<compile_context>
chip_gen: v7x
topology: tpu7x:2x2x1
jax: 0.10.0
libtpu: 0.0.40
codegen_flags: <defaults>
</compile_context>

<pallas_src>
import functools

import numpy as np
import jax
import jax.numpy as jnp
from jax import lax
from jax.experimental import pallas as pl
from jax.experimental.pallas import tpu as pltpu

# ----------------------------------------------------------------------------
# Self-consistent config (the original `config` dict is external; these values
# satisfy the module's own constraint  fc1_in == conv2_out * k2 * k2, which for
# this 16x16 input coincides with the true flatten dim O2*P2*P2).
# ----------------------------------------------------------------------------
config = dict(
    input_C=1, input_H=16, input_W=16,
    conv1_in_channels=1, conv1_out_channels=4, conv1_kernel_size=5,
    pool_kernel_size=2, pool_stride=2,
    conv2_in_channels=4, conv2_out_channels=8, conv2_kernel_size=2,
    fc1_out_features=32, fc2_out_features=16, fc3_out_features=10,
)

_HI = jax.lax.Precision.HIGHEST
_LANE_PAD = 128        # fc3 logits padded to a lane-dense 128-wide output slab


def _cdiv(a, b):
    return -(-a // b)


def _round_up(a, b):
    return _cdiv(a, b) * b


def _dot(a, b):
    return jnp.dot(a, b, precision=_HI, preferred_element_type=jnp.float32)


# ----------------------------------------------------------------------------
# Wrapper-side constant builders (static numpy indices, traced weight values).
# These run ONCE at parameter-load time (prepare_params), not per forward call.
# ----------------------------------------------------------------------------
def conv_as_matmul(w, H, W):
    """Expand (O,C,K,K) conv weights into a dense (C*H*W, O*Ho*Wo) matrix M
    such that  valid_conv2d(x_NCHW, w) flattened channel-major == x_flat @ M."""
    O, C, K, _ = w.shape
    Ho, Wo = H - K + 1, W - K + 1
    rows, cols = [], []
    out_idx = np.arange(Ho)[:, None] * Wo + np.arange(Wo)[None, :]
    for o in range(O):
        for c in range(C):
            for kh in range(K):
                for kw in range(K):
                    in_idx = (c * H * W
                              + (np.arange(Ho)[:, None] + kh) * W
                              + (np.arange(Wo)[None, :] + kw))
                    rows.append(in_idx.ravel())
                    cols.append((o * Ho * Wo + out_idx).ravel())
    rows = np.concatenate(rows)
    cols = np.concatenate(cols)
    vals = jnp.repeat(w.reshape(-1).astype(jnp.float32), Ho * Wo)
    M = jnp.zeros((C * H * W, O * Ho * Wo), jnp.float32)
    return M.at[rows, cols].add(vals)


def pool_col_indices(C, H, W):
    """Static column-index table (4, C*Ho*Wo) for a 2x2/stride-2 floor max-pool
    on channel-major flattened maps: pooled column j at offset k reads conv
    column cols[k, j].  pool(z) == max_k z[:, cols[k]]."""
    Ho, Wo = (H - 2) // 2 + 1, (W - 2) // 2 + 1
    cols = np.zeros((4, C * Ho * Wo), np.int64)
    for k, (dh, dw) in enumerate(((0, 0), (0, 1), (1, 0), (1, 1))):
        for c in range(C):
            for pi in range(Ho):
                for pj in range(Wo):
                    cols[k, c * Ho * Wo + pi * Wo + pj] = (
                        c * H * W + (2 * pi + dh) * W + (2 * pj + dw))
    return cols


def prepare_params(params):
    """One-time expansion of the PyTorch-style parameters into the fused
    operands consumed by the kernel.  Call once at parameter-load time."""
    C, H, W = config['input_C'], config['input_H'], config['input_W']
    O1, K1 = config['conv1_out_channels'], config['conv1_kernel_size']
    O2, K2 = config['conv2_out_channels'], config['conv2_kernel_size']
    F2 = config['fc2_out_features']
    F3 = config['fc3_out_features']

    H1 = W1 = H - K1 + 1
    P1 = (H1 - 2) // 2 + 1
    H2 = W2 = P1 - K2 + 1
    P2 = (H2 - 2) // 2 + 1

    # Conv -> Toeplitz matmul operands.
    m1 = conv_as_matmul(params['w_conv1'], H, W)          # (C*H*W,   O1*H1*W1)
    m2 = conv_as_matmul(params['w_conv2'], P1, P1)        # (O1*P1^2, O2*H2*W2)

    # Fold the max-pool column selections into the conv matrices (exact, since
    # each selection is a 0/1 column pick and ReLU/bias commute with it):
    #   pool(relu(conv(x) + b)) == relu(max_k(x @ M[k]) + b_pooled)
    cols1 = pool_col_indices(O1, H1, W1)                  # (4, O1*P1*P1)
    cols2 = pool_col_indices(O2, H2, W2)                  # (4, O2*P2*P2)
    M1 = jnp.transpose(m1[:, cols1], (1, 0, 2))           # (4, C*H*W,   O1*P1*P1)
    M2 = jnp.transpose(m2[:, cols2], (1, 0, 2))           # (4, O1*P1^2, O2*P2*P2)
    bp1 = jnp.repeat(params['b_conv1'].astype(jnp.float32), P1 * P1).reshape(1, -1)
    bp2 = jnp.repeat(params['b_conv2'].astype(jnp.float32), P2 * P2).reshape(1, -1)

    wf1 = params['w_fc1'].astype(jnp.float32)             # (O2*P2*P2, F1)
    bf1 = params['b_fc1'].reshape(1, -1).astype(jnp.float32)
    wf2 = params['w_fc2'].astype(jnp.float32)             # (F1, F2)
    bf2 = params['b_fc2'].reshape(1, -1).astype(jnp.float32)
    # Pad fc3 to a 128-wide lane-dense output slab (sliced back to F3 later).
    wf3 = jnp.zeros((F2, _LANE_PAD), jnp.float32).at[:, :F3].set(
        params['w_fc3'].astype(jnp.float32))
    bf3 = jnp.zeros((1, _LANE_PAD), jnp.float32).at[:, :F3].set(
        params['b_fc3'].astype(jnp.float32))

    return (M1, bp1, M2, bp2, wf1, bf1, wf2, bf2, wf3, bf3)


# ----------------------------------------------------------------------------
# Fused kernel: (conv1+relu+pool1) + (conv2+relu+pool2) + fc1+relu+fc2+relu+fc3
# One grid step processes a (B, features) batch block entirely on the MXU/VPU.
# ----------------------------------------------------------------------------
def fused_forward_kernel(x_ref, m1_ref, b1_ref, m2_ref, b2_ref,
                         wf1_ref, bf1_ref, wf2_ref, bf2_ref,
                         wf3_ref, bf3_ref, o_ref):
    x = x_ref[...]                                           # (B, C*H*W)

    # Stage 1: conv1 + relu + 2x2 max-pool, fused into 4 matmuls + max.
    h = _dot(x, m1_ref[0])
    for k in range(1, 4):
        h = jnp.maximum(h, _dot(x, m1_ref[k]))
    p = jnp.maximum(h + b1_ref[...], 0.0)                    # (B, O1*P1*P1)

    # Stage 2: conv2 + relu + 2x2 max-pool, fused into 4 matmuls + max.
    h = _dot(p, m2_ref[0])
    for k in range(1, 4):
        h = jnp.maximum(h, _dot(p, m2_ref[k]))
    p = jnp.maximum(h + b2_ref[...], 0.0)                    # (B, O2*P2*P2)

    # MLP head (weights resident in VMEM).
    f = jnp.maximum(_dot(p, wf1_ref[...]) + bf1_ref[...], 0.0)   # (B, F1)
    f = jnp.maximum(_dot(f, wf2_ref[...]) + bf2_ref[...], 0.0)   # (B, F2)
    out = _dot(f, wf3_ref[...]) + bf3_ref[...]                   # (B, 128) lane-dense

    o_ref[...] = out.astype(o_ref.dtype)


# ----------------------------------------------------------------------------
# Full forward (jitted; takes the pre-expanded operands from prepare_params)
# ----------------------------------------------------------------------------
@functools.partial(jax.jit, static_argnames=("block_b",))
def fashion_classifier_forward(x, prepped, block_b=512):
    (M1, bp1, M2, bp2, wf1, bf1, wf2, bf2, wf3, bf3) = prepped

    D_in = M1.shape[1]           # C*H*W
    Dp1 = M1.shape[2]            # O1*P1*P1
    Dp2 = M2.shape[2]            # O2*P2*P2 (== fc1 in_features)
    F1 = wf1.shape[1]
    F2 = wf2.shape[1]
    F3 = config['fc3_out_features']

    N = x.shape[0]
    # torch.reshape(x, [N, C, H, W]) followed by channel-major flatten == the
    # flat row-major input, so x stays a (N, C*H*W) lane-dense slab.
    x = x.reshape(N, D_in).astype(jnp.float32)

    # Batch blocking: cdiv-based block size (no gross padding waste), rounded
    # to the 8-row sublane granule, with an even number of grid steps >= 2 so
    # the "parallel" axis keeps both v7x TensorCores busy (no-op on v5e/v6e).
    n_steps = max(2, _cdiv(N, block_b))
    n_steps += n_steps % 2
    B = _round_up(max(1, _cdiv(N, n_steps)), 8)
    Npad = _round_up(N, B)
    if Npad != N:
        x = jnp.pad(x, ((0, Npad - N), (0, 0)))

    full2 = lambda n: (0, 0)
    full3 = lambda n: (0, 0, 0)

    out = pl.pallas_call(
        fused_forward_kernel,
        out_shape=jax.ShapeDtypeStruct((Npad, _LANE_PAD), jnp.float32),
        grid=(Npad // B,),
        in_specs=[
            pl.BlockSpec((B, D_in), lambda n: (n, 0)),      # x block
            pl.BlockSpec((4, D_in, Dp1), full3),            # fused conv1+pool1 matrices
            pl.BlockSpec((1, Dp1), full2),                  # conv1 bias (pooled layout)
            pl.BlockSpec((4, Dp1, Dp2), full3),             # fused conv2+pool2 matrices
            pl.BlockSpec((1, Dp2), full2),                  # conv2 bias (pooled layout)
            pl.BlockSpec((Dp2, F1), full2),                 # fc1
            pl.BlockSpec((1, F1), full2),
            pl.BlockSpec((F1, F2), full2),                  # fc2
            pl.BlockSpec((1, F2), full2),
            pl.BlockSpec((F2, _LANE_PAD), full2),           # fc3 (padded to 128)
            pl.BlockSpec((1, _LANE_PAD), full2),
        ],
        out_specs=pl.BlockSpec((B, _LANE_PAD), lambda n: (n, 0)),
        compiler_params=pltpu.CompilerParams(
            dimension_semantics=("parallel",)),
    )(x, M1, bp1, M2, bp2, wf1, bf1, wf2, bf2, wf3, bf3)

    return out[:N, :F3]


# ----------------------------------------------------------------------------
# Pure-JAX reference (for correctness check only)
# ----------------------------------------------------------------------------
def reference_forward(x, params):
    N = x.shape[0]
    x = x.reshape(N, config['input_C'], config['input_H'],
                  config['input_W']).astype(jnp.float32)

    def conv(h, w, b):
        y = lax.conv_general_dilated(h, w, (1, 1), 'VALID',
                                     dimension_numbers=('NCHW', 'OIHW', 'NCHW'),
                                     precision=_HI)
        return y + b[None, :, None, None]

    def pool(h):
        return lax.reduce_window(h, -jnp.inf, lax.max,
                                 (1, 1, 2, 2), (1, 1, 2, 2), 'VALID')

    h = pool(jnp.maximum(conv(x, params['w_conv1'], params['b_conv1']), 0.0))
    h = pool(jnp.maximum(conv(h, params['w_conv2'], params['b_conv2']), 0.0))
    h = h.reshape(N, -1)
    h = jnp.maximum(jnp.dot(h, params['w_fc1'], precision=_HI) + params['b_fc1'], 0.0)
    h = jnp.maximum(jnp.dot(h, params['w_fc2'], precision=_HI) + params['b_fc2'], 0.0)
    return jnp.dot(h, params['w_fc3'], precision=_HI) + params['b_fc3']


if __name__ == "__main__":
    key = jax.random.PRNGKey(0)
    ks = jax.random.split(key, 11)

    C1 = config['conv1_in_channels']
    O1 = config['conv1_out_channels']
    K1 = config['conv1_kernel_size']
    C2 = config['conv2_in_channels']
    O2 = config['conv2_out_channels']
    K2 = config['conv2_kernel_size']
    D = O2 * K2 * K2                      # fc1 in_features (== flatten dim here)
    F1 = config['fc1_out_features']
    F2 = config['fc2_out_features']
    F3 = config['fc3_out_features']

    params = {
        'w_conv1': 0.20 * jax.random.normal(ks[0], (O1, C1, K1, K1), jnp.float32),
        'b_conv1': 0.10 * jax.random.normal(ks[1], (O1,), jnp.float32),
        'w_conv2': 0.20 * jax.random.normal(ks[2], (O2, C2, K2, K2), jnp.float32),
        'b_conv2': 0.10 * jax.random.normal(ks[3], (O2,), jnp.float32),
        'w_fc1':   0.20 * jax.random.normal(ks[4], (D, F1), jnp.float32),
        'b_fc1':   0.10 * jax.random.normal(ks[5], (F1,), jnp.float32),
        'w_fc2':   0.20 * jax.random.normal(ks[6], (F1, F2), jnp.float32),
        'b_fc2':   0.10 * jax.random.normal(ks[7], (F2,), jnp.float32),
        'w_fc3':   0.20 * jax.random.normal(ks[8], (F2, F3), jnp.float32),
        'b_fc3':   0.10 * jax.random.normal(ks[9], (F3,), jnp.float32),
    }

    # One-time weight expansion (hoisted out of the per-call jitted path).
    prepped = prepare_params(params)

    feat_dim = config['input_C'] * config['input_H'] * config['input_W']

    # Two checks: tiny batch (spec example) and a batch that exercises a
    # multi-step grid + sublane padding (N=300 -> B=152, grid=2).
    for batch in (2, 300):
        x = jax.random.normal(ks[10], (batch, feat_dim), jnp.float32)
        out = jax.block_until_ready(fashion_classifier_forward(x, prepped))
        ref = reference_forward(x, params)
        assert out.shape == (batch, F3), out.shape
        max_err = float(jnp.max(jnp.abs(out - ref)))
        if not jnp.allclose(out, ref, atol=1e-3, rtol=1e-3):
            raise AssertionError(
                f"Pallas output mismatch vs reference (batch={batch}), max_err={max_err}")

    print("KERNEL_OK")
</pallas_src>

<mosaic_0001>
module attributes {stable_mosaic.version = 11 : i64} {
  func.func @fused_forward_kernel(%arg0: i32, %arg1: memref<8x256xf32, #tpu.memory_space<vmem>>, %arg2: memref<4x256x144xf32, #tpu.memory_space<vmem>>, %arg3: memref<1x144xf32, #tpu.memory_space<vmem>>, %arg4: memref<4x144x32xf32, #tpu.memory_space<vmem>>, %arg5: memref<1x32xf32, #tpu.memory_space<vmem>>, %arg6: memref<32x32xf32, #tpu.memory_space<vmem>>, %arg7: memref<1x32xf32, #tpu.memory_space<vmem>>, %arg8: memref<32x16xf32, #tpu.memory_space<vmem>>, %arg9: memref<1x16xf32, #tpu.memory_space<vmem>>, %arg10: memref<16x128xf32, #tpu.memory_space<vmem>>, %arg11: memref<1x128xf32, #tpu.memory_space<vmem>>, %arg12: memref<8x128xf32, #tpu.memory_space<vmem>>) attributes {dimension_semantics = [#tpu.dimension_semantics<parallel>], iteration_bounds = array<i64: 1>, scalar_prefetch = 0 : i64, scratch_operands = 0 : i64, tpu.core_type = #tpu.core_type<tc>, window_params = [{transform_indices = @transform_0, window_bounds = array<i64: 8, 256>}, {pipeline_mode = #tpu.pipeline_mode<synchronous>, transform_indices = @transform_1, window_bounds = array<i64: 4, 256, 144>}, {pipeline_mode = #tpu.pipeline_mode<synchronous>, transform_indices = @transform_2, window_bounds = array<i64: 1, 144>}, {pipeline_mode = #tpu.pipeline_mode<synchronous>, transform_indices = @transform_3, window_bounds = array<i64: 4, 144, 32>}, {pipeline_mode = #tpu.pipeline_mode<synchronous>, transform_indices = @transform_4, window_bounds = array<i64: 1, 32>}, {pipeline_mode = #tpu.pipeline_mode<synchronous>, transform_indices = @transform_5, window_bounds = array<i64: 32, 32>}, {pipeline_mode = #tpu.pipeline_mode<synchronous>, transform_indices = @transform_6, window_bounds = array<i64: 1, 32>}, {pipeline_mode = #tpu.pipeline_mode<synchronous>, transform_indices = @transform_7, window_bounds = array<i64: 32, 16>}, {pipeline_mode = #tpu.pipeline_mode<synchronous>, transform_indices = @transform_8, window_bounds = array<i64: 1, 16>}, {pipeline_mode = #tpu.pipeline_mode<synchronous>, transform_indices = @transform_9, window_bounds = array<i64: 16, 128>}, {pipeline_mode = #tpu.pipeline_mode<synchronous>, transform_indices = @transform_10, window_bounds = array<i64: 1, 128>}, {transform_indices = @transform_11, window_bounds = array<i64: 8, 128>}]} {
    %c0 = arith.constant 0 : index
    %c0_0 = arith.constant 0 : index
    %0 = vector.load %arg1[%c0, %c0_0] : memref<8x256xf32, #tpu.memory_space<vmem>>, vector<8x256xf32>
    %c0_1 = arith.constant 0 : index
    %c0_2 = arith.constant 0 : index
    %c0_3 = arith.constant 0 : index
    %1 = vector.load %arg2[%c0_1, %c0_2, %c0_3] : memref<4x256x144xf32, #tpu.memory_space<vmem>>, vector<1x256x144xf32>
    %2 = vector.shape_cast %1 : vector<1x256x144xf32> to vector<256x144xf32>
    %cst = arith.constant dense<0.000000e+00> : vector<8x144xf32>
    %3 = tpu.matmul %0, %2, %cst {dimension_numbers = #tpu.dot_dimension_numbers<[1], [0], [0], [1], [0, 0, 1, 1], [], []>, precision = #tpu.contract_precision<fp32>} : vector<8x256xf32>, vector<256x144xf32>, vector<8x144xf32> -> vector<8x144xf32>
    %c1 = arith.constant 1 : index
    %c0_4 = arith.constant 0 : index
    %c0_5 = arith.constant 0 : index
    %4 = vector.load %arg2[%c1, %c0_4, %c0_5] : memref<4x256x144xf32, #tpu.memory_space<vmem>>, vector<1x256x144xf32>
    %5 = vector.shape_cast %4 : vector<1x256x144xf32> to vector<256x144xf32>
    %cst_6 = arith.constant dense<0.000000e+00> : vector<8x144xf32>
    %6 = tpu.matmul %0, %5, %cst_6 {dimension_numbers = #tpu.dot_dimension_numbers<[1], [0], [0], [1], [0, 0, 1, 1], [], []>, precision = #tpu.contract_precision<fp32>} : vector<8x256xf32>, vector<256x144xf32>, vector<8x144xf32> -> vector<8x144xf32>
    %7 = arith.maximumf %3, %6 : vector<8x144xf32>
    %c2 = arith.constant 2 : index
    %c0_7 = arith.constant 0 : index
    %c0_8 = arith.constant 0 : index
    %8 = vector.load %arg2[%c2, %c0_7, %c0_8] : memref<4x256x144xf32, #tpu.memory_space<vmem>>, vector<1x256x144xf32>
    %9 = vector.shape_cast %8 : vector<1x256x144xf32> to vector<256x144xf32>
    %cst_9 = arith.constant dense<0.000000e+00> : vector<8x144xf32>
    %10 = tpu.matmul %0, %9, %cst_9 {dimension_numbers = #tpu.dot_dimension_numbers<[1], [0], [0], [1], [0, 0, 1, 1], [], []>, precision = #tpu.contract_precision<fp32>} : vector<8x256xf32>, vector<256x144xf32>, vector<8x144xf32> -> vector<8x144xf32>
    %11 = arith.maximumf %7, %10 : vector<8x144xf32>
    %c3 = arith.constant 3 : index
    %c0_10 = arith.constant 0 : index
    %c0_11 = arith.constant 0 : index
    %12 = vector.load %arg2[%c3, %c0_10, %c0_11] : memref<4x256x144xf32, #tpu.memory_space<vmem>>, vector<1x256x144xf32>
    %13 = vector.shape_cast %12 : vector<1x256x144xf32> to vector<256x144xf32>
    %cst_12 = arith.constant dense<0.000000e+00> : vector<8x144xf32>
    %14 = tpu.matmul %0, %13, %cst_12 {dimension_numbers = #tpu.dot_dimension_numbers<[1], [0], [0], [1], [0, 0, 1, 1], [], []>, precision = #tpu.contract_precision<fp32>} : vector<8x256xf32>, vector<256x144xf32>, vector<8x144xf32> -> vector<8x144xf32>
    %15 = arith.maximumf %11, %14 : vector<8x144xf32>
    %c0_13 = arith.constant 0 : index
    %c0_14 = arith.constant 0 : index
    %16 = vector.load %arg3[%c0_13, %c0_14] : memref<1x144xf32, #tpu.memory_space<vmem>>, vector<1x144xf32>
    %17 = vector.broadcast %16 : vector<1x144xf32> to vector<8x144xf32>
    %18 = arith.addf %15, %17 : vector<8x144xf32>
    %cst_15 = arith.constant 0.000000e+00 : f32
    %19 = vector.broadcast %cst_15 : f32 to vector<8x144xf32>
    %20 = arith.maximumf %18, %19 : vector<8x144xf32>
    %c0_16 = arith.constant 0 : index
    %c0_17 = arith.constant 0 : index
    %c0_18 = arith.constant 0 : index
    %21 = vector.load %arg4[%c0_16, %c0_17, %c0_18] : memref<4x144x32xf32, #tpu.memory_space<vmem>>, vector<1x144x32xf32>
    %22 = vector.shape_cast %21 : vector<1x144x32xf32> to vector<144x32xf32>
    %cst_19 = arith.constant dense<0.000000e+00> : vector<8x32xf32>
    %23 = tpu.matmul %20, %22, %cst_19 {dimension_numbers = #tpu.dot_dimension_numbers<[1], [0], [0], [1], [0, 0, 1, 1], [], []>, precision = #tpu.contract_precision<fp32>} : vector<8x144xf32>, vector<144x32xf32>, vector<8x32xf32> -> vector<8x32xf32>
    %c1_20 = arith.constant 1 : index
    %c0_21 = arith.constant 0 : index
    %c0_22 = arith.constant 0 : index
    %24 = vector.load %arg4[%c1_20, %c0_21, %c0_22] : memref<4x144x32xf32, #tpu.memory_space<vmem>>, vector<1x144x32xf32>
    %25 = vector.shape_cast %24 : vector<1x144x32xf32> to vector<144x32xf32>
    %cst_23 = arith.constant dense<0.000000e+00> : vector<8x32xf32>
    %26 = tpu.matmul %20, %25, %cst_23 {dimension_numbers = #tpu.dot_dimension_numbers<[1], [0], [0], [1], [0, 0, 1, 1], [], []>, precision = #tpu.contract_precision<fp32>} : vector<8x144xf32>, vector<144x32xf32>, vector<8x32xf32> -> vector<8x32xf32>
    %27 = arith.maximumf %23, %26 : vector<8x32xf32>
    %c2_24 = arith.constant 2 : index
    %c0_25 = arith.constant 0 : index
    %c0_26 = arith.constant 0 : index
    %28 = vector.load %arg4[%c2_24, %c0_25, %c0_26] : memref<4x144x32xf32, #tpu.memory_space<vmem>>, vector<1x144x32xf32>
    %29 = vector.shape_cast %28 : vector<1x144x32xf32> to vector<144x32xf32>
    %cst_27 = arith.constant dense<0.000000e+00> : vector<8x32xf32>
    %30 = tpu.matmul %20, %29, %cst_27 {dimension_numbers = #tpu.dot_dimension_numbers<[1], [0], [0], [1], [0, 0, 1, 1], [], []>, precision = #tpu.contract_precision<fp32>} : vector<8x144xf32>, vector<144x32xf32>, vector<8x32xf32> -> vector<8x32xf32>
    %31 = arith.maximumf %27, %30 : vector<8x32xf32>
    %c3_28 = arith.constant 3 : index
    %c0_29 = arith.constant 0 : index
    %c0_30 = arith.constant 0 : index
    %32 = vector.load %arg4[%c3_28, %c0_29, %c0_30] : memref<4x144x32xf32, #tpu.memory_space<vmem>>, vector<1x144x32xf32>
    %33 = vector.shape_cast %32 : vector<1x144x32xf32> to vector<144x32xf32>
    %cst_31 = arith.constant dense<0.000000e+00> : vector<8x32xf32>
    %34 = tpu.matmul %20, %33, %cst_31 {dimension_numbers = #tpu.dot_dimension_numbers<[1], [0], [0], [1], [0, 0, 1, 1], [], []>, precision = #tpu.contract_precision<fp32>} : vector<8x144xf32>, vector<144x32xf32>, vector<8x32xf32> -> vector<8x32xf32>
    %35 = arith.maximumf %31, %34 : vector<8x32xf32>
    %c0_32 = arith.constant 0 : index
    %c0_33 = arith.constant 0 : index
    %36 = vector.load %arg5[%c0_32, %c0_33] : memref<1x32xf32, #tpu.memory_space<vmem>>, vector<1x32xf32>
    %37 = vector.broadcast %36 : vector<1x32xf32> to vector<8x32xf32>
    %38 = arith.addf %35, %37 : vector<8x32xf32>
    %cst_34 = arith.constant 0.000000e+00 : f32
    %39 = vector.broadcast %cst_34 : f32 to vector<8x32xf32>
    %40 = arith.maximumf %38, %39 : vector<8x32xf32>
    %c0_35 = arith.constant 0 : index
    %c0_36 = arith.constant 0 : index
    %41 = vector.load %arg6[%c0_35, %c0_36] : memref<32x32xf32, #tpu.memory_space<vmem>>, vector<32x32xf32>
    %cst_37 = arith.constant dense<0.000000e+00> : vector<8x32xf32>
    %42 = tpu.matmul %40, %41, %cst_37 {dimension_numbers = #tpu.dot_dimension_numbers<[1], [0], [0], [1], [0, 0, 1, 1], [], []>, precision = #tpu.contract_precision<fp32>} : vector<8x32xf32>, vector<32x32xf32>, vector<8x32xf32> -> vector<8x32xf32>
    %c0_38 = arith.constant 0 : index
    %c0_39 = arith.constant 0 : index
    %43 = vector.load %arg7[%c0_38, %c0_39] : memref<1x32xf32, #tpu.memory_space<vmem>>, vector<1x32xf32>
    %44 = vector.broadcast %43 : vector<1x32xf32> to vector<8x32xf32>
    %45 = arith.addf %42, %44 : vector<8x32xf32>
    %cst_40 = arith.constant 0.000000e+00 : f32
    %46 = vector.broadcast %cst_40 : f32 to vector<8x32xf32>
    %47 = arith.maximumf %45, %46 : vector<8x32xf32>
    %c0_41 = arith.constant 0 : index
    %c0_42 = arith.constant 0 : index
    %48 = vector.load %arg8[%c0_41, %c0_42] : memref<32x16xf32, #tpu.memory_space<vmem>>, vector<32x16xf32>
    %cst_43 = arith.constant dense<0.000000e+00> : vector<8x16xf32>
    %49 = tpu.matmul %47, %48, %cst_43 {dimension_numbers = #tpu.dot_dimension_numbers<[1], [0], [0], [1], [0, 0, 1, 1], [], []>, precision = #tpu.contract_precision<fp32>} : vector<8x32xf32>, vector<32x16xf32>, vector<8x16xf32> -> vector<8x16xf32>
    %c0_44 = arith.constant 0 : index
    %c0_45 = arith.constant 0 : index
    %50 = vector.load %arg9[%c0_44, %c0_45] : memref<1x16xf32, #tpu.memory_space<vmem>>, vector<1x16xf32>
    %51 = vector.broadcast %50 : vector<1x16xf32> to vector<8x16xf32>
    %52 = arith.addf %49, %51 : vector<8x16xf32>
    %cst_46 = arith.constant 0.000000e+00 : f32
    %53 = vector.broadcast %cst_46 : f32 to vector<8x16xf32>
    %54 = arith.maximumf %52, %53 : vector<8x16xf32>
    %c0_47 = arith.constant 0 : index
    %c0_48 = arith.constant 0 : index
    %55 = vector.load %arg10[%c0_47, %c0_48] : memref<16x128xf32, #tpu.memory_space<vmem>>, vector<16x128xf32>
    %cst_49 = arith.constant dense<0.000000e+00> : vector<8x128xf32>
    %56 = tpu.matmul %54, %55, %cst_49 {dimension_numbers = #tpu.dot_dimension_numbers<[1], [0], [0], [1], [0, 0, 1, 1], [], []>, precision = #tpu.contract_precision<fp32>} : vector<8x16xf32>, vector<16x128xf32>, vector<8x128xf32> -> vector<8x128xf32>
    %c0_50 = arith.constant 0 : index
    %c0_51 = arith.constant 0 : index
    %57 = vector.load %arg11[%c0_50, %c0_51] : memref<1x128xf32, #tpu.memory_space<vmem>>, vector<1x128xf32>
    %58 = vector.broadcast %57 : vector<1x128xf32> to vector<8x128xf32>
    %59 = arith.addf %56, %58 : vector<8x128xf32>
    %c0_52 = arith.constant 0 : index
    %c0_53 = arith.constant 0 : index
    %60 = vector.load %arg12[%c0_52, %c0_53] : memref<8x128xf32, #tpu.memory_space<vmem>>, vector<8x128xf32>
    tpu.vector_store %arg12[%c0_52, %c0_53], %59 {strides = array<i32>} : memref<8x128xf32, #tpu.memory_space<vmem>>, vector<8x128xf32>,
    return
  }
  func.func @transform_0(%arg0: i32) -> (i32, i32) {
    %c0_i32 = arith.constant 0 : i32
    %c0_i32_0 = arith.constant 0 : i32
    return %arg0, %c0_i32 : i32, i32
  }
  func.func @transform_1(%arg0: i32) -> (i32, i32, i32) {
    %c0_i32 = arith.constant 0 : i32
    %c0_i32_0 = arith.constant 0 : i32
    %c0_i32_1 = arith.constant 0 : i32
    %c0_i32_2 = arith.constant 0 : i32
    return %c0_i32, %c0_i32_0, %c0_i32_1 : i32, i32, i32
  }
  func.func @transform_2(%arg0: i32) -> (i32, i32) {
    %c0_i32 = arith.constant 0 : i32
    %c0_i32_0 = arith.constant 0 : i32
    %c0_i32_1 = arith.constant 0 : i32
    return %c0_i32, %c0_i32_0 : i32, i32
  }
  func.func @transform_3(%arg0: i32) -> (i32, i32, i32) {
    %c0_i32 = arith.constant 0 : i32
    %c0_i32_0 = arith.constant 0 : i32
    %c0_i32_1 = arith.constant 0 : i32
    %c0_i32_2 = arith.constant 0 : i32
    return %c0_i32, %c0_i32_0, %c0_i32_1 : i32, i32, i32
  }
  func.func @transform_4(%arg0: i32) -> (i32, i32) {
    %c0_i32 = arith.constant 0 : i32
    %c0_i32_0 = arith.constant 0 : i32
    %c0_i32_1 = arith.constant 0 : i32
    return %c0_i32, %c0_i32_0 : i32, i32
  }
  func.func @transform_5(%arg0: i32) -> (i32, i32) {
    %c0_i32 = arith.constant 0 : i32
    %c0_i32_0 = arith.constant 0 : i32
    %c0_i32_1 = arith.constant 0 : i32
    return %c0_i32, %c0_i32_0 : i32, i32
  }
  func.func @transform_6(%arg0: i32) -> (i32, i32) {
    %c0_i32 = arith.constant 0 : i32
    %c0_i32_0 = arith.constant 0 : i32
    %c0_i32_1 = arith.constant 0 : i32
    return %c0_i32, %c0_i32_0 : i32, i32
  }
  func.func @transform_7(%arg0: i32) -> (i32, i32) {
    %c0_i32 = arith.constant 0 : i32
    %c0_i32_0 = arith.constant 0 : i32
    %c0_i32_1 = arith.constant 0 : i32
    return %c0_i32, %c0_i32_0 : i32, i32
  }
  func.func @transform_8(%arg0: i32) -> (i32, i32) {
    %c0_i32 = arith.constant 0 : i32
    %c0_i32_0 = arith.constant 0 : i32
    %c0_i32_1 = arith.constant 0 : i32
    return %c0_i32, %c0_i32_0 : i32, i32
  }
  func.func @transform_9(%arg0: i32) -> (i32, i32) {
    %c0_i32 = arith.constant 0 : i32
    %c0_i32_0 = arith.constant 0 : i32
    %c0_i32_1 = arith.constant 0 : i32
    return %c0_i32, %c0_i32_0 : i32, i32
  }
  func.func @transform_10(%arg0: i32) -> (i32, i32) {
    %c0_i32 = arith.constant 0 : i32
    %c0_i32_0 = arith.constant 0 : i32
    %c0_i32_1 = arith.constant 0 : i32
    return %c0_i32, %c0_i32_0 : i32, i32
  }
  func.func @transform_11(%arg0: i32) -> (i32, i32) {
    %c0_i32 = arith.constant 0 : i32
    %c0_i32_0 = arith.constant 0 : i32
    return %arg0, %c0_i32 : i32, i32
  }
}

</mosaic_0001>

<llo_original>
// kernel: fashion_classifier_forward.1
$region0: #{fashion_classifier_forward.1}
  #allocation0 [shape = 'u32[]', space=smem, size = 0x4, offset = 0x4, fixed_abs, tag = 'smem constant byte address 0x4 - core index']
  #allocation1 [shape = 'u32[144,128]{1,0:T(1,128)}', space=vmem, size = 0x12000, scoped, tag = 'internal scratch']
  %s0 = inlined_call_operand.vmem [shape: f32[8,256], index: 0, kind: input, shape index: {}]
  %s1 = inlined_call_operand.vmem [shape: f32[4,256,144], index: 1, kind: input, shape index: {}]
  %s2 = inlined_call_operand.vmem [shape: f32[1,144], index: 2, kind: input, shape index: {}]
  %s3 = inlined_call_operand.vmem [shape: f32[4,144,32], index: 3, kind: input, shape index: {}]
  %s4 = inlined_call_operand.vmem [shape: f32[1,32], index: 4, kind: input, shape index: {}]
  %s5 = inlined_call_operand.vmem [shape: f32[32,32], index: 5, kind: input, shape index: {}]
  %s6 = inlined_call_operand.vmem [shape: f32[1,32], index: 6, kind: input, shape index: {}]
  %s7 = inlined_call_operand.vmem [shape: f32[32,16], index: 7, kind: input, shape index: {}]
  %s8 = inlined_call_operand.vmem [shape: f32[1,16], index: 8, kind: input, shape index: {}]
  %s9 = inlined_call_operand.vmem [shape: f32[16,128], index: 9, kind: input, shape index: {}]
  %s10 = inlined_call_operand.vmem [shape: f32[1,128], index: 10, kind: input, shape index: {}]
  %s11 = inlined_call_operand.vmem [shape: f32[8,128], index: 11, kind: output, shape index: {}]
  %s12 = sld [smem:[#allocation0]]
  $region54: #{fashion_classifier_forward.1} parent=0
    _
  %s14 = ssub.s32 1, %s12
  %s15 = scalar_select 0, %s14, %s12
  // Predicated region
  $region2: #{fashion_classifier_forward.1} parent=0 // pred_check
    _
  $region3: #{fashion_classifier_forward.1} parent=0 // pred_check_branch
    %17 = sbr.rel (0) target = $region5
  $region4: #{fashion_classifier_forward.1} parent=0 // pred_region
    _
  $region5: #{fashion_classifier_forward.1} parent=0 // pred_fallthru
    _
  // Predicated region
  $region6: #{fashion_classifier_forward.1} parent=0 // pred_check
    _
  $region7: #{fashion_classifier_forward.1} parent=0 // pred_check_branch
    %19 = sbr.rel (0) target = $region9
  $region8: #{fashion_classifier_forward.1} parent=0 // pred_region
    _
  $region9: #{fashion_classifier_forward.1} parent=0 // pred_fallthru
    _
  // Predicated region
  $region10: #{fashion_classifier_forward.1} parent=0 // pred_check
    _
  $region11: #{fashion_classifier_forward.1} parent=0 // pred_check_branch
    %21 = sbr.rel (0) target = $region13
  $region12: #{fashion_classifier_forward.1} parent=0 // pred_region
    _
  $region13: #{fashion_classifier_forward.1} parent=0 // pred_fallthru
    _
  // Predicated region
  $region14: #{fashion_classifier_forward.1} parent=0 // pred_check
    _
  $region15: #{fashion_classifier_forward.1} parent=0 // pred_check_branch
    %23 = sbr.rel (0) target = $region17
  $region16: #{fashion_classifier_forward.1} parent=0 // pred_region
    _
  $region17: #{fashion_classifier_forward.1} parent=0 // pred_fallthru
    _
  // Predicated region
  $region18: #{fashion_classifier_forward.1} parent=0 // pred_check
    _
  $region19: #{fashion_classifier_forward.1} parent=0 // pred_check_branch
    %25 = sbr.rel (0) target = $region21
  $region20: #{fashion_classifier_forward.1} parent=0 // pred_region
    _
  $region21: #{fashion_classifier_forward.1} parent=0 // pred_fallthru
    _
  // Predicated region
  $region22: #{fashion_classifier_forward.1} parent=0 // pred_check
    _
  $region23: #{fashion_classifier_forward.1} parent=0 // pred_check_branch
    %27 = sbr.rel (0) target = $region25
  $region24: #{fashion_classifier_forward.1} parent=0 // pred_region
    _
  $region25: #{fashion_classifier_forward.1} parent=0 // pred_fallthru
    _
  // Predicated region
  $region26: #{fashion_classifier_forward.1} parent=0 // pred_check
    _
  $region27: #{fashion_classifier_forward.1} parent=0 // pred_check_branch
    %29 = sbr.rel (0) target = $region29
  $region28: #{fashion_classifier_forward.1} parent=0 // pred_region
    _
  $region29: #{fashion_classifier_forward.1} parent=0 // pred_fallthru
    _
  // Predicated region
  $region30: #{fashion_classifier_forward.1} parent=0 // pred_check
    _
  $region31: #{fashion_classifier_forward.1} parent=0 // pred_check_branch
    %31 = sbr.rel (0) target = $region33
  $region32: #{fashion_classifier_forward.1} parent=0 // pred_region
    _
  $region33: #{fashion_classifier_forward.1} parent=0 // pred_fallthru
    _
  // Predicated region
  $region34: #{fashion_classifier_forward.1} parent=0 // pred_check
    _
  $region35: #{fashion_classifier_forward.1} parent=0 // pred_check_branch
    %33 = sbr.rel (0) target = $region37
  $region36: #{fashion_classifier_forward.1} parent=0 // pred_region
    _
  $region37: #{fashion_classifier_forward.1} parent=0 // pred_fallthru
    _
  // Predicated region
  $region38: #{fashion_classifier_forward.1} parent=0 // pred_check
    _
  $region39: #{fashion_classifier_forward.1} parent=0 // pred_check_branch
    %35 = sbr.rel (0) target = $region41
  $region40: #{fashion_classifier_forward.1} parent=0 // pred_region
    _
  $region41: #{fashion_classifier_forward.1} parent=0 // pred_fallthru
    _
  // Predicated region
  $region42: #{fashion_classifier_forward.1} parent=0 // pred_check
    _
  $region43: #{fashion_classifier_forward.1} parent=0 // pred_check_branch
    %37 = sbr.rel (0) target = $region45
  $region44: #{fashion_classifier_forward.1} parent=0 // pred_region
    _
  $region45: #{fashion_classifier_forward.1} parent=0 // pred_fallthru
    _
  %v38 = vld [vmem:[%s0] sm:$0xff]
  %v39 = vld [vmem:[%s0 + $0x8] sm:$0xff]
  %v40 = vld [vmem:[%s1] sm:$0xff]
  %v41 = vld [vmem:[%s1 + $0x8] sm:$0xff]
  %v42 = vld [vmem:[%s1 + $0x10] sm:$0xff]
  %v43 = vld [vmem:[%s1 + $0x18] sm:$0xff]
  %v44 = vld [vmem:[%s1 + $0x20] sm:$0xff]
  %v45 = vld [vmem:[%s1 + $0x28] sm:$0xff]
  %v46 = vld [vmem:[%s1 + $0x30] sm:$0xff]
  %v47 = vld [vmem:[%s1 + $0x38] sm:$0xff]
  %v48 = vld [vmem:[%s1 + $0x40] sm:$0xff]
  %v49 = vld [vmem:[%s1 + $0x48] sm:$0xff]
  %v50 = vld [vmem:[%s1 + $0x50] sm:$0xff]
  %v51 = vld [vmem:[%s1 + $0x58] sm:$0xff]
  %v52 = vld [vmem:[%s1 + $0x60] sm:$0xff]
  %v53 = vld [vmem:[%s1 + $0x68] sm:$0xff]
  %v54 = vld [vmem:[%s1 + $0x70] sm:$0xff]
  %v55 = vld [vmem:[%s1 + $0x78] sm:$0xff]
  %v56 = vld [vmem:[%s1 + $0x80] sm:$0xff]
  %v57 = vld [vmem:[%s1 + $0x88] sm:$0xff]
  %v58 = vld [vmem:[%s1 + $0x90] sm:$0xff]
  %v59 = vld [vmem:[%s1 + $0x98] sm:$0xff]
  %v60 = vld [vmem:[%s1 + $0xa0] sm:$0xff]
  %v61 = vld [vmem:[%s1 + $0xa8] sm:$0xff]
  %v62 = vld [vmem:[%s1 + $0xb0] sm:$0xff]
  %v63 = vld [vmem:[%s1 + $0xb8] sm:$0xff]
  %v64 = vld [vmem:[%s1 + $0xc0] sm:$0xff]
  %v65 = vld [vmem:[%s1 + $0xc8] sm:$0xff]
  %v66 = vld [vmem:[%s1 + $0xd0] sm:$0xff]
  %v67 = vld [vmem:[%s1 + $0xd8] sm:$0xff]
  %v68 = vld [vmem:[%s1 + $0xe0] sm:$0xff]
  %v69 = vld [vmem:[%s1 + $0xe8] sm:$0xff]
  %v70 = vld [vmem:[%s1 + $0xf0] sm:$0xff]
  %v71 = vld [vmem:[%s1 + $0xf8] sm:$0xff]
  %v72 = vld [vmem:[%s1 + $0x100] sm:$0xff]
  %v73 = vld [vmem:[%s1 + $0x108] sm:$0xff]
  %v74 = vld [vmem:[%s1 + $0x110] sm:$0xff]
  %v75 = vld [vmem:[%s1 + $0x118] sm:$0xff]
  %v76 = vld [vmem:[%s1 + $0x120] sm:$0xff]
  %v77 = vld [vmem:[%s1 + $0x128] sm:$0xff]
  %v78 = vld [vmem:[%s1 + $0x130] sm:$0xff]
  %v79 = vld [vmem:[%s1 + $0x138] sm:$0xff]
  %v80 = vld [vmem:[%s1 + $0x140] sm:$0xff]
  %v81 = vld [vmem:[%s1 + $0x148] sm:$0xff]
  %v82 = vld [vmem:[%s1 + $0x150] sm:$0xff]
  %v83 = vld [vmem:[%s1 + $0x158] sm:$0xff]
  %v84 = vld [vmem:[%s1 + $0x160] sm:$0xff]
  %v85 = vld [vmem:[%s1 + $0x168] sm:$0xff]
  %v86 = vld [vmem:[%s1 + $0x170] sm:$0xff]
  %v87 = vld [vmem:[%s1 + $0x178] sm:$0xff]
  %v88 = vld [vmem:[%s1 + $0x180] sm:$0xff]
  %v89 = vld [vmem:[%s1 + $0x188] sm:$0xff]
  %v90 = vld [vmem:[%s1 + $0x190] sm:$0xff]
  %v91 = vld [vmem:[%s1 + $0x198] sm:$0xff]
  %v92 = vld [vmem:[%s1 + $0x1a0] sm:$0xff]
  %v93 = vld [vmem:[%s1 + $0x1a8] sm:$0xff]
  %v94 = vld [vmem:[%s1 + $0x1b0] sm:$0xff]
  %v95 = vld [vmem:[%s1 + $0x1b8] sm:$0xff]
  %v96 = vld [vmem:[%s1 + $0x1c0] sm:$0xff]
  %v97 = vld [vmem:[%s1 + $0x1c8] sm:$0xff]
  %v98 = vld [vmem:[%s1 + $0x1d0] sm:$0xff]
  %v99 = vld [vmem:[%s1 + $0x1d8] sm:$0xff]
  %v100 = vld [vmem:[%s1 + $0x1e0] sm:$0xff]
  %v101 = vld [vmem:[%s1 + $0x1e8] sm:$0xff]
  %v102 = vld [vmem:[%s1 + $0x1f0] sm:$0xff]
  %v103 = vld [vmem:[%s1 + $0x1f8] sm:$0xff]
  %v104 = vand.u32 %v41, 4294901760
  %105 = vmatprep.subr.mxu0 %v104
  %v106 = vand.u32 %v40, 4294901760
  %107 = vmatpush1.msra.mxu0 %v106
  %v108 = vand.u32 %v43, 4294901760
  %109 = vmatprep.subr.mxu0 %v108
  %v110 = vand.u32 %v42, 4294901760
  %111 = vmatpush1.msra.mxu0 %v110
  %v112 = vand.u32 %v45, 4294901760
  %113 = vmatprep.subr.mxu0 %v112
  %v114 = vand.u32 %v44, 4294901760
  %115 = vmatpush1.msra.mxu0 %v114
  %v116 = vand.u32 %v47, 4294901760
  %117 = vmatprep.subr.mxu0 %v116
  %v118 = vand.u32 %v46, 4294901760
  %119 = vmatpush1.msra.mxu0 %v118
  %v120 = vand.u32 %v49, 4294901760
  %121 = vmatprep.subr.mxu0 %v120
  %v122 = vand.u32 %v48, 4294901760
  %123 = vmatpush1.msra.mxu0 %v122
  %v124 = vand.u32 %v51, 4294901760
  %125 = vmatprep.subr.mxu0 %v124
  %v126 = vand.u32 %v50, 4294901760
  %127 = vmatpush1.msra.mxu0 %v126
  %v128 = vand.u32 %v53, 4294901760
  %129 = vmatprep.subr.mxu0 %v128
  %v130 = vand.u32 %v52, 4294901760
  %131 = vmatpush1.msra.mxu0 %v130
  %v132 = vand.u32 %v55, 4294901760
  %133 = vmatprep.subr.mxu0 %v132
  %v134 = vand.u32 %v54, 4294901760
  %135 = vmatpush1.msra.mxu0 %v134
  %v136 = vand.u32 %v57, 4294901760
  %137 = vmatprep.subr.mxu0 %v136
  %v138 = vand.u32 %v56, 4294901760
  %139 = vmatpush1.msra.mxu0 %v138
  %v140 = vand.u32 %v59, 4294901760
  %141 = vmatprep.subr.mxu0 %v140
  %v142 = vand.u32 %v58, 4294901760
  %143 = vmatpush1.msra.mxu0 %v142
  %v144 = vand.u32 %v61, 4294901760
  %145 = vmatprep.subr.mxu0 %v144
  %v146 = vand.u32 %v60, 4294901760
  %147 = vmatpush1.msra.mxu0 %v146
  %v148 = vand.u32 %v63, 4294901760
  %149 = vmatprep.subr.mxu0 %v148
  %v150 = vand.u32 %v62, 4294901760
  %151 = vmatpush1.msra.mxu0 %v150
  %v152 = vand.u32 %v65, 4294901760
  %153 = vmatprep.subr.mxu0 %v152
  %v154 = vand.u32 %v64, 4294901760
  %155 = vmatpush1.msra.mxu0 %v154
  %v156 = vand.u32 %v67, 4294901760
  %157 = vmatprep.subr.mxu0 %v156
  %v158 = vand.u32 %v66, 4294901760
  %159 = vmatpush1.msra.mxu0 %v158
  %v160 = vand.u32 %v69, 4294901760
  %161 = vmatprep.subr.mxu0 %v160
  %v162 = vand.u32 %v68, 4294901760
  %163 = vmatpush1.msra.mxu0 %v162
  %v164 = vand.u32 %v71, 4294901760
  %165 = vmatprep.subr.mxu0 %v164
  %v166 = vand.u32 %v70, 4294901760
  %167 = vmatpush1.msra.mxu0 %v166
  %v168 = vand.u32 %v73, 4294901760
  %169 = vmatprep.subr.mxu0 %v168
  %v170 = vand.u32 %v72, 4294901760
  %171 = vmatpush1.msra.mxu0 %v170
  %v172 = vand.u32 %v75, 4294901760
  %173 = vmatprep.subr.mxu0 %v172
  %v174 = vand.u32 %v74, 4294901760
  %175 = vmatpush1.msra.mxu0 %v174
  %v176 = vand.u32 %v77, 4294901760
  %177 = vmatprep.subr.mxu0 %v176
  %v178 = vand.u32 %v76, 4294901760
  %179 = vmatpush1.msra.mxu0 %v178
  %v180 = vand.u32 %v79, 4294901760
  %181 = vmatprep.subr.mxu0 %v180
  %v182 = vand.u32 %v78, 4294901760
  %183 = vmatpush1.msra.mxu0 %v182
  %v184 = vand.u32 %v81, 4294901760
  %185 = vmatprep.subr.mxu0 %v184
  %v186 = vand.u32 %v80, 4294901760
  %187 = vmatpush1.msra.mxu0 %v186
  %v188 = vand.u32 %v83, 4294901760
  %189 = vmatprep.subr.mxu0 %v188
  %v190 = vand.u32 %v82, 4294901760
  %191 = vmatpush1.msra.mxu0 %v190
  %v192 = vand.u32 %v85, 4294901760
  %193 = vmatprep.subr.mxu0 %v192
  %v194 = vand.u32 %v84, 4294901760
  %195 = vmatpush1.msra.mxu0 %v194
  %v196 = vand.u32 %v87, 4294901760
  %197 = vmatprep.subr.mxu0 %v196
  %v198 = vand.u32 %v86, 4294901760
  %199 = vmatpush1.msra.mxu0 %v198
  %v200 = vand.u32 %v89, 4294901760
  %201 = vmatprep.subr.mxu0 %v200
  %v202 = vand.u32 %v88, 4294901760
  %203 = vmatpush1.msra.mxu0 %v202
  %v204 = vand.u32 %v91, 4294901760
  %205 = vmatprep.subr.mxu0 %v204
  %v206 = vand.u32 %v90, 4294901760
  %207 = vmatpush1.msra.mxu0 %v206
  %v208 = vand.u32 %v93, 4294901760
  %209 = vmatprep.subr.mxu0 %v208
  %v210 = vand.u32 %v92, 4294901760
  %211 = vmatpush1.msra.mxu0 %v210
  %v212 = vand.u32 %v95, 4294901760
  %213 = vmatprep.subr.mxu0 %v212
  %v214 = vand.u32 %v94, 4294901760
  %215 = vmatpush1.msra.mxu0 %v214
  %v216 = vand.u32 %v97, 4294901760
  %217 = vmatprep.subr.mxu0 %v216
  %v218 = vand.u32 %v96, 4294901760
  %219 = vmatpush1.msra.mxu0 %v218
  %v220 = vand.u32 %v99, 4294901760
  %221 = vmatprep.subr.mxu0 %v220
  %v222 = vand.u32 %v98, 4294901760
  %223 = vmatpush1.msra.mxu0 %v222
  %v224 = vand.u32 %v101, 4294901760
  %225 = vmatprep.subr.mxu0 %v224
  %v226 = vand.u32 %v100, 4294901760
  %227 = vmatpush1.msra.mxu0 %v226
  %v228 = vand.u32 %v103, 4294901760
  %229 = vmatprep.subr.mxu0 %v228
  %v230 = vand.u32 %v102, 4294901760
  %231 = vmatpush1.msra.mxu0 %v230
  %v232 = vand.u32 %v39, 4294901760
  %v233 = vsub.f32 %v39, %v232
  %v234 = vand.u32 %v233, 4294901760
  %v235 = vsub.f32 %v233, %v234
  %v236 = vand.u32 %v235, 4294901760
  %237 = vmatprep.mubr.f32.mxu0 %v236
  %v238 = vand.u32 %v38, 4294901760
  %v239 = vsub.f32 %v38, %v238
  %v240 = vand.u32 %v239, 4294901760
  %v241 = vsub.f32 %v239, %v240
  %v242 = vand.u32 %v241, 4294901760
  %243 = vmatmul.mubr.f32.gmra.mrb[0].mxu0 %v242
  %v244 = vpop.f32.mrb[0].mxu0
  %v245 = vadd.f32 0.0, %v244
  %v246 = vpop.f32.mrb[0].mxu0
  %v247 = vadd.f32 0.0, %v246
  %248 = vdwg.mxu0
  %v249 = vand.u32 %v41, 4294901760
  %v250 = vsub.f32 %v41, %v249
  %v251 = vand.u32 %v250, 4294901760
  %v252 = vsub.f32 %v250, %v251
  %v253 = vand.u32 %v252, 4294901760
  %254 = vmatprep.subr.mxu0 %v253
  %v255 = vand.u32 %v40, 4294901760
  %v256 = vsub.f32 %v40, %v255
  %v257 = vand.u32 %v256, 4294901760
  %v258 = vsub.f32 %v256, %v257
  %v259 = vand.u32 %v258, 4294901760
  %260 = vmatpush1.msra.mxu0 %v259
  %v261 = vand.u32 %v43, 4294901760
  %v262 = vsub.f32 %v43, %v261
  %v263 = vand.u32 %v262, 4294901760
  %v264 = vsub.f32 %v262, %v263
  %v265 = vand.u32 %v264, 4294901760
  %266 = vmatprep.subr.mxu0 %v265
  %v267 = vand.u32 %v42, 4294901760
  %v268 = vsub.f32 %v42, %v267
  %v269 = vand.u32 %v268, 4294901760
  %v270 = vsub.f32 %v268, %v269
  %v271 = vand.u32 %v270, 4294901760
  %272 = vmatpush1.msra.mxu0 %v271
  %v273 = vand.u32 %v45, 4294901760
  %v274 = vsub.f32 %v45, %v273
  %v275 = vand.u32 %v274, 4294901760
  %v276 = vsub.f32 %v274, %v275
  %v277 = vand.u32 %v276, 4294901760
  %278 = vmatprep.subr.mxu0 %v277
  %v279 = vand.u32 %v44, 4294901760
  %v280 = vsub.f32 %v44, %v279
  %v281 = vand.u32 %v280, 4294901760
  %v282 = vsub.f32 %v280, %v281
  %v283 = vand.u32 %v282, 4294901760
  %284 = vmatpush1.msra.mxu0 %v283
  %v285 = vand.u32 %v47, 4294901760
  %v286 = vsub.f32 %v47, %v285
  %v287 = vand.u32 %v286, 4294901760
  %v288 = vsub.f32 %v286, %v287
  %v289 = vand.u32 %v288, 4294901760
  %290 = vmatprep.subr.mxu0 %v289
  %v291 = vand.u32 %v46, 4294901760
  %v292 = vsub.f32 %v46, %v291
  %v293 = vand.u32 %v292, 4294901760
  %v294 = vsub.f32 %v292, %v293
  %v295 = vand.u32 %v294, 4294901760
  %296 = vmatpush1.msra.mxu0 %v295
  %v297 = vand.u32 %v49, 4294901760
  %v298 = vsub.f32 %v49, %v297
  %v299 = vand.u32 %v298, 4294901760
  %v300 = vsub.f32 %v298, %v299
  %v301 = vand.u32 %v300, 4294901760
  %302 = vmatprep.subr.mxu0 %v301
  %v303 = vand.u32 %v48, 4294901760
  %v304 = vsub.f32 %v48, %v303
  %v305 = vand.u32 %v304, 4294901760
  %v306 = vsub.f32 %v304, %v305
  %v307 = vand.u32 %v306, 4294901760
  %308 = vmatpush1.msra.mxu0 %v307
  %v309 = vand.u32 %v51, 4294901760
  %v310 = vsub.f32 %v51, %v309
  %v311 = vand.u32 %v310, 4294901760
  %v312 = vsub.f32 %v310, %v311
  %v313 = vand.u32 %v312, 4294901760
  %314 = vmatprep.subr.mxu0 %v313
  %v315 = vand.u32 %v50, 4294901760
  %v316 = vsub.f32 %v50, %v315
  %v317 = vand.u32 %v316, 4294901760
  %v318 = vsub.f32 %v316, %v317
  %v319 = vand.u32 %v318, 4294901760
  %320 = vmatpush1.msra.mxu0 %v319
  %v321 = vand.u32 %v53, 4294901760
  %v322 = vsub.f32 %v53, %v321
  %v323 = vand.u32 %v322, 4294901760
  %v324 = vsub.f32 %v322, %v323
  %v325 = vand.u32 %v324, 4294901760
  %326 = vmatprep.subr.mxu0 %v325
  %v327 = vand.u32 %v52, 4294901760
  %v328 = vsub.f32 %v52, %v327
  %v329 = vand.u32 %v328, 4294901760
  %v330 = vsub.f32 %v328, %v329
  %v331 = vand.u32 %v330, 4294901760
  %332 = vmatpush1.msra.mxu0 %v331
  %v333 = vand.u32 %v55, 4294901760
  %v334 = vsub.f32 %v55, %v333
  %v335 = vand.u32 %v334, 4294901760
  %v336 = vsub.f32 %v334, %v335
  %v337 = vand.u32 %v336, 4294901760
  %338 = vmatprep.subr.mxu0 %v337
  %v339 = vand.u32 %v54, 4294901760
  %v340 = vsub.f32 %v54, %v339
  %v341 = vand.u32 %v340, 4294901760
  %v342 = vsub.f32 %v340, %v341
  %v343 = vand.u32 %v342, 4294901760
  %344 = vmatpush1.msra.mxu0 %v343
  %v345 = vand.u32 %v57, 4294901760
  %v346 = vsub.f32 %v57, %v345
  %v347 = vand.u32 %v346, 4294901760
  %v348 = vsub.f32 %v346, %v347
  %v349 = vand.u32 %v348, 4294901760
  %350 = vmatprep.subr.mxu0 %v349
  %v351 = vand.u32 %v56, 4294901760
  %v352 = vsub.f32 %v56, %v351
  %v353 = vand.u32 %v352, 4294901760
  %v354 = vsub.f32 %v352, %v353
  %v355 = vand.u32 %v354, 4294901760
  %356 = vmatpush1.msra.mxu0 %v355
  %v357 = vand.u32 %v59, 4294901760
  %v358 = vsub.f32 %v59, %v357
  %v359 = vand.u32 %v358, 4294901760
  %v360 = vsub.f32 %v358, %v359
  %v361 = vand.u32 %v360, 4294901760
  %362 = vmatprep.subr.mxu0 %v361
  %v363 = vand.u32 %v58, 4294901760
  %v364 = vsub.f32 %v58, %v363
  %v365 = vand.u32 %v364, 4294901760
  %v366 = vsub.f32 %v364, %v365
  %v367 = vand.u32 %v366, 4294901760
  %368 = vmatpush1.msra.mxu0 %v367
  %v369 = vand.u32 %v61, 4294901760
  %v370 = vsub.f32 %v61, %v369
  %v371 = vand.u32 %v370, 4294901760
  %v372 = vsub.f32 %v370, %v371
  %v373 = vand.u32 %v372, 4294901760
  %374 = vmatprep.subr.mxu0 %v373
  %v375 = vand.u32 %v60, 4294901760
  %v376 = vsub.f32 %v60, %v375
  %v377 = vand.u32 %v376, 4294901760
  %v378 = vsub.f32 %v376, %v377
  %v379 = vand.u32 %v378, 4294901760
  %380 = vmatpush1.msra.mxu0 %v379
  %v381 = vand.u32 %v63, 4294901760
  %v382 = vsub.f32 %v63, %v381
  %v383 = vand.u32 %v382, 4294901760
  %v384 = vsub.f32 %v382, %v383
  %v385 = vand.u32 %v384, 4294901760
  %386 = vmatprep.subr.mxu0 %v385
  %v387 = vand.u32 %v62, 4294901760
  %v388 = vsub.f32 %v62, %v387
  %v389 = vand.u32 %v388, 4294901760
  %v390 = vsub.f32 %v388, %v389
  %v391 = vand.u32 %v390, 4294901760
  %392 = vmatpush1.msra.mxu0 %v391
  %v393 = vand.u32 %v65, 4294901760
  %v394 = vsub.f32 %v65, %v393
  %v395 = vand.u32 %v394, 4294901760
  %v396 = vsub.f32 %v394, %v395
  %v397 = vand.u32 %v396, 4294901760
  %398 = vmatprep.subr.mxu0 %v397
  %v399 = vand.u32 %v64, 4294901760
  %v400 = vsub.f32 %v64, %v399
  %v401 = vand.u32 %v400, 4294901760
  %v402 = vsub.f32 %v400, %v401
  %v403 = vand.u32 %v402, 4294901760
  %404 = vmatpush1.msra.mxu0 %v403
  %v405 = vand.u32 %v67, 4294901760
  %v406 = vsub.f32 %v67, %v405
  %v407 = vand.u32 %v406, 4294901760
  %v408 = vsub.f32 %v406, %v407
  %v409 = vand.u32 %v408, 4294901760
  %410 = vmatprep.subr.mxu0 %v409
  %v411 = vand.u32 %v66, 4294901760
  %v412 = vsub.f32 %v66, %v411
  %v413 = vand.u32 %v412, 4294901760
  %v414 = vsub.f32 %v412, %v413
  %v415 = vand.u32 %v414, 4294901760
  %416 = vmatpush1.msra.mxu0 %v415
  %v417 = vand.u32 %v69, 4294901760
  %v418 = vsub.f32 %v69, %v417
  %v419 = vand.u32 %v418, 4294901760
  %v420 = vsub.f32 %v418, %v419
  %v421 = vand.u32 %v420, 4294901760
  %422 = vmatprep.subr.mxu0 %v421
  %v423 = vand.u32 %v68, 4294901760
  %v424 = vsub.f32 %v68, %v423
  %v425 = vand.u32 %v424, 4294901760
  %v426 = vsub.f32 %v424, %v425
  %v427 = vand.u32 %v426, 4294901760
  %428 = vmatpush1.msra.mxu0 %v427
  %v429 = vand.u32 %v71, 4294901760
  %v430 = vsub.f32 %v71, %v429
  %v431 = vand.u32 %v430, 4294901760
  %v432 = vsub.f32 %v430, %v431
  %v433 = vand.u32 %v432, 4294901760
  %434 = vmatprep.subr.mxu0 %v433
  %v435 = vand.u32 %v70, 4294901760
  %v436 = vsub.f32 %v70, %v435
  %v437 = vand.u32 %v436, 4294901760
  %v438 = vsub.f32 %v436, %v437
  %v439 = vand.u32 %v438, 4294901760
  %440 = vmatpush1.msra.mxu0 %v439
  %v441 = vand.u32 %v73, 4294901760
  %v442 = vsub.f32 %v73, %v441
  %v443 = vand.u32 %v442, 4294901760
  %v444 = vsub.f32 %v442, %v443
  %v445 = vand.u32 %v444, 4294901760
  %446 = vmatprep.subr.mxu0 %v445
  %v447 = vand.u32 %v72, 4294901760
  %v448 = vsub.f32 %v72, %v447
  %v449 = vand.u32 %v448, 4294901760
  %v450 = vsub.f32 %v448, %v449
  %v451 = vand.u32 %v450, 4294901760
  %452 = vmatpush1.msra.mxu0 %v451
  %v453 = vand.u32 %v75, 4294901760
  %v454 = vsub.f32 %v75, %v453
  %v455 = vand.u32 %v454, 4294901760
  %v456 = vsub.f32 %v454, %v455
  %v457 = vand.u32 %v456, 4294901760
  %458 = vmatprep.subr.mxu0 %v457
  %v459 = vand.u32 %v74, 4294901760
  %v460 = vsub.f32 %v74, %v459
  %v461 = vand.u32 %v460, 4294901760
  %v462 = vsub.f32 %v460, %v461
  %v463 = vand.u32 %v462, 4294901760
  %464 = vmatpush1.msra.mxu0 %v463
  %v465 = vand.u32 %v77, 4294901760
  %v466 = vsub.f32 %v77, %v465
  %v467 = vand.u32 %v466, 4294901760
  %v468 = vsub.f32 %v466, %v467
  %v469 = vand.u32 %v468, 4294901760
  %470 = vmatprep.subr.mxu0 %v469
  %v471 = vand.u32 %v76, 4294901760
  %v472 = vsub.f32 %v76, %v471
  %v473 = vand.u32 %v472, 4294901760
  %v474 = vsub.f32 %v472, %v473
  %v475 = vand.u32 %v474, 4294901760
  %476 = vmatpush1.msra.mxu0 %v475
  %v477 = vand.u32 %v79, 4294901760
  %v478 = vsub.f32 %v79, %v477
  %v479 = vand.u32 %v478, 4294901760
  %v480 = vsub.f32 %v478, %v479
  %v481 = vand.u32 %v480, 4294901760
  %482 = vmatprep.subr.mxu0 %v481
  %v483 = vand.u32 %v78, 4294901760
  %v484 = vsub.f32 %v78, %v483
  %v485 = vand.u32 %v484, 4294901760
  %v486 = vsub.f32 %v484, %v485
  %v487 = vand.u32 %v486, 4294901760
  %488 = vmatpush1.msra.mxu0 %v487
  %v489 = vand.u32 %v81, 4294901760
  %v490 = vsub.f32 %v81, %v489
  %v491 = vand.u32 %v490, 4294901760
  %v492 = vsub.f32 %v490, %v491
  %v493 = vand.u32 %v492, 4294901760
  %494 = vmatprep.subr.mxu0 %v493
  %v495 = vand.u32 %v80, 4294901760
  %v496 = vsub.f32 %v80, %v495
  %v497 = vand.u32 %v496, 4294901760
  %v498 = vsub.f32 %v496, %v497
  %v499 = vand.u32 %v498, 4294901760
  %500 = vmatpush1.msra.mxu0 %v499
  %v501 = vand.u32 %v83, 4294901760
  %v502 = vsub.f32 %v83, %v501
  %v503 = vand.u32 %v502, 4294901760
  %v504 = vsub.f32 %v502, %v503
  %v505 = vand.u32 %v504, 4294901760
  %506 = vmatprep.subr.mxu0 %v505
  %v507 = vand.u32 %v82, 4294901760
  %v508 = vsub.f32 %v82, %v507
  %v509 = vand.u32 %v508, 4294901760
  %v510 = vsub.f32 %v508, %v509
  %v511 = vand.u32 %v510, 4294901760
  %512 = vmatpush1.msra.mxu0 %v511
  %v513 = vand.u32 %v85, 4294901760
  %v514 = vsub.f32 %v85, %v513
  %v515 = vand.u32 %v514, 4294901760
  %v516 = vsub.f32 %v514, %v515
  %v517 = vand.u32 %v516, 4294901760
  %518 = vmatprep.subr.mxu0 %v517
  %v519 = vand.u32 %v84, 4294901760
  %v520 = vsub.f32 %v84, %v519
  %v521 = vand.u32 %v520, 4294901760
  %v522 = vsub.f32 %v520, %v521
  %v523 = vand.u32 %v522, 4294901760
  %524 = vmatpush1.msra.mxu0 %v523
  %v525 = vand.u32 %v87, 4294901760
  %v526 = vsub.f32 %v87, %v525
  %v527 = vand.u32 %v526, 4294901760
  %v528 = vsub.f32 %v526, %v527
  %v529 = vand.u32 %v528, 4294901760
  %530 = vmatprep.subr.mxu0 %v529
  %v531 = vand.u32 %v86, 4294901760
  %v532 = vsub.f32 %v86, %v531
  %v533 = vand.u32 %v532, 4294901760
  %v534 = vsub.f32 %v532, %v533
  %v535 = vand.u32 %v534, 4294901760
  %536 = vmatpush1.msra.mxu0 %v535
  %v537 = vand.u32 %v89, 4294901760
  %v538 = vsub.f32 %v89, %v537
  %v539 = vand.u32 %v538, 4294901760
  %v540 = vsub.f32 %v538, %v539
  %v541 = vand.u32 %v540, 4294901760
  %542 = vmatprep.subr.mxu0 %v541
  %v543 = vand.u32 %v88, 4294901760
  %v544 = vsub.f32 %v88, %v543
  %v545 = vand.u32 %v544, 4294901760
  %v546 = vsub.f32 %v544, %v545
  %v547 = vand.u32 %v546, 4294901760
  %548 = vmatpush1.msra.mxu0 %v547
  %v549 = vand.u32 %v91, 4294901760
  %v550 = vsub.f32 %v91, %v549
  %v551 = vand.u32 %v550, 4294901760
  %v552 = vsub.f32 %v550, %v551
  %v553 = vand.u32 %v552, 4294901760
  %554 = vmatprep.subr.mxu0 %v553
  %v555 = vand.u32 %v90, 4294901760
  %v556 = vsub.f32 %v90, %v555
  %v557 = vand.u32 %v556, 4294901760
  %v558 = vsub.f32 %v556, %v557
  %v559 = vand.u32 %v558, 4294901760
  %560 = vmatpush1.msra.mxu0 %v559
  %v561 = vand.u32 %v93, 4294901760
  %v562 = vsub.f32 %v93, %v561
  %v563 = vand.u32 %v562, 4294901760
  %v564 = vsub.f32 %v562, %v563
  %v565 = vand.u32 %v564, 4294901760
  %566 = vmatprep.subr.mxu0 %v565
  %v567 = vand.u32 %v92, 4294901760
  %v568 = vsub.f32 %v92, %v567
  %v569 = vand.u32 %v568, 4294901760
  %v570 = vsub.f32 %v568, %v569
  %v571 = vand.u32 %v570, 4294901760
  %572 = vmatpush1.msra.mxu0 %v571
  %v573 = vand.u32 %v95, 4294901760
  %v574 = vsub.f32 %v95, %v573
  %v575 = vand.u32 %v574, 4294901760
  %v576 = vsub.f32 %v574, %v575
  %v577 = vand.u32 %v576, 4294901760
  %578 = vmatprep.subr.mxu0 %v577
  %v579 = vand.u32 %v94, 4294901760
  %v580 = vsub.f32 %v94, %v579
  %v581 = vand.u32 %v580, 4294901760
  %v582 = vsub.f32 %v580, %v581
  %v583 = vand.u32 %v582, 4294901760
  %584 = vmatpush1.msra.mxu0 %v583
  %v585 = vand.u32 %v97, 4294901760
  %v586 = vsub.f32 %v97, %v585
  %v587 = vand.u32 %v586, 4294901760
  %v588 = vsub.f32 %v586, %v587
  %v589 = vand.u32 %v588, 4294901760
  %590 = vmatprep.subr.mxu0 %v589
  %v591 = vand.u32 %v96, 4294901760
  %v592 = vsub.f32 %v96, %v591
  %v593 = vand.u32 %v592, 4294901760
  %v594 = vsub.f32 %v592, %v593
  %v595 = vand.u32 %v594, 4294901760
  %596 = vmatpush1.msra.mxu0 %v595
  %v597 = vand.u32 %v99, 4294901760
  %v598 = vsub.f32 %v99, %v597
  %v599 = vand.u32 %v598, 4294901760
  %v600 = vsub.f32 %v598, %v599
  %v601 = vand.u32 %v600, 4294901760
  %602 = vmatprep.subr.mxu0 %v601
  %v603 = vand.u32 %v98, 4294901760
  %v604 = vsub.f32 %v98, %v603
  %v605 = vand.u32 %v604, 4294901760
  %v606 = vsub.f32 %v604, %v605
  %v607 = vand.u32 %v606, 4294901760
  %608 = vmatpush1.msra.mxu0 %v607
  %v609 = vand.u32 %v101, 4294901760
  %v610 = vsub.f32 %v101, %v609
  %v611 = vand.u32 %v610, 4294901760
  %v612 = vsub.f32 %v610, %v611
  %v613 = vand.u32 %v612, 4294901760
  %614 = vmatprep.subr.mxu0 %v613
  %v615 = vand.u32 %v100, 4294901760
  %v616 = vsub.f32 %v100, %v615
  %v617 = vand.u32 %v616, 4294901760
  %v618 = vsub.f32 %v616, %v617
  %v619 = vand.u32 %v618, 4294901760
  %620 = vmatpush1.msra.mxu0 %v619
  %v621 = vand.u32 %v103, 4294901760
  %v622 = vsub.f32 %v103, %v621
  %v623 = vand.u32 %v622, 4294901760
  %v624 = vsub.f32 %v622, %v623
  %v625 = vand.u32 %v624, 4294901760
  %626 = vmatprep.subr.mxu0 %v625
  %v627 = vand.u32 %v102, 4294901760
  %v628 = vsub.f32 %v102, %v627
  %v629 = vand.u32 %v628, 4294901760
  %v630 = vsub.f32 %v628, %v629
  %v631 = vand.u32 %v630, 4294901760
  %632 = vmatpush1.msra.mxu0 %v631
  %v633 = vand.u32 %v39, 4294901760
  %634 = vmatprep.mubr.f32.mxu0 %v633
  %v635 = vand.u32 %v38, 4294901760
  %636 = vmatmul.mubr.f32.gmra.mrb[0].mxu0 %v635
  %v637 = vpop.f32.mrb[0].mxu0
  %v638 = vadd.f32 %v245, %v637
  %v639 = vpop.f32.mrb[0].mxu0
  %v640 = vadd.f32 %v247, %v639
  %641 = vdwg.mxu0
  %v642 = vand.u32 %v41, 4294901760
  %v643 = vsub.f32 %v41, %v642
  %644 = vmatprep.subr.mxu0 %v643
  %v645 = vand.u32 %v40, 4294901760
  %v646 = vsub.f32 %v40, %v645
  %647 = vmatpush1.msra.mxu0 %v646
  %v648 = vand.u32 %v43, 4294901760
  %v649 = vsub.f32 %v43, %v648
  %650 = vmatprep.subr.mxu0 %v649
  %v651 = vand.u32 %v42, 4294901760
  %v652 = vsub.f32 %v42, %v651
  %653 = vmatpush1.msra.mxu0 %v652
  %v654 = vand.u32 %v45, 4294901760
  %v655 = vsub.f32 %v45, %v654
  %656 = vmatprep.subr.mxu0 %v655
  %v657 = vand.u32 %v44, 4294901760
  %v658 = vsub.f32 %v44, %v657
  %659 = vmatpush1.msra.mxu0 %v658
  %v660 = vand.u32 %v47, 4294901760
  %v661 = vsub.f32 %v47, %v660
  %662 = vmatprep.subr.mxu0 %v661
  %v663 = vand.u32 %v46, 4294901760
  %v664 = vsub.f32 %v46, %v663
  %665 = vmatpush1.msra.mxu0 %v664
  %v666 = vand.u32 %v49, 4294901760
  %v667 = vsub.f32 %v49, %v666
  %668 = vmatprep.subr.mxu0 %v667
  %v669 = vand.u32 %v48, 4294901760
  %v670 = vsub.f32 %v48, %v669
  %671 = vmatpush1.msra.mxu0 %v670
  %v672 = vand.u32 %v51, 4294901760
  %v673 = vsub.f32 %v51, %v672
  %674 = vmatprep.subr.mxu0 %v673
  %v675 = vand.u32 %v50, 4294901760
  %v676 = vsub.f32 %v50, %v675
  %677 = vmatpush1.msra.mxu0 %v676
  %v678 = vand.u32 %v53, 4294901760
  %v679 = vsub.f32 %v53, %v678
  %680 = vmatprep.subr.mxu0 %v679
  %v681 = vand.u32 %v52, 4294901760
  %v682 = vsub.f32 %v52, %v681
  %683 = vmatpush1.msra.mxu0 %v682
  %v684 = vand.u32 %v55, 4294901760
  %v685 = vsub.f32 %v55, %v684
  %686 = vmatprep.subr.mxu0 %v685
  %v687 = vand.u32 %v54, 4294901760
  %v688 = vsub.f32 %v54, %v687
  %689 = vmatpush1.msra.mxu0 %v688
  %v690 = vand.u32 %v57, 4294901760
  %v691 = vsub.f32 %v57, %v690
  %692 = vmatprep.subr.mxu0 %v691
  %v693 = vand.u32 %v56, 4294901760
  %v694 = vsub.f32 %v56, %v693
  %695 = vmatpush1.msra.mxu0 %v694
  %v696 = vand.u32 %v59, 4294901760
  %v697 = vsub.f32 %v59, %v696
  %698 = vmatprep.subr.mxu0 %v697
  %v699 = vand.u32 %v58, 4294901760
  %v700 = vsub.f32 %v58, %v699
  %701 = vmatpush1.msra.mxu0 %v700
  %v702 = vand.u32 %v61, 4294901760
  %v703 = vsub.f32 %v61, %v702
  %704 = vmatprep.subr.mxu0 %v703
  %v705 = vand.u32 %v60, 4294901760
  %v706 = vsub.f32 %v60, %v705
  %707 = vmatpush1.msra.mxu0 %v706
  %v708 = vand.u32 %v63, 4294901760
  %v709 = vsub.f32 %v63, %v708
  %710 = vmatprep.subr.mxu0 %v709
  %v711 = vand.u32 %v62, 4294901760
  %v712 = vsub.f32 %v62, %v711
  %713 = vmatpush1.msra.mxu0 %v712
  %v714 = vand.u32 %v65, 4294901760
  %v715 = vsub.f32 %v65, %v714
  %716 = vmatprep.subr.mxu0 %v715
  %v717 = vand.u32 %v64, 4294901760
  %v718 = vsub.f32 %v64, %v717
  %719 = vmatpush1.msra.mxu0 %v718
  %v720 = vand.u32 %v67, 4294901760
  %v721 = vsub.f32 %v67, %v720
  %722 = vmatprep.subr.mxu0 %v721
  %v723 = vand.u32 %v66, 4294901760
  %v724 = vsub.f32 %v66, %v723
  %725 = vmatpush1.msra.mxu0 %v724
  %v726 = vand.u32 %v69, 4294901760
  %v727 = vsub.f32 %v69, %v726
  %728 = vmatprep.subr.mxu0 %v727
  %v729 = vand.u32 %v68, 4294901760
  %v730 = vsub.f32 %v68, %v729
  %731 = vmatpush1.msra.mxu0 %v730
  %v732 = vand.u32 %v71, 4294901760
  %v733 = vsub.f32 %v71, %v732
  %734 = vmatprep.subr.mxu0 %v733
  %v735 = vand.u32 %v70, 4294901760
  %v736 = vsub.f32 %v70, %v735
  %737 = vmatpush1.msra.mxu0 %v736
  %v738 = vand.u32 %v73, 4294901760
  %v739 = vsub.f32 %v73, %v738
  %740 = vmatprep.subr.mxu0 %v739
  %v741 = vand.u32 %v72, 4294901760
  %v742 = vsub.f32 %v72, %v741
  %743 = vmatpush1.msra.mxu0 %v742
  %v744 = vand.u32 %v75, 4294901760
  %v745 = vsub.f32 %v75, %v744
  %746 = vmatprep.subr.mxu0 %v745
  %v747 = vand.u32 %v74, 4294901760
  %v748 = vsub.f32 %v74, %v747
  %749 = vmatpush1.msra.mxu0 %v748
  %v750 = vand.u32 %v77, 4294901760
  %v751 = vsub.f32 %v77, %v750
  %752 = vmatprep.subr.mxu0 %v751
  %v753 = vand.u32 %v76, 4294901760
  %v754 = vsub.f32 %v76, %v753
  %755 = vmatpush1.msra.mxu0 %v754
  %v756 = vand.u32 %v79, 4294901760
  %v757 = vsub.f32 %v79, %v756
  %758 = vmatprep.subr.mxu0 %v757
  %v759 = vand.u32 %v78, 4294901760
  %v760 = vsub.f32 %v78, %v759
  %761 = vmatpush1.msra.mxu0 %v760
  %v762 = vand.u32 %v81, 4294901760
  %v763 = vsub.f32 %v81, %v762
  %764 = vmatprep.subr.mxu0 %v763
  %v765 = vand.u32 %v80, 4294901760
  %v766 = vsub.f32 %v80, %v765
  %767 = vmatpush1.msra.mxu0 %v766
  %v768 = vand.u32 %v83, 4294901760
  %v769 = vsub.f32 %v83, %v768
  %770 = vmatprep.subr.mxu0 %v769
  %v771 = vand.u32 %v82, 4294901760
  %v772 = vsub.f32 %v82, %v771
  %773 = vmatpush1.msra.mxu0 %v772
  %v774 = vand.u32 %v85, 4294901760
  %v775 = vsub.f32 %v85, %v774
  %776 = vmatprep.subr.mxu0 %v775
  %v777 = vand.u32 %v84, 4294901760
  %v778 = vsub.f32 %v84, %v777
  %779 = vmatpush1.msra.mxu0 %v778
  %v780 = vand.u32 %v87, 4294901760
  %v781 = vsub.f32 %v87, %v780
  %782 = vmatprep.subr.mxu0 %v781
  %v783 = vand.u32 %v86, 4294901760
  %v784 = vsub.f32 %v86, %v783
  %785 = vmatpush1.msra.mxu0 %v784
  %v786 = vand.u32 %v89, 4294901760
  %v787 = vsub.f32 %v89, %v786
  %788 = vmatprep.subr.mxu0 %v787
  %v789 = vand.u32 %v88, 4294901760
  %v790 = vsub.f32 %v88, %v789
  %791 = vmatpush1.msra.mxu0 %v790
  %v792 = vand.u32 %v91, 4294901760
  %v793 = vsub.f32 %v91, %v792
  %794 = vmatprep.subr.mxu0 %v793
  %v795 = vand.u32 %v90, 4294901760
  %v796 = vsub.f32 %v90, %v795
  %797 = vmatpush1.msra.mxu0 %v796
  %v798 = vand.u32 %v93, 4294901760
  %v799 = vsub.f32 %v93, %v798
  %800 = vmatprep.subr.mxu0 %v799
  %v801 = vand.u32 %v92, 4294901760
  %v802 = vsub.f32 %v92, %v801
  %803 = vmatpush1.msra.mxu0 %v802
  %v804 = vand.u32 %v95, 4294901760
  %v805 = vsub.f32 %v95, %v804
  %806 = vmatprep.subr.mxu0 %v805
  %v807 = vand.u32 %v94, 4294901760
  %v808 = vsub.f32 %v94, %v807
  %809 = vmatpush1.msra.mxu0 %v808
  %v810 = vand.u32 %v97, 4294901760
  %v811 = vsub.f32 %v97, %v810
  %812 = vmatprep.subr.mxu0 %v811
  %v813 = vand.u32 %v96, 4294901760
  %v814 = vsub.f32 %v96, %v813
  %815 = vmatpush1.msra.mxu0 %v814
  %v816 = vand.u32 %v99, 4294901760
  %v817 = vsub.f32 %v99, %v816
  %818 = vmatprep.subr.mxu0 %v817
  %v819 = vand.u32 %v98, 4294901760
  %v820 = vsub.f32 %v98, %v819
  %821 = vmatpush1.msra.mxu0 %v820
  %v822 = vand.u32 %v101, 4294901760
  %v823 = vsub.f32 %v101, %v822
  %824 = vmatprep.subr.mxu0 %v823
  %v825 = vand.u32 %v100, 4294901760
  %v826 = vsub.f32 %v100, %v825
  %827 = vmatpush1.msra.mxu0 %v826
  %v828 = vand.u32 %v103, 4294901760
  %v829 = vsub.f32 %v103, %v828
  %830 = vmatprep.subr.mxu0 %v829
  %v831 = vand.u32 %v102, 4294901760
  %v832 = vsub.f32 %v102, %v831
  %833 = vmatpush1.msra.mxu0 %v832
  %v834 = vand.u32 %v39, 4294901760
  %v835 = vsub.f32 %v39, %v834
  %836 = vmatprep.mubr.f32.mxu0 %v835
  %v837 = vand.u32 %v38, 4294901760
  %v838 = vsub.f32 %v38, %v837
  %839 = vmatmul.mubr.f32.gmra.mrb[0].mxu0 %v838
  %v840 = vpop.f32.mrb[0].mxu0
  %v841 = vadd.f32 %v638, %v840
  %v842 = vpop.f32.mrb[0].mxu0
  %v843 = vadd.f32 %v640, %v842
  %844 = vdwg.mxu0
  %v845 = vand.u32 %v41, 4294901760
  %846 = vmatprep.subr.mxu0 %v845
  %v847 = vand.u32 %v40, 4294901760
  %848 = vmatpush1.msra.mxu0 %v847
  %v849 = vand.u32 %v43, 4294901760
  %850 = vmatprep.subr.mxu0 %v849
  %v851 = vand.u32 %v42, 4294901760
  %852 = vmatpush1.msra.mxu0 %v851
  %v853 = vand.u32 %v45, 4294901760
  %854 = vmatprep.subr.mxu0 %v853
  %v855 = vand.u32 %v44, 4294901760
  %856 = vmatpush1.msra.mxu0 %v855
  %v857 = vand.u32 %v47, 4294901760
  %858 = vmatprep.subr.mxu0 %v857
  %v859 = vand.u32 %v46, 4294901760
  %860 = vmatpush1.msra.mxu0 %v859
  %v861 = vand.u32 %v49, 4294901760
  %862 = vmatprep.subr.mxu0 %v861
  %v863 = vand.u32 %v48, 4294901760
  %864 = vmatpush1.msra.mxu0 %v863
  %v865 = vand.u32 %v51, 4294901760
  %866 = vmatprep.subr.mxu0 %v865
  %v867 = vand.u32 %v50, 4294901760
  %868 = vmatpush1.msra.mxu0 %v867
  %v869 = vand.u32 %v53, 4294901760
  %870 = vmatprep.subr.mxu0 %v869
  %v871 = vand.u32 %v52, 4294901760
  %872 = vmatpush1.msra.mxu0 %v871
  %v873 = vand.u32 %v55, 4294901760
  %874 = vmatprep.subr.mxu0 %v873
  %v875 = vand.u32 %v54, 4294901760
  %876 = vmatpush1.msra.mxu0 %v875
  %v877 = vand.u32 %v57, 4294901760
  %878 = vmatprep.subr.mxu0 %v877
  %v879 = vand.u32 %v56, 4294901760
  %880 = vmatpush1.msra.mxu0 %v879
  %v881 = vand.u32 %v59, 4294901760
  %882 = vmatprep.subr.mxu0 %v881
  %v883 = vand.u32 %v58, 4294901760
  %884 = vmatpush1.msra.mxu0 %v883
  %v885 = vand.u32 %v61, 4294901760
  %886 = vmatprep.subr.mxu0 %v885
  %v887 = vand.u32 %v60, 4294901760
  %888 = vmatpush1.msra.mxu0 %v887
  %v889 = vand.u32 %v63, 4294901760
  %890 = vmatprep.subr.mxu0 %v889
  %v891 = vand.u32 %v62, 4294901760
  %892 = vmatpush1.msra.mxu0 %v891
  %v893 = vand.u32 %v65, 4294901760
  %894 = vmatprep.subr.mxu0 %v893
  %v895 = vand.u32 %v64, 4294901760
  %896 = vmatpush1.msra.mxu0 %v895
  %v897 = vand.u32 %v67, 4294901760
  %898 = vmatprep.subr.mxu0 %v897
  %v899 = vand.u32 %v66, 4294901760
  %900 = vmatpush1.msra.mxu0 %v899
  %v901 = vand.u32 %v69, 4294901760
  %902 = vmatprep.subr.mxu0 %v901
  %v903 = vand.u32 %v68, 4294901760
  %904 = vmatpush1.msra.mxu0 %v903
  %v905 = vand.u32 %v71, 4294901760
  %906 = vmatprep.subr.mxu0 %v905
  %v907 = vand.u32 %v70, 4294901760
  %908 = vmatpush1.msra.mxu0 %v907
  %v909 = vand.u32 %v73, 4294901760
  %910 = vmatprep.subr.mxu0 %v909
  %v911 = vand.u32 %v72, 4294901760
  %912 = vmatpush1.msra.mxu0 %v911
  %v913 = vand.u32 %v75, 4294901760
  %914 = vmatprep.subr.mxu0 %v913
  %v915 = vand.u32 %v74, 4294901760
  %916 = vmatpush1.msra.mxu0 %v915
  %v917 = vand.u32 %v77, 4294901760
  %918 = vmatprep.subr.mxu0 %v917
  %v919 = vand.u32 %v76, 4294901760
  %920 = vmatpush1.msra.mxu0 %v919
  %v921 = vand.u32 %v79, 4294901760
  %922 = vmatprep.subr.mxu0 %v921
  %v923 = vand.u32 %v78, 4294901760
  %924 = vmatpush1.msra.mxu0 %v923
  %v925 = vand.u32 %v81, 4294901760
  %926 = vmatprep.subr.mxu0 %v925
  %v927 = vand.u32 %v80, 4294901760
  %928 = vmatpush1.msra.mxu0 %v927
  %v929 = vand.u32 %v83, 4294901760
  %930 = vmatprep.subr.mxu0 %v929
  %v931 = vand.u32 %v82, 4294901760
  %932 = vmatpush1.msra.mxu0 %v931
  %v933 = vand.u32 %v85, 4294901760
  %934 = vmatprep.subr.mxu0 %v933
  %v935 = vand.u32 %v84, 4294901760
  %936 = vmatpush1.msra.mxu0 %v935
  %v937 = vand.u32 %v87, 4294901760
  %938 = vmatprep.subr.mxu0 %v937
  %v939 = vand.u32 %v86, 4294901760
  %940 = vmatpush1.msra.mxu0 %v939
  %v941 = vand.u32 %v89, 4294901760
  %942 = vmatprep.subr.mxu0 %v941
  %v943 = vand.u32 %v88, 4294901760
  %944 = vmatpush1.msra.mxu0 %v943
  %v945 = vand.u32 %v91, 4294901760
  %946 = vmatprep.subr.mxu0 %v945
  %v947 = vand.u32 %v90, 4294901760
  %948 = vmatpush1.msra.mxu0 %v947
  %v949 = vand.u32 %v93, 4294901760
  %950 = vmatprep.subr.mxu0 %v949
  %v951 = vand.u32 %v92, 4294901760
  %952 = vmatpush1.msra.mxu0 %v951
  %v953 = vand.u32 %v95, 4294901760
  %954 = vmatprep.subr.mxu0 %v953
  %v955 = vand.u32 %v94, 4294901760
  %956 = vmatpush1.msra.mxu0 %v955
  %v957 = vand.u32 %v97, 4294901760
  %958 = vmatprep.subr.mxu0 %v957
  %v959 = vand.u32 %v96, 4294901760
  %960 = vmatpush1.msra.mxu0 %v959
  %v961 = vand.u32 %v99, 4294901760
  %962 = vmatprep.subr.mxu0 %v961
  %v963 = vand.u32 %v98, 4294901760
  %964 = vmatpush1.msra.mxu0 %v963
  %v965 = vand.u32 %v101, 4294901760
  %966 = vmatprep.subr.mxu0 %v965
  %v967 = vand.u32 %v100, 4294901760
  %968 = vmatpush1.msra.mxu0 %v967
  %v969 = vand.u32 %v103, 4294901760
  %970 = vmatprep.subr.mxu0 %v969
  %v971 = vand.u32 %v102, 4294901760
  %972 = vmatpush1.msra.mxu0 %v971
  %v973 = vand.u32 %v39, 4294901760
  %v974 = vsub.f32 %v39, %v973
  %v975 = vand.u32 %v974, 4294901760
  %976 = vmatprep.mubr.f32.mxu0 %v975
  %v977 = vand.u32 %v38, 4294901760
  %v978 = vsub.f32 %v38, %v977
  %v979 = vand.u32 %v978, 4294901760
  %980 = vmatmul.mubr.f32.gmra.mrb[0].mxu0 %v979
  %v981 = vpop.f32.mrb[0].mxu0
  %v982 = vadd.f32 %v841, %v981
  %v983 = vpop.f32.mrb[0].mxu0
  %v984 = vadd.f32 %v843, %v983
  %985 = vdwg.mxu0
  %v986 = vand.u32 %v41, 4294901760
  %v987 = vsub.f32 %v41, %v986
  %v988 = vand.u32 %v987, 4294901760
  %989 = vmatprep.subr.mxu0 %v988
  %v990 = vand.u32 %v40, 4294901760
  %v991 = vsub.f32 %v40, %v990
  %v992 = vand.u32 %v991, 4294901760
  %993 = vmatpush1.msra.mxu0 %v992
  %v994 = vand.u32 %v43, 4294901760
  %v995 = vsub.f32 %v43, %v994
  %v996 = vand.u32 %v995, 4294901760
  %997 = vmatprep.subr.mxu0 %v996
  %v998 = vand.u32 %v42, 4294901760
  %v999 = vsub.f32 %v42, %v998
  %v1000 = vand.u32 %v999, 4294901760
  %1001 = vmatpush1.msra.mxu0 %v1000
  %v1002 = vand.u32 %v45, 4294901760
  %v1003 = vsub.f32 %v45, %v1002
  %v1004 = vand.u32 %v1003, 4294901760
  %1005 = vmatprep.subr.mxu0 %v1004
  %v1006 = vand.u32 %v44, 4294901760
  %v1007 = vsub.f32 %v44, %v1006
  %v1008 = vand.u32 %v1007, 4294901760
  %1009 = vmatpush1.msra.mxu0 %v1008
  %v1010 = vand.u32 %v47, 4294901760
  %v1011 = vsub.f32 %v47, %v1010
  %v1012 = vand.u32 %v1011, 4294901760
  %1013 = vmatprep.subr.mxu0 %v1012
  %v1014 = vand.u32 %v46, 4294901760
  %v1015 = vsub.f32 %v46, %v1014
  %v1016 = vand.u32 %v1015, 4294901760
  %1017 = vmatpush1.msra.mxu0 %v1016
  %v1018 = vand.u32 %v49, 4294901760
  %v1019 = vsub.f32 %v49, %v1018
  %v1020 = vand.u32 %v1019, 4294901760
  %1021 = vmatprep.subr.mxu0 %v1020
  %v1022 = vand.u32 %v48, 4294901760
  %v1023 = vsub.f32 %v48, %v1022
  %v1024 = vand.u32 %v1023, 4294901760
  %1025 = vmatpush1.msra.mxu0 %v1024
  %v1026 = vand.u32 %v51, 4294901760
  %v1027 = vsub.f32 %v51, %v1026
  %v1028 = vand.u32 %v1027, 4294901760
  %1029 = vmatprep.subr.mxu0 %v1028
  %v1030 = vand.u32 %v50, 4294901760
  %v1031 = vsub.f32 %v50, %v1030
  %v1032 = vand.u32 %v1031, 4294901760
  %1033 = vmatpush1.msra.mxu0 %v1032
  %v1034 = vand.u32 %v53, 4294901760
  %v1035 = vsub.f32 %v53, %v1034
  %v1036 = vand.u32 %v1035, 4294901760
  %1037 = vmatprep.subr.mxu0 %v1036
  %v1038 = vand.u32 %v52, 4294901760
  %v1039 = vsub.f32 %v52, %v1038
  %v1040 = vand.u32 %v1039, 4294901760
  %1041 = vmatpush1.msra.mxu0 %v1040
  %v1042 = vand.u32 %v55, 4294901760
  %v1043 = vsub.f32 %v55, %v1042
  %v1044 = vand.u32 %v1043, 4294901760
  %1045 = vmatprep.subr.mxu0 %v1044
  %v1046 = vand.u32 %v54, 4294901760
  %v1047 = vsub.f32 %v54, %v1046
  %v1048 = vand.u32 %v1047, 4294901760
  %1049 = vmatpush1.msra.mxu0 %v1048
  %v1050 = vand.u32 %v57, 4294901760
  %v1051 = vsub.f32 %v57, %v1050
  %v1052 = vand.u32 %v1051, 4294901760
  %1053 = vmatprep.subr.mxu0 %v1052
  %v1054 = vand.u32 %v56, 4294901760
  %v1055 = vsub.f32 %v56, %v1054
  %v1056 = vand.u32 %v1055, 4294901760
  %1057 = vmatpush1.msra.mxu0 %v1056
  %v1058 = vand.u32 %v59, 4294901760
  %v1059 = vsub.f32 %v59, %v1058
  %v1060 = vand.u32 %v1059, 4294901760
  %1061 = vmatprep.subr.mxu0 %v1060
  %v1062 = vand.u32 %v58, 4294901760
  %v1063 = vsub.f32 %v58, %v1062
  %v1064 = vand.u32 %v1063, 4294901760
  %1065 = vmatpush1.msra.mxu0 %v1064
  %v1066 = vand.u32 %v61, 4294901760
  %v1067 = vsub.f32 %v61, %v1066
  %v1068 = vand.u32 %v1067, 4294901760
  %1069 = vmatprep.subr.mxu0 %v1068
  %v1070 = vand.u32 %v60, 4294901760
  %v1071 = vsub.f32 %v60, %v1070
  %v1072 = vand.u32 %v1071, 4294901760
  %1073 = vmatpush1.msra.mxu0 %v1072
  %v1074 = vand.u32 %v63, 4294901760
  %v1075 = vsub.f32 %v63, %v1074
  %v1076 = vand.u32 %v1075, 4294901760
  %1077 = vmatprep.subr.mxu0 %v1076
  %v1078 = vand.u32 %v62, 4294901760
  %v1079 = vsub.f32 %v62, %v1078
  %v1080 = vand.u32 %v1079, 4294901760
  %1081 = vmatpush1.msra.mxu0 %v1080
  %v1082 = vand.u32 %v65, 4294901760
  %v1083 = vsub.f32 %v65, %v1082
  %v1084 = vand.u32 %v1083, 4294901760
  %1085 = vmatprep.subr.mxu0 %v1084
  %v1086 = vand.u32 %v64, 4294901760
  %v1087 = vsub.f32 %v64, %v1086
  %v1088 = vand.u32 %v1087, 4294901760
  %1089 = vmatpush1.msra.mxu0 %v1088
  %v1090 = vand.u32 %v67, 4294901760
  %v1091 = vsub.f32 %v67, %v1090
  %v1092 = vand.u32 %v1091, 4294901760
  %1093 = vmatprep.subr.mxu0 %v1092
  %v1094 = vand.u32 %v66, 4294901760
  %v1095 = vsub.f32 %v66, %v1094
  %v1096 = vand.u32 %v1095, 4294901760
  %1097 = vmatpush1.msra.mxu0 %v1096
  %v1098 = vand.u32 %v69, 4294901760
  %v1099 = vsub.f32 %v69, %v1098
  %v1100 = vand.u32 %v1099, 4294901760
  %1101 = vmatprep.subr.mxu0 %v1100
  %v1102 = vand.u32 %v68, 4294901760
  %v1103 = vsub.f32 %v68, %v1102
  %v1104 = vand.u32 %v1103, 4294901760
  %1105 = vmatpush1.msra.mxu0 %v1104
  %v1106 = vand.u32 %v71, 4294901760
  %v1107 = vsub.f32 %v71, %v1106
  %v1108 = vand.u32 %v1107, 4294901760
  %1109 = vmatprep.subr.mxu0 %v1108
  %v1110 = vand.u32 %v70, 4294901760
  %v1111 = vsub.f32 %v70, %v1110
  %v1112 = vand.u32 %v1111, 4294901760
  %1113 = vmatpush1.msra.mxu0 %v1112
  %v1114 = vand.u32 %v73, 4294901760
  %v1115 = vsub.f32 %v73, %v1114
  %v1116 = vand.u32 %v1115, 4294901760
  %1117 = vmatprep.subr.mxu0 %v1116
  %v1118 = vand.u32 %v72, 4294901760
  %v1119 = vsub.f32 %v72, %v1118
  %v1120 = vand.u32 %v1119, 4294901760
  %1121 = vmatpush1.msra.mxu0 %v1120
  %v1122 = vand.u32 %v75, 4294901760
  %v1123 = vsub.f32 %v75, %v1122
  %v1124 = vand.u32 %v1123, 4294901760
  %1125 = vmatprep.subr.mxu0 %v1124
  %v1126 = vand.u32 %v74, 4294901760
  %v1127 = vsub.f32 %v74, %v1126
  %v1128 = vand.u32 %v1127, 4294901760
  %1129 = vmatpush1.msra.mxu0 %v1128
  %v1130 = vand.u32 %v77, 4294901760
  %v1131 = vsub.f32 %v77, %v1130
  %v1132 = vand.u32 %v1131, 4294901760
  %1133 = vmatprep.subr.mxu0 %v1132
  %v1134 = vand.u32 %v76, 4294901760
  %v1135 = vsub.f32 %v76, %v1134
  %v1136 = vand.u32 %v1135, 4294901760
  %1137 = vmatpush1.msra.mxu0 %v1136
  %v1138 = vand.u32 %v79, 4294901760
  %v1139 = vsub.f32 %v79, %v1138
  %v1140 = vand.u32 %v1139, 4294901760
  %1141 = vmatprep.subr.mxu0 %v1140
  %v1142 = vand.u32 %v78, 4294901760
  %v1143 = vsub.f32 %v78, %v1142
  %v1144 = vand.u32 %v1143, 4294901760
  %1145 = vmatpush1.msra.mxu0 %v1144
  %v1146 = vand.u32 %v81, 4294901760
  %v1147 = vsub.f32 %v81, %v1146
  %v1148 = vand.u32 %v1147, 4294901760
  %1149 = vmatprep.subr.mxu0 %v1148
  %v1150 = vand.u32 %v80, 4294901760
  %v1151 = vsub.f32 %v80, %v1150
  %v1152 = vand.u32 %v1151, 4294901760
  %1153 = vmatpush1.msra.mxu0 %v1152
  %v1154 = vand.u32 %v83, 4294901760
  %v1155 = vsub.f32 %v83, %v1154
  %v1156 = vand.u32 %v1155, 4294901760
  %1157 = vmatprep.subr.mxu0 %v1156
  %v1158 = vand.u32 %v82, 4294901760
  %v1159 = vsub.f32 %v82, %v1158
  %v1160 = vand.u32 %v1159, 4294901760
  %1161 = vmatpush1.msra.mxu0 %v1160
  %v1162 = vand.u32 %v85, 4294901760
  %v1163 = vsub.f32 %v85, %v1162
  %v1164 = vand.u32 %v1163, 4294901760
  %1165 = vmatprep.subr.mxu0 %v1164
  %v1166 = vand.u32 %v84, 4294901760
  %v1167 = vsub.f32 %v84, %v1166
  %v1168 = vand.u32 %v1167, 4294901760
  %1169 = vmatpush1.msra.mxu0 %v1168
  %v1170 = vand.u32 %v87, 4294901760
  %v1171 = vsub.f32 %v87, %v1170
  %v1172 = vand.u32 %v1171, 4294901760
  %1173 = vmatprep.subr.mxu0 %v1172
  %v1174 = vand.u32 %v86, 4294901760
  %v1175 = vsub.f32 %v86, %v1174
  %v1176 = vand.u32 %v1175, 4294901760
  %1177 = vmatpush1.msra.mxu0 %v1176
  %v1178 = vand.u32 %v89, 4294901760
  %v1179 = vsub.f32 %v89, %v1178
  %v1180 = vand.u32 %v1179, 4294901760
  %1181 = vmatprep.subr.mxu0 %v1180
  %v1182 = vand.u32 %v88, 4294901760
  %v1183 = vsub.f32 %v88, %v1182
  %v1184 = vand.u32 %v1183, 4294901760
  %1185 = vmatpush1.msra.mxu0 %v1184
  %v1186 = vand.u32 %v91, 4294901760
  %v1187 = vsub.f32 %v91, %v1186
  %v1188 = vand.u32 %v1187, 4294901760
  %1189 = vmatprep.subr.mxu0 %v1188
  %v1190 = vand.u32 %v90, 4294901760
  %v1191 = vsub.f32 %v90, %v1190
  %v1192 = vand.u32 %v1191, 4294901760
  %1193 = vmatpush1.msra.mxu0 %v1192
  %v1194 = vand.u32 %v93, 4294901760
  %v1195 = vsub.f32 %v93, %v1194
  %v1196 = vand.u32 %v1195, 4294901760
  %1197 = vmatprep.subr.mxu0 %v1196
  %v1198 = vand.u32 %v92, 4294901760
  %v1199 = vsub.f32 %v92, %v1198
  %v1200 = vand.u32 %v1199, 4294901760
  %1201 = vmatpush1.msra.mxu0 %v1200
  %v1202 = vand.u32 %v95, 4294901760
  %v1203 = vsub.f32 %v95, %v1202
  %v1204 = vand.u32 %v1203, 4294901760
  %1205 = vmatprep.subr.mxu0 %v1204
  %v1206 = vand.u32 %v94, 4294901760
  %v1207 = vsub.f32 %v94, %v1206
  %v1208 = vand.u32 %v1207, 4294901760
  %1209 = vmatpush1.msra.mxu0 %v1208
  %v1210 = vand.u32 %v97, 4294901760
  %v1211 = vsub.f32 %v97, %v1210
  %v1212 = vand.u32 %v1211, 4294901760
  %1213 = vmatprep.subr.mxu0 %v1212
  %v1214 = vand.u32 %v96, 4294901760
  %v1215 = vsub.f32 %v96, %v1214
  %v1216 = vand.u32 %v1215, 4294901760
  %1217 = vmatpush1.msra.mxu0 %v1216
  %v1218 = vand.u32 %v99, 4294901760
  %v1219 = vsub.f32 %v99, %v1218
  %v1220 = vand.u32 %v1219, 4294901760
  %1221 = vmatprep.subr.mxu0 %v1220
  %v1222 = vand.u32 %v98, 4294901760
  %v1223 = vsub.f32 %v98, %v1222
  %v1224 = vand.u32 %v1223, 4294901760
  %1225 = vmatpush1.msra.mxu0 %v1224
  %v1226 = vand.u32 %v101, 4294901760
  %v1227 = vsub.f32 %v101, %v1226
  %v1228 = vand.u32 %v1227, 4294901760
  %1229 = vmatprep.subr.mxu0 %v1228
  %v1230 = vand.u32 %v100, 4294901760
  %v1231 = vsub.f32 %v100, %v1230
  %v1232 = vand.u32 %v1231, 4294901760
  %1233 = vmatpush1.msra.mxu0 %v1232
  %v1234 = vand.u32 %v103, 4294901760
  %v1235 = vsub.f32 %v103, %v1234
  %v1236 = vand.u32 %v1235, 4294901760
  %1237 = vmatprep.subr.mxu0 %v1236
  %v1238 = vand.u32 %v102, 4294901760
  %v1239 = vsub.f32 %v102, %v1238
  %v1240 = vand.u32 %v1239, 4294901760
  %1241 = vmatpush1.msra.mxu0 %v1240
  %v1242 = vand.u32 %v39, 4294901760
  %1243 = vmatprep.mubr.f32.mxu0 %v1242
  %v1244 = vand.u32 %v38, 4294901760
  %1245 = vmatmul.mubr.f32.gmra.mrb[0].mxu0 %v1244
  %v1246 = vpop.f32.mrb[0].mxu0
  %v1247 = vadd.f32 %v982, %v1246
  %v1248 = vpop.f32.mrb[0].mxu0
  %v1249 = vadd.f32 %v984, %v1248
  %1250 = vdwg.mxu0
  %v1251 = vand.u32 %v41, 4294901760
  %1252 = vmatprep.subr.mxu0 %v1251
  %v1253 = vand.u32 %v40, 4294901760
  %1254 = vmatpush1.msra.mxu0 %v1253
  %v1255 = vand.u32 %v43, 4294901760
  %1256 = vmatprep.subr.mxu0 %v1255
  %v1257 = vand.u32 %v42, 4294901760
  %1258 = vmatpush1.msra.mxu0 %v1257
  %v1259 = vand.u32 %v45, 4294901760
  %1260 = vmatprep.subr.mxu0 %v1259
  %v1261 = vand.u32 %v44, 4294901760
  %1262 = vmatpush1.msra.mxu0 %v1261
  %v1263 = vand.u32 %v47, 4294901760
  %1264 = vmatprep.subr.mxu0 %v1263
  %v1265 = vand.u32 %v46, 4294901760
  %1266 = vmatpush1.msra.mxu0 %v1265
  %v1267 = vand.u32 %v49, 4294901760
  %1268 = vmatprep.subr.mxu0 %v1267
  %v1269 = vand.u32 %v48, 4294901760
  %1270 = vmatpush1.msra.mxu0 %v1269
  %v1271 = vand.u32 %v51, 4294901760
  %1272 = vmatprep.subr.mxu0 %v1271
  %v1273 = vand.u32 %v50, 4294901760
  %1274 = vmatpush1.msra.mxu0 %v1273
  %v1275 = vand.u32 %v53, 4294901760
  %1276 = vmatprep.subr.mxu0 %v1275
  %v1277 = vand.u32 %v52, 4294901760
  %1278 = vmatpush1.msra.mxu0 %v1277
  %v1279 = vand.u32 %v55, 4294901760
  %1280 = vmatprep.subr.mxu0 %v1279
  %v1281 = vand.u32 %v54, 4294901760
  %1282 = vmatpush1.msra.mxu0 %v1281
  %v1283 = vand.u32 %v57, 4294901760
  %1284 = vmatprep.subr.mxu0 %v1283
  %v1285 = vand.u32 %v56, 4294901760
  %1286 = vmatpush1.msra.mxu0 %v1285
  %v1287 = vand.u32 %v59, 4294901760
  %1288 = vmatprep.subr.mxu0 %v1287
  %v1289 = vand.u32 %v58, 4294901760
  %1290 = vmatpush1.msra.mxu0 %v1289
  %v1291 = vand.u32 %v61, 4294901760
  %1292 = vmatprep.subr.mxu0 %v1291
  %v1293 = vand.u32 %v60, 4294901760
  %1294 = vmatpush1.msra.mxu0 %v1293
  %v1295 = vand.u32 %v63, 4294901760
  %1296 = vmatprep.subr.mxu0 %v1295
  %v1297 = vand.u32 %v62, 4294901760
  %1298 = vmatpush1.msra.mxu0 %v1297
  %v1299 = vand.u32 %v65, 4294901760
  %1300 = vmatprep.subr.mxu0 %v1299
  %v1301 = vand.u32 %v64, 4294901760
  %1302 = vmatpush1.msra.mxu0 %v1301
  %v1303 = vand.u32 %v67, 4294901760
  %1304 = vmatprep.subr.mxu0 %v1303
  %v1305 = vand.u32 %v66, 4294901760
  %1306 = vmatpush1.msra.mxu0 %v1305
  %v1307 = vand.u32 %v69, 4294901760
  %1308 = vmatprep.subr.mxu0 %v1307
  %v1309 = vand.u32 %v68, 4294901760
  %1310 = vmatpush1.msra.mxu0 %v1309
  %v1311 = vand.u32 %v71, 4294901760
  %1312 = vmatprep.subr.mxu0 %v1311
  %v1313 = vand.u32 %v70, 4294901760
  %1314 = vmatpush1.msra.mxu0 %v1313
  %v1315 = vand.u32 %v73, 4294901760
  %1316 = vmatprep.subr.mxu0 %v1315
  %v1317 = vand.u32 %v72, 4294901760
  %1318 = vmatpush1.msra.mxu0 %v1317
  %v1319 = vand.u32 %v75, 4294901760
  %1320 = vmatprep.subr.mxu0 %v1319
  %v1321 = vand.u32 %v74, 4294901760
  %1322 = vmatpush1.msra.mxu0 %v1321
  %v1323 = vand.u32 %v77, 4294901760
  %1324 = vmatprep.subr.mxu0 %v1323
  %v1325 = vand.u32 %v76, 4294901760
  %1326 = vmatpush1.msra.mxu0 %v1325
  %v1327 = vand.u32 %v79, 4294901760
  %1328 = vmatprep.subr.mxu0 %v1327
  %v1329 = vand.u32 %v78, 4294901760
  %1330 = vmatpush1.msra.mxu0 %v1329
  %v1331 = vand.u32 %v81, 4294901760
  %1332 = vmatprep.subr.mxu0 %v1331
  %v1333 = vand.u32 %v80, 4294901760
  %1334 = vmatpush1.msra.mxu0 %v1333
  %v1335 = vand.u32 %v83, 4294901760
  %1336 = vmatprep.subr.mxu0 %v1335
  %v1337 = vand.u32 %v82, 4294901760
  %1338 = vmatpush1.msra.mxu0 %v1337
  %v1339 = vand.u32 %v85, 4294901760
  %1340 = vmatprep.subr.mxu0 %v1339
  %v1341 = vand.u32 %v84, 4294901760
  %1342 = vmatpush1.msra.mxu0 %v1341
  %v1343 = vand.u32 %v87, 4294901760
  %1344 = vmatprep.subr.mxu0 %v1343
  %v1345 = vand.u32 %v86, 4294901760
  %1346 = vmatpush1.msra.mxu0 %v1345
  %v1347 = vand.u32 %v89, 4294901760
  %1348 = vmatprep.subr.mxu0 %v1347
  %v1349 = vand.u32 %v88, 4294901760
  %1350 = vmatpush1.msra.mxu0 %v1349
  %v1351 = vand.u32 %v91, 4294901760
  %1352 = vmatprep.subr.mxu0 %v1351
  %v1353 = vand.u32 %v90, 4294901760
  %1354 = vmatpush1.msra.mxu0 %v1353
  %v1355 = vand.u32 %v93, 4294901760
  %1356 = vmatprep.subr.mxu0 %v1355
  %v1357 = vand.u32 %v92, 4294901760
  %1358 = vmatpush1.msra.mxu0 %v1357
  %v1359 = vand.u32 %v95, 4294901760
  %1360 = vmatprep.subr.mxu0 %v1359
  %v1361 = vand.u32 %v94, 4294901760
  %1362 = vmatpush1.msra.mxu0 %v1361
  %v1363 = vand.u32 %v97, 4294901760
  %1364 = vmatprep.subr.mxu0 %v1363
  %v1365 = vand.u32 %v96, 4294901760
  %1366 = vmatpush1.msra.mxu0 %v1365
  %v1367 = vand.u32 %v99, 4294901760
  %1368 = vmatprep.subr.mxu0 %v1367
  %v1369 = vand.u32 %v98, 4294901760
  %1370 = vmatpush1.msra.mxu0 %v1369
  %v1371 = vand.u32 %v101, 4294901760
  %1372 = vmatprep.subr.mxu0 %v1371
  %v1373 = vand.u32 %v100, 4294901760
  %1374 = vmatpush1.msra.mxu0 %v1373
  %v1375 = vand.u32 %v103, 4294901760
  %1376 = vmatprep.subr.mxu0 %v1375
  %v1377 = vand.u32 %v102, 4294901760
  %1378 = vmatpush1.msra.mxu0 %v1377
  %v1379 = vand.u32 %v39, 4294901760
  %1380 = vmatprep.mubr.f32.mxu0 %v1379
  %v1381 = vand.u32 %v38, 4294901760
  %1382 = vmatmul.mubr.f32.gmra.mrb[0].mxu0 %v1381
  %v1383 = vpop.f32.mrb[0].mxu0
  %v1384 = vadd.f32 %v1247, %v1383
  %v1385 = vpop.f32.mrb[0].mxu0
  %v1386 = vadd.f32 %v1249, %v1385
  %1387 = vdwg.mxu0
  %s1388 = scalar_lea.vmem %s1, 512
  %v1389 = vld [vmem:[%s1388] sm:$0xff]
  %v1390 = vld [vmem:[%s1388 + $0x8] sm:$0xff]
  %v1391 = vld [vmem:[%s1388 + $0x10] sm:$0xff]
  %v1392 = vld [vmem:[%s1388 + $0x18] sm:$0xff]
  %v1393 = vld [vmem:[%s1388 + $0x20] sm:$0xff]
  %v1394 = vld [vmem:[%s1388 + $0x28] sm:$0xff]
  %v1395 = vld [vmem:[%s1388 + $0x30] sm:$0xff]
  %v1396 = vld [vmem:[%s1388 + $0x38] sm:$0xff]
  %v1397 = vld [vmem:[%s1388 + $0x40] sm:$0xff]
  %v1398 = vld [vmem:[%s1388 + $0x48] sm:$0xff]
  %v1399 = vld [vmem:[%s1388 + $0x50] sm:$0xff]
  %v1400 = vld [vmem:[%s1388 + $0x58] sm:$0xff]
  %v1401 = vld [vmem:[%s1388 + $0x60] sm:$0xff]
  %v1402 = vld [vmem:[%s1388 + $0x68] sm:$0xff]
  %v1403 = vld [vmem:[%s1388 + $0x70] sm:$0xff]
  %v1404 = vld [vmem:[%s1388 + $0x78] sm:$0xff]
  %v1405 = vld [vmem:[%s1388 + $0x80] sm:$0xff]
  %v1406 = vld [vmem:[%s1388 + $0x88] sm:$0xff]
  %v1407 = vld [vmem:[%s1388 + $0x90] sm:$0xff]
  %v1408 = vld [vmem:[%s1388 + $0x98] sm:$0xff]
  %v1409 = vld [vmem:[%s1388 + $0xa0] sm:$0xff]
  %v1410 = vld [vmem:[%s1388 + $0xa8] sm:$0xff]
  %v1411 = vld [vmem:[%s1388 + $0xb0] sm:$0xff]
  %v1412 = vld [vmem:[%s1388 + $0xb8] sm:$0xff]
  %v1413 = vld [vmem:[%s1388 + $0xc0] sm:$0xff]
  %v1414 = vld [vmem:[%s1388 + $0xc8] sm:$0xff]
  %v1415 = vld [vmem:[%s1388 + $0xd0] sm:$0xff]
  %v1416 = vld [vmem:[%s1388 + $0xd8] sm:$0xff]
  %v1417 = vld [vmem:[%s1388 + $0xe0] sm:$0xff]
  %v1418 = vld [vmem:[%s1388 + $0xe8] sm:$0xff]
  %v1419 = vld [vmem:[%s1388 + $0xf0] sm:$0xff]
  %v1420 = vld [vmem:[%s1388 + $0xf8] sm:$0xff]
  %v1421 = vld [vmem:[%s1388 + $0x100] sm:$0xff]
  %v1422 = vld [vmem:[%s1388 + $0x108] sm:$0xff]
  %v1423 = vld [vmem:[%s1388 + $0x110] sm:$0xff]
  %v1424 = vld [vmem:[%s1388 + $0x118] sm:$0xff]
  %v1425 = vld [vmem:[%s1388 + $0x120] sm:$0xff]
  %v1426 = vld [vmem:[%s1388 + $0x128] sm:$0xff]
  %v1427 = vld [vmem:[%s1388 + $0x130] sm:$0xff]
  %v1428 = vld [vmem:[%s1388 + $0x138] sm:$0xff]
  %v1429 = vld [vmem:[%s1388 + $0x140] sm:$0xff]
  %v1430 = vld [vmem:[%s1388 + $0x148] sm:$0xff]
  %v1431 = vld [vmem:[%s1388 + $0x150] sm:$0xff]
  %v1432 = vld [vmem:[%s1388 + $0x158] sm:$0xff]
  %v1433 = vld [vmem:[%s1388 + $0x160] sm:$0xff]
  %v1434 = vld [vmem:[%s1388 + $0x168] sm:$0xff]
  %v1435 = vld [vmem:[%s1388 + $0x170] sm:$0xff]
  %v1436 = vld [vmem:[%s1388 + $0x178] sm:$0xff]
  %v1437 = vld [vmem:[%s1388 + $0x180] sm:$0xff]
  %v1438 = vld [vmem:[%s1388 + $0x188] sm:$0xff]
  %v1439 = vld [vmem:[%s1388 + $0x190] sm:$0xff]
  %v1440 = vld [vmem:[%s1388 + $0x198] sm:$0xff]
  %v1441 = vld [vmem:[%s1388 + $0x1a0] sm:$0xff]
  %v1442 = vld [vmem:[%s1388 + $0x1a8] sm:$0xff]
  %v1443 = vld [vmem:[%s1388 + $0x1b0] sm:$0xff]
  %v1444 = vld [vmem:[%s1388 + $0x1b8] sm:$0xff]
  %v1445 = vld [vmem:[%s1388 + $0x1c0] sm:$0xff]
  %v1446 = vld [vmem:[%s1388 + $0x1c8] sm:$0xff]
  %v1447 = vld [vmem:[%s1388 + $0x1d0] sm:$0xff]
  %v1448 = vld [vmem:[%s1388 + $0x1d8] sm:$0xff]
  %v1449 = vld [vmem:[%s1388 + $0x1e0] sm:$0xff]
  %v1450 = vld [vmem:[%s1388 + $0x1e8] sm:$0xff]
  %v1451 = vld [vmem:[%s1388 + $0x1f0] sm:$0xff]
  %v1452 = vld [vmem:[%s1388 + $0x1f8] sm:$0xff]
  %v1453 = vand.u32 %v1390, 4294901760
  %1454 = vmatprep.subr.mxu0 %v1453
  %v1455 = vand.u32 %v1389, 4294901760
  %1456 = vmatpush1.msra.mxu0 %v1455
  %v1457 = vand.u32 %v1392, 4294901760
  %1458 = vmatprep.subr.mxu0 %v1457
  %v1459 = vand.u32 %v1391, 4294901760
  %1460 = vmatpush1.msra.mxu0 %v1459
  %v1461 = vand.u32 %v1394, 4294901760
  %1462 = vmatprep.subr.mxu0 %v1461
  %v1463 = vand.u32 %v1393, 4294901760
  %1464 = vmatpush1.msra.mxu0 %v1463
  %v1465 = vand.u32 %v1396, 4294901760
  %1466 = vmatprep.subr.mxu0 %v1465
  %v1467 = vand.u32 %v1395, 4294901760
  %1468 = vmatpush1.msra.mxu0 %v1467
  %v1469 = vand.u32 %v1398, 4294901760
  %1470 = vmatprep.subr.mxu0 %v1469
  %v1471 = vand.u32 %v1397, 4294901760
  %1472 = vmatpush1.msra.mxu0 %v1471
  %v1473 = vand.u32 %v1400, 4294901760
  %1474 = vmatprep.subr.mxu0 %v1473
  %v1475 = vand.u32 %v1399, 4294901760
  %1476 = vmatpush1.msra.mxu0 %v1475
  %v1477 = vand.u32 %v1402, 4294901760
  %1478 = vmatprep.subr.mxu0 %v1477
  %v1479 = vand.u32 %v1401, 4294901760
  %1480 = vmatpush1.msra.mxu0 %v1479
  %v1481 = vand.u32 %v1404, 4294901760
  %1482 = vmatprep.subr.mxu0 %v1481
  %v1483 = vand.u32 %v1403, 4294901760
  %1484 = vmatpush1.msra.mxu0 %v1483
  %v1485 = vand.u32 %v1406, 4294901760
  %1486 = vmatprep.subr.mxu0 %v1485
  %v1487 = vand.u32 %v1405, 4294901760
  %1488 = vmatpush1.msra.mxu0 %v1487
  %v1489 = vand.u32 %v1408, 4294901760
  %1490 = vmatprep.subr.mxu0 %v1489
  %v1491 = vand.u32 %v1407, 4294901760
  %1492 = vmatpush1.msra.mxu0 %v1491
  %v1493 = vand.u32 %v1410, 4294901760
  %1494 = vmatprep.subr.mxu0 %v1493
  %v1495 = vand.u32 %v1409, 4294901760
  %1496 = vmatpush1.msra.mxu0 %v1495
  %v1497 = vand.u32 %v1412, 4294901760
  %1498 = vmatprep.subr.mxu0 %v1497
  %v1499 = vand.u32 %v1411, 4294901760
  %1500 = vmatpush1.msra.mxu0 %v1499
  %v1501 = vand.u32 %v1414, 4294901760
  %1502 = vmatprep.subr.mxu0 %v1501
  %v1503 = vand.u32 %v1413, 4294901760
  %1504 = vmatpush1.msra.mxu0 %v1503
  %v1505 = vand.u32 %v1416, 4294901760
  %1506 = vmatprep.subr.mxu0 %v1505
  %v1507 = vand.u32 %v1415, 4294901760
  %1508 = vmatpush1.msra.mxu0 %v1507
  %v1509 = vand.u32 %v1418, 4294901760
  %1510 = vmatprep.subr.mxu0 %v1509
  %v1511 = vand.u32 %v1417, 4294901760
  %1512 = vmatpush1.msra.mxu0 %v1511
  %v1513 = vand.u32 %v1420, 4294901760
  %1514 = vmatprep.subr.mxu0 %v1513
  %v1515 = vand.u32 %v1419, 4294901760
  %1516 = vmatpush1.msra.mxu0 %v1515
  %v1517 = vand.u32 %v1422, 4294901760
  %1518 = vmatprep.subr.mxu0 %v1517
  %v1519 = vand.u32 %v1421, 4294901760
  %1520 = vmatpush1.msra.mxu0 %v1519
  %v1521 = vand.u32 %v1424, 4294901760
  %1522 = vmatprep.subr.mxu0 %v1521
  %v1523 = vand.u32 %v1423, 4294901760
  %1524 = vmatpush1.msra.mxu0 %v1523
  %v1525 = vand.u32 %v1426, 4294901760
  %1526 = vmatprep.subr.mxu0 %v1525
  %v1527 = vand.u32 %v1425, 4294901760
  %1528 = vmatpush1.msra.mxu0 %v1527
  %v1529 = vand.u32 %v1428, 4294901760
  %1530 = vmatprep.subr.mxu0 %v1529
  %v1531 = vand.u32 %v1427, 4294901760
  %1532 = vmatpush1.msra.mxu0 %v1531
  %v1533 = vand.u32 %v1430, 4294901760
  %1534 = vmatprep.subr.mxu0 %v1533
  %v1535 = vand.u32 %v1429, 4294901760
  %1536 = vmatpush1.msra.mxu0 %v1535
  %v1537 = vand.u32 %v1432, 4294901760
  %1538 = vmatprep.subr.mxu0 %v1537
  %v1539 = vand.u32 %v1431, 4294901760
  %1540 = vmatpush1.msra.mxu0 %v1539
  %v1541 = vand.u32 %v1434, 4294901760
  %1542 = vmatprep.subr.mxu0 %v1541
  %v1543 = vand.u32 %v1433, 4294901760
  %1544 = vmatpush1.msra.mxu0 %v1543
  %v1545 = vand.u32 %v1436, 4294901760
  %1546 = vmatprep.subr.mxu0 %v1545
  %v1547 = vand.u32 %v1435, 4294901760
  %1548 = vmatpush1.msra.mxu0 %v1547
  %v1549 = vand.u32 %v1438, 4294901760
  %1550 = vmatprep.subr.mxu0 %v1549
  %v1551 = vand.u32 %v1437, 4294901760
  %1552 = vmatpush1.msra.mxu0 %v1551
  %v1553 = vand.u32 %v1440, 4294901760
  %1554 = vmatprep.subr.mxu0 %v1553
  %v1555 = vand.u32 %v1439, 4294901760
  %1556 = vmatpush1.msra.mxu0 %v1555
  %v1557 = vand.u32 %v1442, 4294901760
  %1558 = vmatprep.subr.mxu0 %v1557
  %v1559 = vand.u32 %v1441, 4294901760
  %1560 = vmatpush1.msra.mxu0 %v1559
  %v1561 = vand.u32 %v1444, 4294901760
  %1562 = vmatprep.subr.mxu0 %v1561
  %v1563 = vand.u32 %v1443, 4294901760
  %1564 = vmatpush1.msra.mxu0 %v1563
  %v1565 = vand.u32 %v1446, 4294901760
  %1566 = vmatprep.subr.mxu0 %v1565
  %v1567 = vand.u32 %v1445, 4294901760
  %1568 = vmatpush1.msra.mxu0 %v1567
  %v1569 = vand.u32 %v1448, 4294901760
  %1570 = vmatprep.subr.mxu0 %v1569
  %v1571 = vand.u32 %v1447, 4294901760
  %1572 = vmatpush1.msra.mxu0 %v1571
  %v1573 = vand.u32 %v1450, 4294901760
  %1574 = vmatprep.subr.mxu0 %v1573
  %v1575 = vand.u32 %v1449, 4294901760
  %1576 = vmatpush1.msra.mxu0 %v1575
  %v1577 = vand.u32 %v1452, 4294901760
  %1578 = vmatprep.subr.mxu0 %v1577
  %v1579 = vand.u32 %v1451, 4294901760
  %1580 = vmatpush1.msra.mxu0 %v1579
  %v1581 = vand.u32 %v39, 4294901760
  %v1582 = vsub.f32 %v39, %v1581
  %v1583 = vand.u32 %v1582, 4294901760
  %v1584 = vsub.f32 %v1582, %v1583
  %v1585 = vand.u32 %v1584, 4294901760
  %1586 = vmatprep.mubr.f32.mxu0 %v1585
  %v1587 = vand.u32 %v38, 4294901760
  %v1588 = vsub.f32 %v38, %v1587
  %v1589 = vand.u32 %v1588, 4294901760
  %v1590 = vsub.f32 %v1588, %v1589
  %v1591 = vand.u32 %v1590, 4294901760
  %1592 = vmatmul.mubr.f32.gmra.mrb[0].mxu0 %v1591
  %v1593 = vpop.f32.mrb[0].mxu0
  %v1594 = vadd.f32 0.0, %v1593
  %v1595 = vpop.f32.mrb[0].mxu0
  %v1596 = vadd.f32 0.0, %v1595
  %1597 = vdwg.mxu0
  %v1598 = vand.u32 %v1390, 4294901760
  %v1599 = vsub.f32 %v1390, %v1598
  %v1600 = vand.u32 %v1599, 4294901760
  %v1601 = vsub.f32 %v1599, %v1600
  %v1602 = vand.u32 %v1601, 4294901760
  %1603 = vmatprep.subr.mxu0 %v1602
  %v1604 = vand.u32 %v1389, 4294901760
  %v1605 = vsub.f32 %v1389, %v1604
  %v1606 = vand.u32 %v1605, 4294901760
  %v1607 = vsub.f32 %v1605, %v1606
  %v1608 = vand.u32 %v1607, 4294901760
  %1609 = vmatpush1.msra.mxu0 %v1608
  %v1610 = vand.u32 %v1392, 4294901760
  %v1611 = vsub.f32 %v1392, %v1610
  %v1612 = vand.u32 %v1611, 4294901760
  %v1613 = vsub.f32 %v1611, %v1612
  %v1614 = vand.u32 %v1613, 4294901760
  %1615 = vmatprep.subr.mxu0 %v1614
  %v1616 = vand.u32 %v1391, 4294901760
  %v1617 = vsub.f32 %v1391, %v1616
  %v1618 = vand.u32 %v1617, 4294901760
  %v1619 = vsub.f32 %v1617, %v1618
  %v1620 = vand.u32 %v1619, 4294901760
  %1621 = vmatpush1.msra.mxu0 %v1620
  %v1622 = vand.u32 %v1394, 4294901760
  %v1623 = vsub.f32 %v1394, %v1622
  %v1624 = vand.u32 %v1623, 4294901760
  %v1625 = vsub.f32 %v1623, %v1624
  %v1626 = vand.u32 %v1625, 4294901760
  %1627 = vmatprep.subr.mxu0 %v1626
  %v1628 = vand.u32 %v1393, 4294901760
  %v1629 = vsub.f32 %v1393, %v1628
  %v1630 = vand.u32 %v1629, 4294901760
  %v1631 = vsub.f32 %v1629, %v1630
  %v1632 = vand.u32 %v1631, 4294901760
  %1633 = vmatpush1.msra.mxu0 %v1632
  %v1634 = vand.u32 %v1396, 4294901760
  %v1635 = vsub.f32 %v1396, %v1634
  %v1636 = vand.u32 %v1635, 4294901760
  %v1637 = vsub.f32 %v1635, %v1636
  %v1638 = vand.u32 %v1637, 4294901760
  %1639 = vmatprep.subr.mxu0 %v1638
  %v1640 = vand.u32 %v1395, 4294901760
  %v1641 = vsub.f32 %v1395, %v1640
  %v1642 = vand.u32 %v1641, 4294901760
  %v1643 = vsub.f32 %v1641, %v1642
  %v1644 = vand.u32 %v1643, 4294901760
  %1645 = vmatpush1.msra.mxu0 %v1644
  %v1646 = vand.u32 %v1398, 4294901760
  %v1647 = vsub.f32 %v1398, %v1646
  %v1648 = vand.u32 %v1647, 4294901760
  %v1649 = vsub.f32 %v1647, %v1648
  %v1650 = vand.u32 %v1649, 4294901760
  %1651 = vmatprep.subr.mxu0 %v1650
  %v1652 = vand.u32 %v1397, 4294901760
  %v1653 = vsub.f32 %v1397, %v1652
  %v1654 = vand.u32 %v1653, 4294901760
  %v1655 = vsub.f32 %v1653, %v1654
  %v1656 = vand.u32 %v1655, 4294901760
  %1657 = vmatpush1.msra.mxu0 %v1656
  %v1658 = vand.u32 %v1400, 4294901760
  %v1659 = vsub.f32 %v1400, %v1658
  %v1660 = vand.u32 %v1659, 4294901760
  %v1661 = vsub.f32 %v1659, %v1660
  %v1662 = vand.u32 %v1661, 4294901760
  %1663 = vmatprep.subr.mxu0 %v1662
  %v1664 = vand.u32 %v1399, 4294901760
  %v1665 = vsub.f32 %v1399, %v1664
  %v1666 = vand.u32 %v1665, 4294901760
  %v1667 = vsub.f32 %v1665, %v1666
  %v1668 = vand.u32 %v1667, 4294901760
  %1669 = vmatpush1.msra.mxu0 %v1668
  %v1670 = vand.u32 %v1402, 4294901760
  %v1671 = vsub.f32 %v1402, %v1670
  %v1672 = vand.u32 %v1671, 4294901760
  %v1673 = vsub.f32 %v1671, %v1672
  %v1674 = vand.u32 %v1673, 4294901760
  %1675 = vmatprep.subr.mxu0 %v1674
  %v1676 = vand.u32 %v1401, 4294901760
  %v1677 = vsub.f32 %v1401, %v1676
  %v1678 = vand.u32 %v1677, 4294901760
  %v1679 = vsub.f32 %v1677, %v1678
  %v1680 = vand.u32 %v1679, 4294901760
  %1681 = vmatpush1.msra.mxu0 %v1680
  %v1682 = vand.u32 %v1404, 4294901760
  %v1683 = vsub.f32 %v1404, %v1682
  %v1684 = vand.u32 %v1683, 4294901760
  %v1685 = vsub.f32 %v1683, %v1684
  %v1686 = vand.u32 %v1685, 4294901760
  %1687 = vmatprep.subr.mxu0 %v1686
  %v1688 = vand.u32 %v1403, 4294901760
  %v1689 = vsub.f32 %v1403, %v1688
  %v1690 = vand.u32 %v1689, 4294901760
  %v1691 = vsub.f32 %v1689, %v1690
  %v1692 = vand.u32 %v1691, 4294901760
  %1693 = vmatpush1.msra.mxu0 %v1692
  %v1694 = vand.u32 %v1406, 4294901760
  %v1695 = vsub.f32 %v1406, %v1694
  %v1696 = vand.u32 %v1695, 4294901760
  %v1697 = vsub.f32 %v1695, %v1696
  %v1698 = vand.u32 %v1697, 4294901760
  %1699 = vmatprep.subr.mxu0 %v1698
  %v1700 = vand.u32 %v1405, 4294901760
  %v1701 = vsub.f32 %v1405, %v1700
  %v1702 = vand.u32 %v1701, 4294901760
  %v1703 = vsub.f32 %v1701, %v1702
  %v1704 = vand.u32 %v1703, 4294901760
  %1705 = vmatpush1.msra.mxu0 %v1704
  %v1706 = vand.u32 %v1408, 4294901760
  %v1707 = vsub.f32 %v1408, %v1706
  %v1708 = vand.u32 %v1707, 4294901760
  %v1709 = vsub.f32 %v1707, %v1708
  %v1710 = vand.u32 %v1709, 4294901760
  %1711 = vmatprep.subr.mxu0 %v1710
  %v1712 = vand.u32 %v1407, 4294901760
  %v1713 = vsub.f32 %v1407, %v1712
  %v1714 = vand.u32 %v1713, 4294901760
  %v1715 = vsub.f32 %v1713, %v1714
  %v1716 = vand.u32 %v1715, 4294901760
  %1717 = vmatpush1.msra.mxu0 %v1716
  %v1718 = vand.u32 %v1410, 4294901760
  %v1719 = vsub.f32 %v1410, %v1718
  %v1720 = vand.u32 %v1719, 4294901760
  %v1721 = vsub.f32 %v1719, %v1720
  %v1722 = vand.u32 %v1721, 4294901760
  %1723 = vmatprep.subr.mxu0 %v1722
  %v1724 = vand.u32 %v1409, 4294901760
  %v1725 = vsub.f32 %v1409, %v1724
  %v1726 = vand.u32 %v1725, 4294901760
  %v1727 = vsub.f32 %v1725, %v1726
  %v1728 = vand.u32 %v1727, 4294901760
  %1729 = vmatpush1.msra.mxu0 %v1728
  %v1730 = vand.u32 %v1412, 4294901760
  %v1731 = vsub.f32 %v1412, %v1730
  %v1732 = vand.u32 %v1731, 4294901760
  %v1733 = vsub.f32 %v1731, %v1732
  %v1734 = vand.u32 %v1733, 4294901760
  %1735 = vmatprep.subr.mxu0 %v1734
  %v1736 = vand.u32 %v1411, 4294901760
  %v1737 = vsub.f32 %v1411, %v1736
  %v1738 = vand.u32 %v1737, 4294901760
  %v1739 = vsub.f32 %v1737, %v1738
  %v1740 = vand.u32 %v1739, 4294901760
  %1741 = vmatpush1.msra.mxu0 %v1740
  %v1742 = vand.u32 %v1414, 4294901760
  %v1743 = vsub.f32 %v1414, %v1742
  %v1744 = vand.u32 %v1743, 4294901760
  %v1745 = vsub.f32 %v1743, %v1744
  %v1746 = vand.u32 %v1745, 4294901760
  %1747 = vmatprep.subr.mxu0 %v1746
  %v1748 = vand.u32 %v1413, 4294901760
  %v1749 = vsub.f32 %v1413, %v1748
  %v1750 = vand.u32 %v1749, 4294901760
  %v1751 = vsub.f32 %v1749, %v1750
  %v1752 = vand.u32 %v1751, 4294901760
  %1753 = vmatpush1.msra.mxu0 %v1752
  %v1754 = vand.u32 %v1416, 4294901760
  %v1755 = vsub.f32 %v1416, %v1754
  %v1756 = vand.u32 %v1755, 4294901760
  %v1757 = vsub.f32 %v1755, %v1756
  %v1758 = vand.u32 %v1757, 4294901760
  %1759 = vmatprep.subr.mxu0 %v1758
  %v1760 = vand.u32 %v1415, 4294901760
  %v1761 = vsub.f32 %v1415, %v1760
  %v1762 = vand.u32 %v1761, 4294901760
  %v1763 = vsub.f32 %v1761, %v1762
  %v1764 = vand.u32 %v1763, 4294901760
  %1765 = vmatpush1.msra.mxu0 %v1764
  %v1766 = vand.u32 %v1418, 4294901760
  %v1767 = vsub.f32 %v1418, %v1766
  %v1768 = vand.u32 %v1767, 4294901760
  %v1769 = vsub.f32 %v1767, %v1768
  %v1770 = vand.u32 %v1769, 4294901760
  %1771 = vmatprep.subr.mxu0 %v1770
  %v1772 = vand.u32 %v1417, 4294901760
  %v1773 = vsub.f32 %v1417, %v1772
  %v1774 = vand.u32 %v1773, 4294901760
  %v1775 = vsub.f32 %v1773, %v1774
  %v1776 = vand.u32 %v1775, 4294901760
  %1777 = vmatpush1.msra.mxu0 %v1776
  %v1778 = vand.u32 %v1420, 4294901760
  %v1779 = vsub.f32 %v1420, %v1778
  %v1780 = vand.u32 %v1779, 4294901760
  %v1781 = vsub.f32 %v1779, %v1780
  %v1782 = vand.u32 %v1781, 4294901760
  %1783 = vmatprep.subr.mxu0 %v1782
  %v1784 = vand.u32 %v1419, 4294901760
  %v1785 = vsub.f32 %v1419, %v1784
  %v1786 = vand.u32 %v1785, 4294901760
  %v1787 = vsub.f32 %v1785, %v1786
  %v1788 = vand.u32 %v1787, 4294901760
  %1789 = vmatpush1.msra.mxu0 %v1788
  %v1790 = vand.u32 %v1422, 4294901760
  %v1791 = vsub.f32 %v1422, %v1790
  %v1792 = vand.u32 %v1791, 4294901760
  %v1793 = vsub.f32 %v1791, %v1792
  %v1794 = vand.u32 %v1793, 4294901760
  %1795 = vmatprep.subr.mxu0 %v1794
  %v1796 = vand.u32 %v1421, 4294901760
  %v1797 = vsub.f32 %v1421, %v1796
  %v1798 = vand.u32 %v1797, 4294901760
  %v1799 = vsub.f32 %v1797, %v1798
  %v1800 = vand.u32 %v1799, 4294901760
  %1801 = vmatpush1.msra.mxu0 %v1800
  %v1802 = vand.u32 %v1424, 4294901760
  %v1803 = vsub.f32 %v1424, %v1802
  %v1804 = vand.u32 %v1803, 4294901760
  %v1805 = vsub.f32 %v1803, %v1804
  %v1806 = vand.u32 %v1805, 4294901760
  %1807 = vmatprep.subr.mxu0 %v1806
  %v1808 = vand.u32 %v1423, 4294901760
  %v1809 = vsub.f32 %v1423, %v1808
  %v1810 = vand.u32 %v1809, 4294901760
  %v1811 = vsub.f32 %v1809, %v1810
  %v1812 = vand.u32 %v1811, 4294901760
  %1813 = vmatpush1.msra.mxu0 %v1812
  %v1814 = vand.u32 %v1426, 4294901760
  %v1815 = vsub.f32 %v1426, %v1814
  %v1816 = vand.u32 %v1815, 4294901760
  %v1817 = vsub.f32 %v1815, %v1816
  %v1818 = vand.u32 %v1817, 4294901760
  %1819 = vmatprep.subr.mxu0 %v1818
  %v1820 = vand.u32 %v1425, 4294901760
  %v1821 = vsub.f32 %v1425, %v1820
  %v1822 = vand.u32 %v1821, 4294901760
  %v1823 = vsub.f32 %v1821, %v1822
  %v1824 = vand.u32 %v1823, 4294901760
  %1825 = vmatpush1.msra.mxu0 %v1824
  %v1826 = vand.u32 %v1428, 4294901760
  %v1827 = vsub.f32 %v1428, %v1826
  %v1828 = vand.u32 %v1827, 4294901760
  %v1829 = vsub.f32 %v1827, %v1828
  %v1830 = vand.u32 %v1829, 4294901760
  %1831 = vmatprep.subr.mxu0 %v1830
  %v1832 = vand.u32 %v1427, 4294901760
  %v1833 = vsub.f32 %v1427, %v1832
  %v1834 = vand.u32 %v1833, 4294901760
  %v1835 = vsub.f32 %v1833, %v1834
  %v1836 = vand.u32 %v1835, 4294901760
  %1837 = vmatpush1.msra.mxu0 %v1836
  %v1838 = vand.u32 %v1430, 4294901760
  %v1839 = vsub.f32 %v1430, %v1838
  %v1840 = vand.u32 %v1839, 4294901760
  %v1841 = vsub.f32 %v1839, %v1840
  %v1842 = vand.u32 %v1841, 4294901760
  %1843 = vmatprep.subr.mxu0 %v1842
  %v1844 = vand.u32 %v1429, 4294901760
  %v1845 = vsub.f32 %v1429, %v1844
  %v1846 = vand.u32 %v1845, 4294901760
  %v1847 = vsub.f32 %v1845, %v1846
  %v1848 = vand.u32 %v1847, 4294901760
  %1849 = vmatpush1.msra.mxu0 %v1848
  %v1850 = vand.u32 %v1432, 4294901760
  %v1851 = vsub.f32 %v1432, %v1850
  %v1852 = vand.u32 %v1851, 4294901760
  %v1853 = vsub.f32 %v1851, %v1852
  %v1854 = vand.u32 %v1853, 4294901760
  %1855 = vmatprep.subr.mxu0 %v1854
  %v1856 = vand.u32 %v1431, 4294901760
  %v1857 = vsub.f32 %v1431, %v1856
  %v1858 = vand.u32 %v1857, 4294901760
  %v1859 = vsub.f32 %v1857, %v1858
  %v1860 = vand.u32 %v1859, 4294901760
  %1861 = vmatpush1.msra.mxu0 %v1860
  %v1862 = vand.u32 %v1434, 4294901760
  %v1863 = vsub.f32 %v1434, %v1862
  %v1864 = vand.u32 %v1863, 4294901760
  %v1865 = vsub.f32 %v1863, %v1864
  %v1866 = vand.u32 %v1865, 4294901760
  %1867 = vmatprep.subr.mxu0 %v1866
  %v1868 = vand.u32 %v1433, 4294901760
  %v1869 = vsub.f32 %v1433, %v1868
  %v1870 = vand.u32 %v1869, 4294901760
  %v1871 = vsub.f32 %v1869, %v1870
  %v1872 = vand.u32 %v1871, 4294901760
  %1873 = vmatpush1.msra.mxu0 %v1872
  %v1874 = vand.u32 %v1436, 4294901760
  %v1875 = vsub.f32 %v1436, %v1874
  %v1876 = vand.u32 %v1875, 4294901760
  %v1877 = vsub.f32 %v1875, %v1876
  %v1878 = vand.u32 %v1877, 4294901760
  %1879 = vmatprep.subr.mxu0 %v1878
  %v1880 = vand.u32 %v1435, 4294901760
  %v1881 = vsub.f32 %v1435, %v1880
  %v1882 = vand.u32 %v1881, 4294901760
  %v1883 = vsub.f32 %v1881, %v1882
  %v1884 = vand.u32 %v1883, 4294901760
  %1885 = vmatpush1.msra.mxu0 %v1884
  %v1886 = vand.u32 %v1438, 4294901760
  %v1887 = vsub.f32 %v1438, %v1886
  %v1888 = vand.u32 %v1887, 4294901760
  %v1889 = vsub.f32 %v1887, %v1888
  %v1890 = vand.u32 %v1889, 4294901760
  %1891 = vmatprep.subr.mxu0 %v1890
  %v1892 = vand.u32 %v1437, 4294901760
  %v1893 = vsub.f32 %v1437, %v1892
  %v1894 = vand.u32 %v1893, 4294901760
  %v1895 = vsub.f32 %v1893, %v1894
  %v1896 = vand.u32 %v1895, 4294901760
  %1897 = vmatpush1.msra.mxu0 %v1896
  %v1898 = vand.u32 %v1440, 4294901760
  %v1899 = vsub.f32 %v1440, %v1898
  %v1900 = vand.u32 %v1899, 4294901760
  %v1901 = vsub.f32 %v1899, %v1900
  %v1902 = vand.u32 %v1901, 4294901760
  %1903 = vmatprep.subr.mxu0 %v1902
  %v1904 = vand.u32 %v1439, 4294901760
  %v1905 = vsub.f32 %v1439, %v1904
  %v1906 = vand.u32 %v1905, 4294901760
  %v1907 = vsub.f32 %v1905, %v1906
  %v1908 = vand.u32 %v1907, 4294901760
  %1909 = vmatpush1.msra.mxu0 %v1908
  %v1910 = vand.u32 %v1442, 4294901760
  %v1911 = vsub.f32 %v1442, %v1910
  %v1912 = vand.u32 %v1911, 4294901760
  %v1913 = vsub.f32 %v1911, %v1912
  %v1914 = vand.u32 %v1913, 4294901760
  %1915 = vmatprep.subr.mxu0 %v1914
  %v1916 = vand.u32 %v1441, 4294901760
  %v1917 = vsub.f32 %v1441, %v1916
  %v1918 = vand.u32 %v1917, 4294901760
  %v1919 = vsub.f32 %v1917, %v1918
  %v1920 = vand.u32 %v1919, 4294901760
  %1921 = vmatpush1.msra.mxu0 %v1920
  %v1922 = vand.u32 %v1444, 4294901760
  %v1923 = vsub.f32 %v1444, %v1922
  %v1924 = vand.u32 %v1923, 4294901760
  %v1925 = vsub.f32 %v1923, %v1924
  %v1926 = vand.u32 %v1925, 4294901760
  %1927 = vmatprep.subr.mxu0 %v1926
  %v1928 = vand.u32 %v1443, 4294901760
  %v1929 = vsub.f32 %v1443, %v1928
  %v1930 = vand.u32 %v1929, 4294901760
  %v1931 = vsub.f32 %v1929, %v1930
  %v1932 = vand.u32 %v1931, 4294901760
  %1933 = vmatpush1.msra.mxu0 %v1932
  %v1934 = vand.u32 %v1446, 4294901760
  %v1935 = vsub.f32 %v1446, %v1934
  %v1936 = vand.u32 %v1935, 4294901760
  %v1937 = vsub.f32 %v1935, %v1936
  %v1938 = vand.u32 %v1937, 4294901760
  %1939 = vmatprep.subr.mxu0 %v1938
  %v1940 = vand.u32 %v1445, 4294901760
  %v1941 = vsub.f32 %v1445, %v1940
  %v1942 = vand.u32 %v1941, 4294901760
  %v1943 = vsub.f32 %v1941, %v1942
  %v1944 = vand.u32 %v1943, 4294901760
  %1945 = vmatpush1.msra.mxu0 %v1944
  %v1946 = vand.u32 %v1448, 4294901760
  %v1947 = vsub.f32 %v1448, %v1946
  %v1948 = vand.u32 %v1947, 4294901760
  %v1949 = vsub.f32 %v1947, %v1948
  %v1950 = vand.u32 %v1949, 4294901760
  %1951 = vmatprep.subr.mxu0 %v1950
  %v1952 = vand.u32 %v1447, 4294901760
  %v1953 = vsub.f32 %v1447, %v1952
  %v1954 = vand.u32 %v1953, 4294901760
  %v1955 = vsub.f32 %v1953, %v1954
  %v1956 = vand.u32 %v1955, 4294901760
  %1957 = vmatpush1.msra.mxu0 %v1956
  %v1958 = vand.u32 %v1450, 4294901760
  %v1959 = vsub.f32 %v1450, %v1958
  %v1960 = vand.u32 %v1959, 4294901760
  %v1961 = vsub.f32 %v1959, %v1960
  %v1962 = vand.u32 %v1961, 4294901760
  %1963 = vmatprep.subr.mxu0 %v1962
  %v1964 = vand.u32 %v1449, 4294901760
  %v1965 = vsub.f32 %v1449, %v1964
  %v1966 = vand.u32 %v1965, 4294901760
  %v1967 = vsub.f32 %v1965, %v1966
  %v1968 = vand.u32 %v1967, 4294901760
  %1969 = vmatpush1.msra.mxu0 %v1968
  %v1970 = vand.u32 %v1452, 4294901760
  %v1971 = vsub.f32 %v1452, %v1970
  %v1972 = vand.u32 %v1971, 4294901760
  %v1973 = vsub.f32 %v1971, %v1972
  %v1974 = vand.u32 %v1973, 4294901760
  %1975 = vmatprep.subr.mxu0 %v1974
  %v1976 = vand.u32 %v1451, 4294901760
  %v1977 = vsub.f32 %v1451, %v1976
  %v1978 = vand.u32 %v1977, 4294901760
  %v1979 = vsub.f32 %v1977, %v1978
  %v1980 = vand.u32 %v1979, 4294901760
  %1981 = vmatpush1.msra.mxu0 %v1980
  %v1982 = vand.u32 %v39, 4294901760
  %1983 = vmatprep.mubr.f32.mxu0 %v1982
  %v1984 = vand.u32 %v38, 4294901760
  %1985 = vmatmul.mubr.f32.gmra.mrb[0].mxu0 %v1984
  %v1986 = vpop.f32.mrb[0].mxu0
  %v1987 = vadd.f32 %v1594, %v1986
  %v1988 = vpop.f32.mrb[0].mxu0
  %v1989 = vadd.f32 %v1596, %v1988
  %1990 = vdwg.mxu0
  %v1991 = vand.u32 %v1390, 4294901760
  %v1992 = vsub.f32 %v1390, %v1991
  %1993 = vmatprep.subr.mxu0 %v1992
  %v1994 = vand.u32 %v1389, 4294901760
  %v1995 = vsub.f32 %v1389, %v1994
  %1996 = vmatpush1.msra.mxu0 %v1995
  %v1997 = vand.u32 %v1392, 4294901760
  %v1998 = vsub.f32 %v1392, %v1997
  %1999 = vmatprep.subr.mxu0 %v1998
  %v2000 = vand.u32 %v1391, 4294901760
  %v2001 = vsub.f32 %v1391, %v2000
  %2002 = vmatpush1.msra.mxu0 %v2001
  %v2003 = vand.u32 %v1394, 4294901760
  %v2004 = vsub.f32 %v1394, %v2003
  %2005 = vmatprep.subr.mxu0 %v2004
  %v2006 = vand.u32 %v1393, 4294901760
  %v2007 = vsub.f32 %v1393, %v2006
  %2008 = vmatpush1.msra.mxu0 %v2007
  %v2009 = vand.u32 %v1396, 4294901760
  %v2010 = vsub.f32 %v1396, %v2009
  %2011 = vmatprep.subr.mxu0 %v2010
  %v2012 = vand.u32 %v1395, 4294901760
  %v2013 = vsub.f32 %v1395, %v2012
  %2014 = vmatpush1.msra.mxu0 %v2013
  %v2015 = vand.u32 %v1398, 4294901760
  %v2016 = vsub.f32 %v1398, %v2015
  %2017 = vmatprep.subr.mxu0 %v2016
  %v2018 = vand.u32 %v1397, 4294901760
  %v2019 = vsub.f32 %v1397, %v2018
  %2020 = vmatpush1.msra.mxu0 %v2019
  %v2021 = vand.u32 %v1400, 4294901760
  %v2022 = vsub.f32 %v1400, %v2021
  %2023 = vmatprep.subr.mxu0 %v2022
  %v2024 = vand.u32 %v1399, 4294901760
  %v2025 = vsub.f32 %v1399, %v2024
  %2026 = vmatpush1.msra.mxu0 %v2025
  %v2027 = vand.u32 %v1402, 4294901760
  %v2028 = vsub.f32 %v1402, %v2027
  %2029 = vmatprep.subr.mxu0 %v2028
  %v2030 = vand.u32 %v1401, 4294901760
  %v2031 = vsub.f32 %v1401, %v2030
  %2032 = vmatpush1.msra.mxu0 %v2031
  %v2033 = vand.u32 %v1404, 4294901760
  %v2034 = vsub.f32 %v1404, %v2033
  %2035 = vmatprep.subr.mxu0 %v2034
  %v2036 = vand.u32 %v1403, 4294901760
  %v2037 = vsub.f32 %v1403, %v2036
  %2038 = vmatpush1.msra.mxu0 %v2037
  %v2039 = vand.u32 %v1406, 4294901760
  %v2040 = vsub.f32 %v1406, %v2039
  %2041 = vmatprep.subr.mxu0 %v2040
  %v2042 = vand.u32 %v1405, 4294901760
  %v2043 = vsub.f32 %v1405, %v2042
  %2044 = vmatpush1.msra.mxu0 %v2043
  %v2045 = vand.u32 %v1408, 4294901760
  %v2046 = vsub.f32 %v1408, %v2045
  %2047 = vmatprep.subr.mxu0 %v2046
  %v2048 = vand.u32 %v1407, 4294901760
  %v2049 = vsub.f32 %v1407, %v2048
  %2050 = vmatpush1.msra.mxu0 %v2049
  %v2051 = vand.u32 %v1410, 4294901760
  %v2052 = vsub.f32 %v1410, %v2051
  %2053 = vmatprep.subr.mxu0 %v2052
  %v2054 = vand.u32 %v1409, 4294901760
  %v2055 = vsub.f32 %v1409, %v2054
  %2056 = vmatpush1.msra.mxu0 %v2055
  %v2057 = vand.u32 %v1412, 4294901760
  %v2058 = vsub.f32 %v1412, %v2057
  %2059 = vmatprep.subr.mxu0 %v2058
  %v2060 = vand.u32 %v1411, 4294901760
  %v2061 = vsub.f32 %v1411, %v2060
  %2062 = vmatpush1.msra.mxu0 %v2061
  %v2063 = vand.u32 %v1414, 4294901760
  %v2064 = vsub.f32 %v1414, %v2063
  %2065 = vmatprep.subr.mxu0 %v2064
  %v2066 = vand.u32 %v1413, 4294901760
  %v2067 = vsub.f32 %v1413, %v2066
  %2068 = vmatpush1.msra.mxu0 %v2067
  %v2069 = vand.u32 %v1416, 4294901760
  %v2070 = vsub.f32 %v1416, %v2069
  %2071 = vmatprep.subr.mxu0 %v2070
  %v2072 = vand.u32 %v1415, 4294901760
  %v2073 = vsub.f32 %v1415, %v2072
  %2074 = vmatpush1.msra.mxu0 %v2073
  %v2075 = vand.u32 %v1418, 4294901760
  %v2076 = vsub.f32 %v1418, %v2075
  %2077 = vmatprep.subr.mxu0 %v2076
  %v2078 = vand.u32 %v1417, 4294901760
  %v2079 = vsub.f32 %v1417, %v2078
  %2080 = vmatpush1.msra.mxu0 %v2079
  %v2081 = vand.u32 %v1420, 4294901760
  %v2082 = vsub.f32 %v1420, %v2081
  %2083 = vmatprep.subr.mxu0 %v2082
  %v2084 = vand.u32 %v1419, 4294901760
  %v2085 = vsub.f32 %v1419, %v2084
  %2086 = vmatpush1.msra.mxu0 %v2085
  %v2087 = vand.u32 %v1422, 4294901760
  %v2088 = vsub.f32 %v1422, %v2087
  %2089 = vmatprep.subr.mxu0 %v2088
  %v2090 = vand.u32 %v1421, 4294901760
  %v2091 = vsub.f32 %v1421, %v2090
  %2092 = vmatpush1.msra.mxu0 %v2091
  %v2093 = vand.u32 %v1424, 4294901760
  %v2094 = vsub.f32 %v1424, %v2093
  %2095 = vmatprep.subr.mxu0 %v2094
  %v2096 = vand.u32 %v1423, 4294901760
  %v2097 = vsub.f32 %v1423, %v2096
  %2098 = vmatpush1.msra.mxu0 %v2097
  %v2099 = vand.u32 %v1426, 4294901760
  %v2100 = vsub.f32 %v1426, %v2099
  %2101 = vmatprep.subr.mxu0 %v2100
  %v2102 = vand.u32 %v1425, 4294901760
  %v2103 = vsub.f32 %v1425, %v2102
  %2104 = vmatpush1.msra.mxu0 %v2103
  %v2105 = vand.u32 %v1428, 4294901760
  %v2106 = vsub.f32 %v1428, %v2105
  %2107 = vmatprep.subr.mxu0 %v2106
  %v2108 = vand.u32 %v1427, 4294901760
  %v2109 = vsub.f32 %v1427, %v2108
  %2110 = vmatpush1.msra.mxu0 %v2109
  %v2111 = vand.u32 %v1430, 4294901760
  %v2112 = vsub.f32 %v1430, %v2111
  %2113 = vmatprep.subr.mxu0 %v2112
  %v2114 = vand.u32 %v1429, 4294901760
  %v2115 = vsub.f32 %v1429, %v2114
  %2116 = vmatpush1.msra.mxu0 %v2115
  %v2117 = vand.u32 %v1432, 4294901760
  %v2118 = vsub.f32 %v1432, %v2117
  %2119 = vmatprep.subr.mxu0 %v2118
  %v2120 = vand.u32 %v1431, 4294901760
  %v2121 = vsub.f32 %v1431, %v2120
  %2122 = vmatpush1.msra.mxu0 %v2121
  %v2123 = vand.u32 %v1434, 4294901760
  %v2124 = vsub.f32 %v1434, %v2123
  %2125 = vmatprep.subr.mxu0 %v2124
  %v2126 = vand.u32 %v1433, 4294901760
  %v2127 = vsub.f32 %v1433, %v2126
  %2128 = vmatpush1.msra.mxu0 %v2127
  %v2129 = vand.u32 %v1436, 4294901760
  %v2130 = vsub.f32 %v1436, %v2129
  %2131 = vmatprep.subr.mxu0 %v2130
  %v2132 = vand.u32 %v1435, 4294901760
  %v2133 = vsub.f32 %v1435, %v2132
  %2134 = vmatpush1.msra.mxu0 %v2133
  %v2135 = vand.u32 %v1438, 4294901760
  %v2136 = vsub.f32 %v1438, %v2135
  %2137 = vmatprep.subr.mxu0 %v2136
  %v2138 = vand.u32 %v1437, 4294901760
  %v2139 = vsub.f32 %v1437, %v2138
  %2140 = vmatpush1.msra.mxu0 %v2139
  %v2141 = vand.u32 %v1440, 4294901760
  %v2142 = vsub.f32 %v1440, %v2141
  %2143 = vmatprep.subr.mxu0 %v2142
  %v2144 = vand.u32 %v1439, 4294901760
  %v2145 = vsub.f32 %v1439, %v2144
  %2146 = vmatpush1.msra.mxu0 %v2145
  %v2147 = vand.u32 %v1442, 4294901760
  %v2148 = vsub.f32 %v1442, %v2147
  %2149 = vmatprep.subr.mxu0 %v2148
  %v2150 = vand.u32 %v1441, 4294901760
  %v2151 = vsub.f32 %v1441, %v2150
  %2152 = vmatpush1.msra.mxu0 %v2151
  %v2153 = vand.u32 %v1444, 4294901760
  %v2154 = vsub.f32 %v1444, %v2153
  %2155 = vmatprep.subr.mxu0 %v2154
  %v2156 = vand.u32 %v1443, 4294901760
  %v2157 = vsub.f32 %v1443, %v2156
  %2158 = vmatpush1.msra.mxu0 %v2157
  %v2159 = vand.u32 %v1446, 4294901760
  %v2160 = vsub.f32 %v1446, %v2159
  %2161 = vmatprep.subr.mxu0 %v2160
  %v2162 = vand.u32 %v1445, 4294901760
  %v2163 = vsub.f32 %v1445, %v2162
  %2164 = vmatpush1.msra.mxu0 %v2163
  %v2165 = vand.u32 %v1448, 4294901760
  %v2166 = vsub.f32 %v1448, %v2165
  %2167 = vmatprep.subr.mxu0 %v2166
  %v2168 = vand.u32 %v1447, 4294901760
  %v2169 = vsub.f32 %v1447, %v2168
  %2170 = vmatpush1.msra.mxu0 %v2169
  %v2171 = vand.u32 %v1450, 4294901760
  %v2172 = vsub.f32 %v1450, %v2171
  %2173 = vmatprep.subr.mxu0 %v2172
  %v2174 = vand.u32 %v1449, 4294901760
  %v2175 = vsub.f32 %v1449, %v2174
  %2176 = vmatpush1.msra.mxu0 %v2175
  %v2177 = vand.u32 %v1452, 4294901760
  %v2178 = vsub.f32 %v1452, %v2177
  %2179 = vmatprep.subr.mxu0 %v2178
  %v2180 = vand.u32 %v1451, 4294901760
  %v2181 = vsub.f32 %v1451, %v2180
  %2182 = vmatpush1.msra.mxu0 %v2181
  %v2183 = vand.u32 %v39, 4294901760
  %v2184 = vsub.f32 %v39, %v2183
  %2185 = vmatprep.mubr.f32.mxu0 %v2184
  %v2186 = vand.u32 %v38, 4294901760
  %v2187 = vsub.f32 %v38, %v2186
  %2188 = vmatmul.mubr.f32.gmra.mrb[0].mxu0 %v2187
  %v2189 = vpop.f32.mrb[0].mxu0
  %v2190 = vadd.f32 %v1987, %v2189
  %v2191 = vpop.f32.mrb[0].mxu0
  %v2192 = vadd.f32 %v1989, %v2191
  %2193 = vdwg.mxu0
  %v2194 = vand.u32 %v1390, 4294901760
  %2195 = vmatprep.subr.mxu0 %v2194
  %v2196 = vand.u32 %v1389, 4294901760
  %2197 = vmatpush1.msra.mxu0 %v2196
  %v2198 = vand.u32 %v1392, 4294901760
  %2199 = vmatprep.subr.mxu0 %v2198
  %v2200 = vand.u32 %v1391, 4294901760
  %2201 = vmatpush1.msra.mxu0 %v2200
  %v2202 = vand.u32 %v1394, 4294901760
  %2203 = vmatprep.subr.mxu0 %v2202
  %v2204 = vand.u32 %v1393, 4294901760
  %2205 = vmatpush1.msra.mxu0 %v2204
  %v2206 = vand.u32 %v1396, 4294901760
  %2207 = vmatprep.subr.mxu0 %v2206
  %v2208 = vand.u32 %v1395, 4294901760
  %2209 = vmatpush1.msra.mxu0 %v2208
  %v2210 = vand.u32 %v1398, 4294901760
  %2211 = vmatprep.subr.mxu0 %v2210
  %v2212 = vand.u32 %v1397, 4294901760
  %2213 = vmatpush1.msra.mxu0 %v2212
  %v2214 = vand.u32 %v1400, 4294901760
  %2215 = vmatprep.subr.mxu0 %v2214
  %v2216 = vand.u32 %v1399, 4294901760
  %2217 = vmatpush1.msra.mxu0 %v2216
  %v2218 = vand.u32 %v1402, 4294901760
  %2219 = vmatprep.subr.mxu0 %v2218
  %v2220 = vand.u32 %v1401, 4294901760
  %2221 = vmatpush1.msra.mxu0 %v2220
  %v2222 = vand.u32 %v1404, 4294901760
  %2223 = vmatprep.subr.mxu0 %v2222
  %v2224 = vand.u32 %v1403, 4294901760
  %2225 = vmatpush1.msra.mxu0 %v2224
  %v2226 = vand.u32 %v1406, 4294901760
  %2227 = vmatprep.subr.mxu0 %v2226
  %v2228 = vand.u32 %v1405, 4294901760
  %2229 = vmatpush1.msra.mxu0 %v2228
  %v2230 = vand.u32 %v1408, 4294901760
  %2231 = vmatprep.subr.mxu0 %v2230
  %v2232 = vand.u32 %v1407, 4294901760
  %2233 = vmatpush1.msra.mxu0 %v2232
  %v2234 = vand.u32 %v1410, 4294901760
  %2235 = vmatprep.subr.mxu0 %v2234
  %v2236 = vand.u32 %v1409, 4294901760
  %2237 = vmatpush1.msra.mxu0 %v2236
  %v2238 = vand.u32 %v1412, 4294901760
  %2239 = vmatprep.subr.mxu0 %v2238
  %v2240 = vand.u32 %v1411, 4294901760
  %2241 = vmatpush1.msra.mxu0 %v2240
  %v2242 = vand.u32 %v1414, 4294901760
  %2243 = vmatprep.subr.mxu0 %v2242
  %v2244 = vand.u32 %v1413, 4294901760
  %2245 = vmatpush1.msra.mxu0 %v2244
  %v2246 = vand.u32 %v1416, 4294901760
  %2247 = vmatprep.subr.mxu0 %v2246
  %v2248 = vand.u32 %v1415, 4294901760
  %2249 = vmatpush1.msra.mxu0 %v2248
  %v2250 = vand.u32 %v1418, 4294901760
  %2251 = vmatprep.subr.mxu0 %v2250
  %v2252 = vand.u32 %v1417, 4294901760
  %2253 = vmatpush1.msra.mxu0 %v2252
  %v2254 = vand.u32 %v1420, 4294901760
  %2255 = vmatprep.subr.mxu0 %v2254
  %v2256 = vand.u32 %v1419, 4294901760
  %2257 = vmatpush1.msra.mxu0 %v2256
  %v2258 = vand.u32 %v1422, 4294901760
  %2259 = vmatprep.subr.mxu0 %v2258
  %v2260 = vand.u32 %v1421, 4294901760
  %2261 = vmatpush1.msra.mxu0 %v2260
  %v2262 = vand.u32 %v1424, 4294901760
  %2263 = vmatprep.subr.mxu0 %v2262
  %v2264 = vand.u32 %v1423, 4294901760
  %2265 = vmatpush1.msra.mxu0 %v2264
  %v2266 = vand.u32 %v1426, 4294901760
  %2267 = vmatprep.subr.mxu0 %v2266
  %v2268 = vand.u32 %v1425, 4294901760
  %2269 = vmatpush1.msra.mxu0 %v2268
  %v2270 = vand.u32 %v1428, 4294901760
  %2271 = vmatprep.subr.mxu0 %v2270
  %v2272 = vand.u32 %v1427, 4294901760
  %2273 = vmatpush1.msra.mxu0 %v2272
  %v2274 = vand.u32 %v1430, 4294901760
  %2275 = vmatprep.subr.mxu0 %v2274
  %v2276 = vand.u32 %v1429, 4294901760
  %2277 = vmatpush1.msra.mxu0 %v2276
  %v2278 = vand.u32 %v1432, 4294901760
  %2279 = vmatprep.subr.mxu0 %v2278
  %v2280 = vand.u32 %v1431, 4294901760
  %2281 = vmatpush1.msra.mxu0 %v2280
  %v2282 = vand.u32 %v1434, 4294901760
  %2283 = vmatprep.subr.mxu0 %v2282
  %v2284 = vand.u32 %v1433, 4294901760
  %2285 = vmatpush1.msra.mxu0 %v2284
  %v2286 = vand.u32 %v1436, 4294901760
  %2287 = vmatprep.subr.mxu0 %v2286
  %v2288 = vand.u32 %v1435, 4294901760
  %2289 = vmatpush1.msra.mxu0 %v2288
  %v2290 = vand.u32 %v1438, 4294901760
  %2291 = vmatprep.subr.mxu0 %v2290
  %v2292 = vand.u32 %v1437, 4294901760
  %2293 = vmatpush1.msra.mxu0 %v2292
  %v2294 = vand.u32 %v1440, 4294901760
  %2295 = vmatprep.subr.mxu0 %v2294
  %v2296 = vand.u32 %v1439, 4294901760
  %2297 = vmatpush1.msra.mxu0 %v2296
  %v2298 = vand.u32 %v1442, 4294901760
  %2299 = vmatprep.subr.mxu0 %v2298
  %v2300 = vand.u32 %v1441, 4294901760
  %2301 = vmatpush1.msra.mxu0 %v2300
  %v2302 = vand.u32 %v1444, 4294901760
  %2303 = vmatprep.subr.mxu0 %v2302
  %v2304 = vand.u32 %v1443, 4294901760
  %2305 = vmatpush1.msra.mxu0 %v2304
  %v2306 = vand.u32 %v1446, 4294901760
  %2307 = vmatprep.subr.mxu0 %v2306
  %v2308 = vand.u32 %v1445, 4294901760
  %2309 = vmatpush1.msra.mxu0 %v2308
  %v2310 = vand.u32 %v1448, 4294901760
  %2311 = vmatprep.subr.mxu0 %v2310
  %v2312 = vand.u32 %v1447, 4294901760
  %2313 = vmatpush1.msra.mxu0 %v2312
  %v2314 = vand.u32 %v1450, 4294901760
  %2315 = vmatprep.subr.mxu0 %v2314
  %v2316 = vand.u32 %v1449, 4294901760
  %2317 = vmatpush1.msra.mxu0 %v2316
  %v2318 = vand.u32 %v1452, 4294901760
  %2319 = vmatprep.subr.mxu0 %v2318
  %v2320 = vand.u32 %v1451, 4294901760
  %2321 = vmatpush1.msra.mxu0 %v2320
  %v2322 = vand.u32 %v39, 4294901760
  %v2323 = vsub.f32 %v39, %v2322
  %v2324 = vand.u32 %v2323, 4294901760
  %2325 = vmatprep.mubr.f32.mxu0 %v2324
  %v2326 = vand.u32 %v38, 4294901760
  %v2327 = vsub.f32 %v38, %v2326
  %v2328 = vand.u32 %v2327, 4294901760
  %2329 = vmatmul.mubr.f32.gmra.mrb[0].mxu0 %v2328
  %v2330 = vpop.f32.mrb[0].mxu0
  %v2331 = vadd.f32 %v2190, %v2330
  %v2332 = vpop.f32.mrb[0].mxu0
  %v2333 = vadd.f32 %v2192, %v2332
  %2334 = vdwg.mxu0
  %v2335 = vand.u32 %v1390, 4294901760
  %v2336 = vsub.f32 %v1390, %v2335
  %v2337 = vand.u32 %v2336, 4294901760
  %2338 = vmatprep.subr.mxu0 %v2337
  %v2339 = vand.u32 %v1389, 4294901760
  %v2340 = vsub.f32 %v1389, %v2339
  %v2341 = vand.u32 %v2340, 4294901760
  %2342 = vmatpush1.msra.mxu0 %v2341
  %v2343 = vand.u32 %v1392, 4294901760
  %v2344 = vsub.f32 %v1392, %v2343
  %v2345 = vand.u32 %v2344, 4294901760
  %2346 = vmatprep.subr.mxu0 %v2345
  %v2347 = vand.u32 %v1391, 4294901760
  %v2348 = vsub.f32 %v1391, %v2347
  %v2349 = vand.u32 %v2348, 4294901760
  %2350 = vmatpush1.msra.mxu0 %v2349
  %v2351 = vand.u32 %v1394, 4294901760
  %v2352 = vsub.f32 %v1394, %v2351
  %v2353 = vand.u32 %v2352, 4294901760
  %2354 = vmatprep.subr.mxu0 %v2353
  %v2355 = vand.u32 %v1393, 4294901760
  %v2356 = vsub.f32 %v1393, %v2355
  %v2357 = vand.u32 %v2356, 4294901760
  %2358 = vmatpush1.msra.mxu0 %v2357
  %v2359 = vand.u32 %v1396, 4294901760
  %v2360 = vsub.f32 %v1396, %v2359
  %v2361 = vand.u32 %v2360, 4294901760
  %2362 = vmatprep.subr.mxu0 %v2361
  %v2363 = vand.u32 %v1395, 4294901760
  %v2364 = vsub.f32 %v1395, %v2363
  %v2365 = vand.u32 %v2364, 4294901760
  %2366 = vmatpush1.msra.mxu0 %v2365
  %v2367 = vand.u32 %v1398, 4294901760
  %v2368 = vsub.f32 %v1398, %v2367
  %v2369 = vand.u32 %v2368, 4294901760
  %2370 = vmatprep.subr.mxu0 %v2369
  %v2371 = vand.u32 %v1397, 4294901760
  %v2372 = vsub.f32 %v1397, %v2371
  %v2373 = vand.u32 %v2372, 4294901760
  %2374 = vmatpush1.msra.mxu0 %v2373
  %v2375 = vand.u32 %v1400, 4294901760
  %v2376 = vsub.f32 %v1400, %v2375
  %v2377 = vand.u32 %v2376, 4294901760
  %2378 = vmatprep.subr.mxu0 %v2377
  %v2379 = vand.u32 %v1399, 4294901760
  %v2380 = vsub.f32 %v1399, %v2379
  %v2381 = vand.u32 %v2380, 4294901760
  %2382 = vmatpush1.msra.mxu0 %v2381
  %v2383 = vand.u32 %v1402, 4294901760
  %v2384 = vsub.f32 %v1402, %v2383
  %v2385 = vand.u32 %v2384, 4294901760
  %2386 = vmatprep.subr.mxu0 %v2385
  %v2387 = vand.u32 %v1401, 4294901760
  %v2388 = vsub.f32 %v1401, %v2387
  %v2389 = vand.u32 %v2388, 4294901760
  %2390 = vmatpush1.msra.mxu0 %v2389
  %v2391 = vand.u32 %v1404, 4294901760
  %v2392 = vsub.f32 %v1404, %v2391
  %v2393 = vand.u32 %v2392, 4294901760
  %2394 = vmatprep.subr.mxu0 %v2393
  %v2395 = vand.u32 %v1403, 4294901760
  %v2396 = vsub.f32 %v1403, %v2395
  %v2397 = vand.u32 %v2396, 4294901760
  %2398 = vmatpush1.msra.mxu0 %v2397
  %v2399 = vand.u32 %v1406, 4294901760
  %v2400 = vsub.f32 %v1406, %v2399
  %v2401 = vand.u32 %v2400, 4294901760
  %2402 = vmatprep.subr.mxu0 %v2401
  %v2403 = vand.u32 %v1405, 4294901760
  %v2404 = vsub.f32 %v1405, %v2403
  %v2405 = vand.u32 %v2404, 4294901760
  %2406 = vmatpush1.msra.mxu0 %v2405
  %v2407 = vand.u32 %v1408, 4294901760
  %v2408 = vsub.f32 %v1408, %v2407
  %v2409 = vand.u32 %v2408, 4294901760
  %2410 = vmatprep.subr.mxu0 %v2409
  %v2411 = vand.u32 %v1407, 4294901760
  %v2412 = vsub.f32 %v1407, %v2411
  %v2413 = vand.u32 %v2412, 4294901760
  %2414 = vmatpush1.msra.mxu0 %v2413
  %v2415 = vand.u32 %v1410, 4294901760
  %v2416 = vsub.f32 %v1410, %v2415
  %v2417 = vand.u32 %v2416, 4294901760
  %2418 = vmatprep.subr.mxu0 %v2417
  %v2419 = vand.u32 %v1409, 4294901760
  %v2420 = vsub.f32 %v1409, %v2419
  %v2421 = vand.u32 %v2420, 4294901760
  %2422 = vmatpush1.msra.mxu0 %v2421
  %v2423 = vand.u32 %v1412, 4294901760
  %v2424 = vsub.f32 %v1412, %v2423
  %v2425 = vand.u32 %v2424, 4294901760
  %2426 = vmatprep.subr.mxu0 %v2425
  %v2427 = vand.u32 %v1411, 4294901760
  %v2428 = vsub.f32 %v1411, %v2427
  %v2429 = vand.u32 %v2428, 4294901760
  %2430 = vmatpush1.msra.mxu0 %v2429
  %v2431 = vand.u32 %v1414, 4294901760
  %v2432 = vsub.f32 %v1414, %v2431
  %v2433 = vand.u32 %v2432, 4294901760
  %2434 = vmatprep.subr.mxu0 %v2433
  %v2435 = vand.u32 %v1413, 4294901760
  %v2436 = vsub.f32 %v1413, %v2435
  %v2437 = vand.u32 %v2436, 4294901760
  %2438 = vmatpush1.msra.mxu0 %v2437
  %v2439 = vand.u32 %v1416, 4294901760
  %v2440 = vsub.f32 %v1416, %v2439
  %v2441 = vand.u32 %v2440, 4294901760
  %2442 = vmatprep.subr.mxu0 %v2441
  %v2443 = vand.u32 %v1415, 4294901760
  %v2444 = vsub.f32 %v1415, %v2443
  %v2445 = vand.u32 %v2444, 4294901760
  %2446 = vmatpush1.msra.mxu0 %v2445
  %v2447 = vand.u32 %v1418, 4294901760
  %v2448 = vsub.f32 %v1418, %v2447
  %v2449 = vand.u32 %v2448, 4294901760
  %2450 = vmatprep.subr.mxu0 %v2449
  %v2451 = vand.u32 %v1417, 4294901760
  %v2452 = vsub.f32 %v1417, %v2451
  %v2453 = vand.u32 %v2452, 4294901760
  %2454 = vmatpush1.msra.mxu0 %v2453
  %v2455 = vand.u32 %v1420, 4294901760
  %v2456 = vsub.f32 %v1420, %v2455
  %v2457 = vand.u32 %v2456, 4294901760
  %2458 = vmatprep.subr.mxu0 %v2457
  %v2459 = vand.u32 %v1419, 4294901760
  %v2460 = vsub.f32 %v1419, %v2459
  %v2461 = vand.u32 %v2460, 4294901760
  %2462 = vmatpush1.msra.mxu0 %v2461
  %v2463 = vand.u32 %v1422, 4294901760
  %v2464 = vsub.f32 %v1422, %v2463
  %v2465 = vand.u32 %v2464, 4294901760
  %2466 = vmatprep.subr.mxu0 %v2465
  %v2467 = vand.u32 %v1421, 4294901760
  %v2468 = vsub.f32 %v1421, %v2467
  %v2469 = vand.u32 %v2468, 4294901760
  %2470 = vmatpush1.msra.mxu0 %v2469
  %v2471 = vand.u32 %v1424, 4294901760
  %v2472 = vsub.f32 %v1424, %v2471
  %v2473 = vand.u32 %v2472, 4294901760
  %2474 = vmatprep.subr.mxu0 %v2473
  %v2475 = vand.u32 %v1423, 4294901760
  %v2476 = vsub.f32 %v1423, %v2475
  %v2477 = vand.u32 %v2476, 4294901760
  %2478 = vmatpush1.msra.mxu0 %v2477
  %v2479 = vand.u32 %v1426, 4294901760
  %v2480 = vsub.f32 %v1426, %v2479
  %v2481 = vand.u32 %v2480, 4294901760
  %2482 = vmatprep.subr.mxu0 %v2481
  %v2483 = vand.u32 %v1425, 4294901760
  %v2484 = vsub.f32 %v1425, %v2483
  %v2485 = vand.u32 %v2484, 4294901760
  %2486 = vmatpush1.msra.mxu0 %v2485
  %v2487 = vand.u32 %v1428, 4294901760
  %v2488 = vsub.f32 %v1428, %v2487
  %v2489 = vand.u32 %v2488, 4294901760
  %2490 = vmatprep.subr.mxu0 %v2489
  %v2491 = vand.u32 %v1427, 4294901760
  %v2492 = vsub.f32 %v1427, %v2491
  %v2493 = vand.u32 %v2492, 4294901760
  %2494 = vmatpush1.msra.mxu0 %v2493
  %v2495 = vand.u32 %v1430, 4294901760
  %v2496 = vsub.f32 %v1430, %v2495
  %v2497 = vand.u32 %v2496, 4294901760
  %2498 = vmatprep.subr.mxu0 %v2497
  %v2499 = vand.u32 %v1429, 4294901760
  %v2500 = vsub.f32 %v1429, %v2499
  %v2501 = vand.u32 %v2500, 4294901760
  %2502 = vmatpush1.msra.mxu0 %v2501
  %v2503 = vand.u32 %v1432, 4294901760
  %v2504 = vsub.f32 %v1432, %v2503
  %v2505 = vand.u32 %v2504, 4294901760
  %2506 = vmatprep.subr.mxu0 %v2505
  %v2507 = vand.u32 %v1431, 4294901760
  %v2508 = vsub.f32 %v1431, %v2507
  %v2509 = vand.u32 %v2508, 4294901760
  %2510 = vmatpush1.msra.mxu0 %v2509
  %v2511 = vand.u32 %v1434, 4294901760
  %v2512 = vsub.f32 %v1434, %v2511
  %v2513 = vand.u32 %v2512, 4294901760
  %2514 = vmatprep.subr.mxu0 %v2513
  %v2515 = vand.u32 %v1433, 4294901760
  %v2516 = vsub.f32 %v1433, %v2515
  %v2517 = vand.u32 %v2516, 4294901760
  %2518 = vmatpush1.msra.mxu0 %v2517
  %v2519 = vand.u32 %v1436, 4294901760
  %v2520 = vsub.f32 %v1436, %v2519
  %v2521 = vand.u32 %v2520, 4294901760
  %2522 = vmatprep.subr.mxu0 %v2521
  %v2523 = vand.u32 %v1435, 4294901760
  %v2524 = vsub.f32 %v1435, %v2523
  %v2525 = vand.u32 %v2524, 4294901760
  %2526 = vmatpush1.msra.mxu0 %v2525
  %v2527 = vand.u32 %v1438, 4294901760
  %v2528 = vsub.f32 %v1438, %v2527
  %v2529 = vand.u32 %v2528, 4294901760
  %2530 = vmatprep.subr.mxu0 %v2529
  %v2531 = vand.u32 %v1437, 4294901760
  %v2532 = vsub.f32 %v1437, %v2531
  %v2533 = vand.u32 %v2532, 4294901760
  %2534 = vmatpush1.msra.mxu0 %v2533
  %v2535 = vand.u32 %v1440, 4294901760
  %v2536 = vsub.f32 %v1440, %v2535
  %v2537 = vand.u32 %v2536, 4294901760
  %2538 = vmatprep.subr.mxu0 %v2537
  %v2539 = vand.u32 %v1439, 4294901760
  %v2540 = vsub.f32 %v1439, %v2539
  %v2541 = vand.u32 %v2540, 4294901760
  %2542 = vmatpush1.msra.mxu0 %v2541
  %v2543 = vand.u32 %v1442, 4294901760
  %v2544 = vsub.f32 %v1442, %v2543
  %v2545 = vand.u32 %v2544, 4294901760
  %2546 = vmatprep.subr.mxu0 %v2545
  %v2547 = vand.u32 %v1441, 4294901760
  %v2548 = vsub.f32 %v1441, %v2547
  %v2549 = vand.u32 %v2548, 4294901760
  %2550 = vmatpush1.msra.mxu0 %v2549
  %v2551 = vand.u32 %v1444, 4294901760
  %v2552 = vsub.f32 %v1444, %v2551
  %v2553 = vand.u32 %v2552, 4294901760
  %2554 = vmatprep.subr.mxu0 %v2553
  %v2555 = vand.u32 %v1443, 4294901760
  %v2556 = vsub.f32 %v1443, %v2555
  %v2557 = vand.u32 %v2556, 4294901760
  %2558 = vmatpush1.msra.mxu0 %v2557
  %v2559 = vand.u32 %v1446, 4294901760
  %v2560 = vsub.f32 %v1446, %v2559
  %v2561 = vand.u32 %v2560, 4294901760
  %2562 = vmatprep.subr.mxu0 %v2561
  %v2563 = vand.u32 %v1445, 4294901760
  %v2564 = vsub.f32 %v1445, %v2563
  %v2565 = vand.u32 %v2564, 4294901760
  %2566 = vmatpush1.msra.mxu0 %v2565
  %v2567 = vand.u32 %v1448, 4294901760
  %v2568 = vsub.f32 %v1448, %v2567
  %v2569 = vand.u32 %v2568, 4294901760
  %2570 = vmatprep.subr.mxu0 %v2569
  %v2571 = vand.u32 %v1447, 4294901760
  %v2572 = vsub.f32 %v1447, %v2571
  %v2573 = vand.u32 %v2572, 4294901760
  %2574 = vmatpush1.msra.mxu0 %v2573
  %v2575 = vand.u32 %v1450, 4294901760
  %v2576 = vsub.f32 %v1450, %v2575
  %v2577 = vand.u32 %v2576, 4294901760
  %2578 = vmatprep.subr.mxu0 %v2577
  %v2579 = vand.u32 %v1449, 4294901760
  %v2580 = vsub.f32 %v1449, %v2579
  %v2581 = vand.u32 %v2580, 4294901760
  %2582 = vmatpush1.msra.mxu0 %v2581
  %v2583 = vand.u32 %v1452, 4294901760
  %v2584 = vsub.f32 %v1452, %v2583
  %v2585 = vand.u32 %v2584, 4294901760
  %2586 = vmatprep.subr.mxu0 %v2585
  %v2587 = vand.u32 %v1451, 4294901760
  %v2588 = vsub.f32 %v1451, %v2587
  %v2589 = vand.u32 %v2588, 4294901760
  %2590 = vmatpush1.msra.mxu0 %v2589
  %v2591 = vand.u32 %v39, 4294901760
  %2592 = vmatprep.mubr.f32.mxu0 %v2591
  %v2593 = vand.u32 %v38, 4294901760
  %2594 = vmatmul.mubr.f32.gmra.mrb[0].mxu0 %v2593
  %v2595 = vpop.f32.mrb[0].mxu0
  %v2596 = vadd.f32 %v2331, %v2595
  %v2597 = vpop.f32.mrb[0].mxu0
  %v2598 = vadd.f32 %v2333, %v2597
  %2599 = vdwg.mxu0
  %v2600 = vand.u32 %v1390, 4294901760
  %2601 = vmatprep.subr.mxu0 %v2600
  %v2602 = vand.u32 %v1389, 4294901760
  %2603 = vmatpush1.msra.mxu0 %v2602
  %v2604 = vand.u32 %v1392, 4294901760
  %2605 = vmatprep.subr.mxu0 %v2604
  %v2606 = vand.u32 %v1391, 4294901760
  %2607 = vmatpush1.msra.mxu0 %v2606
  %v2608 = vand.u32 %v1394, 4294901760
  %2609 = vmatprep.subr.mxu0 %v2608
  %v2610 = vand.u32 %v1393, 4294901760
  %2611 = vmatpush1.msra.mxu0 %v2610
  %v2612 = vand.u32 %v1396, 4294901760
  %2613 = vmatprep.subr.mxu0 %v2612
  %v2614 = vand.u32 %v1395, 4294901760
  %2615 = vmatpush1.msra.mxu0 %v2614
  %v2616 = vand.u32 %v1398, 4294901760
  %2617 = vmatprep.subr.mxu0 %v2616
  %v2618 = vand.u32 %v1397, 4294901760
  %2619 = vmatpush1.msra.mxu0 %v2618
  %v2620 = vand.u32 %v1400, 4294901760
  %2621 = vmatprep.subr.mxu0 %v2620
  %v2622 = vand.u32 %v1399, 4294901760
  %2623 = vmatpush1.msra.mxu0 %v2622
  %v2624 = vand.u32 %v1402, 4294901760
  %2625 = vmatprep.subr.mxu0 %v2624
  %v2626 = vand.u32 %v1401, 4294901760
  %2627 = vmatpush1.msra.mxu0 %v2626
  %v2628 = vand.u32 %v1404, 4294901760
  %2629 = vmatprep.subr.mxu0 %v2628
  %v2630 = vand.u32 %v1403, 4294901760
  %2631 = vmatpush1.msra.mxu0 %v2630
  %v2632 = vand.u32 %v1406, 4294901760
  %2633 = vmatprep.subr.mxu0 %v2632
  %v2634 = vand.u32 %v1405, 4294901760
  %2635 = vmatpush1.msra.mxu0 %v2634
  %v2636 = vand.u32 %v1408, 4294901760
  %2637 = vmatprep.subr.mxu0 %v2636
  %v2638 = vand.u32 %v1407, 4294901760
  %2639 = vmatpush1.msra.mxu0 %v2638
  %v2640 = vand.u32 %v1410, 4294901760
  %2641 = vmatprep.subr.mxu0 %v2640
  %v2642 = vand.u32 %v1409, 4294901760
  %2643 = vmatpush1.msra.mxu0 %v2642
  %v2644 = vand.u32 %v1412, 4294901760
  %2645 = vmatprep.subr.mxu0 %v2644
  %v2646 = vand.u32 %v1411, 4294901760
  %2647 = vmatpush1.msra.mxu0 %v2646
  %v2648 = vand.u32 %v1414, 4294901760
  %2649 = vmatprep.subr.mxu0 %v2648
  %v2650 = vand.u32 %v1413, 4294901760
  %2651 = vmatpush1.msra.mxu0 %v2650
  %v2652 = vand.u32 %v1416, 4294901760
  %2653 = vmatprep.subr.mxu0 %v2652
  %v2654 = vand.u32 %v1415, 4294901760
  %2655 = vmatpush1.msra.mxu0 %v2654
  %v2656 = vand.u32 %v1418, 4294901760
  %2657 = vmatprep.subr.mxu0 %v2656
  %v2658 = vand.u32 %v1417, 4294901760
  %2659 = vmatpush1.msra.mxu0 %v2658
  %v2660 = vand.u32 %v1420, 4294901760
  %2661 = vmatprep.subr.mxu0 %v2660
  %v2662 = vand.u32 %v1419, 4294901760
  %2663 = vmatpush1.msra.mxu0 %v2662
  %v2664 = vand.u32 %v1422, 4294901760
  %2665 = vmatprep.subr.mxu0 %v2664
  %v2666 = vand.u32 %v1421, 4294901760
  %2667 = vmatpush1.msra.mxu0 %v2666
  %v2668 = vand.u32 %v1424, 4294901760
  %2669 = vmatprep.subr.mxu0 %v2668
  %v2670 = vand.u32 %v1423, 4294901760
  %2671 = vmatpush1.msra.mxu0 %v2670
  %v2672 = vand.u32 %v1426, 4294901760
  %2673 = vmatprep.subr.mxu0 %v2672
  %v2674 = vand.u32 %v1425, 4294901760
  %2675 = vmatpush1.msra.mxu0 %v2674
  %v2676 = vand.u32 %v1428, 4294901760
  %2677 = vmatprep.subr.mxu0 %v2676
  %v2678 = vand.u32 %v1427, 4294901760
  %2679 = vmatpush1.msra.mxu0 %v2678
  %v2680 = vand.u32 %v1430, 4294901760
  %2681 = vmatprep.subr.mxu0 %v2680
  %v2682 = vand.u32 %v1429, 4294901760
  %2683 = vmatpush1.msra.mxu0 %v2682
  %v2684 = vand.u32 %v1432, 4294901760
  %2685 = vmatprep.subr.mxu0 %v2684
  %v2686 = vand.u32 %v1431, 4294901760
  %2687 = vmatpush1.msra.mxu0 %v2686
  %v2688 = vand.u32 %v1434, 4294901760
  %2689 = vmatprep.subr.mxu0 %v2688
  %v2690 = vand.u32 %v1433, 4294901760
  %2691 = vmatpush1.msra.mxu0 %v2690
  %v2692 = vand.u32 %v1436, 4294901760
  %2693 = vmatprep.subr.mxu0 %v2692
  %v2694 = vand.u32 %v1435, 4294901760
  %2695 = vmatpush1.msra.mxu0 %v2694
  %v2696 = vand.u32 %v1438, 4294901760
  %2697 = vmatprep.subr.mxu0 %v2696
  %v2698 = vand.u32 %v1437, 4294901760
  %2699 = vmatpush1.msra.mxu0 %v2698
  %v2700 = vand.u32 %v1440, 4294901760
  %2701 = vmatprep.subr.mxu0 %v2700
  %v2702 = vand.u32 %v1439, 4294901760
  %2703 = vmatpush1.msra.mxu0 %v2702
  %v2704 = vand.u32 %v1442, 4294901760
  %2705 = vmatprep.subr.mxu0 %v2704
  %v2706 = vand.u32 %v1441, 4294901760
  %2707 = vmatpush1.msra.mxu0 %v2706
  %v2708 = vand.u32 %v1444, 4294901760
  %2709 = vmatprep.subr.mxu0 %v2708
  %v2710 = vand.u32 %v1443, 4294901760
  %2711 = vmatpush1.msra.mxu0 %v2710
  %v2712 = vand.u32 %v1446, 4294901760
  %2713 = vmatprep.subr.mxu0 %v2712
  %v2714 = vand.u32 %v1445, 4294901760
  %2715 = vmatpush1.msra.mxu0 %v2714
  %v2716 = vand.u32 %v1448, 4294901760
  %2717 = vmatprep.subr.mxu0 %v2716
  %v2718 = vand.u32 %v1447, 4294901760
  %2719 = vmatpush1.msra.mxu0 %v2718
  %v2720 = vand.u32 %v1450, 4294901760
  %2721 = vmatprep.subr.mxu0 %v2720
  %v2722 = vand.u32 %v1449, 4294901760
  %2723 = vmatpush1.msra.mxu0 %v2722
  %v2724 = vand.u32 %v1452, 4294901760
  %2725 = vmatprep.subr.mxu0 %v2724
  %v2726 = vand.u32 %v1451, 4294901760
  %2727 = vmatpush1.msra.mxu0 %v2726
  %v2728 = vand.u32 %v39, 4294901760
  %2729 = vmatprep.mubr.f32.mxu0 %v2728
  %v2730 = vand.u32 %v38, 4294901760
  %2731 = vmatmul.mubr.f32.gmra.mrb[0].mxu0 %v2730
  %v2732 = vpop.f32.mrb[0].mxu0
  %v2733 = vadd.f32 %v2596, %v2732
  %v2734 = vpop.f32.mrb[0].mxu0
  %v2735 = vadd.f32 %v2598, %v2734
  %2736 = vdwg.mxu0
  %v2737 = vmax.f32 %v1384, %v2733
  %v2738 = vmax.f32 %v1386, %v2735
  %s2739 = scalar_lea.vmem %s1, 1024
  %v2740 = vld [vmem:[%s2739] sm:$0xff]
  %v2741 = vld [vmem:[%s2739 + $0x8] sm:$0xff]
  %v2742 = vld [vmem:[%s2739 + $0x10] sm:$0xff]
  %v2743 = vld [vmem:[%s2739 + $0x18] sm:$0xff]
  %v2744 = vld [vmem:[%s2739 + $0x20] sm:$0xff]
  %v2745 = vld [vmem:[%s2739 + $0x28] sm:$0xff]
  %v2746 = vld [vmem:[%s2739 + $0x30] sm:$0xff]
  %v2747 = vld [vmem:[%s2739 + $0x38] sm:$0xff]
  %v2748 = vld [vmem:[%s2739 + $0x40] sm:$0xff]
  %v2749 = vld [vmem:[%s2739 + $0x48] sm:$0xff]
  %v2750 = vld [vmem:[%s2739 + $0x50] sm:$0xff]
  %v2751 = vld [vmem:[%s2739 + $0x58] sm:$0xff]
  %v2752 = vld [vmem:[%s2739 + $0x60] sm:$0xff]
  %v2753 = vld [vmem:[%s2739 + $0x68] sm:$0xff]
  %v2754 = vld [vmem:[%s2739 + $0x70] sm:$0xff]
  %v2755 = vld [vmem:[%s2739 + $0x78] sm:$0xff]
  %v2756 = vld [vmem:[%s2739 + $0x80] sm:$0xff]
  %v2757 = vld [vmem:[%s2739 + $0x88] sm:$0xff]
  %v2758 = vld [vmem:[%s2739 + $0x90] sm:$0xff]
  %v2759 = vld [vmem:[%s2739 + $0x98] sm:$0xff]
  %v2760 = vld [vmem:[%s2739 + $0xa0] sm:$0xff]
  %v2761 = vld [vmem:[%s2739 + $0xa8] sm:$0xff]
  %v2762 = vld [vmem:[%s2739 + $0xb0] sm:$0xff]
  %v2763 = vld [vmem:[%s2739 + $0xb8] sm:$0xff]
  %v2764 = vld [vmem:[%s2739 + $0xc0] sm:$0xff]
  %v2765 = vld [vmem:[%s2739 + $0xc8] sm:$0xff]
  %v2766 = vld [vmem:[%s2739 + $0xd0] sm:$0xff]
  %v2767 = vld [vmem:[%s2739 + $0xd8] sm:$0xff]
  %v2768 = vld [vmem:[%s2739 + $0xe0] sm:$0xff]
  %v2769 = vld [vmem:[%s2739 + $0xe8] sm:$0xff]
  %v2770 = vld [vmem:[%s2739 + $0xf0] sm:$0xff]
  %v2771 = vld [vmem:[%s2739 + $0xf8] sm:$0xff]
  %v2772 = vld [vmem:[%s2739 + $0x100] sm:$0xff]
  %v2773 = vld [vmem:[%s2739 + $0x108] sm:$0xff]
  %v2774 = vld [vmem:[%s2739 + $0x110] sm:$0xff]
  %v2775 = vld [vmem:[%s2739 + $0x118] sm:$0xff]
  %v2776 = vld [vmem:[%s2739 + $0x120] sm:$0xff]
  %v2777 = vld [vmem:[%s2739 + $0x128] sm:$0xff]
  %v2778 = vld [vmem:[%s2739 + $0x130] sm:$0xff]
  %v2779 = vld [vmem:[%s2739 + $0x138] sm:$0xff]
  %v2780 = vld [vmem:[%s2739 + $0x140] sm:$0xff]
  %v2781 = vld [vmem:[%s2739 + $0x148] sm:$0xff]
  %v2782 = vld [vmem:[%s2739 + $0x150] sm:$0xff]
  %v2783 = vld [vmem:[%s2739 + $0x158] sm:$0xff]
  %v2784 = vld [vmem:[%s2739 + $0x160] sm:$0xff]
  %v2785 = vld [vmem:[%s2739 + $0x168] sm:$0xff]
  %v2786 = vld [vmem:[%s2739 + $0x170] sm:$0xff]
  %v2787 = vld [vmem:[%s2739 + $0x178] sm:$0xff]
  %v2788 = vld [vmem:[%s2739 + $0x180] sm:$0xff]
  %v2789 = vld [vmem:[%s2739 + $0x188] sm:$0xff]
  %v2790 = vld [vmem:[%s2739 + $0x190] sm:$0xff]
  %v2791 = vld [vmem:[%s2739 + $0x198] sm:$0xff]
  %v2792 = vld [vmem:[%s2739 + $0x1a0] sm:$0xff]
  %v2793 = vld [vmem:[%s2739 + $0x1a8] sm:$0xff]
  %v2794 = vld [vmem:[%s2739 + $0x1b0] sm:$0xff]
  %v2795 = vld [vmem:[%s2739 + $0x1b8] sm:$0xff]
  %v2796 = vld [vmem:[%s2739 + $0x1c0] sm:$0xff]
  %v2797 = vld [vmem:[%s2739 + $0x1c8] sm:$0xff]
  %v2798 = vld [vmem:[%s2739 + $0x1d0] sm:$0xff]
  %v2799 = vld [vmem:[%s2739 + $0x1d8] sm:$0xff]
  %v2800 = vld [vmem:[%s2739 + $0x1e0] sm:$0xff]
  %v2801 = vld [vmem:[%s2739 + $0x1e8] sm:$0xff]
  %v2802 = vld [vmem:[%s2739 + $0x1f0] sm:$0xff]
  %v2803 = vld [vmem:[%s2739 + $0x1f8] sm:$0xff]
  %v2804 = vand.u32 %v2741, 4294901760
  %2805 = vmatprep.subr.mxu0 %v2804
  %v2806 = vand.u32 %v2740, 4294901760
  %2807 = vmatpush1.msra.mxu0 %v2806
  %v2808 = vand.u32 %v2743, 4294901760
  %2809 = vmatprep.subr.mxu0 %v2808
  %v2810 = vand.u32 %v2742, 4294901760
  %2811 = vmatpush1.msra.mxu0 %v2810
  %v2812 = vand.u32 %v2745, 4294901760
  %2813 = vmatprep.subr.mxu0 %v2812
  %v2814 = vand.u32 %v2744, 4294901760
  %2815 = vmatpush1.msra.mxu0 %v2814
  %v2816 = vand.u32 %v2747, 4294901760
  %2817 = vmatprep.subr.mxu0 %v2816
  %v2818 = vand.u32 %v2746, 4294901760
  %2819 = vmatpush1.msra.mxu0 %v2818
  %v2820 = vand.u32 %v2749, 4294901760
  %2821 = vmatprep.subr.mxu0 %v2820
  %v2822 = vand.u32 %v2748, 4294901760
  %2823 = vmatpush1.msra.mxu0 %v2822
  %v2824 = vand.u32 %v2751, 4294901760
  %2825 = vmatprep.subr.mxu0 %v2824
  %v2826 = vand.u32 %v2750, 4294901760
  %2827 = vmatpush1.msra.mxu0 %v2826
  %v2828 = vand.u32 %v2753, 4294901760
  %2829 = vmatprep.subr.mxu0 %v2828
  %v2830 = vand.u32 %v2752, 4294901760
  %2831 = vmatpush1.msra.mxu0 %v2830
  %v2832 = vand.u32 %v2755, 4294901760
  %2833 = vmatprep.subr.mxu0 %v2832
  %v2834 = vand.u32 %v2754, 4294901760
  %2835 = vmatpush1.msra.mxu0 %v2834
  %v2836 = vand.u32 %v2757, 4294901760
  %2837 = vmatprep.subr.mxu0 %v2836
  %v2838 = vand.u32 %v2756, 4294901760
  %2839 = vmatpush1.msra.mxu0 %v2838
  %v2840 = vand.u32 %v2759, 4294901760
  %2841 = vmatprep.subr.mxu0 %v2840
  %v2842 = vand.u32 %v2758, 4294901760
  %2843 = vmatpush1.msra.mxu0 %v2842
  %v2844 = vand.u32 %v2761, 4294901760
  %2845 = vmatprep.subr.mxu0 %v2844
  %v2846 = vand.u32 %v2760, 4294901760
  %2847 = vmatpush1.msra.mxu0 %v2846
  %v2848 = vand.u32 %v2763, 4294901760
  %2849 = vmatprep.subr.mxu0 %v2848
  %v2850 = vand.u32 %v2762, 4294901760
  %2851 = vmatpush1.msra.mxu0 %v2850
  %v2852 = vand.u32 %v2765, 4294901760
  %2853 = vmatprep.subr.mxu0 %v2852
  %v2854 = vand.u32 %v2764, 4294901760
  %2855 = vmatpush1.msra.mxu0 %v2854
  %v2856 = vand.u32 %v2767, 4294901760
  %2857 = vmatprep.subr.mxu0 %v2856
  %v2858 = vand.u32 %v2766, 4294901760
  %2859 = vmatpush1.msra.mxu0 %v2858
  %v2860 = vand.u32 %v2769, 4294901760
  %2861 = vmatprep.subr.mxu0 %v2860
  %v2862 = vand.u32 %v2768, 4294901760
  %2863 = vmatpush1.msra.mxu0 %v2862
  %v2864 = vand.u32 %v2771, 4294901760
  %2865 = vmatprep.subr.mxu0 %v2864
  %v2866 = vand.u32 %v2770, 4294901760
  %2867 = vmatpush1.msra.mxu0 %v2866
  %v2868 = vand.u32 %v2773, 4294901760
  %2869 = vmatprep.subr.mxu0 %v2868
  %v2870 = vand.u32 %v2772, 4294901760
  %2871 = vmatpush1.msra.mxu0 %v2870
  %v2872 = vand.u32 %v2775, 4294901760
  %2873 = vmatprep.subr.mxu0 %v2872
  %v2874 = vand.u32 %v2774, 4294901760
  %2875 = vmatpush1.msra.mxu0 %v2874
  %v2876 = vand.u32 %v2777, 4294901760
  %2877 = vmatprep.subr.mxu0 %v2876
  %v2878 = vand.u32 %v2776, 4294901760
  %2879 = vmatpush1.msra.mxu0 %v2878
  %v2880 = vand.u32 %v2779, 4294901760
  %2881 = vmatprep.subr.mxu0 %v2880
  %v2882 = vand.u32 %v2778, 4294901760
  %2883 = vmatpush1.msra.mxu0 %v2882
  %v2884 = vand.u32 %v2781, 4294901760
  %2885 = vmatprep.subr.mxu0 %v2884
  %v2886 = vand.u32 %v2780, 4294901760
  %2887 = vmatpush1.msra.mxu0 %v2886
  %v2888 = vand.u32 %v2783, 4294901760
  %2889 = vmatprep.subr.mxu0 %v2888
  %v2890 = vand.u32 %v2782, 4294901760
  %2891 = vmatpush1.msra.mxu0 %v2890
  %v2892 = vand.u32 %v2785, 4294901760
  %2893 = vmatprep.subr.mxu0 %v2892
  %v2894 = vand.u32 %v2784, 4294901760
  %2895 = vmatpush1.msra.mxu0 %v2894
  %v2896 = vand.u32 %v2787, 4294901760
  %2897 = vmatprep.subr.mxu0 %v2896
  %v2898 = vand.u32 %v2786, 4294901760
  %2899 = vmatpush1.msra.mxu0 %v2898
  %v2900 = vand.u32 %v2789, 4294901760
  %2901 = vmatprep.subr.mxu0 %v2900
  %v2902 = vand.u32 %v2788, 4294901760
  %2903 = vmatpush1.msra.mxu0 %v2902
  %v2904 = vand.u32 %v2791, 4294901760
  %2905 = vmatprep.subr.mxu0 %v2904
  %v2906 = vand.u32 %v2790, 4294901760
  %2907 = vmatpush1.msra.mxu0 %v2906
  %v2908 = vand.u32 %v2793, 4294901760
  %2909 = vmatprep.subr.mxu0 %v2908
  %v2910 = vand.u32 %v2792, 4294901760
  %2911 = vmatpush1.msra.mxu0 %v2910
  %v2912 = vand.u32 %v2795, 4294901760
  %2913 = vmatprep.subr.mxu0 %v2912
  %v2914 = vand.u32 %v2794, 4294901760
  %2915 = vmatpush1.msra.mxu0 %v2914
  %v2916 = vand.u32 %v2797, 4294901760
  %2917 = vmatprep.subr.mxu0 %v2916
  %v2918 = vand.u32 %v2796, 4294901760
  %2919 = vmatpush1.msra.mxu0 %v2918
  %v2920 = vand.u32 %v2799, 4294901760
  %2921 = vmatprep.subr.mxu0 %v2920
  %v2922 = vand.u32 %v2798, 4294901760
  %2923 = vmatpush1.msra.mxu0 %v2922
  %v2924 = vand.u32 %v2801, 4294901760
  %2925 = vmatprep.subr.mxu0 %v2924
  %v2926 = vand.u32 %v2800, 4294901760
  %2927 = vmatpush1.msra.mxu0 %v2926
  %v2928 = vand.u32 %v2803, 4294901760
  %2929 = vmatprep.subr.mxu0 %v2928
  %v2930 = vand.u32 %v2802, 4294901760
  %2931 = vmatpush1.msra.mxu0 %v2930
  %v2932 = vand.u32 %v39, 4294901760
  %v2933 = vsub.f32 %v39, %v2932
  %v2934 = vand.u32 %v2933, 4294901760
  %v2935 = vsub.f32 %v2933, %v2934
  %v2936 = vand.u32 %v2935, 4294901760
  %2937 = vmatprep.mubr.f32.mxu0 %v2936
  %v2938 = vand.u32 %v38, 4294901760
  %v2939 = vsub.f32 %v38, %v2938
  %v2940 = vand.u32 %v2939, 4294901760
  %v2941 = vsub.f32 %v2939, %v2940
  %v2942 = vand.u32 %v2941, 4294901760
  %2943 = vmatmul.mubr.f32.gmra.mrb[0].mxu0 %v2942
  %v2944 = vpop.f32.mrb[0].mxu0
  %v2945 = vadd.f32 0.0, %v2944
  %v2946 = vpop.f32.mrb[0].mxu0
  %v2947 = vadd.f32 0.0, %v2946
  %2948 = vdwg.mxu0
  %v2949 = vand.u32 %v2741, 4294901760
  %v2950 = vsub.f32 %v2741, %v2949
  %v2951 = vand.u32 %v2950, 4294901760
  %v2952 = vsub.f32 %v2950, %v2951
  %v2953 = vand.u32 %v2952, 4294901760
  %2954 = vmatprep.subr.mxu0 %v2953
  %v2955 = vand.u32 %v2740, 4294901760
  %v2956 = vsub.f32 %v2740, %v2955
  %v2957 = vand.u32 %v2956, 4294901760
  %v2958 = vsub.f32 %v2956, %v2957
  %v2959 = vand.u32 %v2958, 4294901760
  %2960 = vmatpush1.msra.mxu0 %v2959
  %v2961 = vand.u32 %v2743, 4294901760
  %v2962 = vsub.f32 %v2743, %v2961
  %v2963 = vand.u32 %v2962, 4294901760
  %v2964 = vsub.f32 %v2962, %v2963
  %v2965 = vand.u32 %v2964, 4294901760
  %2966 = vmatprep.subr.mxu0 %v2965
  %v2967 = vand.u32 %v2742, 4294901760
  %v2968 = vsub.f32 %v2742, %v2967
  %v2969 = vand.u32 %v2968, 4294901760
  %v2970 = vsub.f32 %v2968, %v2969
  %v2971 = vand.u32 %v2970, 4294901760
  %2972 = vmatpush1.msra.mxu0 %v2971
  %v2973 = vand.u32 %v2745, 4294901760
  %v2974 = vsub.f32 %v2745, %v2973
  %v2975 = vand.u32 %v2974, 4294901760
  %v2976 = vsub.f32 %v2974, %v2975
  %v2977 = vand.u32 %v2976, 4294901760
  %2978 = vmatprep.subr.mxu0 %v2977
  %v2979 = vand.u32 %v2744, 4294901760
  %v2980 = vsub.f32 %v2744, %v2979
  %v2981 = vand.u32 %v2980, 4294901760
  %v2982 = vsub.f32 %v2980, %v2981
  %v2983 = vand.u32 %v2982, 4294901760
  %2984 = vmatpush1.msra.mxu0 %v2983
  %v2985 = vand.u32 %v2747, 4294901760
  %v2986 = vsub.f32 %v2747, %v2985
  %v2987 = vand.u32 %v2986, 4294901760
  %v2988 = vsub.f32 %v2986, %v2987
  %v2989 = vand.u32 %v2988, 4294901760
  %2990 = vmatprep.subr.mxu0 %v2989
  %v2991 = vand.u32 %v2746, 4294901760
  %v2992 = vsub.f32 %v2746, %v2991
  %v2993 = vand.u32 %v2992, 4294901760
  %v2994 = vsub.f32 %v2992, %v2993
  %v2995 = vand.u32 %v2994, 4294901760
  %2996 = vmatpush1.msra.mxu0 %v2995
  %v2997 = vand.u32 %v2749, 4294901760
  %v2998 = vsub.f32 %v2749, %v2997
  %v2999 = vand.u32 %v2998, 4294901760
  %v3000 = vsub.f32 %v2998, %v2999
  %v3001 = vand.u32 %v3000, 4294901760
  %3002 = vmatprep.subr.mxu0 %v3001
  %v3003 = vand.u32 %v2748, 4294901760
  %v3004 = vsub.f32 %v2748, %v3003
  %v3005 = vand.u32 %v3004, 4294901760
  %v3006 = vsub.f32 %v3004, %v3005
  %v3007 = vand.u32 %v3006, 4294901760
  %3008 = vmatpush1.msra.mxu0 %v3007
  %v3009 = vand.u32 %v2751, 4294901760
  %v3010 = vsub.f32 %v2751, %v3009
  %v3011 = vand.u32 %v3010, 4294901760
  %v3012 = vsub.f32 %v3010, %v3011
  %v3013 = vand.u32 %v3012, 4294901760
  %3014 = vmatprep.subr.mxu0 %v3013
  %v3015 = vand.u32 %v2750, 4294901760
  %v3016 = vsub.f32 %v2750, %v3015
  %v3017 = vand.u32 %v3016, 4294901760
  %v3018 = vsub.f32 %v3016, %v3017
  %v3019 = vand.u32 %v3018, 4294901760
  %3020 = vmatpush1.msra.mxu0 %v3019
  %v3021 = vand.u32 %v2753, 4294901760
  %v3022 = vsub.f32 %v2753, %v3021
  %v3023 = vand.u32 %v3022, 4294901760
  %v3024 = vsub.f32 %v3022, %v3023
  %v3025 = vand.u32 %v3024, 4294901760
  %3026 = vmatprep.subr.mxu0 %v3025
  %v3027 = vand.u32 %v2752, 4294901760
  %v3028 = vsub.f32 %v2752, %v3027
  %v3029 = vand.u32 %v3028, 4294901760
  %v3030 = vsub.f32 %v3028, %v3029
  %v3031 = vand.u32 %v3030, 4294901760
  %3032 = vmatpush1.msra.mxu0 %v3031
  %v3033 = vand.u32 %v2755, 4294901760
  %v3034 = vsub.f32 %v2755, %v3033
  %v3035 = vand.u32 %v3034, 4294901760
  %v3036 = vsub.f32 %v3034, %v3035
  %v3037 = vand.u32 %v3036, 4294901760
  %3038 = vmatprep.subr.mxu0 %v3037
  %v3039 = vand.u32 %v2754, 4294901760
  %v3040 = vsub.f32 %v2754, %v3039
  %v3041 = vand.u32 %v3040, 4294901760
  %v3042 = vsub.f32 %v3040, %v3041
  %v3043 = vand.u32 %v3042, 4294901760
  %3044 = vmatpush1.msra.mxu0 %v3043
  %v3045 = vand.u32 %v2757, 4294901760
  %v3046 = vsub.f32 %v2757, %v3045
  %v3047 = vand.u32 %v3046, 4294901760
  %v3048 = vsub.f32 %v3046, %v3047
  %v3049 = vand.u32 %v3048, 4294901760
  %3050 = vmatprep.subr.mxu0 %v3049
  %v3051 = vand.u32 %v2756, 4294901760
  %v3052 = vsub.f32 %v2756, %v3051
  %v3053 = vand.u32 %v3052, 4294901760
  %v3054 = vsub.f32 %v3052, %v3053
  %v3055 = vand.u32 %v3054, 4294901760
  %3056 = vmatpush1.msra.mxu0 %v3055
  %v3057 = vand.u32 %v2759, 4294901760
  %v3058 = vsub.f32 %v2759, %v3057
  %v3059 = vand.u32 %v3058, 4294901760
  %v3060 = vsub.f32 %v3058, %v3059
  %v3061 = vand.u32 %v3060, 4294901760
  %3062 = vmatprep.subr.mxu0 %v3061
  %v3063 = vand.u32 %v2758, 4294901760
  %v3064 = vsub.f32 %v2758, %v3063
  %v3065 = vand.u32 %v3064, 4294901760
  %v3066 = vsub.f32 %v3064, %v3065
  %v3067 = vand.u32 %v3066, 4294901760
  %3068 = vmatpush1.msra.mxu0 %v3067
  %v3069 = vand.u32 %v2761, 4294901760
  %v3070 = vsub.f32 %v2761, %v3069
  %v3071 = vand.u32 %v3070, 4294901760
  %v3072 = vsub.f32 %v3070, %v3071
  %v3073 = vand.u32 %v3072, 4294901760
  %3074 = vmatprep.subr.mxu0 %v3073
  %v3075 = vand.u32 %v2760, 4294901760
  %v3076 = vsub.f32 %v2760, %v3075
  %v3077 = vand.u32 %v3076, 4294901760
  %v3078 = vsub.f32 %v3076, %v3077
  %v3079 = vand.u32 %v3078, 4294901760
  %3080 = vmatpush1.msra.mxu0 %v3079
  %v3081 = vand.u32 %v2763, 4294901760
  %v3082 = vsub.f32 %v2763, %v3081
  %v3083 = vand.u32 %v3082, 4294901760
  %v3084 = vsub.f32 %v3082, %v3083
  %v3085 = vand.u32 %v3084, 4294901760
  %3086 = vmatprep.subr.mxu0 %v3085
  %v3087 = vand.u32 %v2762, 4294901760
  %v3088 = vsub.f32 %v2762, %v3087
  %v3089 = vand.u32 %v3088, 4294901760
  %v3090 = vsub.f32 %v3088, %v3089
  %v3091 = vand.u32 %v3090, 4294901760
  %3092 = vmatpush1.msra.mxu0 %v3091
  %v3093 = vand.u32 %v2765, 4294901760
  %v3094 = vsub.f32 %v2765, %v3093
  %v3095 = vand.u32 %v3094, 4294901760
  %v3096 = vsub.f32 %v3094, %v3095
  %v3097 = vand.u32 %v3096, 4294901760
  %3098 = vmatprep.subr.mxu0 %v3097
  %v3099 = vand.u32 %v2764, 4294901760
  %v3100 = vsub.f32 %v2764, %v3099
  %v3101 = vand.u32 %v3100, 4294901760
  %v3102 = vsub.f32 %v3100, %v3101
  %v3103 = vand.u32 %v3102, 4294901760
  %3104 = vmatpush1.msra.mxu0 %v3103
  %v3105 = vand.u32 %v2767, 4294901760
  %v3106 = vsub.f32 %v2767, %v3105
  %v3107 = vand.u32 %v3106, 4294901760
  %v3108 = vsub.f32 %v3106, %v3107
  %v3109 = vand.u32 %v3108, 4294901760
  %3110 = vmatprep.subr.mxu0 %v3109
  %v3111 = vand.u32 %v2766, 4294901760
  %v3112 = vsub.f32 %v2766, %v3111
  %v3113 = vand.u32 %v3112, 4294901760
  %v3114 = vsub.f32 %v3112, %v3113
  %v3115 = vand.u32 %v3114, 4294901760
  %3116 = vmatpush1.msra.mxu0 %v3115
  %v3117 = vand.u32 %v2769, 4294901760
  %v3118 = vsub.f32 %v2769, %v3117
  %v3119 = vand.u32 %v3118, 4294901760
  %v3120 = vsub.f32 %v3118, %v3119
  %v3121 = vand.u32 %v3120, 4294901760
  %3122 = vmatprep.subr.mxu0 %v3121
  %v3123 = vand.u32 %v2768, 4294901760
  %v3124 = vsub.f32 %v2768, %v3123
  %v3125 = vand.u32 %v3124, 4294901760
  %v3126 = vsub.f32 %v3124, %v3125
  %v3127 = vand.u32 %v3126, 4294901760
  %3128 = vmatpush1.msra.mxu0 %v3127
  %v3129 = vand.u32 %v2771, 4294901760
  %v3130 = vsub.f32 %v2771, %v3129
  %v3131 = vand.u32 %v3130, 4294901760
  %v3132 = vsub.f32 %v3130, %v3131
  %v3133 = vand.u32 %v3132, 4294901760
  %3134 = vmatprep.subr.mxu0 %v3133
  %v3135 = vand.u32 %v2770, 4294901760
  %v3136 = vsub.f32 %v2770, %v3135
  %v3137 = vand.u32 %v3136, 4294901760
  %v3138 = vsub.f32 %v3136, %v3137
  %v3139 = vand.u32 %v3138, 4294901760
  %3140 = vmatpush1.msra.mxu0 %v3139
  %v3141 = vand.u32 %v2773, 4294901760
  %v3142 = vsub.f32 %v2773, %v3141
  %v3143 = vand.u32 %v3142, 4294901760
  %v3144 = vsub.f32 %v3142, %v3143
  %v3145 = vand.u32 %v3144, 4294901760
  %3146 = vmatprep.subr.mxu0 %v3145
  %v3147 = vand.u32 %v2772, 4294901760
  %v3148 = vsub.f32 %v2772, %v3147
  %v3149 = vand.u32 %v3148, 4294901760
  %v3150 = vsub.f32 %v3148, %v3149
  %v3151 = vand.u32 %v3150, 4294901760
  %3152 = vmatpush1.msra.mxu0 %v3151
  %v3153 = vand.u32 %v2775, 4294901760
  %v3154 = vsub.f32 %v2775, %v3153
  %v3155 = vand.u32 %v3154, 4294901760
  %v3156 = vsub.f32 %v3154, %v3155
  %v3157 = vand.u32 %v3156, 4294901760
  %3158 = vmatprep.subr.mxu0 %v3157
  %v3159 = vand.u32 %v2774, 4294901760
  %v3160 = vsub.f32 %v2774, %v3159
  %v3161 = vand.u32 %v3160, 4294901760
  %v3162 = vsub.f32 %v3160, %v3161
  %v3163 = vand.u32 %v3162, 4294901760
  %3164 = vmatpush1.msra.mxu0 %v3163
  %v3165 = vand.u32 %v2777, 4294901760
  %v3166 = vsub.f32 %v2777, %v3165
  %v3167 = vand.u32 %v3166, 4294901760
  %v3168 = vsub.f32 %v3166, %v3167
  %v3169 = vand.u32 %v3168, 4294901760
  %3170 = vmatprep.subr.mxu0 %v3169
  %v3171 = vand.u32 %v2776, 4294901760
  %v3172 = vsub.f32 %v2776, %v3171
  %v3173 = vand.u32 %v3172, 4294901760
  %v3174 = vsub.f32 %v3172, %v3173
  %v3175 = vand.u32 %v3174, 4294901760
  %3176 = vmatpush1.msra.mxu0 %v3175
  %v3177 = vand.u32 %v2779, 4294901760
  %v3178 = vsub.f32 %v2779, %v3177
  %v3179 = vand.u32 %v3178, 4294901760
  %v3180 = vsub.f32 %v3178, %v3179
  %v3181 = vand.u32 %v3180, 4294901760
  %3182 = vmatprep.subr.mxu0 %v3181
  %v3183 = vand.u32 %v2778, 4294901760
  %v3184 = vsub.f32 %v2778, %v3183
  %v3185 = vand.u32 %v3184, 4294901760
  %v3186 = vsub.f32 %v3184, %v3185
  %v3187 = vand.u32 %v3186, 4294901760
  %3188 = vmatpush1.msra.mxu0 %v3187
  %v3189 = vand.u32 %v2781, 4294901760
  %v3190 = vsub.f32 %v2781, %v3189
  %v3191 = vand.u32 %v3190, 4294901760
  %v3192 = vsub.f32 %v3190, %v3191
  %v3193 = vand.u32 %v3192, 4294901760
  %3194 = vmatprep.subr.mxu0 %v3193
  %v3195 = vand.u32 %v2780, 4294901760
  %v3196 = vsub.f32 %v2780, %v3195
  %v3197 = vand.u32 %v3196, 4294901760
  %v3198 = vsub.f32 %v3196, %v3197
  %v3199 = vand.u32 %v3198, 4294901760
  %3200 = vmatpush1.msra.mxu0 %v3199
  %v3201 = vand.u32 %v2783, 4294901760
  %v3202 = vsub.f32 %v2783, %v3201
  %v3203 = vand.u32 %v3202, 4294901760
  %v3204 = vsub.f32 %v3202, %v3203
  %v3205 = vand.u32 %v3204, 4294901760
  %3206 = vmatprep.subr.mxu0 %v3205
  %v3207 = vand.u32 %v2782, 4294901760
  %v3208 = vsub.f32 %v2782, %v3207
  %v3209 = vand.u32 %v3208, 4294901760
  %v3210 = vsub.f32 %v3208, %v3209
  %v3211 = vand.u32 %v3210, 4294901760
  %3212 = vmatpush1.msra.mxu0 %v3211
  %v3213 = vand.u32 %v2785, 4294901760
  %v3214 = vsub.f32 %v2785, %v3213
  %v3215 = vand.u32 %v3214, 4294901760
  %v3216 = vsub.f32 %v3214, %v3215
  %v3217 = vand.u32 %v3216, 4294901760
  %3218 = vmatprep.subr.mxu0 %v3217
  %v3219 = vand.u32 %v2784, 4294901760
  %v3220 = vsub.f32 %v2784, %v3219
  %v3221 = vand.u32 %v3220, 4294901760
  %v3222 = vsub.f32 %v3220, %v3221
  %v3223 = vand.u32 %v3222, 4294901760
  %3224 = vmatpush1.msra.mxu0 %v3223
  %v3225 = vand.u32 %v2787, 4294901760
  %v3226 = vsub.f32 %v2787, %v3225
  %v3227 = vand.u32 %v3226, 4294901760
  %v3228 = vsub.f32 %v3226, %v3227
  %v3229 = vand.u32 %v3228, 4294901760
  %3230 = vmatprep.subr.mxu0 %v3229
  %v3231 = vand.u32 %v2786, 4294901760
  %v3232 = vsub.f32 %v2786, %v3231
  %v3233 = vand.u32 %v3232, 4294901760
  %v3234 = vsub.f32 %v3232, %v3233
  %v3235 = vand.u32 %v3234, 4294901760
  %3236 = vmatpush1.msra.mxu0 %v3235
  %v3237 = vand.u32 %v2789, 4294901760
  %v3238 = vsub.f32 %v2789, %v3237
  %v3239 = vand.u32 %v3238, 4294901760
  %v3240 = vsub.f32 %v3238, %v3239
  %v3241 = vand.u32 %v3240, 4294901760
  %3242 = vmatprep.subr.mxu0 %v3241
  %v3243 = vand.u32 %v2788, 4294901760
  %v3244 = vsub.f32 %v2788, %v3243
  %v3245 = vand.u32 %v3244, 4294901760
  %v3246 = vsub.f32 %v3244, %v3245
  %v3247 = vand.u32 %v3246, 4294901760
  %3248 = vmatpush1.msra.mxu0 %v3247
  %v3249 = vand.u32 %v2791, 4294901760
  %v3250 = vsub.f32 %v2791, %v3249
  %v3251 = vand.u32 %v3250, 4294901760
  %v3252 = vsub.f32 %v3250, %v3251
  %v3253 = vand.u32 %v3252, 4294901760
  %3254 = vmatprep.subr.mxu0 %v3253
  %v3255 = vand.u32 %v2790, 4294901760
  %v3256 = vsub.f32 %v2790, %v3255
  %v3257 = vand.u32 %v3256, 4294901760
  %v3258 = vsub.f32 %v3256, %v3257
  %v3259 = vand.u32 %v3258, 4294901760
  %3260 = vmatpush1.msra.mxu0 %v3259
  %v3261 = vand.u32 %v2793, 4294901760
  %v3262 = vsub.f32 %v2793, %v3261
  %v3263 = vand.u32 %v3262, 4294901760
  %v3264 = vsub.f32 %v3262, %v3263
  %v3265 = vand.u32 %v3264, 4294901760
  %3266 = vmatprep.subr.mxu0 %v3265
  %v3267 = vand.u32 %v2792, 4294901760
  %v3268 = vsub.f32 %v2792, %v3267
  %v3269 = vand.u32 %v3268, 4294901760
  %v3270 = vsub.f32 %v3268, %v3269
  %v3271 = vand.u32 %v3270, 4294901760
  %3272 = vmatpush1.msra.mxu0 %v3271
  %v3273 = vand.u32 %v2795, 4294901760
  %v3274 = vsub.f32 %v2795, %v3273
  %v3275 = vand.u32 %v3274, 4294901760
  %v3276 = vsub.f32 %v3274, %v3275
  %v3277 = vand.u32 %v3276, 4294901760
  %3278 = vmatprep.subr.mxu0 %v3277
  %v3279 = vand.u32 %v2794, 4294901760
  %v3280 = vsub.f32 %v2794, %v3279
  %v3281 = vand.u32 %v3280, 4294901760
  %v3282 = vsub.f32 %v3280, %v3281
  %v3283 = vand.u32 %v3282, 4294901760
  %3284 = vmatpush1.msra.mxu0 %v3283
  %v3285 = vand.u32 %v2797, 4294901760
  %v3286 = vsub.f32 %v2797, %v3285
  %v3287 = vand.u32 %v3286, 4294901760
  %v3288 = vsub.f32 %v3286, %v3287
  %v3289 = vand.u32 %v3288, 4294901760
  %3290 = vmatprep.subr.mxu0 %v3289
  %v3291 = vand.u32 %v2796, 4294901760
  %v3292 = vsub.f32 %v2796, %v3291
  %v3293 = vand.u32 %v3292, 4294901760
  %v3294 = vsub.f32 %v3292, %v3293
  %v3295 = vand.u32 %v3294, 4294901760
  %3296 = vmatpush1.msra.mxu0 %v3295
  %v3297 = vand.u32 %v2799, 4294901760
  %v3298 = vsub.f32 %v2799, %v3297
  %v3299 = vand.u32 %v3298, 4294901760
  %v3300 = vsub.f32 %v3298, %v3299
  %v3301 = vand.u32 %v3300, 4294901760
  %3302 = vmatprep.subr.mxu0 %v3301
  %v3303 = vand.u32 %v2798, 4294901760
  %v3304 = vsub.f32 %v2798, %v3303
  %v3305 = vand.u32 %v3304, 4294901760
  %v3306 = vsub.f32 %v3304, %v3305
  %v3307 = vand.u32 %v3306, 4294901760
  %3308 = vmatpush1.msra.mxu0 %v3307
  %v3309 = vand.u32 %v2801, 4294901760
  %v3310 = vsub.f32 %v2801, %v3309
  %v3311 = vand.u32 %v3310, 4294901760
  %v3312 = vsub.f32 %v3310, %v3311
  %v3313 = vand.u32 %v3312, 4294901760
  %3314 = vmatprep.subr.mxu0 %v3313
  %v3315 = vand.u32 %v2800, 4294901760
  %v3316 = vsub.f32 %v2800, %v3315
  %v3317 = vand.u32 %v3316, 4294901760
  %v3318 = vsub.f32 %v3316, %v3317
  %v3319 = vand.u32 %v3318, 4294901760
  %3320 = vmatpush1.msra.mxu0 %v3319
  %v3321 = vand.u32 %v2803, 4294901760
  %v3322 = vsub.f32 %v2803, %v3321
  %v3323 = vand.u32 %v3322, 4294901760
  %v3324 = vsub.f32 %v3322, %v3323
  %v3325 = vand.u32 %v3324, 4294901760
  %3326 = vmatprep.subr.mxu0 %v3325
  %v3327 = vand.u32 %v2802, 4294901760
  %v3328 = vsub.f32 %v2802, %v3327
  %v3329 = vand.u32 %v3328, 4294901760
  %v3330 = vsub.f32 %v3328, %v3329
  %v3331 = vand.u32 %v3330, 4294901760
  %3332 = vmatpush1.msra.mxu0 %v3331
  %v3333 = vand.u32 %v39, 4294901760
  %3334 = vmatprep.mubr.f32.mxu0 %v3333
  %v3335 = vand.u32 %v38, 4294901760
  %3336 = vmatmul.mubr.f32.gmra.mrb[0].mxu0 %v3335
  %v3337 = vpop.f32.mrb[0].mxu0
  %v3338 = vadd.f32 %v2945, %v3337
  %v3339 = vpop.f32.mrb[0].mxu0
  %v3340 = vadd.f32 %v2947, %v3339
  %3341 = vdwg.mxu0
  %v3342 = vand.u32 %v2741, 4294901760
  %v3343 = vsub.f32 %v2741, %v3342
  %3344 = vmatprep.subr.mxu0 %v3343
  %v3345 = vand.u32 %v2740, 4294901760
  %v3346 = vsub.f32 %v2740, %v3345
  %3347 = vmatpush1.msra.mxu0 %v3346
  %v3348 = vand.u32 %v2743, 4294901760
  %v3349 = vsub.f32 %v2743, %v3348
  %3350 = vmatprep.subr.mxu0 %v3349
  %v3351 = vand.u32 %v2742, 4294901760
  %v3352 = vsub.f32 %v2742, %v3351
  %3353 = vmatpush1.msra.mxu0 %v3352
  %v3354 = vand.u32 %v2745, 4294901760
  %v3355 = vsub.f32 %v2745, %v3354
  %3356 = vmatprep.subr.mxu0 %v3355
  %v3357 = vand.u32 %v2744, 4294901760
  %v3358 = vsub.f32 %v2744, %v3357
  %3359 = vmatpush1.msra.mxu0 %v3358
  %v3360 = vand.u32 %v2747, 4294901760
  %v3361 = vsub.f32 %v2747, %v3360
  %3362 = vmatprep.subr.mxu0 %v3361
  %v3363 = vand.u32 %v2746, 4294901760
  %v3364 = vsub.f32 %v2746, %v3363
  %3365 = vmatpush1.msra.mxu0 %v3364
  %v3366 = vand.u32 %v2749, 4294901760
  %v3367 = vsub.f32 %v2749, %v3366
  %3368 = vmatprep.subr.mxu0 %v3367
  %v3369 = vand.u32 %v2748, 4294901760
  %v3370 = vsub.f32 %v2748, %v3369
  %3371 = vmatpush1.msra.mxu0 %v3370
  %v3372 = vand.u32 %v2751, 4294901760
  %v3373 = vsub.f32 %v2751, %v3372
  %3374 = vmatprep.subr.mxu0 %v3373
  %v3375 = vand.u32 %v2750, 4294901760
  %v3376 = vsub.f32 %v2750, %v3375
  %3377 = vmatpush1.msra.mxu0 %v3376
  %v3378 = vand.u32 %v2753, 4294901760
  %v3379 = vsub.f32 %v2753, %v3378
  %3380 = vmatprep.subr.mxu0 %v3379
  %v3381 = vand.u32 %v2752, 4294901760
  %v3382 = vsub.f32 %v2752, %v3381
  %3383 = vmatpush1.msra.mxu0 %v3382
  %v3384 = vand.u32 %v2755, 4294901760
  %v3385 = vsub.f32 %v2755, %v3384
  %3386 = vmatprep.subr.mxu0 %v3385
  %v3387 = vand.u32 %v2754, 4294901760
  %v3388 = vsub.f32 %v2754, %v3387
  %3389 = vmatpush1.msra.mxu0 %v3388
  %v3390 = vand.u32 %v2757, 4294901760
  %v3391 = vsub.f32 %v2757, %v3390
  %3392 = vmatprep.subr.mxu0 %v3391
  %v3393 = vand.u32 %v2756, 4294901760
  %v3394 = vsub.f32 %v2756, %v3393
  %3395 = vmatpush1.msra.mxu0 %v3394
  %v3396 = vand.u32 %v2759, 4294901760
  %v3397 = vsub.f32 %v2759, %v3396
  %3398 = vmatprep.subr.mxu0 %v3397
  %v3399 = vand.u32 %v2758, 4294901760
  %v3400 = vsub.f32 %v2758, %v3399
  %3401 = vmatpush1.msra.mxu0 %v3400
  %v3402 = vand.u32 %v2761, 4294901760
  %v3403 = vsub.f32 %v2761, %v3402
  %3404 = vmatprep.subr.mxu0 %v3403
  %v3405 = vand.u32 %v2760, 4294901760
  %v3406 = vsub.f32 %v2760, %v3405
  %3407 = vmatpush1.msra.mxu0 %v3406
  %v3408 = vand.u32 %v2763, 4294901760
  %v3409 = vsub.f32 %v2763, %v3408
  %3410 = vmatprep.subr.mxu0 %v3409
  %v3411 = vand.u32 %v2762, 4294901760
  %v3412 = vsub.f32 %v2762, %v3411
  %3413 = vmatpush1.msra.mxu0 %v3412
  %v3414 = vand.u32 %v2765, 4294901760
  %v3415 = vsub.f32 %v2765, %v3414
  %3416 = vmatprep.subr.mxu0 %v3415
  %v3417 = vand.u32 %v2764, 4294901760
  %v3418 = vsub.f32 %v2764, %v3417
  %3419 = vmatpush1.msra.mxu0 %v3418
  %v3420 = vand.u32 %v2767, 4294901760
  %v3421 = vsub.f32 %v2767, %v3420
  %3422 = vmatprep.subr.mxu0 %v3421
  %v3423 = vand.u32 %v2766, 4294901760
  %v3424 = vsub.f32 %v2766, %v3423
  %3425 = vmatpush1.msra.mxu0 %v3424
  %v3426 = vand.u32 %v2769, 4294901760
  %v3427 = vsub.f32 %v2769, %v3426
  %3428 = vmatprep.subr.mxu0 %v3427
  %v3429 = vand.u32 %v2768, 4294901760
  %v3430 = vsub.f32 %v2768, %v3429
  %3431 = vmatpush1.msra.mxu0 %v3430
  %v3432 = vand.u32 %v2771, 4294901760
  %v3433 = vsub.f32 %v2771, %v3432
  %3434 = vmatprep.subr.mxu0 %v3433
  %v3435 = vand.u32 %v2770, 4294901760
  %v3436 = vsub.f32 %v2770, %v3435
  %3437 = vmatpush1.msra.mxu0 %v3436
  %v3438 = vand.u32 %v2773, 4294901760
  %v3439 = vsub.f32 %v2773, %v3438
  %3440 = vmatprep.subr.mxu0 %v3439
  %v3441 = vand.u32 %v2772, 4294901760
  %v3442 = vsub.f32 %v2772, %v3441
  %3443 = vmatpush1.msra.mxu0 %v3442
  %v3444 = vand.u32 %v2775, 4294901760
  %v3445 = vsub.f32 %v2775, %v3444
  %3446 = vmatprep.subr.mxu0 %v3445
  %v3447 = vand.u32 %v2774, 4294901760
  %v3448 = vsub.f32 %v2774, %v3447
  %3449 = vmatpush1.msra.mxu0 %v3448
  %v3450 = vand.u32 %v2777, 4294901760
  %v3451 = vsub.f32 %v2777, %v3450
  %3452 = vmatprep.subr.mxu0 %v3451
  %v3453 = vand.u32 %v2776, 4294901760
  %v3454 = vsub.f32 %v2776, %v3453
  %3455 = vmatpush1.msra.mxu0 %v3454
  %v3456 = vand.u32 %v2779, 4294901760
  %v3457 = vsub.f32 %v2779, %v3456
  %3458 = vmatprep.subr.mxu0 %v3457
  %v3459 = vand.u32 %v2778, 4294901760
  %v3460 = vsub.f32 %v2778, %v3459
  %3461 = vmatpush1.msra.mxu0 %v3460
  %v3462 = vand.u32 %v2781, 4294901760
  %v3463 = vsub.f32 %v2781, %v3462
  %3464 = vmatprep.subr.mxu0 %v3463
  %v3465 = vand.u32 %v2780, 4294901760
  %v3466 = vsub.f32 %v2780, %v3465
  %3467 = vmatpush1.msra.mxu0 %v3466
  %v3468 = vand.u32 %v2783, 4294901760
  %v3469 = vsub.f32 %v2783, %v3468
  %3470 = vmatprep.subr.mxu0 %v3469
  %v3471 = vand.u32 %v2782, 4294901760
  %v3472 = vsub.f32 %v2782, %v3471
  %3473 = vmatpush1.msra.mxu0 %v3472
  %v3474 = vand.u32 %v2785, 4294901760
  %v3475 = vsub.f32 %v2785, %v3474
  %3476 = vmatprep.subr.mxu0 %v3475
  %v3477 = vand.u32 %v2784, 4294901760
  %v3478 = vsub.f32 %v2784, %v3477
  %3479 = vmatpush1.msra.mxu0 %v3478
  %v3480 = vand.u32 %v2787, 4294901760
  %v3481 = vsub.f32 %v2787, %v3480
  %3482 = vmatprep.subr.mxu0 %v3481
  %v3483 = vand.u32 %v2786, 4294901760
  %v3484 = vsub.f32 %v2786, %v3483
  %3485 = vmatpush1.msra.mxu0 %v3484
  %v3486 = vand.u32 %v2789, 4294901760
  %v3487 = vsub.f32 %v2789, %v3486
  %3488 = vmatprep.subr.mxu0 %v3487
  %v3489 = vand.u32 %v2788, 4294901760
  %v3490 = vsub.f32 %v2788, %v3489
  %3491 = vmatpush1.msra.mxu0 %v3490
  %v3492 = vand.u32 %v2791, 4294901760
  %v3493 = vsub.f32 %v2791, %v3492
  %3494 = vmatprep.subr.mxu0 %v3493
  %v3495 = vand.u32 %v2790, 4294901760
  %v3496 = vsub.f32 %v2790, %v3495
  %3497 = vmatpush1.msra.mxu0 %v3496
  %v3498 = vand.u32 %v2793, 4294901760
  %v3499 = vsub.f32 %v2793, %v3498
  %3500 = vmatprep.subr.mxu0 %v3499
  %v3501 = vand.u32 %v2792, 4294901760
  %v3502 = vsub.f32 %v2792, %v3501
  %3503 = vmatpush1.msra.mxu0 %v3502
  %v3504 = vand.u32 %v2795, 4294901760
  %v3505 = vsub.f32 %v2795, %v3504
  %3506 = vmatprep.subr.mxu0 %v3505
  %v3507 = vand.u32 %v2794, 4294901760
  %v3508 = vsub.f32 %v2794, %v3507
  %3509 = vmatpush1.msra.mxu0 %v3508
  %v3510 = vand.u32 %v2797, 4294901760
  %v3511 = vsub.f32 %v2797, %v3510
  %3512 = vmatprep.subr.mxu0 %v3511
  %v3513 = vand.u32 %v2796, 4294901760
  %v3514 = vsub.f32 %v2796, %v3513
  %3515 = vmatpush1.msra.mxu0 %v3514
  %v3516 = vand.u32 %v2799, 4294901760
  %v3517 = vsub.f32 %v2799, %v3516
  %3518 = vmatprep.subr.mxu0 %v3517
  %v3519 = vand.u32 %v2798, 4294901760
  %v3520 = vsub.f32 %v2798, %v3519
  %3521 = vmatpush1.msra.mxu0 %v3520
  %v3522 = vand.u32 %v2801, 4294901760
  %v3523 = vsub.f32 %v2801, %v3522
  %3524 = vmatprep.subr.mxu0 %v3523
  %v3525 = vand.u32 %v2800, 4294901760
  %v3526 = vsub.f32 %v2800, %v3525
  %3527 = vmatpush1.msra.mxu0 %v3526
  %v3528 = vand.u32 %v2803, 4294901760
  %v3529 = vsub.f32 %v2803, %v3528
  %3530 = vmatprep.subr.mxu0 %v3529
  %v3531 = vand.u32 %v2802, 4294901760
  %v3532 = vsub.f32 %v2802, %v3531
  %3533 = vmatpush1.msra.mxu0 %v3532
  %v3534 = vand.u32 %v39, 4294901760
  %v3535 = vsub.f32 %v39, %v3534
  %3536 = vmatprep.mubr.f32.mxu0 %v3535
  %v3537 = vand.u32 %v38, 4294901760
  %v3538 = vsub.f32 %v38, %v3537
  %3539 = vmatmul.mubr.f32.gmra.mrb[0].mxu0 %v3538
  %v3540 = vpop.f32.mrb[0].mxu0
  %v3541 = vadd.f32 %v3338, %v3540
  %v3542 = vpop.f32.mrb[0].mxu0
  %v3543 = vadd.f32 %v3340, %v3542
  %3544 = vdwg.mxu0
  %v3545 = vand.u32 %v2741, 4294901760
  %3546 = vmatprep.subr.mxu0 %v3545
  %v3547 = vand.u32 %v2740, 4294901760
  %3548 = vmatpush1.msra.mxu0 %v3547
  %v3549 = vand.u32 %v2743, 4294901760
  %3550 = vmatprep.subr.mxu0 %v3549
  %v3551 = vand.u32 %v2742, 4294901760
  %3552 = vmatpush1.msra.mxu0 %v3551
  %v3553 = vand.u32 %v2745, 4294901760
  %3554 = vmatprep.subr.mxu0 %v3553
  %v3555 = vand.u32 %v2744, 4294901760
  %3556 = vmatpush1.msra.mxu0 %v3555
  %v3557 = vand.u32 %v2747, 4294901760
  %3558 = vmatprep.subr.mxu0 %v3557
  %v3559 = vand.u32 %v2746, 4294901760
  %3560 = vmatpush1.msra.mxu0 %v3559
  %v3561 = vand.u32 %v2749, 4294901760
  %3562 = vmatprep.subr.mxu0 %v3561
  %v3563 = vand.u32 %v2748, 4294901760
  %3564 = vmatpush1.msra.mxu0 %v3563
  %v3565 = vand.u32 %v2751, 4294901760
  %3566 = vmatprep.subr.mxu0 %v3565
  %v3567 = vand.u32 %v2750, 4294901760
  %3568 = vmatpush1.msra.mxu0 %v3567
  %v3569 = vand.u32 %v2753, 4294901760
  %3570 = vmatprep.subr.mxu0 %v3569
  %v3571 = vand.u32 %v2752, 4294901760
  %3572 = vmatpush1.msra.mxu0 %v3571
  %v3573 = vand.u32 %v2755, 4294901760
  %3574 = vmatprep.subr.mxu0 %v3573
  %v3575 = vand.u32 %v2754, 4294901760
  %3576 = vmatpush1.msra.mxu0 %v3575
  %v3577 = vand.u32 %v2757, 4294901760
  %3578 = vmatprep.subr.mxu0 %v3577
  %v3579 = vand.u32 %v2756, 4294901760
  %3580 = vmatpush1.msra.mxu0 %v3579
  %v3581 = vand.u32 %v2759, 4294901760
  %3582 = vmatprep.subr.mxu0 %v3581
  %v3583 = vand.u32 %v2758, 4294901760
  %3584 = vmatpush1.msra.mxu0 %v3583
  %v3585 = vand.u32 %v2761, 4294901760
  %3586 = vmatprep.subr.mxu0 %v3585
  %v3587 = vand.u32 %v2760, 4294901760
  %3588 = vmatpush1.msra.mxu0 %v3587
  %v3589 = vand.u32 %v2763, 4294901760
  %3590 = vmatprep.subr.mxu0 %v3589
  %v3591 = vand.u32 %v2762, 4294901760
  %3592 = vmatpush1.msra.mxu0 %v3591
  %v3593 = vand.u32 %v2765, 4294901760
  %3594 = vmatprep.subr.mxu0 %v3593
  %v3595 = vand.u32 %v2764, 4294901760
  %3596 = vmatpush1.msra.mxu0 %v3595
  %v3597 = vand.u32 %v2767, 4294901760
  %3598 = vmatprep.subr.mxu0 %v3597
  %v3599 = vand.u32 %v2766, 4294901760
  %3600 = vmatpush1.msra.mxu0 %v3599
  %v3601 = vand.u32 %v2769, 4294901760
  %3602 = vmatprep.subr.mxu0 %v3601
  %v3603 = vand.u32 %v2768, 4294901760
  %3604 = vmatpush1.msra.mxu0 %v3603
  %v3605 = vand.u32 %v2771, 4294901760
  %3606 = vmatprep.subr.mxu0 %v3605
  %v3607 = vand.u32 %v2770, 4294901760
  %3608 = vmatpush1.msra.mxu0 %v3607
  %v3609 = vand.u32 %v2773, 4294901760
  %3610 = vmatprep.subr.mxu0 %v3609
  %v3611 = vand.u32 %v2772, 4294901760
  %3612 = vmatpush1.msra.mxu0 %v3611
  %v3613 = vand.u32 %v2775, 4294901760
  %3614 = vmatprep.subr.mxu0 %v3613
  %v3615 = vand.u32 %v2774, 4294901760
  %3616 = vmatpush1.msra.mxu0 %v3615
  %v3617 = vand.u32 %v2777, 4294901760
  %3618 = vmatprep.subr.mxu0 %v3617
  %v3619 = vand.u32 %v2776, 4294901760
  %3620 = vmatpush1.msra.mxu0 %v3619
  %v3621 = vand.u32 %v2779, 4294901760
  %3622 = vmatprep.subr.mxu0 %v3621
  %v3623 = vand.u32 %v2778, 4294901760
  %3624 = vmatpush1.msra.mxu0 %v3623
  %v3625 = vand.u32 %v2781, 4294901760
  %3626 = vmatprep.subr.mxu0 %v3625
  %v3627 = vand.u32 %v2780, 4294901760
  %3628 = vmatpush1.msra.mxu0 %v3627
  %v3629 = vand.u32 %v2783, 4294901760
  %3630 = vmatprep.subr.mxu0 %v3629
  %v3631 = vand.u32 %v2782, 4294901760
  %3632 = vmatpush1.msra.mxu0 %v3631
  %v3633 = vand.u32 %v2785, 4294901760
  %3634 = vmatprep.subr.mxu0 %v3633
  %v3635 = vand.u32 %v2784, 4294901760
  %3636 = vmatpush1.msra.mxu0 %v3635
  %v3637 = vand.u32 %v2787, 4294901760
  %3638 = vmatprep.subr.mxu0 %v3637
  %v3639 = vand.u32 %v2786, 4294901760
  %3640 = vmatpush1.msra.mxu0 %v3639
  %v3641 = vand.u32 %v2789, 4294901760
  %3642 = vmatprep.subr.mxu0 %v3641
  %v3643 = vand.u32 %v2788, 4294901760
  %3644 = vmatpush1.msra.mxu0 %v3643
  %v3645 = vand.u32 %v2791, 4294901760
  %3646 = vmatprep.subr.mxu0 %v3645
  %v3647 = vand.u32 %v2790, 4294901760
  %3648 = vmatpush1.msra.mxu0 %v3647
  %v3649 = vand.u32 %v2793, 4294901760
  %3650 = vmatprep.subr.mxu0 %v3649
  %v3651 = vand.u32 %v2792, 4294901760
  %3652 = vmatpush1.msra.mxu0 %v3651
  %v3653 = vand.u32 %v2795, 4294901760
  %3654 = vmatprep.subr.mxu0 %v3653
  %v3655 = vand.u32 %v2794, 4294901760
  %3656 = vmatpush1.msra.mxu0 %v3655
  %v3657 = vand.u32 %v2797, 4294901760
  %3658 = vmatprep.subr.mxu0 %v3657
  %v3659 = vand.u32 %v2796, 4294901760
  %3660 = vmatpush1.msra.mxu0 %v3659
  %v3661 = vand.u32 %v2799, 4294901760
  %3662 = vmatprep.subr.mxu0 %v3661
  %v3663 = vand.u32 %v2798, 4294901760
  %3664 = vmatpush1.msra.mxu0 %v3663
  %v3665 = vand.u32 %v2801, 4294901760
  %3666 = vmatprep.subr.mxu0 %v3665
  %v3667 = vand.u32 %v2800, 4294901760
  %3668 = vmatpush1.msra.mxu0 %v3667
  %v3669 = vand.u32 %v2803, 4294901760
  %3670 = vmatprep.subr.mxu0 %v3669
  %v3671 = vand.u32 %v2802, 4294901760
  %3672 = vmatpush1.msra.mxu0 %v3671
  %v3673 = vand.u32 %v39, 4294901760
  %v3674 = vsub.f32 %v39, %v3673
  %v3675 = vand.u32 %v3674, 4294901760
  %3676 = vmatprep.mubr.f32.mxu0 %v3675
  %v3677 = vand.u32 %v38, 4294901760
  %v3678 = vsub.f32 %v38, %v3677
  %v3679 = vand.u32 %v3678, 4294901760
  %3680 = vmatmul.mubr.f32.gmra.mrb[0].mxu0 %v3679
  %v3681 = vpop.f32.mrb[0].mxu0
  %v3682 = vadd.f32 %v3541, %v3681
  %v3683 = vpop.f32.mrb[0].mxu0
  %v3684 = vadd.f32 %v3543, %v3683
  %3685 = vdwg.mxu0
  %v3686 = vand.u32 %v2741, 4294901760
  %v3687 = vsub.f32 %v2741, %v3686
  %v3688 = vand.u32 %v3687, 4294901760
  %3689 = vmatprep.subr.mxu0 %v3688
  %v3690 = vand.u32 %v2740, 4294901760
  %v3691 = vsub.f32 %v2740, %v3690
  %v3692 = vand.u32 %v3691, 4294901760
  %3693 = vmatpush1.msra.mxu0 %v3692
  %v3694 = vand.u32 %v2743, 4294901760
  %v3695 = vsub.f32 %v2743, %v3694
  %v3696 = vand.u32 %v3695, 4294901760
  %3697 = vmatprep.subr.mxu0 %v3696
  %v3698 = vand.u32 %v2742, 4294901760
  %v3699 = vsub.f32 %v2742, %v3698
  %v3700 = vand.u32 %v3699, 4294901760
  %3701 = vmatpush1.msra.mxu0 %v3700
  %v3702 = vand.u32 %v2745, 4294901760
  %v3703 = vsub.f32 %v2745, %v3702
  %v3704 = vand.u32 %v3703, 4294901760
  %3705 = vmatprep.subr.mxu0 %v3704
  %v3706 = vand.u32 %v2744, 4294901760
  %v3707 = vsub.f32 %v2744, %v3706
  %v3708 = vand.u32 %v3707, 4294901760
  %3709 = vmatpush1.msra.mxu0 %v3708
  %v3710 = vand.u32 %v2747, 4294901760
  %v3711 = vsub.f32 %v2747, %v3710
  %v3712 = vand.u32 %v3711, 4294901760
  %3713 = vmatprep.subr.mxu0 %v3712
  %v3714 = vand.u32 %v2746, 4294901760
  %v3715 = vsub.f32 %v2746, %v3714
  %v3716 = vand.u32 %v3715, 4294901760
  %3717 = vmatpush1.msra.mxu0 %v3716
  %v3718 = vand.u32 %v2749, 4294901760
  %v3719 = vsub.f32 %v2749, %v3718
  %v3720 = vand.u32 %v3719, 4294901760
  %3721 = vmatprep.subr.mxu0 %v3720
  %v3722 = vand.u32 %v2748, 4294901760
  %v3723 = vsub.f32 %v2748, %v3722
  %v3724 = vand.u32 %v3723, 4294901760
  %3725 = vmatpush1.msra.mxu0 %v3724
  %v3726 = vand.u32 %v2751, 4294901760
  %v3727 = vsub.f32 %v2751, %v3726
  %v3728 = vand.u32 %v3727, 4294901760
  %3729 = vmatprep.subr.mxu0 %v3728
  %v3730 = vand.u32 %v2750, 4294901760
  %v3731 = vsub.f32 %v2750, %v3730
  %v3732 = vand.u32 %v3731, 4294901760
  %3733 = vmatpush1.msra.mxu0 %v3732
  %v3734 = vand.u32 %v2753, 4294901760
  %v3735 = vsub.f32 %v2753, %v3734
  %v3736 = vand.u32 %v3735, 4294901760
  %3737 = vmatprep.subr.mxu0 %v3736
  %v3738 = vand.u32 %v2752, 4294901760
  %v3739 = vsub.f32 %v2752, %v3738
  %v3740 = vand.u32 %v3739, 4294901760
  %3741 = vmatpush1.msra.mxu0 %v3740
  %v3742 = vand.u32 %v2755, 4294901760
  %v3743 = vsub.f32 %v2755, %v3742
  %v3744 = vand.u32 %v3743, 4294901760
  %3745 = vmatprep.subr.mxu0 %v3744
  %v3746 = vand.u32 %v2754, 4294901760
  %v3747 = vsub.f32 %v2754, %v3746
  %v3748 = vand.u32 %v3747, 4294901760
  %3749 = vmatpush1.msra.mxu0 %v3748
  %v3750 = vand.u32 %v2757, 4294901760
  %v3751 = vsub.f32 %v2757, %v3750
  %v3752 = vand.u32 %v3751, 4294901760
  %3753 = vmatprep.subr.mxu0 %v3752
  %v3754 = vand.u32 %v2756, 4294901760
  %v3755 = vsub.f32 %v2756, %v3754
  %v3756 = vand.u32 %v3755, 4294901760
  %3757 = vmatpush1.msra.mxu0 %v3756
  %v3758 = vand.u32 %v2759, 4294901760
  %v3759 = vsub.f32 %v2759, %v3758
  %v3760 = vand.u32 %v3759, 4294901760
  %3761 = vmatprep.subr.mxu0 %v3760
  %v3762 = vand.u32 %v2758, 4294901760
  %v3763 = vsub.f32 %v2758, %v3762
  %v3764 = vand.u32 %v3763, 4294901760
  %3765 = vmatpush1.msra.mxu0 %v3764
  %v3766 = vand.u32 %v2761, 4294901760
  %v3767 = vsub.f32 %v2761, %v3766
  %v3768 = vand.u32 %v3767, 4294901760
  %3769 = vmatprep.subr.mxu0 %v3768
  %v3770 = vand.u32 %v2760, 4294901760
  %v3771 = vsub.f32 %v2760, %v3770
  %v3772 = vand.u32 %v3771, 4294901760
  %3773 = vmatpush1.msra.mxu0 %v3772
  %v3774 = vand.u32 %v2763, 4294901760
  %v3775 = vsub.f32 %v2763, %v3774
  %v3776 = vand.u32 %v3775, 4294901760
  %3777 = vmatprep.subr.mxu0 %v3776
  %v3778 = vand.u32 %v2762, 4294901760
  %v3779 = vsub.f32 %v2762, %v3778
  %v3780 = vand.u32 %v3779, 4294901760
  %3781 = vmatpush1.msra.mxu0 %v3780
  %v3782 = vand.u32 %v2765, 4294901760
  %v3783 = vsub.f32 %v2765, %v3782
  %v3784 = vand.u32 %v3783, 4294901760
  %3785 = vmatprep.subr.mxu0 %v3784
  %v3786 = vand.u32 %v2764, 4294901760
  %v3787 = vsub.f32 %v2764, %v3786
  %v3788 = vand.u32 %v3787, 4294901760
  %3789 = vmatpush1.msra.mxu0 %v3788
  %v3790 = vand.u32 %v2767, 4294901760
  %v3791 = vsub.f32 %v2767, %v3790
  %v3792 = vand.u32 %v3791, 4294901760
  %3793 = vmatprep.subr.mxu0 %v3792
  %v3794 = vand.u32 %v2766, 4294901760
  %v3795 = vsub.f32 %v2766, %v3794
  %v3796 = vand.u32 %v3795, 4294901760
  %3797 = vmatpush1.msra.mxu0 %v3796
  %v3798 = vand.u32 %v2769, 4294901760
  %v3799 = vsub.f32 %v2769, %v3798
  %v3800 = vand.u32 %v3799, 4294901760
  %3801 = vmatprep.subr.mxu0 %v3800
  %v3802 = vand.u32 %v2768, 4294901760
  %v3803 = vsub.f32 %v2768, %v3802
  %v3804 = vand.u32 %v3803, 4294901760
  %3805 = vmatpush1.msra.mxu0 %v3804
  %v3806 = vand.u32 %v2771, 4294901760
  %v3807 = vsub.f32 %v2771, %v3806
  %v3808 = vand.u32 %v3807, 4294901760
  %3809 = vmatprep.subr.mxu0 %v3808
  %v3810 = vand.u32 %v2770, 4294901760
  %v3811 = vsub.f32 %v2770, %v3810
  %v3812 = vand.u32 %v3811, 4294901760
  %3813 = vmatpush1.msra.mxu0 %v3812
  %v3814 = vand.u32 %v2773, 4294901760
  %v3815 = vsub.f32 %v2773, %v3814
  %v3816 = vand.u32 %v3815, 4294901760
  %3817 = vmatprep.subr.mxu0 %v3816
  %v3818 = vand.u32 %v2772, 4294901760
  %v3819 = vsub.f32 %v2772, %v3818
  %v3820 = vand.u32 %v3819, 4294901760
  %3821 = vmatpush1.msra.mxu0 %v3820
  %v3822 = vand.u32 %v2775, 4294901760
  %v3823 = vsub.f32 %v2775, %v3822
  %v3824 = vand.u32 %v3823, 4294901760
  %3825 = vmatprep.subr.mxu0 %v3824
  %v3826 = vand.u32 %v2774, 4294901760
  %v3827 = vsub.f32 %v2774, %v3826
  %v3828 = vand.u32 %v3827, 4294901760
  %3829 = vmatpush1.msra.mxu0 %v3828
  %v3830 = vand.u32 %v2777, 4294901760
  %v3831 = vsub.f32 %v2777, %v3830
  %v3832 = vand.u32 %v3831, 4294901760
  %3833 = vmatprep.subr.mxu0 %v3832
  %v3834 = vand.u32 %v2776, 4294901760
  %v3835 = vsub.f32 %v2776, %v3834
  %v3836 = vand.u32 %v3835, 4294901760
  %3837 = vmatpush1.msra.mxu0 %v3836
  %v3838 = vand.u32 %v2779, 4294901760
  %v3839 = vsub.f32 %v2779, %v3838
  %v3840 = vand.u32 %v3839, 4294901760
  %3841 = vmatprep.subr.mxu0 %v3840
  %v3842 = vand.u32 %v2778, 4294901760
  %v3843 = vsub.f32 %v2778, %v3842
  %v3844 = vand.u32 %v3843, 4294901760
  %3845 = vmatpush1.msra.mxu0 %v3844
  %v3846 = vand.u32 %v2781, 4294901760
  %v3847 = vsub.f32 %v2781, %v3846
  %v3848 = vand.u32 %v3847, 4294901760
  %3849 = vmatprep.subr.mxu0 %v3848
  %v3850 = vand.u32 %v2780, 4294901760
  %v3851 = vsub.f32 %v2780, %v3850
  %v3852 = vand.u32 %v3851, 4294901760
  %3853 = vmatpush1.msra.mxu0 %v3852
  %v3854 = vand.u32 %v2783, 4294901760
  %v3855 = vsub.f32 %v2783, %v3854
  %v3856 = vand.u32 %v3855, 4294901760
  %3857 = vmatprep.subr.mxu0 %v3856
  %v3858 = vand.u32 %v2782, 4294901760
  %v3859 = vsub.f32 %v2782, %v3858
  %v3860 = vand.u32 %v3859, 4294901760
  %3861 = vmatpush1.msra.mxu0 %v3860
  %v3862 = vand.u32 %v2785, 4294901760
  %v3863 = vsub.f32 %v2785, %v3862
  %v3864 = vand.u32 %v3863, 4294901760
  %3865 = vmatprep.subr.mxu0 %v3864
  %v3866 = vand.u32 %v2784, 4294901760
  %v3867 = vsub.f32 %v2784, %v3866
  %v3868 = vand.u32 %v3867, 4294901760
  %3869 = vmatpush1.msra.mxu0 %v3868
  %v3870 = vand.u32 %v2787, 4294901760
  %v3871 = vsub.f32 %v2787, %v3870
  %v3872 = vand.u32 %v3871, 4294901760
  %3873 = vmatprep.subr.mxu0 %v3872
  %v3874 = vand.u32 %v2786, 4294901760
  %v3875 = vsub.f32 %v2786, %v3874
  %v3876 = vand.u32 %v3875, 4294901760
  %3877 = vmatpush1.msra.mxu0 %v3876
  %v3878 = vand.u32 %v2789, 4294901760
  %v3879 = vsub.f32 %v2789, %v3878
  %v3880 = vand.u32 %v3879, 4294901760
  %3881 = vmatprep.subr.mxu0 %v3880
  %v3882 = vand.u32 %v2788, 4294901760
  %v3883 = vsub.f32 %v2788, %v3882
  %v3884 = vand.u32 %v3883, 4294901760
  %3885 = vmatpush1.msra.mxu0 %v3884
  %v3886 = vand.u32 %v2791, 4294901760
  %v3887 = vsub.f32 %v2791, %v3886
  %v3888 = vand.u32 %v3887, 4294901760
  %3889 = vmatprep.subr.mxu0 %v3888
  %v3890 = vand.u32 %v2790, 4294901760
  %v3891 = vsub.f32 %v2790, %v3890
  %v3892 = vand.u32 %v3891, 4294901760
  %3893 = vmatpush1.msra.mxu0 %v3892
  %v3894 = vand.u32 %v2793, 4294901760
  %v3895 = vsub.f32 %v2793, %v3894
  %v3896 = vand.u32 %v3895, 4294901760
  %3897 = vmatprep.subr.mxu0 %v3896
  %v3898 = vand.u32 %v2792, 4294901760
  %v3899 = vsub.f32 %v2792, %v3898
  %v3900 = vand.u32 %v3899, 4294901760
  %3901 = vmatpush1.msra.mxu0 %v3900
  %v3902 = vand.u32 %v2795, 4294901760
  %v3903 = vsub.f32 %v2795, %v3902
  %v3904 = vand.u32 %v3903, 4294901760
  %3905 = vmatprep.subr.mxu0 %v3904
  %v3906 = vand.u32 %v2794, 4294901760
  %v3907 = vsub.f32 %v2794, %v3906
  %v3908 = vand.u32 %v3907, 4294901760
  %3909 = vmatpush1.msra.mxu0 %v3908
  %v3910 = vand.u32 %v2797, 4294901760
  %v3911 = vsub.f32 %v2797, %v3910
  %v3912 = vand.u32 %v3911, 4294901760
  %3913 = vmatprep.subr.mxu0 %v3912
  %v3914 = vand.u32 %v2796, 4294901760
  %v3915 = vsub.f32 %v2796, %v3914
  %v3916 = vand.u32 %v3915, 4294901760
  %3917 = vmatpush1.msra.mxu0 %v3916
  %v3918 = vand.u32 %v2799, 4294901760
  %v3919 = vsub.f32 %v2799, %v3918
  %v3920 = vand.u32 %v3919, 4294901760
  %3921 = vmatprep.subr.mxu0 %v3920
  %v3922 = vand.u32 %v2798, 4294901760
  %v3923 = vsub.f32 %v2798, %v3922
  %v3924 = vand.u32 %v3923, 4294901760
  %3925 = vmatpush1.msra.mxu0 %v3924
  %v3926 = vand.u32 %v2801, 4294901760
  %v3927 = vsub.f32 %v2801, %v3926
  %v3928 = vand.u32 %v3927, 4294901760
  %3929 = vmatprep.subr.mxu0 %v3928
  %v3930 = vand.u32 %v2800, 4294901760
  %v3931 = vsub.f32 %v2800, %v3930
  %v3932 = vand.u32 %v3931, 4294901760
  %3933 = vmatpush1.msra.mxu0 %v3932
  %v3934 = vand.u32 %v2803, 4294901760
  %v3935 = vsub.f32 %v2803, %v3934
  %v3936 = vand.u32 %v3935, 4294901760
  %3937 = vmatprep.subr.mxu0 %v3936
  %v3938 = vand.u32 %v2802, 4294901760
  %v3939 = vsub.f32 %v2802, %v3938
  %v3940 = vand.u32 %v3939, 4294901760
  %3941 = vmatpush1.msra.mxu0 %v3940
  %v3942 = vand.u32 %v39, 4294901760
  %3943 = vmatprep.mubr.f32.mxu0 %v3942
  %v3944 = vand.u32 %v38, 4294901760
  %3945 = vmatmul.mubr.f32.gmra.mrb[0].mxu0 %v3944
  %v3946 = vpop.f32.mrb[0].mxu0
  %v3947 = vadd.f32 %v3682, %v3946
  %v3948 = vpop.f32.mrb[0].mxu0
  %v3949 = vadd.f32 %v3684, %v3948
  %3950 = vdwg.mxu0
  %v3951 = vand.u32 %v2741, 4294901760
  %3952 = vmatprep.subr.mxu0 %v3951
  %v3953 = vand.u32 %v2740, 4294901760
  %3954 = vmatpush1.msra.mxu0 %v3953
  %v3955 = vand.u32 %v2743, 4294901760
  %3956 = vmatprep.subr.mxu0 %v3955
  %v3957 = vand.u32 %v2742, 4294901760
  %3958 = vmatpush1.msra.mxu0 %v3957
  %v3959 = vand.u32 %v2745, 4294901760
  %3960 = vmatprep.subr.mxu0 %v3959
  %v3961 = vand.u32 %v2744, 4294901760
  %3962 = vmatpush1.msra.mxu0 %v3961
  %v3963 = vand.u32 %v2747, 4294901760
  %3964 = vmatprep.subr.mxu0 %v3963
  %v3965 = vand.u32 %v2746, 4294901760
  %3966 = vmatpush1.msra.mxu0 %v3965
  %v3967 = vand.u32 %v2749, 4294901760
  %3968 = vmatprep.subr.mxu0 %v3967
  %v3969 = vand.u32 %v2748, 4294901760
  %3970 = vmatpush1.msra.mxu0 %v3969
  %v3971 = vand.u32 %v2751, 4294901760
  %3972 = vmatprep.subr.mxu0 %v3971
  %v3973 = vand.u32 %v2750, 4294901760
  %3974 = vmatpush1.msra.mxu0 %v3973
  %v3975 = vand.u32 %v2753, 4294901760
  %3976 = vmatprep.subr.mxu0 %v3975
  %v3977 = vand.u32 %v2752, 4294901760
  %3978 = vmatpush1.msra.mxu0 %v3977
  %v3979 = vand.u32 %v2755, 4294901760
  %3980 = vmatprep.subr.mxu0 %v3979
  %v3981 = vand.u32 %v2754, 4294901760
  %3982 = vmatpush1.msra.mxu0 %v3981
  %v3983 = vand.u32 %v2757, 4294901760
  %3984 = vmatprep.subr.mxu0 %v3983
  %v3985 = vand.u32 %v2756, 4294901760
  %3986 = vmatpush1.msra.mxu0 %v3985
  %v3987 = vand.u32 %v2759, 4294901760
  %3988 = vmatprep.subr.mxu0 %v3987
  %v3989 = vand.u32 %v2758, 4294901760
  %3990 = vmatpush1.msra.mxu0 %v3989
  %v3991 = vand.u32 %v2761, 4294901760
  %3992 = vmatprep.subr.mxu0 %v3991
  %v3993 = vand.u32 %v2760, 4294901760
  %3994 = vmatpush1.msra.mxu0 %v3993
  %v3995 = vand.u32 %v2763, 4294901760
  %3996 = vmatprep.subr.mxu0 %v3995
  %v3997 = vand.u32 %v2762, 4294901760
  %3998 = vmatpush1.msra.mxu0 %v3997
  %v3999 = vand.u32 %v2765, 4294901760
  %4000 = vmatprep.subr.mxu0 %v3999
  %v4001 = vand.u32 %v2764, 4294901760
  %4002 = vmatpush1.msra.mxu0 %v4001
  %v4003 = vand.u32 %v2767, 4294901760
  %4004 = vmatprep.subr.mxu0 %v4003
  %v4005 = vand.u32 %v2766, 4294901760
  %4006 = vmatpush1.msra.mxu0 %v4005
  %v4007 = vand.u32 %v2769, 4294901760
  %4008 = vmatprep.subr.mxu0 %v4007
  %v4009 = vand.u32 %v2768, 4294901760
  %4010 = vmatpush1.msra.mxu0 %v4009
  %v4011 = vand.u32 %v2771, 4294901760
  %4012 = vmatprep.subr.mxu0 %v4011
  %v4013 = vand.u32 %v2770, 4294901760
  %4014 = vmatpush1.msra.mxu0 %v4013
  %v4015 = vand.u32 %v2773, 4294901760
  %4016 = vmatprep.subr.mxu0 %v4015
  %v4017 = vand.u32 %v2772, 4294901760
  %4018 = vmatpush1.msra.mxu0 %v4017
  %v4019 = vand.u32 %v2775, 4294901760
  %4020 = vmatprep.subr.mxu0 %v4019
  %v4021 = vand.u32 %v2774, 4294901760
  %4022 = vmatpush1.msra.mxu0 %v4021
  %v4023 = vand.u32 %v2777, 4294901760
  %4024 = vmatprep.subr.mxu0 %v4023
  %v4025 = vand.u32 %v2776, 4294901760
  %4026 = vmatpush1.msra.mxu0 %v4025
  %v4027 = vand.u32 %v2779, 4294901760
  %4028 = vmatprep.subr.mxu0 %v4027
  %v4029 = vand.u32 %v2778, 4294901760
  %4030 = vmatpush1.msra.mxu0 %v4029
  %v4031 = vand.u32 %v2781, 4294901760
  %4032 = vmatprep.subr.mxu0 %v4031
  %v4033 = vand.u32 %v2780, 4294901760
  %4034 = vmatpush1.msra.mxu0 %v4033
  %v4035 = vand.u32 %v2783, 4294901760
  %4036 = vmatprep.subr.mxu0 %v4035
  %v4037 = vand.u32 %v2782, 4294901760
  %4038 = vmatpush1.msra.mxu0 %v4037
  %v4039 = vand.u32 %v2785, 4294901760
  %4040 = vmatprep.subr.mxu0 %v4039
  %v4041 = vand.u32 %v2784, 4294901760
  %4042 = vmatpush1.msra.mxu0 %v4041
  %v4043 = vand.u32 %v2787, 4294901760
  %4044 = vmatprep.subr.mxu0 %v4043
  %v4045 = vand.u32 %v2786, 4294901760
  %4046 = vmatpush1.msra.mxu0 %v4045
  %v4047 = vand.u32 %v2789, 4294901760
  %4048 = vmatprep.subr.mxu0 %v4047
  %v4049 = vand.u32 %v2788, 4294901760
  %4050 = vmatpush1.msra.mxu0 %v4049
  %v4051 = vand.u32 %v2791, 4294901760
  %4052 = vmatprep.subr.mxu0 %v4051
  %v4053 = vand.u32 %v2790, 4294901760
  %4054 = vmatpush1.msra.mxu0 %v4053
  %v4055 = vand.u32 %v2793, 4294901760
  %4056 = vmatprep.subr.mxu0 %v4055
  %v4057 = vand.u32 %v2792, 4294901760
  %4058 = vmatpush1.msra.mxu0 %v4057
  %v4059 = vand.u32 %v2795, 4294901760
  %4060 = vmatprep.subr.mxu0 %v4059
  %v4061 = vand.u32 %v2794, 4294901760
  %4062 = vmatpush1.msra.mxu0 %v4061
  %v4063 = vand.u32 %v2797, 4294901760
  %4064 = vmatprep.subr.mxu0 %v4063
  %v4065 = vand.u32 %v2796, 4294901760
  %4066 = vmatpush1.msra.mxu0 %v4065
  %v4067 = vand.u32 %v2799, 4294901760
  %4068 = vmatprep.subr.mxu0 %v4067
  %v4069 = vand.u32 %v2798, 4294901760
  %4070 = vmatpush1.msra.mxu0 %v4069
  %v4071 = vand.u32 %v2801, 4294901760
  %4072 = vmatprep.subr.mxu0 %v4071
  %v4073 = vand.u32 %v2800, 4294901760
  %4074 = vmatpush1.msra.mxu0 %v4073
  %v4075 = vand.u32 %v2803, 4294901760
  %4076 = vmatprep.subr.mxu0 %v4075
  %v4077 = vand.u32 %v2802, 4294901760
  %4078 = vmatpush1.msra.mxu0 %v4077
  %v4079 = vand.u32 %v39, 4294901760
  %4080 = vmatprep.mubr.f32.mxu0 %v4079
  %v4081 = vand.u32 %v38, 4294901760
  %4082 = vmatmul.mubr.f32.gmra.mrb[0].mxu0 %v4081
  %v4083 = vpop.f32.mrb[0].mxu0
  %v4084 = vadd.f32 %v3947, %v4083
  %v4085 = vpop.f32.mrb[0].mxu0
  %v4086 = vadd.f32 %v3949, %v4085
  %4087 = vdwg.mxu0
  %v4088 = vmax.f32 %v2737, %v4084
  %v4089 = vmax.f32 %v2738, %v4086
  %s4090 = scalar_lea.vmem %s1, 1536
  %v4091 = vld [vmem:[%s4090] sm:$0xff]
  %v4092 = vld [vmem:[%s4090 + $0x8] sm:$0xff]
  %v4093 = vld [vmem:[%s4090 + $0x10] sm:$0xff]
  %v4094 = vld [vmem:[%s4090 + $0x18] sm:$0xff]
  %v4095 = vld [vmem:[%s4090 + $0x20] sm:$0xff]
  %v4096 = vld [vmem:[%s4090 + $0x28] sm:$0xff]
  %v4097 = vld [vmem:[%s4090 + $0x30] sm:$0xff]
  %v4098 = vld [vmem:[%s4090 + $0x38] sm:$0xff]
  %v4099 = vld [vmem:[%s4090 + $0x40] sm:$0xff]
  %v4100 = vld [vmem:[%s4090 + $0x48] sm:$0xff]
  %v4101 = vld [vmem:[%s4090 + $0x50] sm:$0xff]
  %v4102 = vld [vmem:[%s4090 + $0x58] sm:$0xff]
  %v4103 = vld [vmem:[%s4090 + $0x60] sm:$0xff]
  %v4104 = vld [vmem:[%s4090 + $0x68] sm:$0xff]
  %v4105 = vld [vmem:[%s4090 + $0x70] sm:$0xff]
  %v4106 = vld [vmem:[%s4090 + $0x78] sm:$0xff]
  %v4107 = vld [vmem:[%s4090 + $0x80] sm:$0xff]
  %v4108 = vld [vmem:[%s4090 + $0x88] sm:$0xff]
  %v4109 = vld [vmem:[%s4090 + $0x90] sm:$0xff]
  %v4110 = vld [vmem:[%s4090 + $0x98] sm:$0xff]
  %v4111 = vld [vmem:[%s4090 + $0xa0] sm:$0xff]
  %v4112 = vld [vmem:[%s4090 + $0xa8] sm:$0xff]
  %v4113 = vld [vmem:[%s4090 + $0xb0] sm:$0xff]
  %v4114 = vld [vmem:[%s4090 + $0xb8] sm:$0xff]
  %v4115 = vld [vmem:[%s4090 + $0xc0] sm:$0xff]
  %v4116 = vld [vmem:[%s4090 + $0xc8] sm:$0xff]
  %v4117 = vld [vmem:[%s4090 + $0xd0] sm:$0xff]
  %v4118 = vld [vmem:[%s4090 + $0xd8] sm:$0xff]
  %v4119 = vld [vmem:[%s4090 + $0xe0] sm:$0xff]
  %v4120 = vld [vmem:[%s4090 + $0xe8] sm:$0xff]
  %v4121 = vld [vmem:[%s4090 + $0xf0] sm:$0xff]
  %v4122 = vld [vmem:[%s4090 + $0xf8] sm:$0xff]
  %v4123 = vld [vmem:[%s4090 + $0x100] sm:$0xff]
  %v4124 = vld [vmem:[%s4090 + $0x108] sm:$0xff]
  %v4125 = vld [vmem:[%s4090 + $0x110] sm:$0xff]
  %v4126 = vld [vmem:[%s4090 + $0x118] sm:$0xff]
  %v4127 = vld [vmem:[%s4090 + $0x120] sm:$0xff]
  %v4128 = vld [vmem:[%s4090 + $0x128] sm:$0xff]
  %v4129 = vld [vmem:[%s4090 + $0x130] sm:$0xff]
  %v4130 = vld [vmem:[%s4090 + $0x138] sm:$0xff]
  %v4131 = vld [vmem:[%s4090 + $0x140] sm:$0xff]
  %v4132 = vld [vmem:[%s4090 + $0x148] sm:$0xff]
  %v4133 = vld [vmem:[%s4090 + $0x150] sm:$0xff]
  %v4134 = vld [vmem:[%s4090 + $0x158] sm:$0xff]
  %v4135 = vld [vmem:[%s4090 + $0x160] sm:$0xff]
  %v4136 = vld [vmem:[%s4090 + $0x168] sm:$0xff]
  %v4137 = vld [vmem:[%s4090 + $0x170] sm:$0xff]
  %v4138 = vld [vmem:[%s4090 + $0x178] sm:$0xff]
  %v4139 = vld [vmem:[%s4090 + $0x180] sm:$0xff]
  %v4140 = vld [vmem:[%s4090 + $0x188] sm:$0xff]
  %v4141 = vld [vmem:[%s4090 + $0x190] sm:$0xff]
  %v4142 = vld [vmem:[%s4090 + $0x198] sm:$0xff]
  %v4143 = vld [vmem:[%s4090 + $0x1a0] sm:$0xff]
  %v4144 = vld [vmem:[%s4090 + $0x1a8] sm:$0xff]
  %v4145 = vld [vmem:[%s4090 + $0x1b0] sm:$0xff]
  %v4146 = vld [vmem:[%s4090 + $0x1b8] sm:$0xff]
  %v4147 = vld [vmem:[%s4090 + $0x1c0] sm:$0xff]
  %v4148 = vld [vmem:[%s4090 + $0x1c8] sm:$0xff]
  %v4149 = vld [vmem:[%s4090 + $0x1d0] sm:$0xff]
  %v4150 = vld [vmem:[%s4090 + $0x1d8] sm:$0xff]
  %v4151 = vld [vmem:[%s4090 + $0x1e0] sm:$0xff]
  %v4152 = vld [vmem:[%s4090 + $0x1e8] sm:$0xff]
  %v4153 = vld [vmem:[%s4090 + $0x1f0] sm:$0xff]
  %v4154 = vld [vmem:[%s4090 + $0x1f8] sm:$0xff]
  %v4155 = vand.u32 %v4092, 4294901760
  %4156 = vmatprep.subr.mxu0 %v4155
  %v4157 = vand.u32 %v4091, 4294901760
  %4158 = vmatpush1.msra.mxu0 %v4157
  %v4159 = vand.u32 %v4094, 4294901760
  %4160 = vmatprep.subr.mxu0 %v4159
  %v4161 = vand.u32 %v4093, 4294901760
  %4162 = vmatpush1.msra.mxu0 %v4161
  %v4163 = vand.u32 %v4096, 4294901760
  %4164 = vmatprep.subr.mxu0 %v4163
  %v4165 = vand.u32 %v4095, 4294901760
  %4166 = vmatpush1.msra.mxu0 %v4165
  %v4167 = vand.u32 %v4098, 4294901760
  %4168 = vmatprep.subr.mxu0 %v4167
  %v4169 = vand.u32 %v4097, 4294901760
  %4170 = vmatpush1.msra.mxu0 %v4169
  %v4171 = vand.u32 %v4100, 4294901760
  %4172 = vmatprep.subr.mxu0 %v4171
  %v4173 = vand.u32 %v4099, 4294901760
  %4174 = vmatpush1.msra.mxu0 %v4173
  %v4175 = vand.u32 %v4102, 4294901760
  %4176 = vmatprep.subr.mxu0 %v4175
  %v4177 = vand.u32 %v4101, 4294901760
  %4178 = vmatpush1.msra.mxu0 %v4177
  %v4179 = vand.u32 %v4104, 4294901760
  %4180 = vmatprep.subr.mxu0 %v4179
  %v4181 = vand.u32 %v4103, 4294901760
  %4182 = vmatpush1.msra.mxu0 %v4181
  %v4183 = vand.u32 %v4106, 4294901760
  %4184 = vmatprep.subr.mxu0 %v4183
  %v4185 = vand.u32 %v4105, 4294901760
  %4186 = vmatpush1.msra.mxu0 %v4185
  %v4187 = vand.u32 %v4108, 4294901760
  %4188 = vmatprep.subr.mxu0 %v4187
  %v4189 = vand.u32 %v4107, 4294901760
  %4190 = vmatpush1.msra.mxu0 %v4189
  %v4191 = vand.u32 %v4110, 4294901760
  %4192 = vmatprep.subr.mxu0 %v4191
  %v4193 = vand.u32 %v4109, 4294901760
  %4194 = vmatpush1.msra.mxu0 %v4193
  %v4195 = vand.u32 %v4112, 4294901760
  %4196 = vmatprep.subr.mxu0 %v4195
  %v4197 = vand.u32 %v4111, 4294901760
  %4198 = vmatpush1.msra.mxu0 %v4197
  %v4199 = vand.u32 %v4114, 4294901760
  %4200 = vmatprep.subr.mxu0 %v4199
  %v4201 = vand.u32 %v4113, 4294901760
  %4202 = vmatpush1.msra.mxu0 %v4201
  %v4203 = vand.u32 %v4116, 4294901760
  %4204 = vmatprep.subr.mxu0 %v4203
  %v4205 = vand.u32 %v4115, 4294901760
  %4206 = vmatpush1.msra.mxu0 %v4205
  %v4207 = vand.u32 %v4118, 4294901760
  %4208 = vmatprep.subr.mxu0 %v4207
  %v4209 = vand.u32 %v4117, 4294901760
  %4210 = vmatpush1.msra.mxu0 %v4209
  %v4211 = vand.u32 %v4120, 4294901760
  %4212 = vmatprep.subr.mxu0 %v4211
  %v4213 = vand.u32 %v4119, 4294901760
  %4214 = vmatpush1.msra.mxu0 %v4213
  %v4215 = vand.u32 %v4122, 4294901760
  %4216 = vmatprep.subr.mxu0 %v4215
  %v4217 = vand.u32 %v4121, 4294901760
  %4218 = vmatpush1.msra.mxu0 %v4217
  %v4219 = vand.u32 %v4124, 4294901760
  %4220 = vmatprep.subr.mxu0 %v4219
  %v4221 = vand.u32 %v4123, 4294901760
  %4222 = vmatpush1.msra.mxu0 %v4221
  %v4223 = vand.u32 %v4126, 4294901760
  %4224 = vmatprep.subr.mxu0 %v4223
  %v4225 = vand.u32 %v4125, 4294901760
  %4226 = vmatpush1.msra.mxu0 %v4225
  %v4227 = vand.u32 %v4128, 4294901760
  %4228 = vmatprep.subr.mxu0 %v4227
  %v4229 = vand.u32 %v4127, 4294901760
  %4230 = vmatpush1.msra.mxu0 %v4229
  %v4231 = vand.u32 %v4130, 4294901760
  %4232 = vmatprep.subr.mxu0 %v4231
  %v4233 = vand.u32 %v4129, 4294901760
  %4234 = vmatpush1.msra.mxu0 %v4233
  %v4235 = vand.u32 %v4132, 4294901760
  %4236 = vmatprep.subr.mxu0 %v4235
  %v4237 = vand.u32 %v4131, 4294901760
  %4238 = vmatpush1.msra.mxu0 %v4237
  %v4239 = vand.u32 %v4134, 4294901760
  %4240 = vmatprep.subr.mxu0 %v4239
  %v4241 = vand.u32 %v4133, 4294901760
  %4242 = vmatpush1.msra.mxu0 %v4241
  %v4243 = vand.u32 %v4136, 4294901760
  %4244 = vmatprep.subr.mxu0 %v4243
  %v4245 = vand.u32 %v4135, 4294901760
  %4246 = vmatpush1.msra.mxu0 %v4245
  %v4247 = vand.u32 %v4138, 4294901760
  %4248 = vmatprep.subr.mxu0 %v4247
  %v4249 = vand.u32 %v4137, 4294901760
  %4250 = vmatpush1.msra.mxu0 %v4249
  %v4251 = vand.u32 %v4140, 4294901760
  %4252 = vmatprep.subr.mxu0 %v4251
  %v4253 = vand.u32 %v4139, 4294901760
  %4254 = vmatpush1.msra.mxu0 %v4253
  %v4255 = vand.u32 %v4142, 4294901760
  %4256 = vmatprep.subr.mxu0 %v4255
  %v4257 = vand.u32 %v4141, 4294901760
  %4258 = vmatpush1.msra.mxu0 %v4257
  %v4259 = vand.u32 %v4144, 4294901760
  %4260 = vmatprep.subr.mxu0 %v4259
  %v4261 = vand.u32 %v4143, 4294901760
  %4262 = vmatpush1.msra.mxu0 %v4261
  %v4263 = vand.u32 %v4146, 4294901760
  %4264 = vmatprep.subr.mxu0 %v4263
  %v4265 = vand.u32 %v4145, 4294901760
  %4266 = vmatpush1.msra.mxu0 %v4265
  %v4267 = vand.u32 %v4148, 4294901760
  %4268 = vmatprep.subr.mxu0 %v4267
  %v4269 = vand.u32 %v4147, 4294901760
  %4270 = vmatpush1.msra.mxu0 %v4269
  %v4271 = vand.u32 %v4150, 4294901760
  %4272 = vmatprep.subr.mxu0 %v4271
  %v4273 = vand.u32 %v4149, 4294901760
  %4274 = vmatpush1.msra.mxu0 %v4273
  %v4275 = vand.u32 %v4152, 4294901760
  %4276 = vmatprep.subr.mxu0 %v4275
  %v4277 = vand.u32 %v4151, 4294901760
  %4278 = vmatpush1.msra.mxu0 %v4277
  %v4279 = vand.u32 %v4154, 4294901760
  %4280 = vmatprep.subr.mxu0 %v4279
  %v4281 = vand.u32 %v4153, 4294901760
  %4282 = vmatpush1.msra.mxu0 %v4281
  %v4283 = vand.u32 %v39, 4294901760
  %v4284 = vsub.f32 %v39, %v4283
  %v4285 = vand.u32 %v4284, 4294901760
  %v4286 = vsub.f32 %v4284, %v4285
  %v4287 = vand.u32 %v4286, 4294901760
  %4288 = vmatprep.mubr.f32.mxu0 %v4287
  %v4289 = vand.u32 %v38, 4294901760
  %v4290 = vsub.f32 %v38, %v4289
  %v4291 = vand.u32 %v4290, 4294901760
  %v4292 = vsub.f32 %v4290, %v4291
  %v4293 = vand.u32 %v4292, 4294901760
  %4294 = vmatmul.mubr.f32.gmra.mrb[0].mxu0 %v4293
  %v4295 = vpop.f32.mrb[0].mxu0
  %v4296 = vadd.f32 0.0, %v4295
  %v4297 = vpop.f32.mrb[0].mxu0
  %v4298 = vadd.f32 0.0, %v4297
  %4299 = vdwg.mxu0
  %v4300 = vand.u32 %v4092, 4294901760
  %v4301 = vsub.f32 %v4092, %v4300
  %v4302 = vand.u32 %v4301, 4294901760
  %v4303 = vsub.f32 %v4301, %v4302
  %v4304 = vand.u32 %v4303, 4294901760
  %4305 = vmatprep.subr.mxu0 %v4304
  %v4306 = vand.u32 %v4091, 4294901760
  %v4307 = vsub.f32 %v4091, %v4306
  %v4308 = vand.u32 %v4307, 4294901760
  %v4309 = vsub.f32 %v4307, %v4308
  %v4310 = vand.u32 %v4309, 4294901760
  %4311 = vmatpush1.msra.mxu0 %v4310
  %v4312 = vand.u32 %v4094, 4294901760
  %v4313 = vsub.f32 %v4094, %v4312
  %v4314 = vand.u32 %v4313, 4294901760
  %v4315 = vsub.f32 %v4313, %v4314
  %v4316 = vand.u32 %v4315, 4294901760
  %4317 = vmatprep.subr.mxu0 %v4316
  %v4318 = vand.u32 %v4093, 4294901760
  %v4319 = vsub.f32 %v4093, %v4318
  %v4320 = vand.u32 %v4319, 4294901760
  %v4321 = vsub.f32 %v4319, %v4320
  %v4322 = vand.u32 %v4321, 4294901760
  %4323 = vmatpush1.msra.mxu0 %v4322
  %v4324 = vand.u32 %v4096, 4294901760
  %v4325 = vsub.f32 %v4096, %v4324
  %v4326 = vand.u32 %v4325, 4294901760
  %v4327 = vsub.f32 %v4325, %v4326
  %v4328 = vand.u32 %v4327, 4294901760
  %4329 = vmatprep.subr.mxu0 %v4328
  %v4330 = vand.u32 %v4095, 4294901760
  %v4331 = vsub.f32 %v4095, %v4330
  %v4332 = vand.u32 %v4331, 4294901760
  %v4333 = vsub.f32 %v4331, %v4332
  %v4334 = vand.u32 %v4333, 4294901760
  %4335 = vmatpush1.msra.mxu0 %v4334
  %v4336 = vand.u32 %v4098, 4294901760
  %v4337 = vsub.f32 %v4098, %v4336
  %v4338 = vand.u32 %v4337, 4294901760
  %v4339 = vsub.f32 %v4337, %v4338
  %v4340 = vand.u32 %v4339, 4294901760
  %4341 = vmatprep.subr.mxu0 %v4340
  %v4342 = vand.u32 %v4097, 4294901760
  %v4343 = vsub.f32 %v4097, %v4342
  %v4344 = vand.u32 %v4343, 4294901760
  %v4345 = vsub.f32 %v4343, %v4344
  %v4346 = vand.u32 %v4345, 4294901760
  %4347 = vmatpush1.msra.mxu0 %v4346
  %v4348 = vand.u32 %v4100, 4294901760
  %v4349 = vsub.f32 %v4100, %v4348
  %v4350 = vand.u32 %v4349, 4294901760
  %v4351 = vsub.f32 %v4349, %v4350
  %v4352 = vand.u32 %v4351, 4294901760
  %4353 = vmatprep.subr.mxu0 %v4352
  %v4354 = vand.u32 %v4099, 4294901760
  %v4355 = vsub.f32 %v4099, %v4354
  %v4356 = vand.u32 %v4355, 4294901760
  %v4357 = vsub.f32 %v4355, %v4356
  %v4358 = vand.u32 %v4357, 4294901760
  %4359 = vmatpush1.msra.mxu0 %v4358
  %v4360 = vand.u32 %v4102, 4294901760
  %v4361 = vsub.f32 %v4102, %v4360
  %v4362 = vand.u32 %v4361, 4294901760
  %v4363 = vsub.f32 %v4361, %v4362
  %v4364 = vand.u32 %v4363, 4294901760
  %4365 = vmatprep.subr.mxu0 %v4364
  %v4366 = vand.u32 %v4101, 4294901760
  %v4367 = vsub.f32 %v4101, %v4366
  %v4368 = vand.u32 %v4367, 4294901760
  %v4369 = vsub.f32 %v4367, %v4368
  %v4370 = vand.u32 %v4369, 4294901760
  %4371 = vmatpush1.msra.mxu0 %v4370
  %v4372 = vand.u32 %v4104, 4294901760
  %v4373 = vsub.f32 %v4104, %v4372
  %v4374 = vand.u32 %v4373, 4294901760
  %v4375 = vsub.f32 %v4373, %v4374
  %v4376 = vand.u32 %v4375, 4294901760
  %4377 = vmatprep.subr.mxu0 %v4376
  %v4378 = vand.u32 %v4103, 4294901760
  %v4379 = vsub.f32 %v4103, %v4378
  %v4380 = vand.u32 %v4379, 4294901760
  %v4381 = vsub.f32 %v4379, %v4380
  %v4382 = vand.u32 %v4381, 4294901760
  %4383 = vmatpush1.msra.mxu0 %v4382
  %v4384 = vand.u32 %v4106, 4294901760
  %v4385 = vsub.f32 %v4106, %v4384
  %v4386 = vand.u32 %v4385, 4294901760
  %v4387 = vsub.f32 %v4385, %v4386
  %v4388 = vand.u32 %v4387, 4294901760
  %4389 = vmatprep.subr.mxu0 %v4388
  %v4390 = vand.u32 %v4105, 4294901760
  %v4391 = vsub.f32 %v4105, %v4390
  %v4392 = vand.u32 %v4391, 4294901760
  %v4393 = vsub.f32 %v4391, %v4392
  %v4394 = vand.u32 %v4393, 4294901760
  %4395 = vmatpush1.msra.mxu0 %v4394
  %v4396 = vand.u32 %v4108, 4294901760
  %v4397 = vsub.f32 %v4108, %v4396
  %v4398 = vand.u32 %v4397, 4294901760
  %v4399 = vsub.f32 %v4397, %v4398
  %v4400 = vand.u32 %v4399, 4294901760
  %4401 = vmatprep.subr.mxu0 %v4400
  %v4402 = vand.u32 %v4107, 4294901760
  %v4403 = vsub.f32 %v4107, %v4402
  %v4404 = vand.u32 %v4403, 4294901760
  %v4405 = vsub.f32 %v4403, %v4404
  %v4406 = vand.u32 %v4405, 4294901760
  %4407 = vmatpush1.msra.mxu0 %v4406
  %v4408 = vand.u32 %v4110, 4294901760
  %v4409 = vsub.f32 %v4110, %v4408
  %v4410 = vand.u32 %v4409, 4294901760
  %v4411 = vsub.f32 %v4409, %v4410
  %v4412 = vand.u32 %v4411, 4294901760
  %4413 = vmatprep.subr.mxu0 %v4412
  %v4414 = vand.u32 %v4109, 4294901760
  %v4415 = vsub.f32 %v4109, %v4414
  %v4416 = vand.u32 %v4415, 4294901760
  %v4417 = vsub.f32 %v4415, %v4416
  %v4418 = vand.u32 %v4417, 4294901760
  %4419 = vmatpush1.msra.mxu0 %v4418
  %v4420 = vand.u32 %v4112, 4294901760
  %v4421 = vsub.f32 %v4112, %v4420
  %v4422 = vand.u32 %v4421, 4294901760
  %v4423 = vsub.f32 %v4421, %v4422
  %v4424 = vand.u32 %v4423, 4294901760
  %4425 = vmatprep.subr.mxu0 %v4424
  %v4426 = vand.u32 %v4111, 4294901760
  %v4427 = vsub.f32 %v4111, %v4426
  %v4428 = vand.u32 %v4427, 4294901760
  %v4429 = vsub.f32 %v4427, %v4428
  %v4430 = vand.u32 %v4429, 4294901760
  %4431 = vmatpush1.msra.mxu0 %v4430
  %v4432 = vand.u32 %v4114, 4294901760
  %v4433 = vsub.f32 %v4114, %v4432
  %v4434 = vand.u32 %v4433, 4294901760
  %v4435 = vsub.f32 %v4433, %v4434
  %v4436 = vand.u32 %v4435, 4294901760
  %4437 = vmatprep.subr.mxu0 %v4436
  %v4438 = vand.u32 %v4113, 4294901760
  %v4439 = vsub.f32 %v4113, %v4438
  %v4440 = vand.u32 %v4439, 4294901760
  %v4441 = vsub.f32 %v4439, %v4440
  %v4442 = vand.u32 %v4441, 4294901760
  %4443 = vmatpush1.msra.mxu0 %v4442
  %v4444 = vand.u32 %v4116, 4294901760
  %v4445 = vsub.f32 %v4116, %v4444
  %v4446 = vand.u32 %v4445, 4294901760
  %v4447 = vsub.f32 %v4445, %v4446
  %v4448 = vand.u32 %v4447, 4294901760
  %4449 = vmatprep.subr.mxu0 %v4448
  %v4450 = vand.u32 %v4115, 4294901760
  %v4451 = vsub.f32 %v4115, %v4450
  %v4452 = vand.u32 %v4451, 4294901760
  %v4453 = vsub.f32 %v4451, %v4452
  %v4454 = vand.u32 %v4453, 4294901760
  %4455 = vmatpush1.msra.mxu0 %v4454
  %v4456 = vand.u32 %v4118, 4294901760
  %v4457 = vsub.f32 %v4118, %v4456
  %v4458 = vand.u32 %v4457, 4294901760
  %v4459 = vsub.f32 %v4457, %v4458
  %v4460 = vand.u32 %v4459, 4294901760
  %4461 = vmatprep.subr.mxu0 %v4460
  %v4462 = vand.u32 %v4117, 4294901760
  %v4463 = vsub.f32 %v4117, %v4462
  %v4464 = vand.u32 %v4463, 4294901760
  %v4465 = vsub.f32 %v4463, %v4464
  %v4466 = vand.u32 %v4465, 4294901760
  %4467 = vmatpush1.msra.mxu0 %v4466
  %v4468 = vand.u32 %v4120, 4294901760
  %v4469 = vsub.f32 %v4120, %v4468
  %v4470 = vand.u32 %v4469, 4294901760
  %v4471 = vsub.f32 %v4469, %v4470
  %v4472 = vand.u32 %v4471, 4294901760
  %4473 = vmatprep.subr.mxu0 %v4472
  %v4474 = vand.u32 %v4119, 4294901760
  %v4475 = vsub.f32 %v4119, %v4474
  %v4476 = vand.u32 %v4475, 4294901760
  %v4477 = vsub.f32 %v4475, %v4476
  %v4478 = vand.u32 %v4477, 4294901760
  %4479 = vmatpush1.msra.mxu0 %v4478
  %v4480 = vand.u32 %v4122, 4294901760
  %v4481 = vsub.f32 %v4122, %v4480
  %v4482 = vand.u32 %v4481, 4294901760
  %v4483 = vsub.f32 %v4481, %v4482
  %v4484 = vand.u32 %v4483, 4294901760
  %4485 = vmatprep.subr.mxu0 %v4484
  %v4486 = vand.u32 %v4121, 4294901760
  %v4487 = vsub.f32 %v4121, %v4486
  %v4488 = vand.u32 %v4487, 4294901760
  %v4489 = vsub.f32 %v4487, %v4488
  %v4490 = vand.u32 %v4489, 4294901760
  %4491 = vmatpush1.msra.mxu0 %v4490
  %v4492 = vand.u32 %v4124, 4294901760
  %v4493 = vsub.f32 %v4124, %v4492
  %v4494 = vand.u32 %v4493, 4294901760
  %v4495 = vsub.f32 %v4493, %v4494
  %v4496 = vand.u32 %v4495, 4294901760
  %4497 = vmatprep.subr.mxu0 %v4496
  %v4498 = vand.u32 %v4123, 4294901760
  %v4499 = vsub.f32 %v4123, %v4498
  %v4500 = vand.u32 %v4499, 4294901760
  %v4501 = vsub.f32 %v4499, %v4500
  %v4502 = vand.u32 %v4501, 4294901760
  %4503 = vmatpush1.msra.mxu0 %v4502
  %v4504 = vand.u32 %v4126, 4294901760
  %v4505 = vsub.f32 %v4126, %v4504
  %v4506 = vand.u32 %v4505, 4294901760
  %v4507 = vsub.f32 %v4505, %v4506
  %v4508 = vand.u32 %v4507, 4294901760
  %4509 = vmatprep.subr.mxu0 %v4508
  %v4510 = vand.u32 %v4125, 4294901760
  %v4511 = vsub.f32 %v4125, %v4510
  %v4512 = vand.u32 %v4511, 4294901760
  %v4513 = vsub.f32 %v4511, %v4512
  %v4514 = vand.u32 %v4513, 4294901760
  %4515 = vmatpush1.msra.mxu0 %v4514
  %v4516 = vand.u32 %v4128, 4294901760
  %v4517 = vsub.f32 %v4128, %v4516
  %v4518 = vand.u32 %v4517, 4294901760
  %v4519 = vsub.f32 %v4517, %v4518
  %v4520 = vand.u32 %v4519, 4294901760
  %4521 = vmatprep.subr.mxu0 %v4520
  %v4522 = vand.u32 %v4127, 4294901760
  %v4523 = vsub.f32 %v4127, %v4522
  %v4524 = vand.u32 %v4523, 4294901760
  %v4525 = vsub.f32 %v4523, %v4524
  %v4526 = vand.u32 %v4525, 4294901760
  %4527 = vmatpush1.msra.mxu0 %v4526
  %v4528 = vand.u32 %v4130, 4294901760
  %v4529 = vsub.f32 %v4130, %v4528
  %v4530 = vand.u32 %v4529, 4294901760
  %v4531 = vsub.f32 %v4529, %v4530
  %v4532 = vand.u32 %v4531, 4294901760
  %4533 = vmatprep.subr.mxu0 %v4532
  %v4534 = vand.u32 %v4129, 4294901760
  %v4535 = vsub.f32 %v4129, %v4534
  %v4536 = vand.u32 %v4535, 4294901760
  %v4537 = vsub.f32 %v4535, %v4536
  %v4538 = vand.u32 %v4537, 4294901760
  %4539 = vmatpush1.msra.mxu0 %v4538
  %v4540 = vand.u32 %v4132, 4294901760
  %v4541 = vsub.f32 %v4132, %v4540
  %v4542 = vand.u32 %v4541, 4294901760
  %v4543 = vsub.f32 %v4541, %v4542
  %v4544 = vand.u32 %v4543, 4294901760
  %4545 = vmatprep.subr.mxu0 %v4544
  %v4546 = vand.u32 %v4131, 4294901760
  %v4547 = vsub.f32 %v4131, %v4546
  %v4548 = vand.u32 %v4547, 4294901760
  %v4549 = vsub.f32 %v4547, %v4548
  %v4550 = vand.u32 %v4549, 4294901760
  %4551 = vmatpush1.msra.mxu0 %v4550
  %v4552 = vand.u32 %v4134, 4294901760
  %v4553 = vsub.f32 %v4134, %v4552
  %v4554 = vand.u32 %v4553, 4294901760
  %v4555 = vsub.f32 %v4553, %v4554
  %v4556 = vand.u32 %v4555, 4294901760
  %4557 = vmatprep.subr.mxu0 %v4556
  %v4558 = vand.u32 %v4133, 4294901760
  %v4559 = vsub.f32 %v4133, %v4558
  %v4560 = vand.u32 %v4559, 4294901760
  %v4561 = vsub.f32 %v4559, %v4560
  %v4562 = vand.u32 %v4561, 4294901760
  %4563 = vmatpush1.msra.mxu0 %v4562
  %v4564 = vand.u32 %v4136, 4294901760
  %v4565 = vsub.f32 %v4136, %v4564
  %v4566 = vand.u32 %v4565, 4294901760
  %v4567 = vsub.f32 %v4565, %v4566
  %v4568 = vand.u32 %v4567, 4294901760
  %4569 = vmatprep.subr.mxu0 %v4568
  %v4570 = vand.u32 %v4135, 4294901760
  %v4571 = vsub.f32 %v4135, %v4570
  %v4572 = vand.u32 %v4571, 4294901760
  %v4573 = vsub.f32 %v4571, %v4572
  %v4574 = vand.u32 %v4573, 4294901760
  %4575 = vmatpush1.msra.mxu0 %v4574
  %v4576 = vand.u32 %v4138, 4294901760
  %v4577 = vsub.f32 %v4138, %v4576
  %v4578 = vand.u32 %v4577, 4294901760
  %v4579 = vsub.f32 %v4577, %v4578
  %v4580 = vand.u32 %v4579, 4294901760
  %4581 = vmatprep.subr.mxu0 %v4580
  %v4582 = vand.u32 %v4137, 4294901760
  %v4583 = vsub.f32 %v4137, %v4582
  %v4584 = vand.u32 %v4583, 4294901760
  %v4585 = vsub.f32 %v4583, %v4584
  %v4586 = vand.u32 %v4585, 4294901760
  %4587 = vmatpush1.msra.mxu0 %v4586
  %v4588 = vand.u32 %v4140, 4294901760
  %v4589 = vsub.f32 %v4140, %v4588
  %v4590 = vand.u32 %v4589, 4294901760
  %v4591 = vsub.f32 %v4589, %v4590
  %v4592 = vand.u32 %v4591, 4294901760
  %4593 = vmatprep.subr.mxu0 %v4592
  %v4594 = vand.u32 %v4139, 4294901760
  %v4595 = vsub.f32 %v4139, %v4594
  %v4596 = vand.u32 %v4595, 4294901760
  %v4597 = vsub.f32 %v4595, %v4596
  %v4598 = vand.u32 %v4597, 4294901760
  %4599 = vmatpush1.msra.mxu0 %v4598
  %v4600 = vand.u32 %v4142, 4294901760
  %v4601 = vsub.f32 %v4142, %v4600
  %v4602 = vand.u32 %v4601, 4294901760
  %v4603 = vsub.f32 %v4601, %v4602
  %v4604 = vand.u32 %v4603, 4294901760
  %4605 = vmatprep.subr.mxu0 %v4604
  %v4606 = vand.u32 %v4141, 4294901760
  %v4607 = vsub.f32 %v4141, %v4606
  %v4608 = vand.u32 %v4607, 4294901760
  %v4609 = vsub.f32 %v4607, %v4608
  %v4610 = vand.u32 %v4609, 4294901760
  %4611 = vmatpush1.msra.mxu0 %v4610
  %v4612 = vand.u32 %v4144, 4294901760
  %v4613 = vsub.f32 %v4144, %v4612
  %v4614 = vand.u32 %v4613, 4294901760
  %v4615 = vsub.f32 %v4613, %v4614
  %v4616 = vand.u32 %v4615, 4294901760
  %4617 = vmatprep.subr.mxu0 %v4616
  %v4618 = vand.u32 %v4143, 4294901760
  %v4619 = vsub.f32 %v4143, %v4618
  %v4620 = vand.u32 %v4619, 4294901760
  %v4621 = vsub.f32 %v4619, %v4620
  %v4622 = vand.u32 %v4621, 4294901760
  %4623 = vmatpush1.msra.mxu0 %v4622
  %v4624 = vand.u32 %v4146, 4294901760
  %v4625 = vsub.f32 %v4146, %v4624
  %v4626 = vand.u32 %v4625, 4294901760
  %v4627 = vsub.f32 %v4625, %v4626
  %v4628 = vand.u32 %v4627, 4294901760
  %4629 = vmatprep.subr.mxu0 %v4628
  %v4630 = vand.u32 %v4145, 4294901760
  %v4631 = vsub.f32 %v4145, %v4630
  %v4632 = vand.u32 %v4631, 4294901760
  %v4633 = vsub.f32 %v4631, %v4632
  %v4634 = vand.u32 %v4633, 4294901760
  %4635 = vmatpush1.msra.mxu0 %v4634
  %v4636 = vand.u32 %v4148, 4294901760
  %v4637 = vsub.f32 %v4148, %v4636
  %v4638 = vand.u32 %v4637, 4294901760
  %v4639 = vsub.f32 %v4637, %v4638
  %v4640 = vand.u32 %v4639, 4294901760
  %4641 = vmatprep.subr.mxu0 %v4640
  %v4642 = vand.u32 %v4147, 4294901760
  %v4643 = vsub.f32 %v4147, %v4642
  %v4644 = vand.u32 %v4643, 4294901760
  %v4645 = vsub.f32 %v4643, %v4644
  %v4646 = vand.u32 %v4645, 4294901760
  %4647 = vmatpush1.msra.mxu0 %v4646
  %v4648 = vand.u32 %v4150, 4294901760
  %v4649 = vsub.f32 %v4150, %v4648
  %v4650 = vand.u32 %v4649, 4294901760
  %v4651 = vsub.f32 %v4649, %v4650
  %v4652 = vand.u32 %v4651, 4294901760
  %4653 = vmatprep.subr.mxu0 %v4652
  %v4654 = vand.u32 %v4149, 4294901760
  %v4655 = vsub.f32 %v4149, %v4654
  %v4656 = vand.u32 %v4655, 4294901760
  %v4657 = vsub.f32 %v4655, %v4656
  %v4658 = vand.u32 %v4657, 4294901760
  %4659 = vmatpush1.msra.mxu0 %v4658
  %v4660 = vand.u32 %v4152, 4294901760
  %v4661 = vsub.f32 %v4152, %v4660
  %v4662 = vand.u32 %v4661, 4294901760
  %v4663 = vsub.f32 %v4661, %v4662
  %v4664 = vand.u32 %v4663, 4294901760
  %4665 = vmatprep.subr.mxu0 %v4664
  %v4666 = vand.u32 %v4151, 4294901760
  %v4667 = vsub.f32 %v4151, %v4666
  %v4668 = vand.u32 %v4667, 4294901760
  %v4669 = vsub.f32 %v4667, %v4668
  %v4670 = vand.u32 %v4669, 4294901760
  %4671 = vmatpush1.msra.mxu0 %v4670
  %v4672 = vand.u32 %v4154, 4294901760
  %v4673 = vsub.f32 %v4154, %v4672
  %v4674 = vand.u32 %v4673, 4294901760
  %v4675 = vsub.f32 %v4673, %v4674
  %v4676 = vand.u32 %v4675, 4294901760
  %4677 = vmatprep.subr.mxu0 %v4676
  %v4678 = vand.u32 %v4153, 4294901760
  %v4679 = vsub.f32 %v4153, %v4678
  %v4680 = vand.u32 %v4679, 4294901760
  %v4681 = vsub.f32 %v4679, %v4680
  %v4682 = vand.u32 %v4681, 4294901760
  %4683 = vmatpush1.msra.mxu0 %v4682
  %v4684 = vand.u32 %v39, 4294901760
  %4685 = vmatprep.mubr.f32.mxu0 %v4684
  %v4686 = vand.u32 %v38, 4294901760
  %4687 = vmatmul.mubr.f32.gmra.mrb[0].mxu0 %v4686
  %v4688 = vpop.f32.mrb[0].mxu0
  %v4689 = vadd.f32 %v4296, %v4688
  %v4690 = vpop.f32.mrb[0].mxu0
  %v4691 = vadd.f32 %v4298, %v4690
  %4692 = vdwg.mxu0
  %v4693 = vand.u32 %v4092, 4294901760
  %v4694 = vsub.f32 %v4092, %v4693
  %4695 = vmatprep.subr.mxu0 %v4694
  %v4696 = vand.u32 %v4091, 4294901760
  %v4697 = vsub.f32 %v4091, %v4696
  %4698 = vmatpush1.msra.mxu0 %v4697
  %v4699 = vand.u32 %v4094, 4294901760
  %v4700 = vsub.f32 %v4094, %v4699
  %4701 = vmatprep.subr.mxu0 %v4700
  %v4702 = vand.u32 %v4093, 4294901760
  %v4703 = vsub.f32 %v4093, %v4702
  %4704 = vmatpush1.msra.mxu0 %v4703
  %v4705 = vand.u32 %v4096, 4294901760
  %v4706 = vsub.f32 %v4096, %v4705
  %4707 = vmatprep.subr.mxu0 %v4706
  %v4708 = vand.u32 %v4095, 4294901760
  %v4709 = vsub.f32 %v4095, %v4708
  %4710 = vmatpush1.msra.mxu0 %v4709
  %v4711 = vand.u32 %v4098, 4294901760
  %v4712 = vsub.f32 %v4098, %v4711
  %4713 = vmatprep.subr.mxu0 %v4712
  %v4714 = vand.u32 %v4097, 4294901760
  %v4715 = vsub.f32 %v4097, %v4714
  %4716 = vmatpush1.msra.mxu0 %v4715
  %v4717 = vand.u32 %v4100, 4294901760
  %v4718 = vsub.f32 %v4100, %v4717
  %4719 = vmatprep.subr.mxu0 %v4718
  %v4720 = vand.u32 %v4099, 4294901760
  %v4721 = vsub.f32 %v4099, %v4720
  %4722 = vmatpush1.msra.mxu0 %v4721
  %v4723 = vand.u32 %v4102, 4294901760
  %v4724 = vsub.f32 %v4102, %v4723
  %4725 = vmatprep.subr.mxu0 %v4724
  %v4726 = vand.u32 %v4101, 4294901760
  %v4727 = vsub.f32 %v4101, %v4726
  %4728 = vmatpush1.msra.mxu0 %v4727
  %v4729 = vand.u32 %v4104, 4294901760
  %v4730 = vsub.f32 %v4104, %v4729
  %4731 = vmatprep.subr.mxu0 %v4730
  %v4732 = vand.u32 %v4103, 4294901760
  %v4733 = vsub.f32 %v4103, %v4732
  %4734 = vmatpush1.msra.mxu0 %v4733
  %v4735 = vand.u32 %v4106, 4294901760
  %v4736 = vsub.f32 %v4106, %v4735
  %4737 = vmatprep.subr.mxu0 %v4736
  %v4738 = vand.u32 %v4105, 4294901760
  %v4739 = vsub.f32 %v4105, %v4738
  %4740 = vmatpush1.msra.mxu0 %v4739
  %v4741 = vand.u32 %v4108, 4294901760
  %v4742 = vsub.f32 %v4108, %v4741
  %4743 = vmatprep.subr.mxu0 %v4742
  %v4744 = vand.u32 %v4107, 4294901760
  %v4745 = vsub.f32 %v4107, %v4744
  %4746 = vmatpush1.msra.mxu0 %v4745
  %v4747 = vand.u32 %v4110, 4294901760
  %v4748 = vsub.f32 %v4110, %v4747
  %4749 = vmatprep.subr.mxu0 %v4748
  %v4750 = vand.u32 %v4109, 4294901760
  %v4751 = vsub.f32 %v4109, %v4750
  %4752 = vmatpush1.msra.mxu0 %v4751
  %v4753 = vand.u32 %v4112, 4294901760
  %v4754 = vsub.f32 %v4112, %v4753
  %4755 = vmatprep.subr.mxu0 %v4754
  %v4756 = vand.u32 %v4111, 4294901760
  %v4757 = vsub.f32 %v4111, %v4756
  %4758 = vmatpush1.msra.mxu0 %v4757
  %v4759 = vand.u32 %v4114, 4294901760
  %v4760 = vsub.f32 %v4114, %v4759
  %4761 = vmatprep.subr.mxu0 %v4760
  %v4762 = vand.u32 %v4113, 4294901760
  %v4763 = vsub.f32 %v4113, %v4762
  %4764 = vmatpush1.msra.mxu0 %v4763
  %v4765 = vand.u32 %v4116, 4294901760
  %v4766 = vsub.f32 %v4116, %v4765
  %4767 = vmatprep.subr.mxu0 %v4766
  %v4768 = vand.u32 %v4115, 4294901760
  %v4769 = vsub.f32 %v4115, %v4768
  %4770 = vmatpush1.msra.mxu0 %v4769
  %v4771 = vand.u32 %v4118, 4294901760
  %v4772 = vsub.f32 %v4118, %v4771
  %4773 = vmatprep.subr.mxu0 %v4772
  %v4774 = vand.u32 %v4117, 4294901760
  %v4775 = vsub.f32 %v4117, %v4774
  %4776 = vmatpush1.msra.mxu0 %v4775
  %v4777 = vand.u32 %v4120, 4294901760
  %v4778 = vsub.f32 %v4120, %v4777
  %4779 = vmatprep.subr.mxu0 %v4778
  %v4780 = vand.u32 %v4119, 4294901760
  %v4781 = vsub.f32 %v4119, %v4780
  %4782 = vmatpush1.msra.mxu0 %v4781
  %v4783 = vand.u32 %v4122, 4294901760
  %v4784 = vsub.f32 %v4122, %v4783
  %4785 = vmatprep.subr.mxu0 %v4784
  %v4786 = vand.u32 %v4121, 4294901760
  %v4787 = vsub.f32 %v4121, %v4786
  %4788 = vmatpush1.msra.mxu0 %v4787
  %v4789 = vand.u32 %v4124, 4294901760
  %v4790 = vsub.f32 %v4124, %v4789
  %4791 = vmatprep.subr.mxu0 %v4790
  %v4792 = vand.u32 %v4123, 4294901760
  %v4793 = vsub.f32 %v4123, %v4792
  %4794 = vmatpush1.msra.mxu0 %v4793
  %v4795 = vand.u32 %v4126, 4294901760
  %v4796 = vsub.f32 %v4126, %v4795
  %4797 = vmatprep.subr.mxu0 %v4796
  %v4798 = vand.u32 %v4125, 4294901760
  %v4799 = vsub.f32 %v4125, %v4798
  %4800 = vmatpush1.msra.mxu0 %v4799
  %v4801 = vand.u32 %v4128, 4294901760
  %v4802 = vsub.f32 %v4128, %v4801
  %4803 = vmatprep.subr.mxu0 %v4802
  %v4804 = vand.u32 %v4127, 4294901760
  %v4805 = vsub.f32 %v4127, %v4804
  %4806 = vmatpush1.msra.mxu0 %v4805
  %v4807 = vand.u32 %v4130, 4294901760
  %v4808 = vsub.f32 %v4130, %v4807
  %4809 = vmatprep.subr.mxu0 %v4808
  %v4810 = vand.u32 %v4129, 4294901760
  %v4811 = vsub.f32 %v4129, %v4810
  %4812 = vmatpush1.msra.mxu0 %v4811
  %v4813 = vand.u32 %v4132, 4294901760
  %v4814 = vsub.f32 %v4132, %v4813
  %4815 = vmatprep.subr.mxu0 %v4814
  %v4816 = vand.u32 %v4131, 4294901760
  %v4817 = vsub.f32 %v4131, %v4816
  %4818 = vmatpush1.msra.mxu0 %v4817
  %v4819 = vand.u32 %v4134, 4294901760
  %v4820 = vsub.f32 %v4134, %v4819
  %4821 = vmatprep.subr.mxu0 %v4820
  %v4822 = vand.u32 %v4133, 4294901760
  %v4823 = vsub.f32 %v4133, %v4822
  %4824 = vmatpush1.msra.mxu0 %v4823
  %v4825 = vand.u32 %v4136, 4294901760
  %v4826 = vsub.f32 %v4136, %v4825
  %4827 = vmatprep.subr.mxu0 %v4826
  %v4828 = vand.u32 %v4135, 4294901760
  %v4829 = vsub.f32 %v4135, %v4828
  %4830 = vmatpush1.msra.mxu0 %v4829
  %v4831 = vand.u32 %v4138, 4294901760
  %v4832 = vsub.f32 %v4138, %v4831
  %4833 = vmatprep.subr.mxu0 %v4832
  %v4834 = vand.u32 %v4137, 4294901760
  %v4835 = vsub.f32 %v4137, %v4834
  %4836 = vmatpush1.msra.mxu0 %v4835
  %v4837 = vand.u32 %v4140, 4294901760
  %v4838 = vsub.f32 %v4140, %v4837
  %4839 = vmatprep.subr.mxu0 %v4838
  %v4840 = vand.u32 %v4139, 4294901760
  %v4841 = vsub.f32 %v4139, %v4840
  %4842 = vmatpush1.msra.mxu0 %v4841
  %v4843 = vand.u32 %v4142, 4294901760
  %v4844 = vsub.f32 %v4142, %v4843
  %4845 = vmatprep.subr.mxu0 %v4844
  %v4846 = vand.u32 %v4141, 4294901760
  %v4847 = vsub.f32 %v4141, %v4846
  %4848 = vmatpush1.msra.mxu0 %v4847
  %v4849 = vand.u32 %v4144, 4294901760
  %v4850 = vsub.f32 %v4144, %v4849
  %4851 = vmatprep.subr.mxu0 %v4850
  %v4852 = vand.u32 %v4143, 4294901760
  %v4853 = vsub.f32 %v4143, %v4852
  %4854 = vmatpush1.msra.mxu0 %v4853
  %v4855 = vand.u32 %v4146, 4294901760
  %v4856 = vsub.f32 %v4146, %v4855
  %4857 = vmatprep.subr.mxu0 %v4856
  %v4858 = vand.u32 %v4145, 4294901760
  %v4859 = vsub.f32 %v4145, %v4858
  %4860 = vmatpush1.msra.mxu0 %v4859
  %v4861 = vand.u32 %v4148, 4294901760
  %v4862 = vsub.f32 %v4148, %v4861
  %4863 = vmatprep.subr.mxu0 %v4862
  %v4864 = vand.u32 %v4147, 4294901760
  %v4865 = vsub.f32 %v4147, %v4864
  %4866 = vmatpush1.msra.mxu0 %v4865
  %v4867 = vand.u32 %v4150, 4294901760
  %v4868 = vsub.f32 %v4150, %v4867
  %4869 = vmatprep.subr.mxu0 %v4868
  %v4870 = vand.u32 %v4149, 4294901760
  %v4871 = vsub.f32 %v4149, %v4870
  %4872 = vmatpush1.msra.mxu0 %v4871
  %v4873 = vand.u32 %v4152, 4294901760
  %v4874 = vsub.f32 %v4152, %v4873
  %4875 = vmatprep.subr.mxu0 %v4874
  %v4876 = vand.u32 %v4151, 4294901760
  %v4877 = vsub.f32 %v4151, %v4876
  %4878 = vmatpush1.msra.mxu0 %v4877
  %v4879 = vand.u32 %v4154, 4294901760
  %v4880 = vsub.f32 %v4154, %v4879
  %4881 = vmatprep.subr.mxu0 %v4880
  %v4882 = vand.u32 %v4153, 4294901760
  %v4883 = vsub.f32 %v4153, %v4882
  %4884 = vmatpush1.msra.mxu0 %v4883
  %v4885 = vand.u32 %v39, 4294901760
  %v4886 = vsub.f32 %v39, %v4885
  %4887 = vmatprep.mubr.f32.mxu0 %v4886
  %v4888 = vand.u32 %v38, 4294901760
  %v4889 = vsub.f32 %v38, %v4888
  %4890 = vmatmul.mubr.f32.gmra.mrb[0].mxu0 %v4889
  %v4891 = vpop.f32.mrb[0].mxu0
  %v4892 = vadd.f32 %v4689, %v4891
  %v4893 = vpop.f32.mrb[0].mxu0
  %v4894 = vadd.f32 %v4691, %v4893
  %4895 = vdwg.mxu0
  %v4896 = vand.u32 %v4092, 4294901760
  %4897 = vmatprep.subr.mxu0 %v4896
  %v4898 = vand.u32 %v4091, 4294901760
  %4899 = vmatpush1.msra.mxu0 %v4898
  %v4900 = vand.u32 %v4094, 4294901760
  %4901 = vmatprep.subr.mxu0 %v4900
  %v4902 = vand.u32 %v4093, 4294901760
  %4903 = vmatpush1.msra.mxu0 %v4902
  %v4904 = vand.u32 %v4096, 4294901760
  %4905 = vmatprep.subr.mxu0 %v4904
  %v4906 = vand.u32 %v4095, 4294901760
  %4907 = vmatpush1.msra.mxu0 %v4906
  %v4908 = vand.u32 %v4098, 4294901760
  %4909 = vmatprep.subr.mxu0 %v4908
  %v4910 = vand.u32 %v4097, 4294901760
  %4911 = vmatpush1.msra.mxu0 %v4910
  %v4912 = vand.u32 %v4100, 4294901760
  %4913 = vmatprep.subr.mxu0 %v4912
  %v4914 = vand.u32 %v4099, 4294901760
  %4915 = vmatpush1.msra.mxu0 %v4914
  %v4916 = vand.u32 %v4102, 4294901760
  %4917 = vmatprep.subr.mxu0 %v4916
  %v4918 = vand.u32 %v4101, 4294901760
  %4919 = vmatpush1.msra.mxu0 %v4918
  %v4920 = vand.u32 %v4104, 4294901760
  %4921 = vmatprep.subr.mxu0 %v4920
  %v4922 = vand.u32 %v4103, 4294901760
  %4923 = vmatpush1.msra.mxu0 %v4922
  %v4924 = vand.u32 %v4106, 4294901760
  %4925 = vmatprep.subr.mxu0 %v4924
  %v4926 = vand.u32 %v4105, 4294901760
  %4927 = vmatpush1.msra.mxu0 %v4926
  %v4928 = vand.u32 %v4108, 4294901760
  %4929 = vmatprep.subr.mxu0 %v4928
  %v4930 = vand.u32 %v4107, 4294901760
  %4931 = vmatpush1.msra.mxu0 %v4930
  %v4932 = vand.u32 %v4110, 4294901760
  %4933 = vmatprep.subr.mxu0 %v4932
  %v4934 = vand.u32 %v4109, 4294901760
  %4935 = vmatpush1.msra.mxu0 %v4934
  %v4936 = vand.u32 %v4112, 4294901760
  %4937 = vmatprep.subr.mxu0 %v4936
  %v4938 = vand.u32 %v4111, 4294901760
  %4939 = vmatpush1.msra.mxu0 %v4938
  %v4940 = vand.u32 %v4114, 4294901760
  %4941 = vmatprep.subr.mxu0 %v4940
  %v4942 = vand.u32 %v4113, 4294901760
  %4943 = vmatpush1.msra.mxu0 %v4942
  %v4944 = vand.u32 %v4116, 4294901760
  %4945 = vmatprep.subr.mxu0 %v4944
  %v4946 = vand.u32 %v4115, 4294901760
  %4947 = vmatpush1.msra.mxu0 %v4946
  %v4948 = vand.u32 %v4118, 4294901760
  %4949 = vmatprep.subr.mxu0 %v4948
  %v4950 = vand.u32 %v4117, 4294901760
  %4951 = vmatpush1.msra.mxu0 %v4950
  %v4952 = vand.u32 %v4120, 4294901760
  %4953 = vmatprep.subr.mxu0 %v4952
  %v4954 = vand.u32 %v4119, 4294901760
  %4955 = vmatpush1.msra.mxu0 %v4954
  %v4956 = vand.u32 %v4122, 4294901760
  %4957 = vmatprep.subr.mxu0 %v4956
  %v4958 = vand.u32 %v4121, 4294901760
  %4959 = vmatpush1.msra.mxu0 %v4958
  %v4960 = vand.u32 %v4124, 4294901760
  %4961 = vmatprep.subr.mxu0 %v4960
  %v4962 = vand.u32 %v4123, 4294901760
  %4963 = vmatpush1.msra.mxu0 %v4962
  %v4964 = vand.u32 %v4126, 4294901760
  %4965 = vmatprep.subr.mxu0 %v4964
  %v4966 = vand.u32 %v4125, 4294901760
  %4967 = vmatpush1.msra.mxu0 %v4966
  %v4968 = vand.u32 %v4128, 4294901760
  %4969 = vmatprep.subr.mxu0 %v4968
  %v4970 = vand.u32 %v4127, 4294901760
  %4971 = vmatpush1.msra.mxu0 %v4970
  %v4972 = vand.u32 %v4130, 4294901760
  %4973 = vmatprep.subr.mxu0 %v4972
  %v4974 = vand.u32 %v4129, 4294901760
  %4975 = vmatpush1.msra.mxu0 %v4974
  %v4976 = vand.u32 %v4132, 4294901760
  %4977 = vmatprep.subr.mxu0 %v4976
  %v4978 = vand.u32 %v4131, 4294901760
  %4979 = vmatpush1.msra.mxu0 %v4978
  %v4980 = vand.u32 %v4134, 4294901760
  %4981 = vmatprep.subr.mxu0 %v4980
  %v4982 = vand.u32 %v4133, 4294901760
  %4983 = vmatpush1.msra.mxu0 %v4982
  %v4984 = vand.u32 %v4136, 4294901760
  %4985 = vmatprep.subr.mxu0 %v4984
  %v4986 = vand.u32 %v4135, 4294901760
  %4987 = vmatpush1.msra.mxu0 %v4986
  %v4988 = vand.u32 %v4138, 4294901760
  %4989 = vmatprep.subr.mxu0 %v4988
  %v4990 = vand.u32 %v4137, 4294901760
  %4991 = vmatpush1.msra.mxu0 %v4990
  %v4992 = vand.u32 %v4140, 4294901760
  %4993 = vmatprep.subr.mxu0 %v4992
  %v4994 = vand.u32 %v4139, 4294901760
  %4995 = vmatpush1.msra.mxu0 %v4994
  %v4996 = vand.u32 %v4142, 4294901760
  %4997 = vmatprep.subr.mxu0 %v4996
  %v4998 = vand.u32 %v4141, 4294901760
  %4999 = vmatpush1.msra.mxu0 %v4998
  %v5000 = vand.u32 %v4144, 4294901760
  %5001 = vmatprep.subr.mxu0 %v5000
  %v5002 = vand.u32 %v4143, 4294901760
  %5003 = vmatpush1.msra.mxu0 %v5002
  %v5004 = vand.u32 %v4146, 4294901760
  %5005 = vmatprep.subr.mxu0 %v5004
  %v5006 = vand.u32 %v4145, 4294901760
  %5007 = vmatpush1.msra.mxu0 %v5006
  %v5008 = vand.u32 %v4148, 4294901760
  %5009 = vmatprep.subr.mxu0 %v5008
  %v5010 = vand.u32 %v4147, 4294901760
  %5011 = vmatpush1.msra.mxu0 %v5010
  %v5012 = vand.u32 %v4150, 4294901760
  %5013 = vmatprep.subr.mxu0 %v5012
  %v5014 = vand.u32 %v4149, 4294901760
  %5015 = vmatpush1.msra.mxu0 %v5014
  %v5016 = vand.u32 %v4152, 4294901760
  %5017 = vmatprep.subr.mxu0 %v5016
  %v5018 = vand.u32 %v4151, 4294901760
  %5019 = vmatpush1.msra.mxu0 %v5018
  %v5020 = vand.u32 %v4154, 4294901760
  %5021 = vmatprep.subr.mxu0 %v5020
  %v5022 = vand.u32 %v4153, 4294901760
  %5023 = vmatpush1.msra.mxu0 %v5022
  %v5024 = vand.u32 %v39, 4294901760
  %v5025 = vsub.f32 %v39, %v5024
  %v5026 = vand.u32 %v5025, 4294901760
  %5027 = vmatprep.mubr.f32.mxu0 %v5026
  %v5028 = vand.u32 %v38, 4294901760
  %v5029 = vsub.f32 %v38, %v5028
  %v5030 = vand.u32 %v5029, 4294901760
  %5031 = vmatmul.mubr.f32.gmra.mrb[0].mxu0 %v5030
  %v5032 = vpop.f32.mrb[0].mxu0
  %v5033 = vadd.f32 %v4892, %v5032
  %v5034 = vpop.f32.mrb[0].mxu0
  %v5035 = vadd.f32 %v4894, %v5034
  %5036 = vdwg.mxu0
  %v5037 = vand.u32 %v4092, 4294901760
  %v5038 = vsub.f32 %v4092, %v5037
  %v5039 = vand.u32 %v5038, 4294901760
  %5040 = vmatprep.subr.mxu0 %v5039
  %v5041 = vand.u32 %v4091, 4294901760
  %v5042 = vsub.f32 %v4091, %v5041
  %v5043 = vand.u32 %v5042, 4294901760
  %5044 = vmatpush1.msra.mxu0 %v5043
  %v5045 = vand.u32 %v4094, 4294901760
  %v5046 = vsub.f32 %v4094, %v5045
  %v5047 = vand.u32 %v5046, 4294901760
  %5048 = vmatprep.subr.mxu0 %v5047
  %v5049 = vand.u32 %v4093, 4294901760
  %v5050 = vsub.f32 %v4093, %v5049
  %v5051 = vand.u32 %v5050, 4294901760
  %5052 = vmatpush1.msra.mxu0 %v5051
  %v5053 = vand.u32 %v4096, 4294901760
  %v5054 = vsub.f32 %v4096, %v5053
  %v5055 = vand.u32 %v5054, 4294901760
  %5056 = vmatprep.subr.mxu0 %v5055
  %v5057 = vand.u32 %v4095, 4294901760
  %v5058 = vsub.f32 %v4095, %v5057
  %v5059 = vand.u32 %v5058, 4294901760
  %5060 = vmatpush1.msra.mxu0 %v5059
  %v5061 = vand.u32 %v4098, 4294901760
  %v5062 = vsub.f32 %v4098, %v5061
  %v5063 = vand.u32 %v5062, 4294901760
  %5064 = vmatprep.subr.mxu0 %v5063
  %v5065 = vand.u32 %v4097, 4294901760
  %v5066 = vsub.f32 %v4097, %v5065
  %v5067 = vand.u32 %v5066, 4294901760
  %5068 = vmatpush1.msra.mxu0 %v5067
  %v5069 = vand.u32 %v4100, 4294901760
  %v5070 = vsub.f32 %v4100, %v5069
  %v5071 = vand.u32 %v5070, 4294901760
  %5072 = vmatprep.subr.mxu0 %v5071
  %v5073 = vand.u32 %v4099, 4294901760
  %v5074 = vsub.f32 %v4099, %v5073
  %v5075 = vand.u32 %v5074, 4294901760
  %5076 = vmatpush1.msra.mxu0 %v5075
  %v5077 = vand.u32 %v4102, 4294901760
  %v5078 = vsub.f32 %v4102, %v5077
  %v5079 = vand.u32 %v5078, 4294901760
  %5080 = vmatprep.subr.mxu0 %v5079
  %v5081 = vand.u32 %v4101, 4294901760
  %v5082 = vsub.f32 %v4101, %v5081
  %v5083 = vand.u32 %v5082, 4294901760
  %5084 = vmatpush1.msra.mxu0 %v5083
  %v5085 = vand.u32 %v4104, 4294901760
  %v5086 = vsub.f32 %v4104, %v5085
  %v5087 = vand.u32 %v5086, 4294901760
  %5088 = vmatprep.subr.mxu0 %v5087
  %v5089 = vand.u32 %v4103, 4294901760
  %v5090 = vsub.f32 %v4103, %v5089
  %v5091 = vand.u32 %v5090, 4294901760
  %5092 = vmatpush1.msra.mxu0 %v5091
  %v5093 = vand.u32 %v4106, 4294901760
  %v5094 = vsub.f32 %v4106, %v5093
  %v5095 = vand.u32 %v5094, 4294901760
  %5096 = vmatprep.subr.mxu0 %v5095
  %v5097 = vand.u32 %v4105, 4294901760
  %v5098 = vsub.f32 %v4105, %v5097
  %v5099 = vand.u32 %v5098, 4294901760
  %5100 = vmatpush1.msra.mxu0 %v5099
  %v5101 = vand.u32 %v4108, 4294901760
  %v5102 = vsub.f32 %v4108, %v5101
  %v5103 = vand.u32 %v5102, 4294901760
  %5104 = vmatprep.subr.mxu0 %v5103
  %v5105 = vand.u32 %v4107, 4294901760
  %v5106 = vsub.f32 %v4107, %v5105
  %v5107 = vand.u32 %v5106, 4294901760
  %5108 = vmatpush1.msra.mxu0 %v5107
  %v5109 = vand.u32 %v4110, 4294901760
  %v5110 = vsub.f32 %v4110, %v5109
  %v5111 = vand.u32 %v5110, 4294901760
  %5112 = vmatprep.subr.mxu0 %v5111
  %v5113 = vand.u32 %v4109, 4294901760
  %v5114 = vsub.f32 %v4109, %v5113
  %v5115 = vand.u32 %v5114, 4294901760
  %5116 = vmatpush1.msra.mxu0 %v5115
  %v5117 = vand.u32 %v4112, 4294901760
  %v5118 = vsub.f32 %v4112, %v5117
  %v5119 = vand.u32 %v5118, 4294901760
  %5120 = vmatprep.subr.mxu0 %v5119
  %v5121 = vand.u32 %v4111, 4294901760
  %v5122 = vsub.f32 %v4111, %v5121
  %v5123 = vand.u32 %v5122, 4294901760
  %5124 = vmatpush1.msra.mxu0 %v5123
  %v5125 = vand.u32 %v4114, 4294901760
  %v5126 = vsub.f32 %v4114, %v5125
  %v5127 = vand.u32 %v5126, 4294901760
  %5128 = vmatprep.subr.mxu0 %v5127
  %v5129 = vand.u32 %v4113, 4294901760
  %v5130 = vsub.f32 %v4113, %v5129
  %v5131 = vand.u32 %v5130, 4294901760
  %5132 = vmatpush1.msra.mxu0 %v5131
  %v5133 = vand.u32 %v4116, 4294901760
  %v5134 = vsub.f32 %v4116, %v5133
  %v5135 = vand.u32 %v5134, 4294901760
  %5136 = vmatprep.subr.mxu0 %v5135
  %v5137 = vand.u32 %v4115, 4294901760
  %v5138 = vsub.f32 %v4115, %v5137
  %v5139 = vand.u32 %v5138, 4294901760
  %5140 = vmatpush1.msra.mxu0 %v5139
  %v5141 = vand.u32 %v4118, 4294901760
  %v5142 = vsub.f32 %v4118, %v5141
  %v5143 = vand.u32 %v5142, 4294901760
  %5144 = vmatprep.subr.mxu0 %v5143
  %v5145 = vand.u32 %v4117, 4294901760
  %v5146 = vsub.f32 %v4117, %v5145
  %v5147 = vand.u32 %v5146, 4294901760
  %5148 = vmatpush1.msra.mxu0 %v5147
  %v5149 = vand.u32 %v4120, 4294901760
  %v5150 = vsub.f32 %v4120, %v5149
  %v5151 = vand.u32 %v5150, 4294901760
  %5152 = vmatprep.subr.mxu0 %v5151
  %v5153 = vand.u32 %v4119, 4294901760
  %v5154 = vsub.f32 %v4119, %v5153
  %v5155 = vand.u32 %v5154, 4294901760
  %5156 = vmatpush1.msra.mxu0 %v5155
  %v5157 = vand.u32 %v4122, 4294901760
  %v5158 = vsub.f32 %v4122, %v5157
  %v5159 = vand.u32 %v5158, 4294901760
  %5160 = vmatprep.subr.mxu0 %v5159
  %v5161 = vand.u32 %v4121, 4294901760
  %v5162 = vsub.f32 %v4121, %v5161
  %v5163 = vand.u32 %v5162, 4294901760
  %5164 = vmatpush1.msra.mxu0 %v5163
  %v5165 = vand.u32 %v4124, 4294901760
  %v5166 = vsub.f32 %v4124, %v5165
  %v5167 = vand.u32 %v5166, 4294901760
  %5168 = vmatprep.subr.mxu0 %v5167
  %v5169 = vand.u32 %v4123, 4294901760
  %v5170 = vsub.f32 %v4123, %v5169
  %v5171 = vand.u32 %v5170, 4294901760
  %5172 = vmatpush1.msra.mxu0 %v5171
  %v5173 = vand.u32 %v4126, 4294901760
  %v5174 = vsub.f32 %v4126, %v5173
  %v5175 = vand.u32 %v5174, 4294901760
  %5176 = vmatprep.subr.mxu0 %v5175
  %v5177 = vand.u32 %v4125, 4294901760
  %v5178 = vsub.f32 %v4125, %v5177
  %v5179 = vand.u32 %v5178, 4294901760
  %5180 = vmatpush1.msra.mxu0 %v5179
  %v5181 = vand.u32 %v4128, 4294901760
  %v5182 = vsub.f32 %v4128, %v5181
  %v5183 = vand.u32 %v5182, 4294901760
  %5184 = vmatprep.subr.mxu0 %v5183
  %v5185 = vand.u32 %v4127, 4294901760
  %v5186 = vsub.f32 %v4127, %v5185
  %v5187 = vand.u32 %v5186, 4294901760
  %5188 = vmatpush1.msra.mxu0 %v5187
  %v5189 = vand.u32 %v4130, 4294901760
  %v5190 = vsub.f32 %v4130, %v5189
  %v5191 = vand.u32 %v5190, 4294901760
  %5192 = vmatprep.subr.mxu0 %v5191
  %v5193 = vand.u32 %v4129, 4294901760
  %v5194 = vsub.f32 %v4129, %v5193
  %v5195 = vand.u32 %v5194, 4294901760
  %5196 = vmatpush1.msra.mxu0 %v5195
  %v5197 = vand.u32 %v4132, 4294901760
  %v5198 = vsub.f32 %v4132, %v5197
  %v5199 = vand.u32 %v5198, 4294901760
  %5200 = vmatprep.subr.mxu0 %v5199
  %v5201 = vand.u32 %v4131, 4294901760
  %v5202 = vsub.f32 %v4131, %v5201
  %v5203 = vand.u32 %v5202, 4294901760
  %5204 = vmatpush1.msra.mxu0 %v5203
  %v5205 = vand.u32 %v4134, 4294901760
  %v5206 = vsub.f32 %v4134, %v5205
  %v5207 = vand.u32 %v5206, 4294901760
  %5208 = vmatprep.subr.mxu0 %v5207
  %v5209 = vand.u32 %v4133, 4294901760
  %v5210 = vsub.f32 %v4133, %v5209
  %v5211 = vand.u32 %v5210, 4294901760
  %5212 = vmatpush1.msra.mxu0 %v5211
  %v5213 = vand.u32 %v4136, 4294901760
  %v5214 = vsub.f32 %v4136, %v5213
  %v5215 = vand.u32 %v5214, 4294901760
  %5216 = vmatprep.subr.mxu0 %v5215
  %v5217 = vand.u32 %v4135, 4294901760
  %v5218 = vsub.f32 %v4135, %v5217
  %v5219 = vand.u32 %v5218, 4294901760
  %5220 = vmatpush1.msra.mxu0 %v5219
  %v5221 = vand.u32 %v4138, 4294901760
  %v5222 = vsub.f32 %v4138, %v5221
  %v5223 = vand.u32 %v5222, 4294901760
  %5224 = vmatprep.subr.mxu0 %v5223
  %v5225 = vand.u32 %v4137, 4294901760
  %v5226 = vsub.f32 %v4137, %v5225
  %v5227 = vand.u32 %v5226, 4294901760
  %5228 = vmatpush1.msra.mxu0 %v5227
  %v5229 = vand.u32 %v4140, 4294901760
  %v5230 = vsub.f32 %v4140, %v5229
  %v5231 = vand.u32 %v5230, 4294901760
  %5232 = vmatprep.subr.mxu0 %v5231
  %v5233 = vand.u32 %v4139, 4294901760
  %v5234 = vsub.f32 %v4139, %v5233
  %v5235 = vand.u32 %v5234, 4294901760
  %5236 = vmatpush1.msra.mxu0 %v5235
  %v5237 = vand.u32 %v4142, 4294901760
  %v5238 = vsub.f32 %v4142, %v5237
  %v5239 = vand.u32 %v5238, 4294901760
  %5240 = vmatprep.subr.mxu0 %v5239
  %v5241 = vand.u32 %v4141, 4294901760
  %v5242 = vsub.f32 %v4141, %v5241
  %v5243 = vand.u32 %v5242, 4294901760
  %5244 = vmatpush1.msra.mxu0 %v5243
  %v5245 = vand.u32 %v4144, 4294901760
  %v5246 = vsub.f32 %v4144, %v5245
  %v5247 = vand.u32 %v5246, 4294901760
  %5248 = vmatprep.subr.mxu0 %v5247
  %v5249 = vand.u32 %v4143, 4294901760
  %v5250 = vsub.f32 %v4143, %v5249
  %v5251 = vand.u32 %v5250, 4294901760
  %5252 = vmatpush1.msra.mxu0 %v5251
  %v5253 = vand.u32 %v4146, 4294901760
  %v5254 = vsub.f32 %v4146, %v5253
  %v5255 = vand.u32 %v5254, 4294901760
  %5256 = vmatprep.subr.mxu0 %v5255
  %v5257 = vand.u32 %v4145, 4294901760
  %v5258 = vsub.f32 %v4145, %v5257
  %v5259 = vand.u32 %v5258, 4294901760
  %5260 = vmatpush1.msra.mxu0 %v5259
  %v5261 = vand.u32 %v4148, 4294901760
  %v5262 = vsub.f32 %v4148, %v5261
  %v5263 = vand.u32 %v5262, 4294901760
  %5264 = vmatprep.subr.mxu0 %v5263
  %v5265 = vand.u32 %v4147, 4294901760
  %v5266 = vsub.f32 %v4147, %v5265
  %v5267 = vand.u32 %v5266, 4294901760
  %5268 = vmatpush1.msra.mxu0 %v5267
  %v5269 = vand.u32 %v4150, 4294901760
  %v5270 = vsub.f32 %v4150, %v5269
  %v5271 = vand.u32 %v5270, 4294901760
  %5272 = vmatprep.subr.mxu0 %v5271
  %v5273 = vand.u32 %v4149, 4294901760
  %v5274 = vsub.f32 %v4149, %v5273
  %v5275 = vand.u32 %v5274, 4294901760
  %5276 = vmatpush1.msra.mxu0 %v5275
  %v5277 = vand.u32 %v4152, 4294901760
  %v5278 = vsub.f32 %v4152, %v5277
  %v5279 = vand.u32 %v5278, 4294901760
  %5280 = vmatprep.subr.mxu0 %v5279
  %v5281 = vand.u32 %v4151, 4294901760
  %v5282 = vsub.f32 %v4151, %v5281
  %v5283 = vand.u32 %v5282, 4294901760
  %5284 = vmatpush1.msra.mxu0 %v5283
  %v5285 = vand.u32 %v4154, 4294901760
  %v5286 = vsub.f32 %v4154, %v5285
  %v5287 = vand.u32 %v5286, 4294901760
  %5288 = vmatprep.subr.mxu0 %v5287
  %v5289 = vand.u32 %v4153, 4294901760
  %v5290 = vsub.f32 %v4153, %v5289
  %v5291 = vand.u32 %v5290, 4294901760
  %5292 = vmatpush1.msra.mxu0 %v5291
  %v5293 = vand.u32 %v39, 4294901760
  %5294 = vmatprep.mubr.f32.mxu0 %v5293
  %v5295 = vand.u32 %v38, 4294901760
  %5296 = vmatmul.mubr.f32.gmra.mrb[0].mxu0 %v5295
  %v5297 = vpop.f32.mrb[0].mxu0
  %v5298 = vadd.f32 %v5033, %v5297
  %v5299 = vpop.f32.mrb[0].mxu0
  %v5300 = vadd.f32 %v5035, %v5299
  %5301 = vdwg.mxu0
  %v5302 = vand.u32 %v4092, 4294901760
  %5303 = vmatprep.subr.mxu0 %v5302
  %v5304 = vand.u32 %v4091, 4294901760
  %5305 = vmatpush1.msra.mxu0 %v5304
  %v5306 = vand.u32 %v4094, 4294901760
  %5307 = vmatprep.subr.mxu0 %v5306
  %v5308 = vand.u32 %v4093, 4294901760
  %5309 = vmatpush1.msra.mxu0 %v5308
  %v5310 = vand.u32 %v4096, 4294901760
  %5311 = vmatprep.subr.mxu0 %v5310
  %v5312 = vand.u32 %v4095, 4294901760
  %5313 = vmatpush1.msra.mxu0 %v5312
  %v5314 = vand.u32 %v4098, 4294901760
  %5315 = vmatprep.subr.mxu0 %v5314
  %v5316 = vand.u32 %v4097, 4294901760
  %5317 = vmatpush1.msra.mxu0 %v5316
  %v5318 = vand.u32 %v4100, 4294901760
  %5319 = vmatprep.subr.mxu0 %v5318
  %v5320 = vand.u32 %v4099, 4294901760
  %5321 = vmatpush1.msra.mxu0 %v5320
  %v5322 = vand.u32 %v4102, 4294901760
  %5323 = vmatprep.subr.mxu0 %v5322
  %v5324 = vand.u32 %v4101, 4294901760
  %5325 = vmatpush1.msra.mxu0 %v5324
  %v5326 = vand.u32 %v4104, 4294901760
  %5327 = vmatprep.subr.mxu0 %v5326
  %v5328 = vand.u32 %v4103, 4294901760
  %5329 = vmatpush1.msra.mxu0 %v5328
  %v5330 = vand.u32 %v4106, 4294901760
  %5331 = vmatprep.subr.mxu0 %v5330
  %v5332 = vand.u32 %v4105, 4294901760
  %5333 = vmatpush1.msra.mxu0 %v5332
  %v5334 = vand.u32 %v4108, 4294901760
  %5335 = vmatprep.subr.mxu0 %v5334
  %v5336 = vand.u32 %v4107, 4294901760
  %5337 = vmatpush1.msra.mxu0 %v5336
  %v5338 = vand.u32 %v4110, 4294901760
  %5339 = vmatprep.subr.mxu0 %v5338
  %v5340 = vand.u32 %v4109, 4294901760
  %5341 = vmatpush1.msra.mxu0 %v5340
  %v5342 = vand.u32 %v4112, 4294901760
  %5343 = vmatprep.subr.mxu0 %v5342
  %v5344 = vand.u32 %v4111, 4294901760
  %5345 = vmatpush1.msra.mxu0 %v5344
  %v5346 = vand.u32 %v4114, 4294901760
  %5347 = vmatprep.subr.mxu0 %v5346
  %v5348 = vand.u32 %v4113, 4294901760
  %5349 = vmatpush1.msra.mxu0 %v5348
  %v5350 = vand.u32 %v4116, 4294901760
  %5351 = vmatprep.subr.mxu0 %v5350
  %v5352 = vand.u32 %v4115, 4294901760
  %5353 = vmatpush1.msra.mxu0 %v5352
  %v5354 = vand.u32 %v4118, 4294901760
  %5355 = vmatprep.subr.mxu0 %v5354
  %v5356 = vand.u32 %v4117, 4294901760
  %5357 = vmatpush1.msra.mxu0 %v5356
  %v5358 = vand.u32 %v4120, 4294901760
  %5359 = vmatprep.subr.mxu0 %v5358
  %v5360 = vand.u32 %v4119, 4294901760
  %5361 = vmatpush1.msra.mxu0 %v5360
  %v5362 = vand.u32 %v4122, 4294901760
  %5363 = vmatprep.subr.mxu0 %v5362
  %v5364 = vand.u32 %v4121, 4294901760
  %5365 = vmatpush1.msra.mxu0 %v5364
  %v5366 = vand.u32 %v4124, 4294901760
  %5367 = vmatprep.subr.mxu0 %v5366
  %v5368 = vand.u32 %v4123, 4294901760
  %5369 = vmatpush1.msra.mxu0 %v5368
  %v5370 = vand.u32 %v4126, 4294901760
  %5371 = vmatprep.subr.mxu0 %v5370
  %v5372 = vand.u32 %v4125, 4294901760
  %5373 = vmatpush1.msra.mxu0 %v5372
  %v5374 = vand.u32 %v4128, 4294901760
  %5375 = vmatprep.subr.mxu0 %v5374
  %v5376 = vand.u32 %v4127, 4294901760
  %5377 = vmatpush1.msra.mxu0 %v5376
  %v5378 = vand.u32 %v4130, 4294901760
  %5379 = vmatprep.subr.mxu0 %v5378
  %v5380 = vand.u32 %v4129, 4294901760
  %5381 = vmatpush1.msra.mxu0 %v5380
  %v5382 = vand.u32 %v4132, 4294901760
  %5383 = vmatprep.subr.mxu0 %v5382
  %v5384 = vand.u32 %v4131, 4294901760
  %5385 = vmatpush1.msra.mxu0 %v5384
  %v5386 = vand.u32 %v4134, 4294901760
  %5387 = vmatprep.subr.mxu0 %v5386
  %v5388 = vand.u32 %v4133, 4294901760
  %5389 = vmatpush1.msra.mxu0 %v5388
  %v5390 = vand.u32 %v4136, 4294901760
  %5391 = vmatprep.subr.mxu0 %v5390
  %v5392 = vand.u32 %v4135, 4294901760
  %5393 = vmatpush1.msra.mxu0 %v5392
  %v5394 = vand.u32 %v4138, 4294901760
  %5395 = vmatprep.subr.mxu0 %v5394
  %v5396 = vand.u32 %v4137, 4294901760
  %5397 = vmatpush1.msra.mxu0 %v5396
  %v5398 = vand.u32 %v4140, 4294901760
  %5399 = vmatprep.subr.mxu0 %v5398
  %v5400 = vand.u32 %v4139, 4294901760
  %5401 = vmatpush1.msra.mxu0 %v5400
  %v5402 = vand.u32 %v4142, 4294901760
  %5403 = vmatprep.subr.mxu0 %v5402
  %v5404 = vand.u32 %v4141, 4294901760
  %5405 = vmatpush1.msra.mxu0 %v5404
  %v5406 = vand.u32 %v4144, 4294901760
  %5407 = vmatprep.subr.mxu0 %v5406
  %v5408 = vand.u32 %v4143, 4294901760
  %5409 = vmatpush1.msra.mxu0 %v5408
  %v5410 = vand.u32 %v4146, 4294901760
  %5411 = vmatprep.subr.mxu0 %v5410
  %v5412 = vand.u32 %v4145, 4294901760
  %5413 = vmatpush1.msra.mxu0 %v5412
  %v5414 = vand.u32 %v4148, 4294901760
  %5415 = vmatprep.subr.mxu0 %v5414
  %v5416 = vand.u32 %v4147, 4294901760
  %5417 = vmatpush1.msra.mxu0 %v5416
  %v5418 = vand.u32 %v4150, 4294901760
  %5419 = vmatprep.subr.mxu0 %v5418
  %v5420 = vand.u32 %v4149, 4294901760
  %5421 = vmatpush1.msra.mxu0 %v5420
  %v5422 = vand.u32 %v4152, 4294901760
  %5423 = vmatprep.subr.mxu0 %v5422
  %v5424 = vand.u32 %v4151, 4294901760
  %5425 = vmatpush1.msra.mxu0 %v5424
  %v5426 = vand.u32 %v4154, 4294901760
  %5427 = vmatprep.subr.mxu0 %v5426
  %v5428 = vand.u32 %v4153, 4294901760
  %5429 = vmatpush1.msra.mxu0 %v5428
  %v5430 = vand.u32 %v39, 4294901760
  %5431 = vmatprep.mubr.f32.mxu0 %v5430
  %v5432 = vand.u32 %v38, 4294901760
  %5433 = vmatmul.mubr.f32.gmra.mrb[0].mxu0 %v5432
  %v5434 = vpop.f32.mrb[0].mxu0
  %v5435 = vadd.f32 %v5298, %v5434
  %v5436 = vpop.f32.mrb[0].mxu0
  %v5437 = vadd.f32 %v5300, %v5436
  %5438 = vdwg.mxu0
  %v5439 = vmax.f32 %v4088, %v5435
  %v5440 = vmax.f32 %v4089, %v5437
  %v5441 = vld [vmem:[%s2] sm:$0x3]
  %v5443 = vlaneseq
  %v5444 = vshrl.u32 %v5443, 7
  %v5445 = vsub.s32 0, %v5444
  %v5446 = vrot.slane %v5441, %v5445
  %v5447 = vlaneseq
  %v5448 = vshrl.u32 %v5447, 7
  %v5449 = vsub.s32 1, %v5448
  %v5450 = vrot.slane %v5441, %v5449
  %v5453 = vadd.f32 %v5439, %v5446
  %v5454 = vadd.f32 %v5440, %v5450
  %v5455 = vmax.f32 %v5453, 0.0
  %v5456 = vmax.f32 %v5454, 0.0
  %v5457 = vld [vmem:[%s3] sm:$0xff]
  %v5458 = vld [vmem:[%s3 + $0x8] sm:$0xff]
  %v5459 = vld [vmem:[%s3 + $0x10] sm:$0xff]
  %v5460 = vld [vmem:[%s3 + $0x18] sm:$0xff]
  %v5461 = vld [vmem:[%s3 + $0x20] sm:$0xff]
  %v5462 = vld [vmem:[%s3 + $0x28] sm:$0xff]
  %v5463 = vld [vmem:[%s3 + $0x30] sm:$0xff]
  %v5464 = vld [vmem:[%s3 + $0x38] sm:$0xff]
  %v5465 = vld [vmem:[%s3 + $0x40] sm:$0xff]
  %v5466 = vld [vmem:[%s3 + $0x48] sm:$0xff]
  %v5467 = vld [vmem:[%s3 + $0x50] sm:$0xff]
  %v5468 = vld [vmem:[%s3 + $0x58] sm:$0xff]
  %v5469 = vld [vmem:[%s3 + $0x60] sm:$0xff]
  %v5470 = vld [vmem:[%s3 + $0x68] sm:$0xff]
  %v5471 = vld [vmem:[%s3 + $0x70] sm:$0xff]
  %v5472 = vld [vmem:[%s3 + $0x78] sm:$0xff]
  %v5473 = vld [vmem:[%s3 + $0x80] sm:$0xff]
  %v5474 = vld [vmem:[%s3 + $0x88] sm:$0xff]
  %vm5475 = vcmask 130048
  %v5477 = vsel %vm5475, %v5456, 0
  %5479 = vmatprep.subr.mxu0 0.0
  %v5480 = vand.u32 %v5457, 4294901760
  %5481 = vmatpush1.msra.mxu0 %v5480
  %5482 = vmatprep.subr.mxu0 0.0
  %v5483 = vand.u32 %v5458, 4294901760
  %5484 = vmatpush1.msra.mxu0 %v5483
  %5485 = vmatprep.subr.mxu0 0.0
  %v5486 = vand.u32 %v5459, 4294901760
  %5487 = vmatpush1.msra.mxu0 %v5486
  %5488 = vmatprep.subr.mxu0 0.0
  %v5489 = vand.u32 %v5460, 4294901760
  %5490 = vmatpush1.msra.mxu0 %v5489
  %5491 = vmatprep.subr.mxu0 0.0
  %v5492 = vand.u32 %v5461, 4294901760
  %5493 = vmatpush1.msra.mxu0 %v5492
  %5494 = vmatprep.subr.mxu0 0.0
  %v5495 = vand.u32 %v5462, 4294901760
  %5496 = vmatpush1.msra.mxu0 %v5495
  %5497 = vmatprep.subr.mxu0 0.0
  %v5498 = vand.u32 %v5463, 4294901760
  %5499 = vmatpush1.msra.mxu0 %v5498
  %5500 = vmatprep.subr.mxu0 0.0
  %v5501 = vand.u32 %v5464, 4294901760
  %5502 = vmatpush1.msra.mxu0 %v5501
  %5503 = vmatprep.subr.mxu0 0.0
  %v5504 = vand.u32 %v5465, 4294901760
  %5505 = vmatpush1.msra.mxu0 %v5504
  %5506 = vmatprep.subr.mxu0 0.0
  %v5507 = vand.u32 %v5466, 4294901760
  %5508 = vmatpush1.msra.mxu0 %v5507
  %5509 = vmatprep.subr.mxu0 0.0
  %v5510 = vand.u32 %v5467, 4294901760
  %5511 = vmatpush1.msra.mxu0 %v5510
  %5512 = vmatprep.subr.mxu0 0.0
  %v5513 = vand.u32 %v5468, 4294901760
  %5514 = vmatpush1.msra.mxu0 %v5513
  %5515 = vmatprep.subr.mxu0 0.0
  %v5516 = vand.u32 %v5469, 4294901760
  %5517 = vmatpush1.msra.mxu0 %v5516
  %5518 = vmatprep.subr.mxu0 0.0
  %v5519 = vand.u32 %v5470, 4294901760
  %5520 = vmatpush1.msra.mxu0 %v5519
  %5521 = vmatprep.subr.mxu0 0.0
  %v5522 = vand.u32 %v5471, 4294901760
  %5523 = vmatpush1.msra.mxu0 %v5522
  %5524 = vmatprep.subr.mxu0 0.0
  %v5525 = vand.u32 %v5472, 4294901760
  %5526 = vmatpush1.msra.mxu0 %v5525
  %5527 = vmatprep.subr.mxu0 0.0
  %v5528 = vand.u32 %v5473, 4294901760
  %5529 = vmatpush1.msra.mxu0 %v5528
  %5530 = vmatprep.subr.mxu0 0.0
  %v5531 = vand.u32 %v5474, 4294901760
  %5532 = vmatpush1.msra.mxu0 %v5531
  %5533 = vmatprep.subr.mxu0 0.0
  %5534 = vmatpush1.msra.mxu0 0.0
  %5535 = vmatprep.subr.mxu0 0.0
  %5536 = vmatpush1.msra.mxu0 0.0
  %5537 = vmatprep.subr.mxu0 0.0
  %5538 = vmatpush1.msra.mxu0 0.0
  %5539 = vmatprep.subr.mxu0 0.0
  %5540 = vmatpush1.msra.mxu0 0.0
  %5541 = vmatprep.subr.mxu0 0.0
  %5542 = vmatpush1.msra.mxu0 0.0
  %5543 = vmatprep.subr.mxu0 0.0
  %5544 = vmatpush1.msra.mxu0 0.0
  %5545 = vmatprep.subr.mxu0 0.0
  %5546 = vmatpush1.msra.mxu0 0.0
  %5547 = vmatprep.subr.mxu0 0.0
  %5548 = vmatpush1.msra.mxu0 0.0
  %5549 = vmatprep.subr.mxu0 0.0
  %5550 = vmatpush1.msra.mxu0 0.0
  %5551 = vmatprep.subr.mxu0 0.0
  %5552 = vmatpush1.msra.mxu0 0.0
  %5553 = vmatprep.subr.mxu0 0.0
  %5554 = vmatpush1.msra.mxu0 0.0
  %5555 = vmatprep.subr.mxu0 0.0
  %5556 = vmatpush1.msra.mxu0 0.0
  %5557 = vmatprep.subr.mxu0 0.0
  %5558 = vmatpush1.msra.mxu0 0.0
  %5559 = vmatprep.subr.mxu0 0.0
  %5560 = vmatpush1.msra.mxu0 0.0
  %v5561 = vand.u32 %v5477, 4294901760
  %v5562 = vsub.f32 %v5477, %v5561
  %v5563 = vand.u32 %v5562, 4294901760
  %v5564 = vsub.f32 %v5562, %v5563
  %v5565 = vand.u32 %v5564, 4294901760
  %5566 = vmatprep.mubr.f32.mxu0 %v5565
  %v5567 = vand.u32 %v5455, 4294901760
  %v5568 = vsub.f32 %v5455, %v5567
  %v5569 = vand.u32 %v5568, 4294901760
  %v5570 = vsub.f32 %v5568, %v5569
  %v5571 = vand.u32 %v5570, 4294901760
  %5572 = vmatmul.mubr.f32.gmra.mrb[0].mxu0 %v5571
  %v5573 = vpop.f32.mrb[0].mxu0
  %v5574 = vadd.f32 0.0, %v5573
  %v5575 = vpop.f32.mrb[0].mxu0
  %5576 = vdwg.mxu0
  %5577 = vmatprep.subr.mxu0 0.0
  %v5578 = vand.u32 %v5457, 4294901760
  %v5579 = vsub.f32 %v5457, %v5578
  %v5580 = vand.u32 %v5579, 4294901760
  %v5581 = vsub.f32 %v5579, %v5580
  %v5582 = vand.u32 %v5581, 4294901760
  %5583 = vmatpush1.msra.mxu0 %v5582
  %5584 = vmatprep.subr.mxu0 0.0
  %v5585 = vand.u32 %v5458, 4294901760
  %v5586 = vsub.f32 %v5458, %v5585
  %v5587 = vand.u32 %v5586, 4294901760
  %v5588 = vsub.f32 %v5586, %v5587
  %v5589 = vand.u32 %v5588, 4294901760
  %5590 = vmatpush1.msra.mxu0 %v5589
  %5591 = vmatprep.subr.mxu0 0.0
  %v5592 = vand.u32 %v5459, 4294901760
  %v5593 = vsub.f32 %v5459, %v5592
  %v5594 = vand.u32 %v5593, 4294901760
  %v5595 = vsub.f32 %v5593, %v5594
  %v5596 = vand.u32 %v5595, 4294901760
  %5597 = vmatpush1.msra.mxu0 %v5596
  %5598 = vmatprep.subr.mxu0 0.0
  %v5599 = vand.u32 %v5460, 4294901760
  %v5600 = vsub.f32 %v5460, %v5599
  %v5601 = vand.u32 %v5600, 4294901760
  %v5602 = vsub.f32 %v5600, %v5601
  %v5603 = vand.u32 %v5602, 4294901760
  %5604 = vmatpush1.msra.mxu0 %v5603
  %5605 = vmatprep.subr.mxu0 0.0
  %v5606 = vand.u32 %v5461, 4294901760
  %v5607 = vsub.f32 %v5461, %v5606
  %v5608 = vand.u32 %v5607, 4294901760
  %v5609 = vsub.f32 %v5607, %v5608
  %v5610 = vand.u32 %v5609, 4294901760
  %5611 = vmatpush1.msra.mxu0 %v5610
  %5612 = vmatprep.subr.mxu0 0.0
  %v5613 = vand.u32 %v5462, 4294901760
  %v5614 = vsub.f32 %v5462, %v5613
  %v5615 = vand.u32 %v5614, 4294901760
  %v5616 = vsub.f32 %v5614, %v5615
  %v5617 = vand.u32 %v5616, 4294901760
  %5618 = vmatpush1.msra.mxu0 %v5617
  %5619 = vmatprep.subr.mxu0 0.0
  %v5620 = vand.u32 %v5463, 4294901760
  %v5621 = vsub.f32 %v5463, %v5620
  %v5622 = vand.u32 %v5621, 4294901760
  %v5623 = vsub.f32 %v5621, %v5622
  %v5624 = vand.u32 %v5623, 4294901760
  %5625 = vmatpush1.msra.mxu0 %v5624
  %5626 = vmatprep.subr.mxu0 0.0
  %v5627 = vand.u32 %v5464, 4294901760
  %v5628 = vsub.f32 %v5464, %v5627
  %v5629 = vand.u32 %v5628, 4294901760
  %v5630 = vsub.f32 %v5628, %v5629
  %v5631 = vand.u32 %v5630, 4294901760
  %5632 = vmatpush1.msra.mxu0 %v5631
  %5633 = vmatprep.subr.mxu0 0.0
  %v5634 = vand.u32 %v5465, 4294901760
  %v5635 = vsub.f32 %v5465, %v5634
  %v5636 = vand.u32 %v5635, 4294901760
  %v5637 = vsub.f32 %v5635, %v5636
  %v5638 = vand.u32 %v5637, 4294901760
  %5639 = vmatpush1.msra.mxu0 %v5638
  %5640 = vmatprep.subr.mxu0 0.0
  %v5641 = vand.u32 %v5466, 4294901760
  %v5642 = vsub.f32 %v5466, %v5641
  %v5643 = vand.u32 %v5642, 4294901760
  %v5644 = vsub.f32 %v5642, %v5643
  %v5645 = vand.u32 %v5644, 4294901760
  %5646 = vmatpush1.msra.mxu0 %v5645
  %5647 = vmatprep.subr.mxu0 0.0
  %v5648 = vand.u32 %v5467, 4294901760
  %v5649 = vsub.f32 %v5467, %v5648
  %v5650 = vand.u32 %v5649, 4294901760
  %v5651 = vsub.f32 %v5649, %v5650
  %v5652 = vand.u32 %v5651, 4294901760
  %5653 = vmatpush1.msra.mxu0 %v5652
  %5654 = vmatprep.subr.mxu0 0.0
  %v5655 = vand.u32 %v5468, 4294901760
  %v5656 = vsub.f32 %v5468, %v5655
  %v5657 = vand.u32 %v5656, 4294901760
  %v5658 = vsub.f32 %v5656, %v5657
  %v5659 = vand.u32 %v5658, 4294901760
  %5660 = vmatpush1.msra.mxu0 %v5659
  %5661 = vmatprep.subr.mxu0 0.0
  %v5662 = vand.u32 %v5469, 4294901760
  %v5663 = vsub.f32 %v5469, %v5662
  %v5664 = vand.u32 %v5663, 4294901760
  %v5665 = vsub.f32 %v5663, %v5664
  %v5666 = vand.u32 %v5665, 4294901760
  %5667 = vmatpush1.msra.mxu0 %v5666
  %5668 = vmatprep.subr.mxu0 0.0
  %v5669 = vand.u32 %v5470, 4294901760
  %v5670 = vsub.f32 %v5470, %v5669
  %v5671 = vand.u32 %v5670, 4294901760
  %v5672 = vsub.f32 %v5670, %v5671
  %v5673 = vand.u32 %v5672, 4294901760
  %5674 = vmatpush1.msra.mxu0 %v5673
  %5675 = vmatprep.subr.mxu0 0.0
  %v5676 = vand.u32 %v5471, 4294901760
  %v5677 = vsub.f32 %v5471, %v5676
  %v5678 = vand.u32 %v5677, 4294901760
  %v5679 = vsub.f32 %v5677, %v5678
  %v5680 = vand.u32 %v5679, 4294901760
  %5681 = vmatpush1.msra.mxu0 %v5680
  %5682 = vmatprep.subr.mxu0 0.0
  %v5683 = vand.u32 %v5472, 4294901760
  %v5684 = vsub.f32 %v5472, %v5683
  %v5685 = vand.u32 %v5684, 4294901760
  %v5686 = vsub.f32 %v5684, %v5685
  %v5687 = vand.u32 %v5686, 4294901760
  %5688 = vmatpush1.msra.mxu0 %v5687
  %5689 = vmatprep.subr.mxu0 0.0
  %v5690 = vand.u32 %v5473, 4294901760
  %v5691 = vsub.f32 %v5473, %v5690
  %v5692 = vand.u32 %v5691, 4294901760
  %v5693 = vsub.f32 %v5691, %v5692
  %v5694 = vand.u32 %v5693, 4294901760
  %5695 = vmatpush1.msra.mxu0 %v5694
  %5696 = vmatprep.subr.mxu0 0.0
  %v5697 = vand.u32 %v5474, 4294901760
  %v5698 = vsub.f32 %v5474, %v5697
  %v5699 = vand.u32 %v5698, 4294901760
  %v5700 = vsub.f32 %v5698, %v5699
  %v5701 = vand.u32 %v5700, 4294901760
  %5702 = vmatpush1.msra.mxu0 %v5701
  %5703 = vmatprep.subr.mxu0 0.0
  %5704 = vmatpush1.msra.mxu0 0.0
  %5705 = vmatprep.subr.mxu0 0.0
  %5706 = vmatpush1.msra.mxu0 0.0
  %5707 = vmatprep.subr.mxu0 0.0
  %5708 = vmatpush1.msra.mxu0 0.0
  %5709 = vmatprep.subr.mxu0 0.0
  %5710 = vmatpush1.msra.mxu0 0.0
  %5711 = vmatprep.subr.mxu0 0.0
  %5712 = vmatpush1.msra.mxu0 0.0
  %5713 = vmatprep.subr.mxu0 0.0
  %5714 = vmatpush1.msra.mxu0 0.0
  %5715 = vmatprep.subr.mxu0 0.0
  %5716 = vmatpush1.msra.mxu0 0.0
  %5717 = vmatprep.subr.mxu0 0.0
  %5718 = vmatpush1.msra.mxu0 0.0
  %5719 = vmatprep.subr.mxu0 0.0
  %5720 = vmatpush1.msra.mxu0 0.0
  %5721 = vmatprep.subr.mxu0 0.0
  %5722 = vmatpush1.msra.mxu0 0.0
  %5723 = vmatprep.subr.mxu0 0.0
  %5724 = vmatpush1.msra.mxu0 0.0
  %5725 = vmatprep.subr.mxu0 0.0
  %5726 = vmatpush1.msra.mxu0 0.0
  %5727 = vmatprep.subr.mxu0 0.0
  %5728 = vmatpush1.msra.mxu0 0.0
  %5729 = vmatprep.subr.mxu0 0.0
  %5730 = vmatpush1.msra.mxu0 0.0
  %v5731 = vand.u32 %v5477, 4294901760
  %5732 = vmatprep.mubr.f32.mxu0 %v5731
  %v5733 = vand.u32 %v5455, 4294901760
  %5734 = vmatmul.mubr.f32.gmra.mrb[0].mxu0 %v5733
  %v5735 = vpop.f32.mrb[0].mxu0
  %v5736 = vadd.f32 %v5574, %v5735
  %v5737 = vpop.f32.mrb[0].mxu0
  %5738 = vdwg.mxu0
  %5739 = vmatprep.subr.mxu0 0.0
  %v5740 = vand.u32 %v5457, 4294901760
  %v5741 = vsub.f32 %v5457, %v5740
  %5742 = vmatpush1.msra.mxu0 %v5741
  %5743 = vmatprep.subr.mxu0 0.0
  %v5744 = vand.u32 %v5458, 4294901760
  %v5745 = vsub.f32 %v5458, %v5744
  %5746 = vmatpush1.msra.mxu0 %v5745
  %5747 = vmatprep.subr.mxu0 0.0
  %v5748 = vand.u32 %v5459, 4294901760
  %v5749 = vsub.f32 %v5459, %v5748
  %5750 = vmatpush1.msra.mxu0 %v5749
  %5751 = vmatprep.subr.mxu0 0.0
  %v5752 = vand.u32 %v5460, 4294901760
  %v5753 = vsub.f32 %v5460, %v5752
  %5754 = vmatpush1.msra.mxu0 %v5753
  %5755 = vmatprep.subr.mxu0 0.0
  %v5756 = vand.u32 %v5461, 4294901760
  %v5757 = vsub.f32 %v5461, %v5756
  %5758 = vmatpush1.msra.mxu0 %v5757
  %5759 = vmatprep.subr.mxu0 0.0
  %v5760 = vand.u32 %v5462, 4294901760
  %v5761 = vsub.f32 %v5462, %v5760
  %5762 = vmatpush1.msra.mxu0 %v5761
  %5763 = vmatprep.subr.mxu0 0.0
  %v5764 = vand.u32 %v5463, 4294901760
  %v5765 = vsub.f32 %v5463, %v5764
  %5766 = vmatpush1.msra.mxu0 %v5765
  %5767 = vmatprep.subr.mxu0 0.0
  %v5768 = vand.u32 %v5464, 4294901760
  %v5769 = vsub.f32 %v5464, %v5768
  %5770 = vmatpush1.msra.mxu0 %v5769
  %5771 = vmatprep.subr.mxu0 0.0
  %v5772 = vand.u32 %v5465, 4294901760
  %v5773 = vsub.f32 %v5465, %v5772
  %5774 = vmatpush1.msra.mxu0 %v5773
  %5775 = vmatprep.subr.mxu0 0.0
  %v5776 = vand.u32 %v5466, 4294901760
  %v5777 = vsub.f32 %v5466, %v5776
  %5778 = vmatpush1.msra.mxu0 %v5777
  %5779 = vmatprep.subr.mxu0 0.0
  %v5780 = vand.u32 %v5467, 4294901760
  %v5781 = vsub.f32 %v5467, %v5780
  %5782 = vmatpush1.msra.mxu0 %v5781
  %5783 = vmatprep.subr.mxu0 0.0
  %v5784 = vand.u32 %v5468, 4294901760
  %v5785 = vsub.f32 %v5468, %v5784
  %5786 = vmatpush1.msra.mxu0 %v5785
  %5787 = vmatprep.subr.mxu0 0.0
  %v5788 = vand.u32 %v5469, 4294901760
  %v5789 = vsub.f32 %v5469, %v5788
  %5790 = vmatpush1.msra.mxu0 %v5789
  %5791 = vmatprep.subr.mxu0 0.0
  %v5792 = vand.u32 %v5470, 4294901760
  %v5793 = vsub.f32 %v5470, %v5792
  %5794 = vmatpush1.msra.mxu0 %v5793
  %5795 = vmatprep.subr.mxu0 0.0
  %v5796 = vand.u32 %v5471, 4294901760
  %v5797 = vsub.f32 %v5471, %v5796
  %5798 = vmatpush1.msra.mxu0 %v5797
  %5799 = vmatprep.subr.mxu0 0.0
  %v5800 = vand.u32 %v5472, 4294901760
  %v5801 = vsub.f32 %v5472, %v5800
  %5802 = vmatpush1.msra.mxu0 %v5801
  %5803 = vmatprep.subr.mxu0 0.0
  %v5804 = vand.u32 %v5473, 4294901760
  %v5805 = vsub.f32 %v5473, %v5804
  %5806 = vmatpush1.msra.mxu0 %v5805
  %5807 = vmatprep.subr.mxu0 0.0
  %v5808 = vand.u32 %v5474, 4294901760
  %v5809 = vsub.f32 %v5474, %v5808
  %5810 = vmatpush1.msra.mxu0 %v5809
  %5811 = vmatprep.subr.mxu0 0.0
  %5812 = vmatpush1.msra.mxu0 0.0
  %5813 = vmatprep.subr.mxu0 0.0
  %5814 = vmatpush1.msra.mxu0 0.0
  %5815 = vmatprep.subr.mxu0 0.0
  %5816 = vmatpush1.msra.mxu0 0.0
  %5817 = vmatprep.subr.mxu0 0.0
  %5818 = vmatpush1.msra.mxu0 0.0
  %5819 = vmatprep.subr.mxu0 0.0
  %5820 = vmatpush1.msra.mxu0 0.0
  %5821 = vmatprep.subr.mxu0 0.0
  %5822 = vmatpush1.msra.mxu0 0.0
  %5823 = vmatprep.subr.mxu0 0.0
  %5824 = vmatpush1.msra.mxu0 0.0
  %5825 = vmatprep.subr.mxu0 0.0
  %5826 = vmatpush1.msra.mxu0 0.0
  %5827 = vmatprep.subr.mxu0 0.0
  %5828 = vmatpush1.msra.mxu0 0.0
  %5829 = vmatprep.subr.mxu0 0.0
  %5830 = vmatpush1.msra.mxu0 0.0
  %5831 = vmatprep.subr.mxu0 0.0
  %5832 = vmatpush1.msra.mxu0 0.0
  %5833 = vmatprep.subr.mxu0 0.0
  %5834 = vmatpush1.msra.mxu0 0.0
  %5835 = vmatprep.subr.mxu0 0.0
  %5836 = vmatpush1.msra.mxu0 0.0
  %5837 = vmatprep.subr.mxu0 0.0
  %5838 = vmatpush1.msra.mxu0 0.0
  %v5839 = vand.u32 %v5477, 4294901760
  %v5840 = vsub.f32 %v5477, %v5839
  %5841 = vmatprep.mubr.f32.mxu0 %v5840
  %v5842 = vand.u32 %v5455, 4294901760
  %v5843 = vsub.f32 %v5455, %v5842
  %5844 = vmatmul.mubr.f32.gmra.mrb[0].mxu0 %v5843
  %v5845 = vpop.f32.mrb[0].mxu0
  %v5846 = vadd.f32 %v5736, %v5845
  %v5847 = vpop.f32.mrb[0].mxu0
  %5848 = vdwg.mxu0
  %5849 = vmatprep.subr.mxu0 0.0
  %v5850 = vand.u32 %v5457, 4294901760
  %5851 = vmatpush1.msra.mxu0 %v5850
  %5852 = vmatprep.subr.mxu0 0.0
  %v5853 = vand.u32 %v5458, 4294901760
  %5854 = vmatpush1.msra.mxu0 %v5853
  %5855 = vmatprep.subr.mxu0 0.0
  %v5856 = vand.u32 %v5459, 4294901760
  %5857 = vmatpush1.msra.mxu0 %v5856
  %5858 = vmatprep.subr.mxu0 0.0
  %v5859 = vand.u32 %v5460, 4294901760
  %5860 = vmatpush1.msra.mxu0 %v5859
  %5861 = vmatprep.subr.mxu0 0.0
  %v5862 = vand.u32 %v5461, 4294901760
  %5863 = vmatpush1.msra.mxu0 %v5862
  %5864 = vmatprep.subr.mxu0 0.0
  %v5865 = vand.u32 %v5462, 4294901760
  %5866 = vmatpush1.msra.mxu0 %v5865
  %5867 = vmatprep.subr.mxu0 0.0
  %v5868 = vand.u32 %v5463, 4294901760
  %5869 = vmatpush1.msra.mxu0 %v5868
  %5870 = vmatprep.subr.mxu0 0.0
  %v5871 = vand.u32 %v5464, 4294901760
  %5872 = vmatpush1.msra.mxu0 %v5871
  %5873 = vmatprep.subr.mxu0 0.0
  %v5874 = vand.u32 %v5465, 4294901760
  %5875 = vmatpush1.msra.mxu0 %v5874
  %5876 = vmatprep.subr.mxu0 0.0
  %v5877 = vand.u32 %v5466, 4294901760
  %5878 = vmatpush1.msra.mxu0 %v5877
  %5879 = vmatprep.subr.mxu0 0.0
  %v5880 = vand.u32 %v5467, 4294901760
  %5881 = vmatpush1.msra.mxu0 %v5880
  %5882 = vmatprep.subr.mxu0 0.0
  %v5883 = vand.u32 %v5468, 4294901760
  %5884 = vmatpush1.msra.mxu0 %v5883
  %5885 = vmatprep.subr.mxu0 0.0
  %v5886 = vand.u32 %v5469, 4294901760
  %5887 = vmatpush1.msra.mxu0 %v5886
  %5888 = vmatprep.subr.mxu0 0.0
  %v5889 = vand.u32 %v5470, 4294901760
  %5890 = vmatpush1.msra.mxu0 %v5889
  %5891 = vmatprep.subr.mxu0 0.0
  %v5892 = vand.u32 %v5471, 4294901760
  %5893 = vmatpush1.msra.mxu0 %v5892
  %5894 = vmatprep.subr.mxu0 0.0
  %v5895 = vand.u32 %v5472, 4294901760
  %5896 = vmatpush1.msra.mxu0 %v5895
  %5897 = vmatprep.subr.mxu0 0.0
  %v5898 = vand.u32 %v5473, 4294901760
  %5899 = vmatpush1.msra.mxu0 %v5898
  %5900 = vmatprep.subr.mxu0 0.0
  %v5901 = vand.u32 %v5474, 4294901760
  %5902 = vmatpush1.msra.mxu0 %v5901
  %5903 = vmatprep.subr.mxu0 0.0
  %5904 = vmatpush1.msra.mxu0 0.0
  %5905 = vmatprep.subr.mxu0 0.0
  %5906 = vmatpush1.msra.mxu0 0.0
  %5907 = vmatprep.subr.mxu0 0.0
  %5908 = vmatpush1.msra.mxu0 0.0
  %5909 = vmatprep.subr.mxu0 0.0
  %5910 = vmatpush1.msra.mxu0 0.0
  %5911 = vmatprep.subr.mxu0 0.0
  %5912 = vmatpush1.msra.mxu0 0.0
  %5913 = vmatprep.subr.mxu0 0.0
  %5914 = vmatpush1.msra.mxu0 0.0
  %5915 = vmatprep.subr.mxu0 0.0
  %5916 = vmatpush1.msra.mxu0 0.0
  %5917 = vmatprep.subr.mxu0 0.0
  %5918 = vmatpush1.msra.mxu0 0.0
  %5919 = vmatprep.subr.mxu0 0.0
  %5920 = vmatpush1.msra.mxu0 0.0
  %5921 = vmatprep.subr.mxu0 0.0
  %5922 = vmatpush1.msra.mxu0 0.0
  %5923 = vmatprep.subr.mxu0 0.0
  %5924 = vmatpush1.msra.mxu0 0.0
  %5925 = vmatprep.subr.mxu0 0.0
  %5926 = vmatpush1.msra.mxu0 0.0
  %5927 = vmatprep.subr.mxu0 0.0
  %5928 = vmatpush1.msra.mxu0 0.0
  %5929 = vmatprep.subr.mxu0 0.0
  %5930 = vmatpush1.msra.mxu0 0.0
  %v5931 = vand.u32 %v5477, 4294901760
  %v5932 = vsub.f32 %v5477, %v5931
  %v5933 = vand.u32 %v5932, 4294901760
  %5934 = vmatprep.mubr.f32.mxu0 %v5933
  %v5935 = vand.u32 %v5455, 4294901760
  %v5936 = vsub.f32 %v5455, %v5935
  %v5937 = vand.u32 %v5936, 4294901760
  %5938 = vmatmul.mubr.f32.gmra.mrb[0].mxu0 %v5937
  %v5939 = vpop.f32.mrb[0].mxu0
  %v5940 = vadd.f32 %v5846, %v5939
  %v5941 = vpop.f32.mrb[0].mxu0
  %5942 = vdwg.mxu0
  %5943 = vmatprep.subr.mxu0 0.0
  %v5944 = vand.u32 %v5457, 4294901760
  %v5945 = vsub.f32 %v5457, %v5944
  %v5946 = vand.u32 %v5945, 4294901760
  %5947 = vmatpush1.msra.mxu0 %v5946
  %5948 = vmatprep.subr.mxu0 0.0
  %v5949 = vand.u32 %v5458, 4294901760
  %v5950 = vsub.f32 %v5458, %v5949
  %v5951 = vand.u32 %v5950, 4294901760
  %5952 = vmatpush1.msra.mxu0 %v5951
  %5953 = vmatprep.subr.mxu0 0.0
  %v5954 = vand.u32 %v5459, 4294901760
  %v5955 = vsub.f32 %v5459, %v5954
  %v5956 = vand.u32 %v5955, 4294901760
  %5957 = vmatpush1.msra.mxu0 %v5956
  %5958 = vmatprep.subr.mxu0 0.0
  %v5959 = vand.u32 %v5460, 4294901760
  %v5960 = vsub.f32 %v5460, %v5959
  %v5961 = vand.u32 %v5960, 4294901760
  %5962 = vmatpush1.msra.mxu0 %v5961
  %5963 = vmatprep.subr.mxu0 0.0
  %v5964 = vand.u32 %v5461, 4294901760
  %v5965 = vsub.f32 %v5461, %v5964
  %v5966 = vand.u32 %v5965, 4294901760
  %5967 = vmatpush1.msra.mxu0 %v5966
  %5968 = vmatprep.subr.mxu0 0.0
  %v5969 = vand.u32 %v5462, 4294901760
  %v5970 = vsub.f32 %v5462, %v5969
  %v5971 = vand.u32 %v5970, 4294901760
  %5972 = vmatpush1.msra.mxu0 %v5971
  %5973 = vmatprep.subr.mxu0 0.0
  %v5974 = vand.u32 %v5463, 4294901760
  %v5975 = vsub.f32 %v5463, %v5974
  %v5976 = vand.u32 %v5975, 4294901760
  %5977 = vmatpush1.msra.mxu0 %v5976
  %5978 = vmatprep.subr.mxu0 0.0
  %v5979 = vand.u32 %v5464, 4294901760
  %v5980 = vsub.f32 %v5464, %v5979
  %v5981 = vand.u32 %v5980, 4294901760
  %5982 = vmatpush1.msra.mxu0 %v5981
  %5983 = vmatprep.subr.mxu0 0.0
  %v5984 = vand.u32 %v5465, 4294901760
  %v5985 = vsub.f32 %v5465, %v5984
  %v5986 = vand.u32 %v5985, 4294901760
  %5987 = vmatpush1.msra.mxu0 %v5986
  %5988 = vmatprep.subr.mxu0 0.0
  %v5989 = vand.u32 %v5466, 4294901760
  %v5990 = vsub.f32 %v5466, %v5989
  %v5991 = vand.u32 %v5990, 4294901760
  %5992 = vmatpush1.msra.mxu0 %v5991
  %5993 = vmatprep.subr.mxu0 0.0
  %v5994 = vand.u32 %v5467, 4294901760
  %v5995 = vsub.f32 %v5467, %v5994
  %v5996 = vand.u32 %v5995, 4294901760
  %5997 = vmatpush1.msra.mxu0 %v5996
  %5998 = vmatprep.subr.mxu0 0.0
  %v5999 = vand.u32 %v5468, 4294901760
  %v6000 = vsub.f32 %v5468, %v5999
  %v6001 = vand.u32 %v6000, 4294901760
  %6002 = vmatpush1.msra.mxu0 %v6001
  %6003 = vmatprep.subr.mxu0 0.0
  %v6004 = vand.u32 %v5469, 4294901760
  %v6005 = vsub.f32 %v5469, %v6004
  %v6006 = vand.u32 %v6005, 4294901760
  %6007 = vmatpush1.msra.mxu0 %v6006
  %6008 = vmatprep.subr.mxu0 0.0
  %v6009 = vand.u32 %v5470, 4294901760
  %v6010 = vsub.f32 %v5470, %v6009
  %v6011 = vand.u32 %v6010, 4294901760
  %6012 = vmatpush1.msra.mxu0 %v6011
  %6013 = vmatprep.subr.mxu0 0.0
  %v6014 = vand.u32 %v5471, 4294901760
  %v6015 = vsub.f32 %v5471, %v6014
  %v6016 = vand.u32 %v6015, 4294901760
  %6017 = vmatpush1.msra.mxu0 %v6016
  %6018 = vmatprep.subr.mxu0 0.0
  %v6019 = vand.u32 %v5472, 4294901760
  %v6020 = vsub.f32 %v5472, %v6019
  %v6021 = vand.u32 %v6020, 4294901760
  %6022 = vmatpush1.msra.mxu0 %v6021
  %6023 = vmatprep.subr.mxu0 0.0
  %v6024 = vand.u32 %v5473, 4294901760
  %v6025 = vsub.f32 %v5473, %v6024
  %v6026 = vand.u32 %v6025, 4294901760
  %6027 = vmatpush1.msra.mxu0 %v6026
  %6028 = vmatprep.subr.mxu0 0.0
  %v6029 = vand.u32 %v5474, 4294901760
  %v6030 = vsub.f32 %v5474, %v6029
  %v6031 = vand.u32 %v6030, 4294901760
  %6032 = vmatpush1.msra.mxu0 %v6031
  %6033 = vmatprep.subr.mxu0 0.0
  %6034 = vmatpush1.msra.mxu0 0.0
  %6035 = vmatprep.subr.mxu0 0.0
  %6036 = vmatpush1.msra.mxu0 0.0
  %6037 = vmatprep.subr.mxu0 0.0
  %6038 = vmatpush1.msra.mxu0 0.0
  %6039 = vmatprep.subr.mxu0 0.0
  %6040 = vmatpush1.msra.mxu0 0.0
  %6041 = vmatprep.subr.mxu0 0.0
  %6042 = vmatpush1.msra.mxu0 0.0
  %6043 = vmatprep.subr.mxu0 0.0
  %6044 = vmatpush1.msra.mxu0 0.0
  %6045 = vmatprep.subr.mxu0 0.0
  %6046 = vmatpush1.msra.mxu0 0.0
  %6047 = vmatprep.subr.mxu0 0.0
  %6048 = vmatpush1.msra.mxu0 0.0
  %6049 = vmatprep.subr.mxu0 0.0
  %6050 = vmatpush1.msra.mxu0 0.0
  %6051 = vmatprep.subr.mxu0 0.0
  %6052 = vmatpush1.msra.mxu0 0.0
  %6053 = vmatprep.subr.mxu0 0.0
  %6054 = vmatpush1.msra.mxu0 0.0
  %6055 = vmatprep.subr.mxu0 0.0
  %6056 = vmatpush1.msra.mxu0 0.0
  %6057 = vmatprep.subr.mxu0 0.0
  %6058 = vmatpush1.msra.mxu0 0.0
  %6059 = vmatprep.subr.mxu0 0.0
  %6060 = vmatpush1.msra.mxu0 0.0
  %v6061 = vand.u32 %v5477, 4294901760
  %6062 = vmatprep.mubr.f32.mxu0 %v6061
  %v6063 = vand.u32 %v5455, 4294901760
  %6064 = vmatmul.mubr.f32.gmra.mrb[0].mxu0 %v6063
  %v6065 = vpop.f32.mrb[0].mxu0
  %v6066 = vadd.f32 %v5940, %v6065
  %v6067 = vpop.f32.mrb[0].mxu0
  %6068 = vdwg.mxu0
  %6069 = vmatprep.subr.mxu0 0.0
  %v6070 = vand.u32 %v5457, 4294901760
  %6071 = vmatpush1.msra.mxu0 %v6070
  %6072 = vmatprep.subr.mxu0 0.0
  %v6073 = vand.u32 %v5458, 4294901760
  %6074 = vmatpush1.msra.mxu0 %v6073
  %6075 = vmatprep.subr.mxu0 0.0
  %v6076 = vand.u32 %v5459, 4294901760
  %6077 = vmatpush1.msra.mxu0 %v6076
  %6078 = vmatprep.subr.mxu0 0.0
  %v6079 = vand.u32 %v5460, 4294901760
  %6080 = vmatpush1.msra.mxu0 %v6079
  %6081 = vmatprep.subr.mxu0 0.0
  %v6082 = vand.u32 %v5461, 4294901760
  %6083 = vmatpush1.msra.mxu0 %v6082
  %6084 = vmatprep.subr.mxu0 0.0
  %v6085 = vand.u32 %v5462, 4294901760
  %6086 = vmatpush1.msra.mxu0 %v6085
  %6087 = vmatprep.subr.mxu0 0.0
  %v6088 = vand.u32 %v5463, 4294901760
  %6089 = vmatpush1.msra.mxu0 %v6088
  %6090 = vmatprep.subr.mxu0 0.0
  %v6091 = vand.u32 %v5464, 4294901760
  %6092 = vmatpush1.msra.mxu0 %v6091
  %6093 = vmatprep.subr.mxu0 0.0
  %v6094 = vand.u32 %v5465, 4294901760
  %6095 = vmatpush1.msra.mxu0 %v6094
  %6096 = vmatprep.subr.mxu0 0.0
  %v6097 = vand.u32 %v5466, 4294901760
  %6098 = vmatpush1.msra.mxu0 %v6097
  %6099 = vmatprep.subr.mxu0 0.0
  %v6100 = vand.u32 %v5467, 4294901760
  %6101 = vmatpush1.msra.mxu0 %v6100
  %6102 = vmatprep.subr.mxu0 0.0
  %v6103 = vand.u32 %v5468, 4294901760
  %6104 = vmatpush1.msra.mxu0 %v6103
  %6105 = vmatprep.subr.mxu0 0.0
  %v6106 = vand.u32 %v5469, 4294901760
  %6107 = vmatpush1.msra.mxu0 %v6106
  %6108 = vmatprep.subr.mxu0 0.0
  %v6109 = vand.u32 %v5470, 4294901760
  %6110 = vmatpush1.msra.mxu0 %v6109
  %6111 = vmatprep.subr.mxu0 0.0
  %v6112 = vand.u32 %v5471, 4294901760
  %6113 = vmatpush1.msra.mxu0 %v6112
  %6114 = vmatprep.subr.mxu0 0.0
  %v6115 = vand.u32 %v5472, 4294901760
  %6116 = vmatpush1.msra.mxu0 %v6115
  %6117 = vmatprep.subr.mxu0 0.0
  %v6118 = vand.u32 %v5473, 4294901760
  %6119 = vmatpush1.msra.mxu0 %v6118
  %6120 = vmatprep.subr.mxu0 0.0
  %v6121 = vand.u32 %v5474, 4294901760
  %6122 = vmatpush1.msra.mxu0 %v6121
  %6123 = vmatprep.subr.mxu0 0.0
  %6124 = vmatpush1.msra.mxu0 0.0
  %6125 = vmatprep.subr.mxu0 0.0
  %6126 = vmatpush1.msra.mxu0 0.0
  %6127 = vmatprep.subr.mxu0 0.0
  %6128 = vmatpush1.msra.mxu0 0.0
  %6129 = vmatprep.subr.mxu0 0.0
  %6130 = vmatpush1.msra.mxu0 0.0
  %6131 = vmatprep.subr.mxu0 0.0
  %6132 = vmatpush1.msra.mxu0 0.0
  %6133 = vmatprep.subr.mxu0 0.0
  %6134 = vmatpush1.msra.mxu0 0.0
  %6135 = vmatprep.subr.mxu0 0.0
  %6136 = vmatpush1.msra.mxu0 0.0
  %6137 = vmatprep.subr.mxu0 0.0
  %6138 = vmatpush1.msra.mxu0 0.0
  %6139 = vmatprep.subr.mxu0 0.0
  %6140 = vmatpush1.msra.mxu0 0.0
  %6141 = vmatprep.subr.mxu0 0.0
  %6142 = vmatpush1.msra.mxu0 0.0
  %6143 = vmatprep.subr.mxu0 0.0
  %6144 = vmatpush1.msra.mxu0 0.0
  %6145 = vmatprep.subr.mxu0 0.0
  %6146 = vmatpush1.msra.mxu0 0.0
  %6147 = vmatprep.subr.mxu0 0.0
  %6148 = vmatpush1.msra.mxu0 0.0
  %6149 = vmatprep.subr.mxu0 0.0
  %6150 = vmatpush1.msra.mxu0 0.0
  %v6151 = vand.u32 %v5477, 4294901760
  %6152 = vmatprep.mubr.f32.mxu0 %v6151
  %v6153 = vand.u32 %v5455, 4294901760
  %6154 = vmatmul.mubr.f32.gmra.mrb[0].mxu0 %v6153
  %v6155 = vpop.f32.mrb[0].mxu0
  %v6156 = vadd.f32 %v6066, %v6155
  %v6157 = vpop.f32.mrb[0].mxu0
  %6158 = vdwg.mxu0
  %s6159 = scalar_lea.vmem %s3, 144
  %v6160 = vld [vmem:[%s6159] sm:$0xff]
  %v6161 = vld [vmem:[%s6159 + $0x8] sm:$0xff]
  %v6162 = vld [vmem:[%s6159 + $0x10] sm:$0xff]
  %v6163 = vld [vmem:[%s6159 + $0x18] sm:$0xff]
  %v6164 = vld [vmem:[%s6159 + $0x20] sm:$0xff]
  %v6165 = vld [vmem:[%s6159 + $0x28] sm:$0xff]
  %v6166 = vld [vmem:[%s6159 + $0x30] sm:$0xff]
  %v6167 = vld [vmem:[%s6159 + $0x38] sm:$0xff]
  %v6168 = vld [vmem:[%s6159 + $0x40] sm:$0xff]
  %v6169 = vld [vmem:[%s6159 + $0x48] sm:$0xff]
  %v6170 = vld [vmem:[%s6159 + $0x50] sm:$0xff]
  %v6171 = vld [vmem:[%s6159 + $0x58] sm:$0xff]
  %v6172 = vld [vmem:[%s6159 + $0x60] sm:$0xff]
  %v6173 = vld [vmem:[%s6159 + $0x68] sm:$0xff]
  %v6174 = vld [vmem:[%s6159 + $0x70] sm:$0xff]
  %v6175 = vld [vmem:[%s6159 + $0x78] sm:$0xff]
  %v6176 = vld [vmem:[%s6159 + $0x80] sm:$0xff]
  %v6177 = vld [vmem:[%s6159 + $0x88] sm:$0xff]
  %6178 = vmatprep.subr.mxu0 0.0
  %v6179 = vand.u32 %v6160, 4294901760
  %6180 = vmatpush1.msra.mxu0 %v6179
  %6181 = vmatprep.subr.mxu0 0.0
  %v6182 = vand.u32 %v6161, 4294901760
  %6183 = vmatpush1.msra.mxu0 %v6182
  %6184 = vmatprep.subr.mxu0 0.0
  %v6185 = vand.u32 %v6162, 4294901760
  %6186 = vmatpush1.msra.mxu0 %v6185
  %6187 = vmatprep.subr.mxu0 0.0
  %v6188 = vand.u32 %v6163, 4294901760
  %6189 = vmatpush1.msra.mxu0 %v6188
  %6190 = vmatprep.subr.mxu0 0.0
  %v6191 = vand.u32 %v6164, 4294901760
  %6192 = vmatpush1.msra.mxu0 %v6191
  %6193 = vmatprep.subr.mxu0 0.0
  %v6194 = vand.u32 %v6165, 4294901760
  %6195 = vmatpush1.msra.mxu0 %v6194
  %6196 = vmatprep.subr.mxu0 0.0
  %v6197 = vand.u32 %v6166, 4294901760
  %6198 = vmatpush1.msra.mxu0 %v6197
  %6199 = vmatprep.subr.mxu0 0.0
  %v6200 = vand.u32 %v6167, 4294901760
  %6201 = vmatpush1.msra.mxu0 %v6200
  %6202 = vmatprep.subr.mxu0 0.0
  %v6203 = vand.u32 %v6168, 4294901760
  %6204 = vmatpush1.msra.mxu0 %v6203
  %6205 = vmatprep.subr.mxu0 0.0
  %v6206 = vand.u32 %v6169, 4294901760
  %6207 = vmatpush1.msra.mxu0 %v6206
  %6208 = vmatprep.subr.mxu0 0.0
  %v6209 = vand.u32 %v6170, 4294901760
  %6210 = vmatpush1.msra.mxu0 %v6209
  %6211 = vmatprep.subr.mxu0 0.0
  %v6212 = vand.u32 %v6171, 4294901760
  %6213 = vmatpush1.msra.mxu0 %v6212
  %6214 = vmatprep.subr.mxu0 0.0
  %v6215 = vand.u32 %v6172, 4294901760
  %6216 = vmatpush1.msra.mxu0 %v6215
  %6217 = vmatprep.subr.mxu0 0.0
  %v6218 = vand.u32 %v6173, 4294901760
  %6219 = vmatpush1.msra.mxu0 %v6218
  %6220 = vmatprep.subr.mxu0 0.0
  %v6221 = vand.u32 %v6174, 4294901760
  %6222 = vmatpush1.msra.mxu0 %v6221
  %6223 = vmatprep.subr.mxu0 0.0
  %v6224 = vand.u32 %v6175, 4294901760
  %6225 = vmatpush1.msra.mxu0 %v6224
  %6226 = vmatprep.subr.mxu0 0.0
  %v6227 = vand.u32 %v6176, 4294901760
  %6228 = vmatpush1.msra.mxu0 %v6227
  %6229 = vmatprep.subr.mxu0 0.0
  %v6230 = vand.u32 %v6177, 4294901760
  %6231 = vmatpush1.msra.mxu0 %v6230
  %6232 = vmatprep.subr.mxu0 0.0
  %6233 = vmatpush1.msra.mxu0 0.0
  %6234 = vmatprep.subr.mxu0 0.0
  %6235 = vmatpush1.msra.mxu0 0.0
  %6236 = vmatprep.subr.mxu0 0.0
  %6237 = vmatpush1.msra.mxu0 0.0
  %6238 = vmatprep.subr.mxu0 0.0
  %6239 = vmatpush1.msra.mxu0 0.0
  %6240 = vmatprep.subr.mxu0 0.0
  %6241 = vmatpush1.msra.mxu0 0.0
  %6242 = vmatprep.subr.mxu0 0.0
  %6243 = vmatpush1.msra.mxu0 0.0
  %6244 = vmatprep.subr.mxu0 0.0
  %6245 = vmatpush1.msra.mxu0 0.0
  %6246 = vmatprep.subr.mxu0 0.0
  %6247 = vmatpush1.msra.mxu0 0.0
  %6248 = vmatprep.subr.mxu0 0.0
  %6249 = vmatpush1.msra.mxu0 0.0
  %6250 = vmatprep.subr.mxu0 0.0
  %6251 = vmatpush1.msra.mxu0 0.0
  %6252 = vmatprep.subr.mxu0 0.0
  %6253 = vmatpush1.msra.mxu0 0.0
  %6254 = vmatprep.subr.mxu0 0.0
  %6255 = vmatpush1.msra.mxu0 0.0
  %6256 = vmatprep.subr.mxu0 0.0
  %6257 = vmatpush1.msra.mxu0 0.0
  %6258 = vmatprep.subr.mxu0 0.0
  %6259 = vmatpush1.msra.mxu0 0.0
  %v6260 = vand.u32 %v5477, 4294901760
  %v6261 = vsub.f32 %v5477, %v6260
  %v6262 = vand.u32 %v6261, 4294901760
  %v6263 = vsub.f32 %v6261, %v6262
  %v6264 = vand.u32 %v6263, 4294901760
  %6265 = vmatprep.mubr.f32.mxu0 %v6264
  %v6266 = vand.u32 %v5455, 4294901760
  %v6267 = vsub.f32 %v5455, %v6266
  %v6268 = vand.u32 %v6267, 4294901760
  %v6269 = vsub.f32 %v6267, %v6268
  %v6270 = vand.u32 %v6269, 4294901760
  %6271 = vmatmul.mubr.f32.gmra.mrb[0].mxu0 %v6270
  %v6272 = vpop.f32.mrb[0].mxu0
  %v6273 = vadd.f32 0.0, %v6272
  %v6274 = vpop.f32.mrb[0].mxu0
  %6275 = vdwg.mxu0
  %6276 = vmatprep.subr.mxu0 0.0
  %v6277 = vand.u32 %v6160, 4294901760
  %v6278 = vsub.f32 %v6160, %v6277
  %v6279 = vand.u32 %v6278, 4294901760
  %v6280 = vsub.f32 %v6278, %v6279
  %v6281 = vand.u32 %v6280, 4294901760
  %6282 = vmatpush1.msra.mxu0 %v6281
  %6283 = vmatprep.subr.mxu0 0.0
  %v6284 = vand.u32 %v6161, 4294901760
  %v6285 = vsub.f32 %v6161, %v6284
  %v6286 = vand.u32 %v6285, 4294901760
  %v6287 = vsub.f32 %v6285, %v6286
  %v6288 = vand.u32 %v6287, 4294901760
  %6289 = vmatpush1.msra.mxu0 %v6288
  %6290 = vmatprep.subr.mxu0 0.0
  %v6291 = vand.u32 %v6162, 4294901760
  %v6292 = vsub.f32 %v6162, %v6291
  %v6293 = vand.u32 %v6292, 4294901760
  %v6294 = vsub.f32 %v6292, %v6293
  %v6295 = vand.u32 %v6294, 4294901760
  %6296 = vmatpush1.msra.mxu0 %v6295
  %6297 = vmatprep.subr.mxu0 0.0
  %v6298 = vand.u32 %v6163, 4294901760
  %v6299 = vsub.f32 %v6163, %v6298
  %v6300 = vand.u32 %v6299, 4294901760
  %v6301 = vsub.f32 %v6299, %v6300
  %v6302 = vand.u32 %v6301, 4294901760
  %6303 = vmatpush1.msra.mxu0 %v6302
  %6304 = vmatprep.subr.mxu0 0.0
  %v6305 = vand.u32 %v6164, 4294901760
  %v6306 = vsub.f32 %v6164, %v6305
  %v6307 = vand.u32 %v6306, 4294901760
  %v6308 = vsub.f32 %v6306, %v6307
  %v6309 = vand.u32 %v6308, 4294901760
  %6310 = vmatpush1.msra.mxu0 %v6309
  %6311 = vmatprep.subr.mxu0 0.0
  %v6312 = vand.u32 %v6165, 4294901760
  %v6313 = vsub.f32 %v6165, %v6312
  %v6314 = vand.u32 %v6313, 4294901760
  %v6315 = vsub.f32 %v6313, %v6314
  %v6316 = vand.u32 %v6315, 4294901760
  %6317 = vmatpush1.msra.mxu0 %v6316
  %6318 = vmatprep.subr.mxu0 0.0
  %v6319 = vand.u32 %v6166, 4294901760
  %v6320 = vsub.f32 %v6166, %v6319
  %v6321 = vand.u32 %v6320, 4294901760
  %v6322 = vsub.f32 %v6320, %v6321
  %v6323 = vand.u32 %v6322, 4294901760
  %6324 = vmatpush1.msra.mxu0 %v6323
  %6325 = vmatprep.subr.mxu0 0.0
  %v6326 = vand.u32 %v6167, 4294901760
  %v6327 = vsub.f32 %v6167, %v6326
  %v6328 = vand.u32 %v6327, 4294901760
  %v6329 = vsub.f32 %v6327, %v6328
  %v6330 = vand.u32 %v6329, 4294901760
  %6331 = vmatpush1.msra.mxu0 %v6330
  %6332 = vmatprep.subr.mxu0 0.0
  %v6333 = vand.u32 %v6168, 4294901760
  %v6334 = vsub.f32 %v6168, %v6333
  %v6335 = vand.u32 %v6334, 4294901760
  %v6336 = vsub.f32 %v6334, %v6335
  %v6337 = vand.u32 %v6336, 4294901760
  %6338 = vmatpush1.msra.mxu0 %v6337
  %6339 = vmatprep.subr.mxu0 0.0
  %v6340 = vand.u32 %v6169, 4294901760
  %v6341 = vsub.f32 %v6169, %v6340
  %v6342 = vand.u32 %v6341, 4294901760
  %v6343 = vsub.f32 %v6341, %v6342
  %v6344 = vand.u32 %v6343, 4294901760
  %6345 = vmatpush1.msra.mxu0 %v6344
  %6346 = vmatprep.subr.mxu0 0.0
  %v6347 = vand.u32 %v6170, 4294901760
  %v6348 = vsub.f32 %v6170, %v6347
  %v6349 = vand.u32 %v6348, 4294901760
  %v6350 = vsub.f32 %v6348, %v6349
  %v6351 = vand.u32 %v6350, 4294901760
  %6352 = vmatpush1.msra.mxu0 %v6351
  %6353 = vmatprep.subr.mxu0 0.0
  %v6354 = vand.u32 %v6171, 4294901760
  %v6355 = vsub.f32 %v6171, %v6354
  %v6356 = vand.u32 %v6355, 4294901760
  %v6357 = vsub.f32 %v6355, %v6356
  %v6358 = vand.u32 %v6357, 4294901760
  %6359 = vmatpush1.msra.mxu0 %v6358
  %6360 = vmatprep.subr.mxu0 0.0
  %v6361 = vand.u32 %v6172, 4294901760
  %v6362 = vsub.f32 %v6172, %v6361
  %v6363 = vand.u32 %v6362, 4294901760
  %v6364 = vsub.f32 %v6362, %v6363
  %v6365 = vand.u32 %v6364, 4294901760
  %6366 = vmatpush1.msra.mxu0 %v6365
  %6367 = vmatprep.subr.mxu0 0.0
  %v6368 = vand.u32 %v6173, 4294901760
  %v6369 = vsub.f32 %v6173, %v6368
  %v6370 = vand.u32 %v6369, 4294901760
  %v6371 = vsub.f32 %v6369, %v6370
  %v6372 = vand.u32 %v6371, 4294901760
  %6373 = vmatpush1.msra.mxu0 %v6372
  %6374 = vmatprep.subr.mxu0 0.0
  %v6375 = vand.u32 %v6174, 4294901760
  %v6376 = vsub.f32 %v6174, %v6375
  %v6377 = vand.u32 %v6376, 4294901760
  %v6378 = vsub.f32 %v6376, %v6377
  %v6379 = vand.u32 %v6378, 4294901760
  %6380 = vmatpush1.msra.mxu0 %v6379
  %6381 = vmatprep.subr.mxu0 0.0
  %v6382 = vand.u32 %v6175, 4294901760
  %v6383 = vsub.f32 %v6175, %v6382
  %v6384 = vand.u32 %v6383, 4294901760
  %v6385 = vsub.f32 %v6383, %v6384
  %v6386 = vand.u32 %v6385, 4294901760
  %6387 = vmatpush1.msra.mxu0 %v6386
  %6388 = vmatprep.subr.mxu0 0.0
  %v6389 = vand.u32 %v6176, 4294901760
  %v6390 = vsub.f32 %v6176, %v6389
  %v6391 = vand.u32 %v6390, 4294901760
  %v6392 = vsub.f32 %v6390, %v6391
  %v6393 = vand.u32 %v6392, 4294901760
  %6394 = vmatpush1.msra.mxu0 %v6393
  %6395 = vmatprep.subr.mxu0 0.0
  %v6396 = vand.u32 %v6177, 4294901760
  %v6397 = vsub.f32 %v6177, %v6396
  %v6398 = vand.u32 %v6397, 4294901760
  %v6399 = vsub.f32 %v6397, %v6398
  %v6400 = vand.u32 %v6399, 4294901760
  %6401 = vmatpush1.msra.mxu0 %v6400
  %6402 = vmatprep.subr.mxu0 0.0
  %6403 = vmatpush1.msra.mxu0 0.0
  %6404 = vmatprep.subr.mxu0 0.0
  %6405 = vmatpush1.msra.mxu0 0.0
  %6406 = vmatprep.subr.mxu0 0.0
  %6407 = vmatpush1.msra.mxu0 0.0
  %6408 = vmatprep.subr.mxu0 0.0
  %6409 = vmatpush1.msra.mxu0 0.0
  %6410 = vmatprep.subr.mxu0 0.0
  %6411 = vmatpush1.msra.mxu0 0.0
  %6412 = vmatprep.subr.mxu0 0.0
  %6413 = vmatpush1.msra.mxu0 0.0
  %6414 = vmatprep.subr.mxu0 0.0
  %6415 = vmatpush1.msra.mxu0 0.0
  %6416 = vmatprep.subr.mxu0 0.0
  %6417 = vmatpush1.msra.mxu0 0.0
  %6418 = vmatprep.subr.mxu0 0.0
  %6419 = vmatpush1.msra.mxu0 0.0
  %6420 = vmatprep.subr.mxu0 0.0
  %6421 = vmatpush1.msra.mxu0 0.0
  %6422 = vmatprep.subr.mxu0 0.0
  %6423 = vmatpush1.msra.mxu0 0.0
  %6424 = vmatprep.subr.mxu0 0.0
  %6425 = vmatpush1.msra.mxu0 0.0
  %6426 = vmatprep.subr.mxu0 0.0
  %6427 = vmatpush1.msra.mxu0 0.0
  %6428 = vmatprep.subr.mxu0 0.0
  %6429 = vmatpush1.msra.mxu0 0.0
  %v6430 = vand.u32 %v5477, 4294901760
  %6431 = vmatprep.mubr.f32.mxu0 %v6430
  %v6432 = vand.u32 %v5455, 4294901760
  %6433 = vmatmul.mubr.f32.gmra.mrb[0].mxu0 %v6432
  %v6434 = vpop.f32.mrb[0].mxu0
  %v6435 = vadd.f32 %v6273, %v6434
  %v6436 = vpop.f32.mrb[0].mxu0
  %6437 = vdwg.mxu0
  %6438 = vmatprep.subr.mxu0 0.0
  %v6439 = vand.u32 %v6160, 4294901760
  %v6440 = vsub.f32 %v6160, %v6439
  %6441 = vmatpush1.msra.mxu0 %v6440
  %6442 = vmatprep.subr.mxu0 0.0
  %v6443 = vand.u32 %v6161, 4294901760
  %v6444 = vsub.f32 %v6161, %v6443
  %6445 = vmatpush1.msra.mxu0 %v6444
  %6446 = vmatprep.subr.mxu0 0.0
  %v6447 = vand.u32 %v6162, 4294901760
  %v6448 = vsub.f32 %v6162, %v6447
  %6449 = vmatpush1.msra.mxu0 %v6448
  %6450 = vmatprep.subr.mxu0 0.0
  %v6451 = vand.u32 %v6163, 4294901760
  %v6452 = vsub.f32 %v6163, %v6451
  %6453 = vmatpush1.msra.mxu0 %v6452
  %6454 = vmatprep.subr.mxu0 0.0
  %v6455 = vand.u32 %v6164, 4294901760
  %v6456 = vsub.f32 %v6164, %v6455
  %6457 = vmatpush1.msra.mxu0 %v6456
  %6458 = vmatprep.subr.mxu0 0.0
  %v6459 = vand.u32 %v6165, 4294901760
  %v6460 = vsub.f32 %v6165, %v6459
  %6461 = vmatpush1.msra.mxu0 %v6460
  %6462 = vmatprep.subr.mxu0 0.0
  %v6463 = vand.u32 %v6166, 4294901760
  %v6464 = vsub.f32 %v6166, %v6463
  %6465 = vmatpush1.msra.mxu0 %v6464
  %6466 = vmatprep.subr.mxu0 0.0
  %v6467 = vand.u32 %v6167, 4294901760
  %v6468 = vsub.f32 %v6167, %v6467
  %6469 = vmatpush1.msra.mxu0 %v6468
  %6470 = vmatprep.subr.mxu0 0.0
  %v6471 = vand.u32 %v6168, 4294901760
  %v6472 = vsub.f32 %v6168, %v6471
  %6473 = vmatpush1.msra.mxu0 %v6472
  %6474 = vmatprep.subr.mxu0 0.0
  %v6475 = vand.u32 %v6169, 4294901760
  %v6476 = vsub.f32 %v6169, %v6475
  %6477 = vmatpush1.msra.mxu0 %v6476
  %6478 = vmatprep.subr.mxu0 0.0
  %v6479 = vand.u32 %v6170, 4294901760
  %v6480 = vsub.f32 %v6170, %v6479
  %6481 = vmatpush1.msra.mxu0 %v6480
  %6482 = vmatprep.subr.mxu0 0.0
  %v6483 = vand.u32 %v6171, 4294901760
  %v6484 = vsub.f32 %v6171, %v6483
  %6485 = vmatpush1.msra.mxu0 %v6484
  %6486 = vmatprep.subr.mxu0 0.0
  %v6487 = vand.u32 %v6172, 4294901760
  %v6488 = vsub.f32 %v6172, %v6487
  %6489 = vmatpush1.msra.mxu0 %v6488
  %6490 = vmatprep.subr.mxu0 0.0
  %v6491 = vand.u32 %v6173, 4294901760
  %v6492 = vsub.f32 %v6173, %v6491
  %6493 = vmatpush1.msra.mxu0 %v6492
  %6494 = vmatprep.subr.mxu0 0.0
  %v6495 = vand.u32 %v6174, 4294901760
  %v6496 = vsub.f32 %v6174, %v6495
  %6497 = vmatpush1.msra.mxu0 %v6496
  %6498 = vmatprep.subr.mxu0 0.0
  %v6499 = vand.u32 %v6175, 4294901760
  %v6500 = vsub.f32 %v6175, %v6499
  %6501 = vmatpush1.msra.mxu0 %v6500
  %6502 = vmatprep.subr.mxu0 0.0
  %v6503 = vand.u32 %v6176, 4294901760
  %v6504 = vsub.f32 %v6176, %v6503
  %6505 = vmatpush1.msra.mxu0 %v6504
  %6506 = vmatprep.subr.mxu0 0.0
  %v6507 = vand.u32 %v6177, 4294901760
  %v6508 = vsub.f32 %v6177, %v6507
  %6509 = vmatpush1.msra.mxu0 %v6508
  %6510 = vmatprep.subr.mxu0 0.0
  %6511 = vmatpush1.msra.mxu0 0.0
  %6512 = vmatprep.subr.mxu0 0.0
  %6513 = vmatpush1.msra.mxu0 0.0
  %6514 = vmatprep.subr.mxu0 0.0
  %6515 = vmatpush1.msra.mxu0 0.0
  %6516 = vmatprep.subr.mxu0 0.0
  %6517 = vmatpush1.msra.mxu0 0.0
  %6518 = vmatprep.subr.mxu0 0.0
  %6519 = vmatpush1.msra.mxu0 0.0
  %6520 = vmatprep.subr.mxu0 0.0
  %6521 = vmatpush1.msra.mxu0 0.0
  %6522 = vmatprep.subr.mxu0 0.0
  %6523 = vmatpush1.msra.mxu0 0.0
  %6524 = vmatprep.subr.mxu0 0.0
  %6525 = vmatpush1.msra.mxu0 0.0
  %6526 = vmatprep.subr.mxu0 0.0
  %6527 = vmatpush1.msra.mxu0 0.0
  %6528 = vmatprep.subr.mxu0 0.0
  %6529 = vmatpush1.msra.mxu0 0.0
  %6530 = vmatprep.subr.mxu0 0.0
  %6531 = vmatpush1.msra.mxu0 0.0
  %6532 = vmatprep.subr.mxu0 0.0
  %6533 = vmatpush1.msra.mxu0 0.0
  %6534 = vmatprep.subr.mxu0 0.0
  %6535 = vmatpush1.msra.mxu0 0.0
  %6536 = vmatprep.subr.mxu0 0.0
  %6537 = vmatpush1.msra.mxu0 0.0
  %v6538 = vand.u32 %v5477, 4294901760
  %v6539 = vsub.f32 %v5477, %v6538
  %6540 = vmatprep.mubr.f32.mxu0 %v6539
  %v6541 = vand.u32 %v5455, 4294901760
  %v6542 = vsub.f32 %v5455, %v6541
  %6543 = vmatmul.mubr.f32.gmra.mrb[0].mxu0 %v6542
  %v6544 = vpop.f32.mrb[0].mxu0
  %v6545 = vadd.f32 %v6435, %v6544
  %v6546 = vpop.f32.mrb[0].mxu0
  %6547 = vdwg.mxu0
  %6548 = vmatprep.subr.mxu0 0.0
  %v6549 = vand.u32 %v6160, 4294901760
  %6550 = vmatpush1.msra.mxu0 %v6549
  %6551 = vmatprep.subr.mxu0 0.0
  %v6552 = vand.u32 %v6161, 4294901760
  %6553 = vmatpush1.msra.mxu0 %v6552
  %6554 = vmatprep.subr.mxu0 0.0
  %v6555 = vand.u32 %v6162, 4294901760
  %6556 = vmatpush1.msra.mxu0 %v6555
  %6557 = vmatprep.subr.mxu0 0.0
  %v6558 = vand.u32 %v6163, 4294901760
  %6559 = vmatpush1.msra.mxu0 %v6558
  %6560 = vmatprep.subr.mxu0 0.0
  %v6561 = vand.u32 %v6164, 4294901760
  %6562 = vmatpush1.msra.mxu0 %v6561
  %6563 = vmatprep.subr.mxu0 0.0
  %v6564 = vand.u32 %v6165, 4294901760
  %6565 = vmatpush1.msra.mxu0 %v6564
  %6566 = vmatprep.subr.mxu0 0.0
  %v6567 = vand.u32 %v6166, 4294901760
  %6568 = vmatpush1.msra.mxu0 %v6567
  %6569 = vmatprep.subr.mxu0 0.0
  %v6570 = vand.u32 %v6167, 4294901760
  %6571 = vmatpush1.msra.mxu0 %v6570
  %6572 = vmatprep.subr.mxu0 0.0
  %v6573 = vand.u32 %v6168, 4294901760
  %6574 = vmatpush1.msra.mxu0 %v6573
  %6575 = vmatprep.subr.mxu0 0.0
  %v6576 = vand.u32 %v6169, 4294901760
  %6577 = vmatpush1.msra.mxu0 %v6576
  %6578 = vmatprep.subr.mxu0 0.0
  %v6579 = vand.u32 %v6170, 4294901760
  %6580 = vmatpush1.msra.mxu0 %v6579
  %6581 = vmatprep.subr.mxu0 0.0
  %v6582 = vand.u32 %v6171, 4294901760
  %6583 = vmatpush1.msra.mxu0 %v6582
  %6584 = vmatprep.subr.mxu0 0.0
  %v6585 = vand.u32 %v6172, 4294901760
  %6586 = vmatpush1.msra.mxu0 %v6585
  %6587 = vmatprep.subr.mxu0 0.0
  %v6588 = vand.u32 %v6173, 4294901760
  %6589 = vmatpush1.msra.mxu0 %v6588
  %6590 = vmatprep.subr.mxu0 0.0
  %v6591 = vand.u32 %v6174, 4294901760
  %6592 = vmatpush1.msra.mxu0 %v6591
  %6593 = vmatprep.subr.mxu0 0.0
  %v6594 = vand.u32 %v6175, 4294901760
  %6595 = vmatpush1.msra.mxu0 %v6594
  %6596 = vmatprep.subr.mxu0 0.0
  %v6597 = vand.u32 %v6176, 4294901760
  %6598 = vmatpush1.msra.mxu0 %v6597
  %6599 = vmatprep.subr.mxu0 0.0
  %v6600 = vand.u32 %v6177, 4294901760
  %6601 = vmatpush1.msra.mxu0 %v6600
  %6602 = vmatprep.subr.mxu0 0.0
  %6603 = vmatpush1.msra.mxu0 0.0
  %6604 = vmatprep.subr.mxu0 0.0
  %6605 = vmatpush1.msra.mxu0 0.0
  %6606 = vmatprep.subr.mxu0 0.0
  %6607 = vmatpush1.msra.mxu0 0.0
  %6608 = vmatprep.subr.mxu0 0.0
  %6609 = vmatpush1.msra.mxu0 0.0
  %6610 = vmatprep.subr.mxu0 0.0
  %6611 = vmatpush1.msra.mxu0 0.0
  %6612 = vmatprep.subr.mxu0 0.0
  %6613 = vmatpush1.msra.mxu0 0.0
  %6614 = vmatprep.subr.mxu0 0.0
  %6615 = vmatpush1.msra.mxu0 0.0
  %6616 = vmatprep.subr.mxu0 0.0
  %6617 = vmatpush1.msra.mxu0 0.0
  %6618 = vmatprep.subr.mxu0 0.0
  %6619 = vmatpush1.msra.mxu0 0.0
  %6620 = vmatprep.subr.mxu0 0.0
  %6621 = vmatpush1.msra.mxu0 0.0
  %6622 = vmatprep.subr.mxu0 0.0
  %6623 = vmatpush1.msra.mxu0 0.0
  %6624 = vmatprep.subr.mxu0 0.0
  %6625 = vmatpush1.msra.mxu0 0.0
  %6626 = vmatprep.subr.mxu0 0.0
  %6627 = vmatpush1.msra.mxu0 0.0
  %6628 = vmatprep.subr.mxu0 0.0
  %6629 = vmatpush1.msra.mxu0 0.0
  %v6630 = vand.u32 %v5477, 4294901760
  %v6631 = vsub.f32 %v5477, %v6630
  %v6632 = vand.u32 %v6631, 4294901760
  %6633 = vmatprep.mubr.f32.mxu0 %v6632
  %v6634 = vand.u32 %v5455, 4294901760
  %v6635 = vsub.f32 %v5455, %v6634
  %v6636 = vand.u32 %v6635, 4294901760
  %6637 = vmatmul.mubr.f32.gmra.mrb[0].mxu0 %v6636
  %v6638 = vpop.f32.mrb[0].mxu0
  %v6639 = vadd.f32 %v6545, %v6638
  %v6640 = vpop.f32.mrb[0].mxu0
  %6641 = vdwg.mxu0
  %6642 = vmatprep.subr.mxu0 0.0
  %v6643 = vand.u32 %v6160, 4294901760
  %v6644 = vsub.f32 %v6160, %v6643
  %v6645 = vand.u32 %v6644, 4294901760
  %6646 = vmatpush1.msra.mxu0 %v6645
  %6647 = vmatprep.subr.mxu0 0.0
  %v6648 = vand.u32 %v6161, 4294901760
  %v6649 = vsub.f32 %v6161, %v6648
  %v6650 = vand.u32 %v6649, 4294901760
  %6651 = vmatpush1.msra.mxu0 %v6650
  %6652 = vmatprep.subr.mxu0 0.0
  %v6653 = vand.u32 %v6162, 4294901760
  %v6654 = vsub.f32 %v6162, %v6653
  %v6655 = vand.u32 %v6654, 4294901760
  %6656 = vmatpush1.msra.mxu0 %v6655
  %6657 = vmatprep.subr.mxu0 0.0
  %v6658 = vand.u32 %v6163, 4294901760
  %v6659 = vsub.f32 %v6163, %v6658
  %v6660 = vand.u32 %v6659, 4294901760
  %6661 = vmatpush1.msra.mxu0 %v6660
  %6662 = vmatprep.subr.mxu0 0.0
  %v6663 = vand.u32 %v6164, 4294901760
  %v6664 = vsub.f32 %v6164, %v6663
  %v6665 = vand.u32 %v6664, 4294901760
  %6666 = vmatpush1.msra.mxu0 %v6665
  %6667 = vmatprep.subr.mxu0 0.0
  %v6668 = vand.u32 %v6165, 4294901760
  %v6669 = vsub.f32 %v6165, %v6668
  %v6670 = vand.u32 %v6669, 4294901760
  %6671 = vmatpush1.msra.mxu0 %v6670
  %6672 = vmatprep.subr.mxu0 0.0
  %v6673 = vand.u32 %v6166, 4294901760
  %v6674 = vsub.f32 %v6166, %v6673
  %v6675 = vand.u32 %v6674, 4294901760
  %6676 = vmatpush1.msra.mxu0 %v6675
  %6677 = vmatprep.subr.mxu0 0.0
  %v6678 = vand.u32 %v6167, 4294901760
  %v6679 = vsub.f32 %v6167, %v6678
  %v6680 = vand.u32 %v6679, 4294901760
  %6681 = vmatpush1.msra.mxu0 %v6680
  %6682 = vmatprep.subr.mxu0 0.0
  %v6683 = vand.u32 %v6168, 4294901760
  %v6684 = vsub.f32 %v6168, %v6683
  %v6685 = vand.u32 %v6684, 4294901760
  %6686 = vmatpush1.msra.mxu0 %v6685
  %6687 = vmatprep.subr.mxu0 0.0
  %v6688 = vand.u32 %v6169, 4294901760
  %v6689 = vsub.f32 %v6169, %v6688
  %v6690 = vand.u32 %v6689, 4294901760
  %6691 = vmatpush1.msra.mxu0 %v6690
  %6692 = vmatprep.subr.mxu0 0.0
  %v6693 = vand.u32 %v6170, 4294901760
  %v6694 = vsub.f32 %v6170, %v6693
  %v6695 = vand.u32 %v6694, 4294901760
  %6696 = vmatpush1.msra.mxu0 %v6695
  %6697 = vmatprep.subr.mxu0 0.0
  %v6698 = vand.u32 %v6171, 4294901760
  %v6699 = vsub.f32 %v6171, %v6698
  %v6700 = vand.u32 %v6699, 4294901760
  %6701 = vmatpush1.msra.mxu0 %v6700
  %6702 = vmatprep.subr.mxu0 0.0
  %v6703 = vand.u32 %v6172, 4294901760
  %v6704 = vsub.f32 %v6172, %v6703
  %v6705 = vand.u32 %v6704, 4294901760
  %6706 = vmatpush1.msra.mxu0 %v6705
  %6707 = vmatprep.subr.mxu0 0.0
  %v6708 = vand.u32 %v6173, 4294901760
  %v6709 = vsub.f32 %v6173, %v6708
  %v6710 = vand.u32 %v6709, 4294901760
  %6711 = vmatpush1.msra.mxu0 %v6710
  %6712 = vmatprep.subr.mxu0 0.0
  %v6713 = vand.u32 %v6174, 4294901760
  %v6714 = vsub.f32 %v6174, %v6713
  %v6715 = vand.u32 %v6714, 4294901760
  %6716 = vmatpush1.msra.mxu0 %v6715
  %6717 = vmatprep.subr.mxu0 0.0
  %v6718 = vand.u32 %v6175, 4294901760
  %v6719 = vsub.f32 %v6175, %v6718
  %v6720 = vand.u32 %v6719, 4294901760
  %6721 = vmatpush1.msra.mxu0 %v6720
  %6722 = vmatprep.subr.mxu0 0.0
  %v6723 = vand.u32 %v6176, 4294901760
  %v6724 = vsub.f32 %v6176, %v6723
  %v6725 = vand.u32 %v6724, 4294901760
  %6726 = vmatpush1.msra.mxu0 %v6725
  %6727 = vmatprep.subr.mxu0 0.0
  %v6728 = vand.u32 %v6177, 4294901760
  %v6729 = vsub.f32 %v6177, %v6728
  %v6730 = vand.u32 %v6729, 4294901760
  %6731 = vmatpush1.msra.mxu0 %v6730
  %6732 = vmatprep.subr.mxu0 0.0
  %6733 = vmatpush1.msra.mxu0 0.0
  %6734 = vmatprep.subr.mxu0 0.0
  %6735 = vmatpush1.msra.mxu0 0.0
  %6736 = vmatprep.subr.mxu0 0.0
  %6737 = vmatpush1.msra.mxu0 0.0
  %6738 = vmatprep.subr.mxu0 0.0
  %6739 = vmatpush1.msra.mxu0 0.0
  %6740 = vmatprep.subr.mxu0 0.0
  %6741 = vmatpush1.msra.mxu0 0.0
  %6742 = vmatprep.subr.mxu0 0.0
  %6743 = vmatpush1.msra.mxu0 0.0
  %6744 = vmatprep.subr.mxu0 0.0
  %6745 = vmatpush1.msra.mxu0 0.0
  %6746 = vmatprep.subr.mxu0 0.0
  %6747 = vmatpush1.msra.mxu0 0.0
  %6748 = vmatprep.subr.mxu0 0.0
  %6749 = vmatpush1.msra.mxu0 0.0
  %6750 = vmatprep.subr.mxu0 0.0
  %6751 = vmatpush1.msra.mxu0 0.0
  %6752 = vmatprep.subr.mxu0 0.0
  %6753 = vmatpush1.msra.mxu0 0.0
  %6754 = vmatprep.subr.mxu0 0.0
  %6755 = vmatpush1.msra.mxu0 0.0
  %6756 = vmatprep.subr.mxu0 0.0
  %6757 = vmatpush1.msra.mxu0 0.0
  %6758 = vmatprep.subr.mxu0 0.0
  %6759 = vmatpush1.msra.mxu0 0.0
  %v6760 = vand.u32 %v5477, 4294901760
  %6761 = vmatprep.mubr.f32.mxu0 %v6760
  %v6762 = vand.u32 %v5455, 4294901760
  %6763 = vmatmul.mubr.f32.gmra.mrb[0].mxu0 %v6762
  %v6764 = vpop.f32.mrb[0].mxu0
  %v6765 = vadd.f32 %v6639, %v6764
  %v6766 = vpop.f32.mrb[0].mxu0
  %6767 = vdwg.mxu0
  %6768 = vmatprep.subr.mxu0 0.0
  %v6769 = vand.u32 %v6160, 4294901760
  %6770 = vmatpush1.msra.mxu0 %v6769
  %6771 = vmatprep.subr.mxu0 0.0
  %v6772 = vand.u32 %v6161, 4294901760
  %6773 = vmatpush1.msra.mxu0 %v6772
  %6774 = vmatprep.subr.mxu0 0.0
  %v6775 = vand.u32 %v6162, 4294901760
  %6776 = vmatpush1.msra.mxu0 %v6775
  %6777 = vmatprep.subr.mxu0 0.0
  %v6778 = vand.u32 %v6163, 4294901760
  %6779 = vmatpush1.msra.mxu0 %v6778
  %6780 = vmatprep.subr.mxu0 0.0
  %v6781 = vand.u32 %v6164, 4294901760
  %6782 = vmatpush1.msra.mxu0 %v6781
  %6783 = vmatprep.subr.mxu0 0.0
  %v6784 = vand.u32 %v6165, 4294901760
  %6785 = vmatpush1.msra.mxu0 %v6784
  %6786 = vmatprep.subr.mxu0 0.0
  %v6787 = vand.u32 %v6166, 4294901760
  %6788 = vmatpush1.msra.mxu0 %v6787
  %6789 = vmatprep.subr.mxu0 0.0
  %v6790 = vand.u32 %v6167, 4294901760
  %6791 = vmatpush1.msra.mxu0 %v6790
  %6792 = vmatprep.subr.mxu0 0.0
  %v6793 = vand.u32 %v6168, 4294901760
  %6794 = vmatpush1.msra.mxu0 %v6793
  %6795 = vmatprep.subr.mxu0 0.0
  %v6796 = vand.u32 %v6169, 4294901760
  %6797 = vmatpush1.msra.mxu0 %v6796
  %6798 = vmatprep.subr.mxu0 0.0
  %v6799 = vand.u32 %v6170, 4294901760
  %6800 = vmatpush1.msra.mxu0 %v6799
  %6801 = vmatprep.subr.mxu0 0.0
  %v6802 = vand.u32 %v6171, 4294901760
  %6803 = vmatpush1.msra.mxu0 %v6802
  %6804 = vmatprep.subr.mxu0 0.0
  %v6805 = vand.u32 %v6172, 4294901760
  %6806 = vmatpush1.msra.mxu0 %v6805
  %6807 = vmatprep.subr.mxu0 0.0
  %v6808 = vand.u32 %v6173, 4294901760
  %6809 = vmatpush1.msra.mxu0 %v6808
  %6810 = vmatprep.subr.mxu0 0.0
  %v6811 = vand.u32 %v6174, 4294901760
  %6812 = vmatpush1.msra.mxu0 %v6811
  %6813 = vmatprep.subr.mxu0 0.0
  %v6814 = vand.u32 %v6175, 4294901760
  %6815 = vmatpush1.msra.mxu0 %v6814
  %6816 = vmatprep.subr.mxu0 0.0
  %v6817 = vand.u32 %v6176, 4294901760
  %6818 = vmatpush1.msra.mxu0 %v6817
  %6819 = vmatprep.subr.mxu0 0.0
  %v6820 = vand.u32 %v6177, 4294901760
  %6821 = vmatpush1.msra.mxu0 %v6820
  %6822 = vmatprep.subr.mxu0 0.0
  %6823 = vmatpush1.msra.mxu0 0.0
  %6824 = vmatprep.subr.mxu0 0.0
  %6825 = vmatpush1.msra.mxu0 0.0
  %6826 = vmatprep.subr.mxu0 0.0
  %6827 = vmatpush1.msra.mxu0 0.0
  %6828 = vmatprep.subr.mxu0 0.0
  %6829 = vmatpush1.msra.mxu0 0.0
  %6830 = vmatprep.subr.mxu0 0.0
  %6831 = vmatpush1.msra.mxu0 0.0
  %6832 = vmatprep.subr.mxu0 0.0
  %6833 = vmatpush1.msra.mxu0 0.0
  %6834 = vmatprep.subr.mxu0 0.0
  %6835 = vmatpush1.msra.mxu0 0.0
  %6836 = vmatprep.subr.mxu0 0.0
  %6837 = vmatpush1.msra.mxu0 0.0
  %6838 = vmatprep.subr.mxu0 0.0
  %6839 = vmatpush1.msra.mxu0 0.0
  %6840 = vmatprep.subr.mxu0 0.0
  %6841 = vmatpush1.msra.mxu0 0.0
  %6842 = vmatprep.subr.mxu0 0.0
  %6843 = vmatpush1.msra.mxu0 0.0
  %6844 = vmatprep.subr.mxu0 0.0
  %6845 = vmatpush1.msra.mxu0 0.0
  %6846 = vmatprep.subr.mxu0 0.0
  %6847 = vmatpush1.msra.mxu0 0.0
  %6848 = vmatprep.subr.mxu0 0.0
  %6849 = vmatpush1.msra.mxu0 0.0
  %v6850 = vand.u32 %v5477, 4294901760
  %6851 = vmatprep.mubr.f32.mxu0 %v6850
  %v6852 = vand.u32 %v5455, 4294901760
  %6853 = vmatmul.mubr.f32.gmra.mrb[0].mxu0 %v6852
  %v6854 = vpop.f32.mrb[0].mxu0
  %v6855 = vadd.f32 %v6765, %v6854
  %v6856 = vpop.f32.mrb[0].mxu0
  %6857 = vdwg.mxu0
  %v6858 = vmax.f32 %v6156, %v6855
  %s6859 = scalar_lea.vmem %s3, 288
  %v6860 = vld [vmem:[%s6859] sm:$0xff]
  %v6861 = vld [vmem:[%s6859 + $0x8] sm:$0xff]
  %v6862 = vld [vmem:[%s6859 + $0x10] sm:$0xff]
  %v6863 = vld [vmem:[%s6859 + $0x18] sm:$0xff]
  %v6864 = vld [vmem:[%s6859 + $0x20] sm:$0xff]
  %v6865 = vld [vmem:[%s6859 + $0x28] sm:$0xff]
  %v6866 = vld [vmem:[%s6859 + $0x30] sm:$0xff]
  %v6867 = vld [vmem:[%s6859 + $0x38] sm:$0xff]
  %v6868 = vld [vmem:[%s6859 + $0x40] sm:$0xff]
  %v6869 = vld [vmem:[%s6859 + $0x48] sm:$0xff]
  %v6870 = vld [vmem:[%s6859 + $0x50] sm:$0xff]
  %v6871 = vld [vmem:[%s6859 + $0x58] sm:$0xff]
  %v6872 = vld [vmem:[%s6859 + $0x60] sm:$0xff]
  %v6873 = vld [vmem:[%s6859 + $0x68] sm:$0xff]
  %v6874 = vld [vmem:[%s6859 + $0x70] sm:$0xff]
  %v6875 = vld [vmem:[%s6859 + $0x78] sm:$0xff]
  %v6876 = vld [vmem:[%s6859 + $0x80] sm:$0xff]
  %v6877 = vld [vmem:[%s6859 + $0x88] sm:$0xff]
  %6878 = vmatprep.subr.mxu0 0.0
  %v6879 = vand.u32 %v6860, 4294901760
  %6880 = vmatpush1.msra.mxu0 %v6879
  %6881 = vmatprep.subr.mxu0 0.0
  %v6882 = vand.u32 %v6861, 4294901760
  %6883 = vmatpush1.msra.mxu0 %v6882
  %6884 = vmatprep.subr.mxu0 0.0
  %v6885 = vand.u32 %v6862, 4294901760
  %6886 = vmatpush1.msra.mxu0 %v6885
  %6887 = vmatprep.subr.mxu0 0.0
  %v6888 = vand.u32 %v6863, 4294901760
  %6889 = vmatpush1.msra.mxu0 %v6888
  %6890 = vmatprep.subr.mxu0 0.0
  %v6891 = vand.u32 %v6864, 4294901760
  %6892 = vmatpush1.msra.mxu0 %v6891
  %6893 = vmatprep.subr.mxu0 0.0
  %v6894 = vand.u32 %v6865, 4294901760
  %6895 = vmatpush1.msra.mxu0 %v6894
  %6896 = vmatprep.subr.mxu0 0.0
  %v6897 = vand.u32 %v6866, 4294901760
  %6898 = vmatpush1.msra.mxu0 %v6897
  %6899 = vmatprep.subr.mxu0 0.0
  %v6900 = vand.u32 %v6867, 4294901760
  %6901 = vmatpush1.msra.mxu0 %v6900
  %6902 = vmatprep.subr.mxu0 0.0
  %v6903 = vand.u32 %v6868, 4294901760
  %6904 = vmatpush1.msra.mxu0 %v6903
  %6905 = vmatprep.subr.mxu0 0.0
  %v6906 = vand.u32 %v6869, 4294901760
  %6907 = vmatpush1.msra.mxu0 %v6906
  %6908 = vmatprep.subr.mxu0 0.0
  %v6909 = vand.u32 %v6870, 4294901760
  %6910 = vmatpush1.msra.mxu0 %v6909
  %6911 = vmatprep.subr.mxu0 0.0
  %v6912 = vand.u32 %v6871, 4294901760
  %6913 = vmatpush1.msra.mxu0 %v6912
  %6914 = vmatprep.subr.mxu0 0.0
  %v6915 = vand.u32 %v6872, 4294901760
  %6916 = vmatpush1.msra.mxu0 %v6915
  %6917 = vmatprep.subr.mxu0 0.0
  %v6918 = vand.u32 %v6873, 4294901760
  %6919 = vmatpush1.msra.mxu0 %v6918
  %6920 = vmatprep.subr.mxu0 0.0
  %v6921 = vand.u32 %v6874, 4294901760
  %6922 = vmatpush1.msra.mxu0 %v6921
  %6923 = vmatprep.subr.mxu0 0.0
  %v6924 = vand.u32 %v6875, 4294901760
  %6925 = vmatpush1.msra.mxu0 %v6924
  %6926 = vmatprep.subr.mxu0 0.0
  %v6927 = vand.u32 %v6876, 4294901760
  %6928 = vmatpush1.msra.mxu0 %v6927
  %6929 = vmatprep.subr.mxu0 0.0
  %v6930 = vand.u32 %v6877, 4294901760
  %6931 = vmatpush1.msra.mxu0 %v6930
  %6932 = vmatprep.subr.mxu0 0.0
  %6933 = vmatpush1.msra.mxu0 0.0
  %6934 = vmatprep.subr.mxu0 0.0
  %6935 = vmatpush1.msra.mxu0 0.0
  %6936 = vmatprep.subr.mxu0 0.0
  %6937 = vmatpush1.msra.mxu0 0.0
  %6938 = vmatprep.subr.mxu0 0.0
  %6939 = vmatpush1.msra.mxu0 0.0
  %6940 = vmatprep.subr.mxu0 0.0
  %6941 = vmatpush1.msra.mxu0 0.0
  %6942 = vmatprep.subr.mxu0 0.0
  %6943 = vmatpush1.msra.mxu0 0.0
  %6944 = vmatprep.subr.mxu0 0.0
  %6945 = vmatpush1.msra.mxu0 0.0
  %6946 = vmatprep.subr.mxu0 0.0
  %6947 = vmatpush1.msra.mxu0 0.0
  %6948 = vmatprep.subr.mxu0 0.0
  %6949 = vmatpush1.msra.mxu0 0.0
  %6950 = vmatprep.subr.mxu0 0.0
  %6951 = vmatpush1.msra.mxu0 0.0
  %6952 = vmatprep.subr.mxu0 0.0
  %6953 = vmatpush1.msra.mxu0 0.0
  %6954 = vmatprep.subr.mxu0 0.0
  %6955 = vmatpush1.msra.mxu0 0.0
  %6956 = vmatprep.subr.mxu0 0.0
  %6957 = vmatpush1.msra.mxu0 0.0
  %6958 = vmatprep.subr.mxu0 0.0
  %6959 = vmatpush1.msra.mxu0 0.0
  %v6960 = vand.u32 %v5477, 4294901760
  %v6961 = vsub.f32 %v5477, %v6960
  %v6962 = vand.u32 %v6961, 4294901760
  %v6963 = vsub.f32 %v6961, %v6962
  %v6964 = vand.u32 %v6963, 4294901760
  %6965 = vmatprep.mubr.f32.mxu0 %v6964
  %v6966 = vand.u32 %v5455, 4294901760
  %v6967 = vsub.f32 %v5455, %v6966
  %v6968 = vand.u32 %v6967, 4294901760
  %v6969 = vsub.f32 %v6967, %v6968
  %v6970 = vand.u32 %v6969, 4294901760
  %6971 = vmatmul.mubr.f32.gmra.mrb[0].mxu0 %v6970
  %v6972 = vpop.f32.mrb[0].mxu0
  %v6973 = vadd.f32 0.0, %v6972
  %v6974 = vpop.f32.mrb[0].mxu0
  %6975 = vdwg.mxu0
  %6976 = vmatprep.subr.mxu0 0.0
  %v6977 = vand.u32 %v6860, 4294901760
  %v6978 = vsub.f32 %v6860, %v6977
  %v6979 = vand.u32 %v6978, 4294901760
  %v6980 = vsub.f32 %v6978, %v6979
  %v6981 = vand.u32 %v6980, 4294901760
  %6982 = vmatpush1.msra.mxu0 %v6981
  %6983 = vmatprep.subr.mxu0 0.0
  %v6984 = vand.u32 %v6861, 4294901760
  %v6985 = vsub.f32 %v6861, %v6984
  %v6986 = vand.u32 %v6985, 4294901760
  %v6987 = vsub.f32 %v6985, %v6986
  %v6988 = vand.u32 %v6987, 4294901760
  %6989 = vmatpush1.msra.mxu0 %v6988
  %6990 = vmatprep.subr.mxu0 0.0
  %v6991 = vand.u32 %v6862, 4294901760
  %v6992 = vsub.f32 %v6862, %v6991
  %v6993 = vand.u32 %v6992, 4294901760
  %v6994 = vsub.f32 %v6992, %v6993
  %v6995 = vand.u32 %v6994, 4294901760
  %6996 = vmatpush1.msra.mxu0 %v6995
  %6997 = vmatprep.subr.mxu0 0.0
  %v6998 = vand.u32 %v6863, 4294901760
  %v6999 = vsub.f32 %v6863, %v6998
  %v7000 = vand.u32 %v6999, 4294901760
  %v7001 = vsub.f32 %v6999, %v7000
  %v7002 = vand.u32 %v7001, 4294901760
  %7003 = vmatpush1.msra.mxu0 %v7002
  %7004 = vmatprep.subr.mxu0 0.0
  %v7005 = vand.u32 %v6864, 4294901760
  %v7006 = vsub.f32 %v6864, %v7005
  %v7007 = vand.u32 %v7006, 4294901760
  %v7008 = vsub.f32 %v7006, %v7007
  %v7009 = vand.u32 %v7008, 4294901760
  %7010 = vmatpush1.msra.mxu0 %v7009
  %7011 = vmatprep.subr.mxu0 0.0
  %v7012 = vand.u32 %v6865, 4294901760
  %v7013 = vsub.f32 %v6865, %v7012
  %v7014 = vand.u32 %v7013, 4294901760
  %v7015 = vsub.f32 %v7013, %v7014
  %v7016 = vand.u32 %v7015, 4294901760
  %7017 = vmatpush1.msra.mxu0 %v7016
  %7018 = vmatprep.subr.mxu0 0.0
  %v7019 = vand.u32 %v6866, 4294901760
  %v7020 = vsub.f32 %v6866, %v7019
  %v7021 = vand.u32 %v7020, 4294901760
  %v7022 = vsub.f32 %v7020, %v7021
  %v7023 = vand.u32 %v7022, 4294901760
  %7024 = vmatpush1.msra.mxu0 %v7023
  %7025 = vmatprep.subr.mxu0 0.0
  %v7026 = vand.u32 %v6867, 4294901760
  %v7027 = vsub.f32 %v6867, %v7026
  %v7028 = vand.u32 %v7027, 4294901760
  %v7029 = vsub.f32 %v7027, %v7028
  %v7030 = vand.u32 %v7029, 4294901760
  %7031 = vmatpush1.msra.mxu0 %v7030
  %7032 = vmatprep.subr.mxu0 0.0
  %v7033 = vand.u32 %v6868, 4294901760
  %v7034 = vsub.f32 %v6868, %v7033
  %v7035 = vand.u32 %v7034, 4294901760
  %v7036 = vsub.f32 %v7034, %v7035
  %v7037 = vand.u32 %v7036, 4294901760
  %7038 = vmatpush1.msra.mxu0 %v7037
  %7039 = vmatprep.subr.mxu0 0.0
  %v7040 = vand.u32 %v6869, 4294901760
  %v7041 = vsub.f32 %v6869, %v7040
  %v7042 = vand.u32 %v7041, 4294901760
  %v7043 = vsub.f32 %v7041, %v7042
  %v7044 = vand.u32 %v7043, 4294901760
  %7045 = vmatpush1.msra.mxu0 %v7044
  %7046 = vmatprep.subr.mxu0 0.0
  %v7047 = vand.u32 %v6870, 4294901760
  %v7048 = vsub.f32 %v6870, %v7047
  %v7049 = vand.u32 %v7048, 4294901760
  %v7050 = vsub.f32 %v7048, %v7049
  %v7051 = vand.u32 %v7050, 4294901760
  %7052 = vmatpush1.msra.mxu0 %v7051
  %7053 = vmatprep.subr.mxu0 0.0
  %v7054 = vand.u32 %v6871, 4294901760
  %v7055 = vsub.f32 %v6871, %v7054
  %v7056 = vand.u32 %v7055, 4294901760
  %v7057 = vsub.f32 %v7055, %v7056
  %v7058 = vand.u32 %v7057, 4294901760
  %7059 = vmatpush1.msra.mxu0 %v7058
  %7060 = vmatprep.subr.mxu0 0.0
  %v7061 = vand.u32 %v6872, 4294901760
  %v7062 = vsub.f32 %v6872, %v7061
  %v7063 = vand.u32 %v7062, 4294901760
  %v7064 = vsub.f32 %v7062, %v7063
  %v7065 = vand.u32 %v7064, 4294901760
  %7066 = vmatpush1.msra.mxu0 %v7065
  %7067 = vmatprep.subr.mxu0 0.0
  %v7068 = vand.u32 %v6873, 4294901760
  %v7069 = vsub.f32 %v6873, %v7068
  %v7070 = vand.u32 %v7069, 4294901760
  %v7071 = vsub.f32 %v7069, %v7070
  %v7072 = vand.u32 %v7071, 4294901760
  %7073 = vmatpush1.msra.mxu0 %v7072
  %7074 = vmatprep.subr.mxu0 0.0
  %v7075 = vand.u32 %v6874, 4294901760
  %v7076 = vsub.f32 %v6874, %v7075
  %v7077 = vand.u32 %v7076, 4294901760
  %v7078 = vsub.f32 %v7076, %v7077
  %v7079 = vand.u32 %v7078, 4294901760
  %7080 = vmatpush1.msra.mxu0 %v7079
  %7081 = vmatprep.subr.mxu0 0.0
  %v7082 = vand.u32 %v6875, 4294901760
  %v7083 = vsub.f32 %v6875, %v7082
  %v7084 = vand.u32 %v7083, 4294901760
  %v7085 = vsub.f32 %v7083, %v7084
  %v7086 = vand.u32 %v7085, 4294901760
  %7087 = vmatpush1.msra.mxu0 %v7086
  %7088 = vmatprep.subr.mxu0 0.0
  %v7089 = vand.u32 %v6876, 4294901760
  %v7090 = vsub.f32 %v6876, %v7089
  %v7091 = vand.u32 %v7090, 4294901760
  %v7092 = vsub.f32 %v7090, %v7091
  %v7093 = vand.u32 %v7092, 4294901760
  %7094 = vmatpush1.msra.mxu0 %v7093
  %7095 = vmatprep.subr.mxu0 0.0
  %v7096 = vand.u32 %v6877, 4294901760
  %v7097 = vsub.f32 %v6877, %v7096
  %v7098 = vand.u32 %v7097, 4294901760
  %v7099 = vsub.f32 %v7097, %v7098
  %v7100 = vand.u32 %v7099, 4294901760
  %7101 = vmatpush1.msra.mxu0 %v7100
  %7102 = vmatprep.subr.mxu0 0.0
  %7103 = vmatpush1.msra.mxu0 0.0
  %7104 = vmatprep.subr.mxu0 0.0
  %7105 = vmatpush1.msra.mxu0 0.0
  %7106 = vmatprep.subr.mxu0 0.0
  %7107 = vmatpush1.msra.mxu0 0.0
  %7108 = vmatprep.subr.mxu0 0.0
  %7109 = vmatpush1.msra.mxu0 0.0
  %7110 = vmatprep.subr.mxu0 0.0
  %7111 = vmatpush1.msra.mxu0 0.0
  %7112 = vmatprep.subr.mxu0 0.0
  %7113 = vmatpush1.msra.mxu0 0.0
  %7114 = vmatprep.subr.mxu0 0.0
  %7115 = vmatpush1.msra.mxu0 0.0
  %7116 = vmatprep.subr.mxu0 0.0
  %7117 = vmatpush1.msra.mxu0 0.0
  %7118 = vmatprep.subr.mxu0 0.0
  %7119 = vmatpush1.msra.mxu0 0.0
  %7120 = vmatprep.subr.mxu0 0.0
  %7121 = vmatpush1.msra.mxu0 0.0
  %7122 = vmatprep.subr.mxu0 0.0
  %7123 = vmatpush1.msra.mxu0 0.0
  %7124 = vmatprep.subr.mxu0 0.0
  %7125 = vmatpush1.msra.mxu0 0.0
  %7126 = vmatprep.subr.mxu0 0.0
  %7127 = vmatpush1.msra.mxu0 0.0
  %7128 = vmatprep.subr.mxu0 0.0
  %7129 = vmatpush1.msra.mxu0 0.0
  %v7130 = vand.u32 %v5477, 4294901760
  %7131 = vmatprep.mubr.f32.mxu0 %v7130
  %v7132 = vand.u32 %v5455, 4294901760
  %7133 = vmatmul.mubr.f32.gmra.mrb[0].mxu0 %v7132
  %v7134 = vpop.f32.mrb[0].mxu0
  %v7135 = vadd.f32 %v6973, %v7134
  %v7136 = vpop.f32.mrb[0].mxu0
  %7137 = vdwg.mxu0
  %7138 = vmatprep.subr.mxu0 0.0
  %v7139 = vand.u32 %v6860, 4294901760
  %v7140 = vsub.f32 %v6860, %v7139
  %7141 = vmatpush1.msra.mxu0 %v7140
  %7142 = vmatprep.subr.mxu0 0.0
  %v7143 = vand.u32 %v6861, 4294901760
  %v7144 = vsub.f32 %v6861, %v7143
  %7145 = vmatpush1.msra.mxu0 %v7144
  %7146 = vmatprep.subr.mxu0 0.0
  %v7147 = vand.u32 %v6862, 4294901760
  %v7148 = vsub.f32 %v6862, %v7147
  %7149 = vmatpush1.msra.mxu0 %v7148
  %7150 = vmatprep.subr.mxu0 0.0
  %v7151 = vand.u32 %v6863, 4294901760
  %v7152 = vsub.f32 %v6863, %v7151
  %7153 = vmatpush1.msra.mxu0 %v7152
  %7154 = vmatprep.subr.mxu0 0.0
  %v7155 = vand.u32 %v6864, 4294901760
  %v7156 = vsub.f32 %v6864, %v7155
  %7157 = vmatpush1.msra.mxu0 %v7156
  %7158 = vmatprep.subr.mxu0 0.0
  %v7159 = vand.u32 %v6865, 4294901760
  %v7160 = vsub.f32 %v6865, %v7159
  %7161 = vmatpush1.msra.mxu0 %v7160
  %7162 = vmatprep.subr.mxu0 0.0
  %v7163 = vand.u32 %v6866, 4294901760
  %v7164 = vsub.f32 %v6866, %v7163
  %7165 = vmatpush1.msra.mxu0 %v7164
  %7166 = vmatprep.subr.mxu0 0.0
  %v7167 = vand.u32 %v6867, 4294901760
  %v7168 = vsub.f32 %v6867, %v7167
  %7169 = vmatpush1.msra.mxu0 %v7168
  %7170 = vmatprep.subr.mxu0 0.0
  %v7171 = vand.u32 %v6868, 4294901760
  %v7172 = vsub.f32 %v6868, %v7171
  %7173 = vmatpush1.msra.mxu0 %v7172
  %7174 = vmatprep.subr.mxu0 0.0
  %v7175 = vand.u32 %v6869, 4294901760
  %v7176 = vsub.f32 %v6869, %v7175
  %7177 = vmatpush1.msra.mxu0 %v7176
  %7178 = vmatprep.subr.mxu0 0.0
  %v7179 = vand.u32 %v6870, 4294901760
  %v7180 = vsub.f32 %v6870, %v7179
  %7181 = vmatpush1.msra.mxu0 %v7180
  %7182 = vmatprep.subr.mxu0 0.0
  %v7183 = vand.u32 %v6871, 4294901760
  %v7184 = vsub.f32 %v6871, %v7183
  %7185 = vmatpush1.msra.mxu0 %v7184
  %7186 = vmatprep.subr.mxu0 0.0
  %v7187 = vand.u32 %v6872, 4294901760
  %v7188 = vsub.f32 %v6872, %v7187
  %7189 = vmatpush1.msra.mxu0 %v7188
  %7190 = vmatprep.subr.mxu0 0.0
  %v7191 = vand.u32 %v6873, 4294901760
  %v7192 = vsub.f32 %v6873, %v7191
  %7193 = vmatpush1.msra.mxu0 %v7192
  %7194 = vmatprep.subr.mxu0 0.0
  %v7195 = vand.u32 %v6874, 4294901760
  %v7196 = vsub.f32 %v6874, %v7195
  %7197 = vmatpush1.msra.mxu0 %v7196
  %7198 = vmatprep.subr.mxu0 0.0
  %v7199 = vand.u32 %v6875, 4294901760
  %v7200 = vsub.f32 %v6875, %v7199
  %7201 = vmatpush1.msra.mxu0 %v7200
  %7202 = vmatprep.subr.mxu0 0.0
  %v7203 = vand.u32 %v6876, 4294901760
  %v7204 = vsub.f32 %v6876, %v7203
  %7205 = vmatpush1.msra.mxu0 %v7204
  %7206 = vmatprep.subr.mxu0 0.0
  %v7207 = vand.u32 %v6877, 4294901760
  %v7208 = vsub.f32 %v6877, %v7207
  %7209 = vmatpush1.msra.mxu0 %v7208
  %7210 = vmatprep.subr.mxu0 0.0
  %7211 = vmatpush1.msra.mxu0 0.0
  %7212 = vmatprep.subr.mxu0 0.0
  %7213 = vmatpush1.msra.mxu0 0.0
  %7214 = vmatprep.subr.mxu0 0.0
  %7215 = vmatpush1.msra.mxu0 0.0
  %7216 = vmatprep.subr.mxu0 0.0
  %7217 = vmatpush1.msra.mxu0 0.0
  %7218 = vmatprep.subr.mxu0 0.0
  %7219 = vmatpush1.msra.mxu0 0.0
  %7220 = vmatprep.subr.mxu0 0.0
  %7221 = vmatpush1.msra.mxu0 0.0
  %7222 = vmatprep.subr.mxu0 0.0
  %7223 = vmatpush1.msra.mxu0 0.0
  %7224 = vmatprep.subr.mxu0 0.0
  %7225 = vmatpush1.msra.mxu0 0.0
  %7226 = vmatprep.subr.mxu0 0.0
  %7227 = vmatpush1.msra.mxu0 0.0
  %7228 = vmatprep.subr.mxu0 0.0
  %7229 = vmatpush1.msra.mxu0 0.0
  %7230 = vmatprep.subr.mxu0 0.0
  %7231 = vmatpush1.msra.mxu0 0.0
  %7232 = vmatprep.subr.mxu0 0.0
  %7233 = vmatpush1.msra.mxu0 0.0
  %7234 = vmatprep.subr.mxu0 0.0
  %7235 = vmatpush1.msra.mxu0 0.0
  %7236 = vmatprep.subr.mxu0 0.0
  %7237 = vmatpush1.msra.mxu0 0.0
  %v7238 = vand.u32 %v5477, 4294901760
  %v7239 = vsub.f32 %v5477, %v7238
  %7240 = vmatprep.mubr.f32.mxu0 %v7239
  %v7241 = vand.u32 %v5455, 4294901760
  %v7242 = vsub.f32 %v5455, %v7241
  %7243 = vmatmul.mubr.f32.gmra.mrb[0].mxu0 %v7242
  %v7244 = vpop.f32.mrb[0].mxu0
  %v7245 = vadd.f32 %v7135, %v7244
  %v7246 = vpop.f32.mrb[0].mxu0
  %7247 = vdwg.mxu0
  %7248 = vmatprep.subr.mxu0 0.0
  %v7249 = vand.u32 %v6860, 4294901760
  %7250 = vmatpush1.msra.mxu0 %v7249
  %7251 = vmatprep.subr.mxu0 0.0
  %v7252 = vand.u32 %v6861, 4294901760
  %7253 = vmatpush1.msra.mxu0 %v7252
  %7254 = vmatprep.subr.mxu0 0.0
  %v7255 = vand.u32 %v6862, 4294901760
  %7256 = vmatpush1.msra.mxu0 %v7255
  %7257 = vmatprep.subr.mxu0 0.0
  %v7258 = vand.u32 %v6863, 4294901760
  %7259 = vmatpush1.msra.mxu0 %v7258
  %7260 = vmatprep.subr.mxu0 0.0
  %v7261 = vand.u32 %v6864, 4294901760
  %7262 = vmatpush1.msra.mxu0 %v7261
  %7263 = vmatprep.subr.mxu0 0.0
  %v7264 = vand.u32 %v6865, 4294901760
  %7265 = vmatpush1.msra.mxu0 %v7264
  %7266 = vmatprep.subr.mxu0 0.0
  %v7267 = vand.u32 %v6866, 4294901760
  %7268 = vmatpush1.msra.mxu0 %v7267
  %7269 = vmatprep.subr.mxu0 0.0
  %v7270 = vand.u32 %v6867, 4294901760
  %7271 = vmatpush1.msra.mxu0 %v7270
  %7272 = vmatprep.subr.mxu0 0.0
  %v7273 = vand.u32 %v6868, 4294901760
  %7274 = vmatpush1.msra.mxu0 %v7273
  %7275 = vmatprep.subr.mxu0 0.0
  %v7276 = vand.u32 %v6869, 4294901760
  %7277 = vmatpush1.msra.mxu0 %v7276
  %7278 = vmatprep.subr.mxu0 0.0
  %v7279 = vand.u32 %v6870, 4294901760
  %7280 = vmatpush1.msra.mxu0 %v7279
  %7281 = vmatprep.subr.mxu0 0.0
  %v7282 = vand.u32 %v6871, 4294901760
  %7283 = vmatpush1.msra.mxu0 %v7282
  %7284 = vmatprep.subr.mxu0 0.0
  %v7285 = vand.u32 %v6872, 4294901760
  %7286 = vmatpush1.msra.mxu0 %v7285
  %7287 = vmatprep.subr.mxu0 0.0
  %v7288 = vand.u32 %v6873, 4294901760
  %7289 = vmatpush1.msra.mxu0 %v7288
  %7290 = vmatprep.subr.mxu0 0.0
  %v7291 = vand.u32 %v6874, 4294901760
  %7292 = vmatpush1.msra.mxu0 %v7291
  %7293 = vmatprep.subr.mxu0 0.0
  %v7294 = vand.u32 %v6875, 4294901760
  %7295 = vmatpush1.msra.mxu0 %v7294
  %7296 = vmatprep.subr.mxu0 0.0
  %v7297 = vand.u32 %v6876, 4294901760
  %7298 = vmatpush1.msra.mxu0 %v7297
  %7299 = vmatprep.subr.mxu0 0.0
  %v7300 = vand.u32 %v6877, 4294901760
  %7301 = vmatpush1.msra.mxu0 %v7300
  %7302 = vmatprep.subr.mxu0 0.0
  %7303 = vmatpush1.msra.mxu0 0.0
  %7304 = vmatprep.subr.mxu0 0.0
  %7305 = vmatpush1.msra.mxu0 0.0
  %7306 = vmatprep.subr.mxu0 0.0
  %7307 = vmatpush1.msra.mxu0 0.0
  %7308 = vmatprep.subr.mxu0 0.0
  %7309 = vmatpush1.msra.mxu0 0.0
  %7310 = vmatprep.subr.mxu0 0.0
  %7311 = vmatpush1.msra.mxu0 0.0
  %7312 = vmatprep.subr.mxu0 0.0
  %7313 = vmatpush1.msra.mxu0 0.0
  %7314 = vmatprep.subr.mxu0 0.0
  %7315 = vmatpush1.msra.mxu0 0.0
  %7316 = vmatprep.subr.mxu0 0.0
  %7317 = vmatpush1.msra.mxu0 0.0
  %7318 = vmatprep.subr.mxu0 0.0
  %7319 = vmatpush1.msra.mxu0 0.0
  %7320 = vmatprep.subr.mxu0 0.0
  %7321 = vmatpush1.msra.mxu0 0.0
  %7322 = vmatprep.subr.mxu0 0.0
  %7323 = vmatpush1.msra.mxu0 0.0
  %7324 = vmatprep.subr.mxu0 0.0
  %7325 = vmatpush1.msra.mxu0 0.0
  %7326 = vmatprep.subr.mxu0 0.0
  %7327 = vmatpush1.msra.mxu0 0.0
  %7328 = vmatprep.subr.mxu0 0.0
  %7329 = vmatpush1.msra.mxu0 0.0
  %v7330 = vand.u32 %v5477, 4294901760
  %v7331 = vsub.f32 %v5477, %v7330
  %v7332 = vand.u32 %v7331, 4294901760
  %7333 = vmatprep.mubr.f32.mxu0 %v7332
  %v7334 = vand.u32 %v5455, 4294901760
  %v7335 = vsub.f32 %v5455, %v7334
  %v7336 = vand.u32 %v7335, 4294901760
  %7337 = vmatmul.mubr.f32.gmra.mrb[0].mxu0 %v7336
  %v7338 = vpop.f32.mrb[0].mxu0
  %v7339 = vadd.f32 %v7245, %v7338
  %v7340 = vpop.f32.mrb[0].mxu0
  %7341 = vdwg.mxu0
  %7342 = vmatprep.subr.mxu0 0.0
  %v7343 = vand.u32 %v6860, 4294901760
  %v7344 = vsub.f32 %v6860, %v7343
  %v7345 = vand.u32 %v7344, 4294901760
  %7346 = vmatpush1.msra.mxu0 %v7345
  %7347 = vmatprep.subr.mxu0 0.0
  %v7348 = vand.u32 %v6861, 4294901760
  %v7349 = vsub.f32 %v6861, %v7348
  %v7350 = vand.u32 %v7349, 4294901760
  %7351 = vmatpush1.msra.mxu0 %v7350
  %7352 = vmatprep.subr.mxu0 0.0
  %v7353 = vand.u32 %v6862, 4294901760
  %v7354 = vsub.f32 %v6862, %v7353
  %v7355 = vand.u32 %v7354, 4294901760
  %7356 = vmatpush1.msra.mxu0 %v7355
  %7357 = vmatprep.subr.mxu0 0.0
  %v7358 = vand.u32 %v6863, 4294901760
  %v7359 = vsub.f32 %v6863, %v7358
  %v7360 = vand.u32 %v7359, 4294901760
  %7361 = vmatpush1.msra.mxu0 %v7360
  %7362 = vmatprep.subr.mxu0 0.0
  %v7363 = vand.u32 %v6864, 4294901760
  %v7364 = vsub.f32 %v6864, %v7363
  %v7365 = vand.u32 %v7364, 4294901760
  %7366 = vmatpush1.msra.mxu0 %v7365
  %7367 = vmatprep.subr.mxu0 0.0
  %v7368 = vand.u32 %v6865, 4294901760
  %v7369 = vsub.f32 %v6865, %v7368
  %v7370 = vand.u32 %v7369, 4294901760
  %7371 = vmatpush1.msra.mxu0 %v7370
  %7372 = vmatprep.subr.mxu0 0.0
  %v7373 = vand.u32 %v6866, 4294901760
  %v7374 = vsub.f32 %v6866, %v7373
  %v7375 = vand.u32 %v7374, 4294901760
  %7376 = vmatpush1.msra.mxu0 %v7375
  %7377 = vmatprep.subr.mxu0 0.0
  %v7378 = vand.u32 %v6867, 4294901760
  %v7379 = vsub.f32 %v6867, %v7378
  %v7380 = vand.u32 %v7379, 4294901760
  %7381 = vmatpush1.msra.mxu0 %v7380
  %7382 = vmatprep.subr.mxu0 0.0
  %v7383 = vand.u32 %v6868, 4294901760
  %v7384 = vsub.f32 %v6868, %v7383
  %v7385 = vand.u32 %v7384, 4294901760
  %7386 = vmatpush1.msra.mxu0 %v7385
  %7387 = vmatprep.subr.mxu0 0.0
  %v7388 = vand.u32 %v6869, 4294901760
  %v7389 = vsub.f32 %v6869, %v7388
  %v7390 = vand.u32 %v7389, 4294901760
  %7391 = vmatpush1.msra.mxu0 %v7390
  %7392 = vmatprep.subr.mxu0 0.0
  %v7393 = vand.u32 %v6870, 4294901760
  %v7394 = vsub.f32 %v6870, %v7393
  %v7395 = vand.u32 %v7394, 4294901760
  %7396 = vmatpush1.msra.mxu0 %v7395
  %7397 = vmatprep.subr.mxu0 0.0
  %v7398 = vand.u32 %v6871, 4294901760
  %v7399 = vsub.f32 %v6871, %v7398
  %v7400 = vand.u32 %v7399, 4294901760
  %7401 = vmatpush1.msra.mxu0 %v7400
  %7402 = vmatprep.subr.mxu0 0.0
  %v7403 = vand.u32 %v6872, 4294901760
  %v7404 = vsub.f32 %v6872, %v7403
  %v7405 = vand.u32 %v7404, 4294901760
  %7406 = vmatpush1.msra.mxu0 %v7405
  %7407 = vmatprep.subr.mxu0 0.0
  %v7408 = vand.u32 %v6873, 4294901760
  %v7409 = vsub.f32 %v6873, %v7408
  %v7410 = vand.u32 %v7409, 4294901760
  %7411 = vmatpush1.msra.mxu0 %v7410
  %7412 = vmatprep.subr.mxu0 0.0
  %v7413 = vand.u32 %v6874, 4294901760
  %v7414 = vsub.f32 %v6874, %v7413
  %v7415 = vand.u32 %v7414, 4294901760
  %7416 = vmatpush1.msra.mxu0 %v7415
  %7417 = vmatprep.subr.mxu0 0.0
  %v7418 = vand.u32 %v6875, 4294901760
  %v7419 = vsub.f32 %v6875, %v7418
  %v7420 = vand.u32 %v7419, 4294901760
  %7421 = vmatpush1.msra.mxu0 %v7420
  %7422 = vmatprep.subr.mxu0 0.0
  %v7423 = vand.u32 %v6876, 4294901760
  %v7424 = vsub.f32 %v6876, %v7423
  %v7425 = vand.u32 %v7424, 4294901760
  %7426 = vmatpush1.msra.mxu0 %v7425
  %7427 = vmatprep.subr.mxu0 0.0
  %v7428 = vand.u32 %v6877, 4294901760
  %v7429 = vsub.f32 %v6877, %v7428
  %v7430 = vand.u32 %v7429, 4294901760
  %7431 = vmatpush1.msra.mxu0 %v7430
  %7432 = vmatprep.subr.mxu0 0.0
  %7433 = vmatpush1.msra.mxu0 0.0
  %7434 = vmatprep.subr.mxu0 0.0
  %7435 = vmatpush1.msra.mxu0 0.0
  %7436 = vmatprep.subr.mxu0 0.0
  %7437 = vmatpush1.msra.mxu0 0.0
  %7438 = vmatprep.subr.mxu0 0.0
  %7439 = vmatpush1.msra.mxu0 0.0
  %7440 = vmatprep.subr.mxu0 0.0
  %7441 = vmatpush1.msra.mxu0 0.0
  %7442 = vmatprep.subr.mxu0 0.0
  %7443 = vmatpush1.msra.mxu0 0.0
  %7444 = vmatprep.subr.mxu0 0.0
  %7445 = vmatpush1.msra.mxu0 0.0
  %7446 = vmatprep.subr.mxu0 0.0
  %7447 = vmatpush1.msra.mxu0 0.0
  %7448 = vmatprep.subr.mxu0 0.0
  %7449 = vmatpush1.msra.mxu0 0.0
  %7450 = vmatprep.subr.mxu0 0.0
  %7451 = vmatpush1.msra.mxu0 0.0
  %7452 = vmatprep.subr.mxu0 0.0
  %7453 = vmatpush1.msra.mxu0 0.0
  %7454 = vmatprep.subr.mxu0 0.0
  %7455 = vmatpush1.msra.mxu0 0.0
  %7456 = vmatprep.subr.mxu0 0.0
  %7457 = vmatpush1.msra.mxu0 0.0
  %7458 = vmatprep.subr.mxu0 0.0
  %7459 = vmatpush1.msra.mxu0 0.0
  %v7460 = vand.u32 %v5477, 4294901760
  %7461 = vmatprep.mubr.f32.mxu0 %v7460
  %v7462 = vand.u32 %v5455, 4294901760
  %7463 = vmatmul.mubr.f32.gmra.mrb[0].mxu0 %v7462
  %v7464 = vpop.f32.mrb[0].mxu0
  %v7465 = vadd.f32 %v7339, %v7464
  %v7466 = vpop.f32.mrb[0].mxu0
  %7467 = vdwg.mxu0
  %7468 = vmatprep.subr.mxu0 0.0
  %v7469 = vand.u32 %v6860, 4294901760
  %7470 = vmatpush1.msra.mxu0 %v7469
  %7471 = vmatprep.subr.mxu0 0.0
  %v7472 = vand.u32 %v6861, 4294901760
  %7473 = vmatpush1.msra.mxu0 %v7472
  %7474 = vmatprep.subr.mxu0 0.0
  %v7475 = vand.u32 %v6862, 4294901760
  %7476 = vmatpush1.msra.mxu0 %v7475
  %7477 = vmatprep.subr.mxu0 0.0
  %v7478 = vand.u32 %v6863, 4294901760
  %7479 = vmatpush1.msra.mxu0 %v7478
  %7480 = vmatprep.subr.mxu0 0.0
  %v7481 = vand.u32 %v6864, 4294901760
  %7482 = vmatpush1.msra.mxu0 %v7481
  %7483 = vmatprep.subr.mxu0 0.0
  %v7484 = vand.u32 %v6865, 4294901760
  %7485 = vmatpush1.msra.mxu0 %v7484
  %7486 = vmatprep.subr.mxu0 0.0
  %v7487 = vand.u32 %v6866, 4294901760
  %7488 = vmatpush1.msra.mxu0 %v7487
  %7489 = vmatprep.subr.mxu0 0.0
  %v7490 = vand.u32 %v6867, 4294901760
  %7491 = vmatpush1.msra.mxu0 %v7490
  %7492 = vmatprep.subr.mxu0 0.0
  %v7493 = vand.u32 %v6868, 4294901760
  %7494 = vmatpush1.msra.mxu0 %v7493
  %7495 = vmatprep.subr.mxu0 0.0
  %v7496 = vand.u32 %v6869, 4294901760
  %7497 = vmatpush1.msra.mxu0 %v7496
  %7498 = vmatprep.subr.mxu0 0.0
  %v7499 = vand.u32 %v6870, 4294901760
  %7500 = vmatpush1.msra.mxu0 %v7499
  %7501 = vmatprep.subr.mxu0 0.0
  %v7502 = vand.u32 %v6871, 4294901760
  %7503 = vmatpush1.msra.mxu0 %v7502
  %7504 = vmatprep.subr.mxu0 0.0
  %v7505 = vand.u32 %v6872, 4294901760
  %7506 = vmatpush1.msra.mxu0 %v7505
  %7507 = vmatprep.subr.mxu0 0.0
  %v7508 = vand.u32 %v6873, 4294901760
  %7509 = vmatpush1.msra.mxu0 %v7508
  %7510 = vmatprep.subr.mxu0 0.0
  %v7511 = vand.u32 %v6874, 4294901760
  %7512 = vmatpush1.msra.mxu0 %v7511
  %7513 = vmatprep.subr.mxu0 0.0
  %v7514 = vand.u32 %v6875, 4294901760
  %7515 = vmatpush1.msra.mxu0 %v7514
  %7516 = vmatprep.subr.mxu0 0.0
  %v7517 = vand.u32 %v6876, 4294901760
  %7518 = vmatpush1.msra.mxu0 %v7517
  %7519 = vmatprep.subr.mxu0 0.0
  %v7520 = vand.u32 %v6877, 4294901760
  %7521 = vmatpush1.msra.mxu0 %v7520
  %7522 = vmatprep.subr.mxu0 0.0
  %7523 = vmatpush1.msra.mxu0 0.0
  %7524 = vmatprep.subr.mxu0 0.0
  %7525 = vmatpush1.msra.mxu0 0.0
  %7526 = vmatprep.subr.mxu0 0.0
  %7527 = vmatpush1.msra.mxu0 0.0
  %7528 = vmatprep.subr.mxu0 0.0
  %7529 = vmatpush1.msra.mxu0 0.0
  %7530 = vmatprep.subr.mxu0 0.0
  %7531 = vmatpush1.msra.mxu0 0.0
  %7532 = vmatprep.subr.mxu0 0.0
  %7533 = vmatpush1.msra.mxu0 0.0
  %7534 = vmatprep.subr.mxu0 0.0
  %7535 = vmatpush1.msra.mxu0 0.0
  %7536 = vmatprep.subr.mxu0 0.0
  %7537 = vmatpush1.msra.mxu0 0.0
  %7538 = vmatprep.subr.mxu0 0.0
  %7539 = vmatpush1.msra.mxu0 0.0
  %7540 = vmatprep.subr.mxu0 0.0
  %7541 = vmatpush1.msra.mxu0 0.0
  %7542 = vmatprep.subr.mxu0 0.0
  %7543 = vmatpush1.msra.mxu0 0.0
  %7544 = vmatprep.subr.mxu0 0.0
  %7545 = vmatpush1.msra.mxu0 0.0
  %7546 = vmatprep.subr.mxu0 0.0
  %7547 = vmatpush1.msra.mxu0 0.0
  %7548 = vmatprep.subr.mxu0 0.0
  %7549 = vmatpush1.msra.mxu0 0.0
  %v7550 = vand.u32 %v5477, 4294901760
  %7551 = vmatprep.mubr.f32.mxu0 %v7550
  %v7552 = vand.u32 %v5455, 4294901760
  %7553 = vmatmul.mubr.f32.gmra.mrb[0].mxu0 %v7552
  %v7554 = vpop.f32.mrb[0].mxu0
  %v7555 = vadd.f32 %v7465, %v7554
  %v7556 = vpop.f32.mrb[0].mxu0
  %7557 = vdwg.mxu0
  %v7558 = vmax.f32 %v6858, %v7555
  %s7559 = scalar_lea.vmem %s3, 432
  %v7560 = vld [vmem:[%s7559] sm:$0xff]
  %v7561 = vld [vmem:[%s7559 + $0x8] sm:$0xff]
  %v7562 = vld [vmem:[%s7559 + $0x10] sm:$0xff]
  %v7563 = vld [vmem:[%s7559 + $0x18] sm:$0xff]
  %v7564 = vld [vmem:[%s7559 + $0x20] sm:$0xff]
  %v7565 = vld [vmem:[%s7559 + $0x28] sm:$0xff]
  %v7566 = vld [vmem:[%s7559 + $0x30] sm:$0xff]
  %v7567 = vld [vmem:[%s7559 + $0x38] sm:$0xff]
  %v7568 = vld [vmem:[%s7559 + $0x40] sm:$0xff]
  %v7569 = vld [vmem:[%s7559 + $0x48] sm:$0xff]
  %v7570 = vld [vmem:[%s7559 + $0x50] sm:$0xff]
  %v7571 = vld [vmem:[%s7559 + $0x58] sm:$0xff]
  %v7572 = vld [vmem:[%s7559 + $0x60] sm:$0xff]
  %v7573 = vld [vmem:[%s7559 + $0x68] sm:$0xff]
  %v7574 = vld [vmem:[%s7559 + $0x70] sm:$0xff]
  %v7575 = vld [vmem:[%s7559 + $0x78] sm:$0xff]
  %v7576 = vld [vmem:[%s7559 + $0x80] sm:$0xff]
  %v7577 = vld [vmem:[%s7559 + $0x88] sm:$0xff]
  %7578 = vmatprep.subr.mxu0 0.0
  %v7579 = vand.u32 %v7560, 4294901760
  %7580 = vmatpush1.msra.mxu0 %v7579
  %7581 = vmatprep.subr.mxu0 0.0
  %v7582 = vand.u32 %v7561, 4294901760
  %7583 = vmatpush1.msra.mxu0 %v7582
  %7584 = vmatprep.subr.mxu0 0.0
  %v7585 = vand.u32 %v7562, 4294901760
  %7586 = vmatpush1.msra.mxu0 %v7585
  %7587 = vmatprep.subr.mxu0 0.0
  %v7588 = vand.u32 %v7563, 4294901760
  %7589 = vmatpush1.msra.mxu0 %v7588
  %7590 = vmatprep.subr.mxu0 0.0
  %v7591 = vand.u32 %v7564, 4294901760
  %7592 = vmatpush1.msra.mxu0 %v7591
  %7593 = vmatprep.subr.mxu0 0.0
  %v7594 = vand.u32 %v7565, 4294901760
  %7595 = vmatpush1.msra.mxu0 %v7594
  %7596 = vmatprep.subr.mxu0 0.0
  %v7597 = vand.u32 %v7566, 4294901760
  %7598 = vmatpush1.msra.mxu0 %v7597
  %7599 = vmatprep.subr.mxu0 0.0
  %v7600 = vand.u32 %v7567, 4294901760
  %7601 = vmatpush1.msra.mxu0 %v7600
  %7602 = vmatprep.subr.mxu0 0.0
  %v7603 = vand.u32 %v7568, 4294901760
  %7604 = vmatpush1.msra.mxu0 %v7603
  %7605 = vmatprep.subr.mxu0 0.0
  %v7606 = vand.u32 %v7569, 4294901760
  %7607 = vmatpush1.msra.mxu0 %v7606
  %7608 = vmatprep.subr.mxu0 0.0
  %v7609 = vand.u32 %v7570, 4294901760
  %7610 = vmatpush1.msra.mxu0 %v7609
  %7611 = vmatprep.subr.mxu0 0.0
  %v7612 = vand.u32 %v7571, 4294901760
  %7613 = vmatpush1.msra.mxu0 %v7612
  %7614 = vmatprep.subr.mxu0 0.0
  %v7615 = vand.u32 %v7572, 4294901760
  %7616 = vmatpush1.msra.mxu0 %v7615
  %7617 = vmatprep.subr.mxu0 0.0
  %v7618 = vand.u32 %v7573, 4294901760
  %7619 = vmatpush1.msra.mxu0 %v7618
  %7620 = vmatprep.subr.mxu0 0.0
  %v7621 = vand.u32 %v7574, 4294901760
  %7622 = vmatpush1.msra.mxu0 %v7621
  %7623 = vmatprep.subr.mxu0 0.0
  %v7624 = vand.u32 %v7575, 4294901760
  %7625 = vmatpush1.msra.mxu0 %v7624
  %7626 = vmatprep.subr.mxu0 0.0
  %v7627 = vand.u32 %v7576, 4294901760
  %7628 = vmatpush1.msra.mxu0 %v7627
  %7629 = vmatprep.subr.mxu0 0.0
  %v7630 = vand.u32 %v7577, 4294901760
  %7631 = vmatpush1.msra.mxu0 %v7630
  %7632 = vmatprep.subr.mxu0 0.0
  %7633 = vmatpush1.msra.mxu0 0.0
  %7634 = vmatprep.subr.mxu0 0.0
  %7635 = vmatpush1.msra.mxu0 0.0
  %7636 = vmatprep.subr.mxu0 0.0
  %7637 = vmatpush1.msra.mxu0 0.0
  %7638 = vmatprep.subr.mxu0 0.0
  %7639 = vmatpush1.msra.mxu0 0.0
  %7640 = vmatprep.subr.mxu0 0.0
  %7641 = vmatpush1.msra.mxu0 0.0
  %7642 = vmatprep.subr.mxu0 0.0
  %7643 = vmatpush1.msra.mxu0 0.0
  %7644 = vmatprep.subr.mxu0 0.0
  %7645 = vmatpush1.msra.mxu0 0.0
  %7646 = vmatprep.subr.mxu0 0.0
  %7647 = vmatpush1.msra.mxu0 0.0
  %7648 = vmatprep.subr.mxu0 0.0
  %7649 = vmatpush1.msra.mxu0 0.0
  %7650 = vmatprep.subr.mxu0 0.0
  %7651 = vmatpush1.msra.mxu0 0.0
  %7652 = vmatprep.subr.mxu0 0.0
  %7653 = vmatpush1.msra.mxu0 0.0
  %7654 = vmatprep.subr.mxu0 0.0
  %7655 = vmatpush1.msra.mxu0 0.0
  %7656 = vmatprep.subr.mxu0 0.0
  %7657 = vmatpush1.msra.mxu0 0.0
  %7658 = vmatprep.subr.mxu0 0.0
  %7659 = vmatpush1.msra.mxu0 0.0
  %v7660 = vand.u32 %v5477, 4294901760
  %v7661 = vsub.f32 %v5477, %v7660
  %v7662 = vand.u32 %v7661, 4294901760
  %v7663 = vsub.f32 %v7661, %v7662
  %v7664 = vand.u32 %v7663, 4294901760
  %7665 = vmatprep.mubr.f32.mxu0 %v7664
  %v7666 = vand.u32 %v5455, 4294901760
  %v7667 = vsub.f32 %v5455, %v7666
  %v7668 = vand.u32 %v7667, 4294901760
  %v7669 = vsub.f32 %v7667, %v7668
  %v7670 = vand.u32 %v7669, 4294901760
  %7671 = vmatmul.mubr.f32.gmra.mrb[0].mxu0 %v7670
  %v7672 = vpop.f32.mrb[0].mxu0
  %v7673 = vadd.f32 0.0, %v7672
  %v7674 = vpop.f32.mrb[0].mxu0
  %7675 = vdwg.mxu0
  %7676 = vmatprep.subr.mxu0 0.0
  %v7677 = vand.u32 %v7560, 4294901760
  %v7678 = vsub.f32 %v7560, %v7677
  %v7679 = vand.u32 %v7678, 4294901760
  %v7680 = vsub.f32 %v7678, %v7679
  %v7681 = vand.u32 %v7680, 4294901760
  %7682 = vmatpush1.msra.mxu0 %v7681
  %7683 = vmatprep.subr.mxu0 0.0
  %v7684 = vand.u32 %v7561, 4294901760
  %v7685 = vsub.f32 %v7561, %v7684
  %v7686 = vand.u32 %v7685, 4294901760
  %v7687 = vsub.f32 %v7685, %v7686
  %v7688 = vand.u32 %v7687, 4294901760
  %7689 = vmatpush1.msra.mxu0 %v7688
  %7690 = vmatprep.subr.mxu0 0.0
  %v7691 = vand.u32 %v7562, 4294901760
  %v7692 = vsub.f32 %v7562, %v7691
  %v7693 = vand.u32 %v7692, 4294901760
  %v7694 = vsub.f32 %v7692, %v7693
  %v7695 = vand.u32 %v7694, 4294901760
  %7696 = vmatpush1.msra.mxu0 %v7695
  %7697 = vmatprep.subr.mxu0 0.0
  %v7698 = vand.u32 %v7563, 4294901760
  %v7699 = vsub.f32 %v7563, %v7698
  %v7700 = vand.u32 %v7699, 4294901760
  %v7701 = vsub.f32 %v7699, %v7700
  %v7702 = vand.u32 %v7701, 4294901760
  %7703 = vmatpush1.msra.mxu0 %v7702
  %7704 = vmatprep.subr.mxu0 0.0
  %v7705 = vand.u32 %v7564, 4294901760
  %v7706 = vsub.f32 %v7564, %v7705
  %v7707 = vand.u32 %v7706, 4294901760
  %v7708 = vsub.f32 %v7706, %v7707
  %v7709 = vand.u32 %v7708, 4294901760
  %7710 = vmatpush1.msra.mxu0 %v7709
  %7711 = vmatprep.subr.mxu0 0.0
  %v7712 = vand.u32 %v7565, 4294901760
  %v7713 = vsub.f32 %v7565, %v7712
  %v7714 = vand.u32 %v7713, 4294901760
  %v7715 = vsub.f32 %v7713, %v7714
  %v7716 = vand.u32 %v7715, 4294901760
  %7717 = vmatpush1.msra.mxu0 %v7716
  %7718 = vmatprep.subr.mxu0 0.0
  %v7719 = vand.u32 %v7566, 4294901760
  %v7720 = vsub.f32 %v7566, %v7719
  %v7721 = vand.u32 %v7720, 4294901760
  %v7722 = vsub.f32 %v7720, %v7721
  %v7723 = vand.u32 %v7722, 4294901760
  %7724 = vmatpush1.msra.mxu0 %v7723
  %7725 = vmatprep.subr.mxu0 0.0
  %v7726 = vand.u32 %v7567, 4294901760
  %v7727 = vsub.f32 %v7567, %v7726
  %v7728 = vand.u32 %v7727, 4294901760
  %v7729 = vsub.f32 %v7727, %v7728
  %v7730 = vand.u32 %v7729, 4294901760
  %7731 = vmatpush1.msra.mxu0 %v7730
  %7732 = vmatprep.subr.mxu0 0.0
  %v7733 = vand.u32 %v7568, 4294901760
  %v7734 = vsub.f32 %v7568, %v7733
  %v7735 = vand.u32 %v7734, 4294901760
  %v7736 = vsub.f32 %v7734, %v7735
  %v7737 = vand.u32 %v7736, 4294901760
  %7738 = vmatpush1.msra.mxu0 %v7737
  %7739 = vmatprep.subr.mxu0 0.0
  %v7740 = vand.u32 %v7569, 4294901760
  %v7741 = vsub.f32 %v7569, %v7740
  %v7742 = vand.u32 %v7741, 4294901760
  %v7743 = vsub.f32 %v7741, %v7742
  %v7744 = vand.u32 %v7743, 4294901760
  %7745 = vmatpush1.msra.mxu0 %v7744
  %7746 = vmatprep.subr.mxu0 0.0
  %v7747 = vand.u32 %v7570, 4294901760
  %v7748 = vsub.f32 %v7570, %v7747
  %v7749 = vand.u32 %v7748, 4294901760
  %v7750 = vsub.f32 %v7748, %v7749
  %v7751 = vand.u32 %v7750, 4294901760
  %7752 = vmatpush1.msra.mxu0 %v7751
  %7753 = vmatprep.subr.mxu0 0.0
  %v7754 = vand.u32 %v7571, 4294901760
  %v7755 = vsub.f32 %v7571, %v7754
  %v7756 = vand.u32 %v7755, 4294901760
  %v7757 = vsub.f32 %v7755, %v7756
  %v7758 = vand.u32 %v7757, 4294901760
  %7759 = vmatpush1.msra.mxu0 %v7758
  %7760 = vmatprep.subr.mxu0 0.0
  %v7761 = vand.u32 %v7572, 4294901760
  %v7762 = vsub.f32 %v7572, %v7761
  %v7763 = vand.u32 %v7762, 4294901760
  %v7764 = vsub.f32 %v7762, %v7763
  %v7765 = vand.u32 %v7764, 4294901760
  %7766 = vmatpush1.msra.mxu0 %v7765
  %7767 = vmatprep.subr.mxu0 0.0
  %v7768 = vand.u32 %v7573, 4294901760
  %v7769 = vsub.f32 %v7573, %v7768
  %v7770 = vand.u32 %v7769, 4294901760
  %v7771 = vsub.f32 %v7769, %v7770
  %v7772 = vand.u32 %v7771, 4294901760
  %7773 = vmatpush1.msra.mxu0 %v7772
  %7774 = vmatprep.subr.mxu0 0.0
  %v7775 = vand.u32 %v7574, 4294901760
  %v7776 = vsub.f32 %v7574, %v7775
  %v7777 = vand.u32 %v7776, 4294901760
  %v7778 = vsub.f32 %v7776, %v7777
  %v7779 = vand.u32 %v7778, 4294901760
  %7780 = vmatpush1.msra.mxu0 %v7779
  %7781 = vmatprep.subr.mxu0 0.0
  %v7782 = vand.u32 %v7575, 4294901760
  %v7783 = vsub.f32 %v7575, %v7782
  %v7784 = vand.u32 %v7783, 4294901760
  %v7785 = vsub.f32 %v7783, %v7784
  %v7786 = vand.u32 %v7785, 4294901760
  %7787 = vmatpush1.msra.mxu0 %v7786
  %7788 = vmatprep.subr.mxu0 0.0
  %v7789 = vand.u32 %v7576, 4294901760
  %v7790 = vsub.f32 %v7576, %v7789
  %v7791 = vand.u32 %v7790, 4294901760
  %v7792 = vsub.f32 %v7790, %v7791
  %v7793 = vand.u32 %v7792, 4294901760
  %7794 = vmatpush1.msra.mxu0 %v7793
  %7795 = vmatprep.subr.mxu0 0.0
  %v7796 = vand.u32 %v7577, 4294901760
  %v7797 = vsub.f32 %v7577, %v7796
  %v7798 = vand.u32 %v7797, 4294901760
  %v7799 = vsub.f32 %v7797, %v7798
  %v7800 = vand.u32 %v7799, 4294901760
  %7801 = vmatpush1.msra.mxu0 %v7800
  %7802 = vmatprep.subr.mxu0 0.0
  %7803 = vmatpush1.msra.mxu0 0.0
  %7804 = vmatprep.subr.mxu0 0.0
  %7805 = vmatpush1.msra.mxu0 0.0
  %7806 = vmatprep.subr.mxu0 0.0
  %7807 = vmatpush1.msra.mxu0 0.0
  %7808 = vmatprep.subr.mxu0 0.0
  %7809 = vmatpush1.msra.mxu0 0.0
  %7810 = vmatprep.subr.mxu0 0.0
  %7811 = vmatpush1.msra.mxu0 0.0
  %7812 = vmatprep.subr.mxu0 0.0
  %7813 = vmatpush1.msra.mxu0 0.0
  %7814 = vmatprep.subr.mxu0 0.0
  %7815 = vmatpush1.msra.mxu0 0.0
  %7816 = vmatprep.subr.mxu0 0.0
  %7817 = vmatpush1.msra.mxu0 0.0
  %7818 = vmatprep.subr.mxu0 0.0
  %7819 = vmatpush1.msra.mxu0 0.0
  %7820 = vmatprep.subr.mxu0 0.0
  %7821 = vmatpush1.msra.mxu0 0.0
  %7822 = vmatprep.subr.mxu0 0.0
  %7823 = vmatpush1.msra.mxu0 0.0
  %7824 = vmatprep.subr.mxu0 0.0
  %7825 = vmatpush1.msra.mxu0 0.0
  %7826 = vmatprep.subr.mxu0 0.0
  %7827 = vmatpush1.msra.mxu0 0.0
  %7828 = vmatprep.subr.mxu0 0.0
  %7829 = vmatpush1.msra.mxu0 0.0
  %v7830 = vand.u32 %v5477, 4294901760
  %7831 = vmatprep.mubr.f32.mxu0 %v7830
  %v7832 = vand.u32 %v5455, 4294901760
  %7833 = vmatmul.mubr.f32.gmra.mrb[0].mxu0 %v7832
  %v7834 = vpop.f32.mrb[0].mxu0
  %v7835 = vadd.f32 %v7673, %v7834
  %v7836 = vpop.f32.mrb[0].mxu0
  %7837 = vdwg.mxu0
  %7838 = vmatprep.subr.mxu0 0.0
  %v7839 = vand.u32 %v7560, 4294901760
  %v7840 = vsub.f32 %v7560, %v7839
  %7841 = vmatpush1.msra.mxu0 %v7840
  %7842 = vmatprep.subr.mxu0 0.0
  %v7843 = vand.u32 %v7561, 4294901760
  %v7844 = vsub.f32 %v7561, %v7843
  %7845 = vmatpush1.msra.mxu0 %v7844
  %7846 = vmatprep.subr.mxu0 0.0
  %v7847 = vand.u32 %v7562, 4294901760
  %v7848 = vsub.f32 %v7562, %v7847
  %7849 = vmatpush1.msra.mxu0 %v7848
  %7850 = vmatprep.subr.mxu0 0.0
  %v7851 = vand.u32 %v7563, 4294901760
  %v7852 = vsub.f32 %v7563, %v7851
  %7853 = vmatpush1.msra.mxu0 %v7852
  %7854 = vmatprep.subr.mxu0 0.0
  %v7855 = vand.u32 %v7564, 4294901760
  %v7856 = vsub.f32 %v7564, %v7855
  %7857 = vmatpush1.msra.mxu0 %v7856
  %7858 = vmatprep.subr.mxu0 0.0
  %v7859 = vand.u32 %v7565, 4294901760
  %v7860 = vsub.f32 %v7565, %v7859
  %7861 = vmatpush1.msra.mxu0 %v7860
  %7862 = vmatprep.subr.mxu0 0.0
  %v7863 = vand.u32 %v7566, 4294901760
  %v7864 = vsub.f32 %v7566, %v7863
  %7865 = vmatpush1.msra.mxu0 %v7864
  %7866 = vmatprep.subr.mxu0 0.0
  %v7867 = vand.u32 %v7567, 4294901760
  %v7868 = vsub.f32 %v7567, %v7867
  %7869 = vmatpush1.msra.mxu0 %v7868
  %7870 = vmatprep.subr.mxu0 0.0
  %v7871 = vand.u32 %v7568, 4294901760
  %v7872 = vsub.f32 %v7568, %v7871
  %7873 = vmatpush1.msra.mxu0 %v7872
  %7874 = vmatprep.subr.mxu0 0.0
  %v7875 = vand.u32 %v7569, 4294901760
  %v7876 = vsub.f32 %v7569, %v7875
  %7877 = vmatpush1.msra.mxu0 %v7876
  %7878 = vmatprep.subr.mxu0 0.0
  %v7879 = vand.u32 %v7570, 4294901760
  %v7880 = vsub.f32 %v7570, %v7879
  %7881 = vmatpush1.msra.mxu0 %v7880
  %7882 = vmatprep.subr.mxu0 0.0
  %v7883 = vand.u32 %v7571, 4294901760
  %v7884 = vsub.f32 %v7571, %v7883
  %7885 = vmatpush1.msra.mxu0 %v7884
  %7886 = vmatprep.subr.mxu0 0.0
  %v7887 = vand.u32 %v7572, 4294901760
  %v7888 = vsub.f32 %v7572, %v7887
  %7889 = vmatpush1.msra.mxu0 %v7888
  %7890 = vmatprep.subr.mxu0 0.0
  %v7891 = vand.u32 %v7573, 4294901760
  %v7892 = vsub.f32 %v7573, %v7891
  %7893 = vmatpush1.msra.mxu0 %v7892
  %7894 = vmatprep.subr.mxu0 0.0
  %v7895 = vand.u32 %v7574, 4294901760
  %v7896 = vsub.f32 %v7574, %v7895
  %7897 = vmatpush1.msra.mxu0 %v7896
  %7898 = vmatprep.subr.mxu0 0.0
  %v7899 = vand.u32 %v7575, 4294901760
  %v7900 = vsub.f32 %v7575, %v7899
  %7901 = vmatpush1.msra.mxu0 %v7900
  %7902 = vmatprep.subr.mxu0 0.0
  %v7903 = vand.u32 %v7576, 4294901760
  %v7904 = vsub.f32 %v7576, %v7903
  %7905 = vmatpush1.msra.mxu0 %v7904
  %7906 = vmatprep.subr.mxu0 0.0
  %v7907 = vand.u32 %v7577, 4294901760
  %v7908 = vsub.f32 %v7577, %v7907
  %7909 = vmatpush1.msra.mxu0 %v7908
  %7910 = vmatprep.subr.mxu0 0.0
  %7911 = vmatpush1.msra.mxu0 0.0
  %7912 = vmatprep.subr.mxu0 0.0
  %7913 = vmatpush1.msra.mxu0 0.0
  %7914 = vmatprep.subr.mxu0 0.0
  %7915 = vmatpush1.msra.mxu0 0.0
  %7916 = vmatprep.subr.mxu0 0.0
  %7917 = vmatpush1.msra.mxu0 0.0
  %7918 = vmatprep.subr.mxu0 0.0
  %7919 = vmatpush1.msra.mxu0 0.0
  %7920 = vmatprep.subr.mxu0 0.0
  %7921 = vmatpush1.msra.mxu0 0.0
  %7922 = vmatprep.subr.mxu0 0.0
  %7923 = vmatpush1.msra.mxu0 0.0
  %7924 = vmatprep.subr.mxu0 0.0
  %7925 = vmatpush1.msra.mxu0 0.0
  %7926 = vmatprep.subr.mxu0 0.0
  %7927 = vmatpush1.msra.mxu0 0.0
  %7928 = vmatprep.subr.mxu0 0.0
  %7929 = vmatpush1.msra.mxu0 0.0
  %7930 = vmatprep.subr.mxu0 0.0
  %7931 = vmatpush1.msra.mxu0 0.0
  %7932 = vmatprep.subr.mxu0 0.0
  %7933 = vmatpush1.msra.mxu0 0.0
  %7934 = vmatprep.subr.mxu0 0.0
  %7935 = vmatpush1.msra.mxu0 0.0
  %7936 = vmatprep.subr.mxu0 0.0
  %7937 = vmatpush1.msra.mxu0 0.0
  %v7938 = vand.u32 %v5477, 4294901760
  %v7939 = vsub.f32 %v5477, %v7938
  %7940 = vmatprep.mubr.f32.mxu0 %v7939
  %v7941 = vand.u32 %v5455, 4294901760
  %v7942 = vsub.f32 %v5455, %v7941
  %7943 = vmatmul.mubr.f32.gmra.mrb[0].mxu0 %v7942
  %v7944 = vpop.f32.mrb[0].mxu0
  %v7945 = vadd.f32 %v7835, %v7944
  %v7946 = vpop.f32.mrb[0].mxu0
  %7947 = vdwg.mxu0
  %7948 = vmatprep.subr.mxu0 0.0
  %v7949 = vand.u32 %v7560, 4294901760
  %7950 = vmatpush1.msra.mxu0 %v7949
  %7951 = vmatprep.subr.mxu0 0.0
  %v7952 = vand.u32 %v7561, 4294901760
  %7953 = vmatpush1.msra.mxu0 %v7952
  %7954 = vmatprep.subr.mxu0 0.0
  %v7955 = vand.u32 %v7562, 4294901760
  %7956 = vmatpush1.msra.mxu0 %v7955
  %7957 = vmatprep.subr.mxu0 0.0
  %v7958 = vand.u32 %v7563, 4294901760
  %7959 = vmatpush1.msra.mxu0 %v7958
  %7960 = vmatprep.subr.mxu0 0.0
  %v7961 = vand.u32 %v7564, 4294901760
  %7962 = vmatpush1.msra.mxu0 %v7961
  %7963 = vmatprep.subr.mxu0 0.0
  %v7964 = vand.u32 %v7565, 4294901760
  %7965 = vmatpush1.msra.mxu0 %v7964
  %7966 = vmatprep.subr.mxu0 0.0
  %v7967 = vand.u32 %v7566, 4294901760
  %7968 = vmatpush1.msra.mxu0 %v7967
  %7969 = vmatprep.subr.mxu0 0.0
  %v7970 = vand.u32 %v7567, 4294901760
  %7971 = vmatpush1.msra.mxu0 %v7970
  %7972 = vmatprep.subr.mxu0 0.0
  %v7973 = vand.u32 %v7568, 4294901760
  %7974 = vmatpush1.msra.mxu0 %v7973
  %7975 = vmatprep.subr.mxu0 0.0
  %v7976 = vand.u32 %v7569, 4294901760
  %7977 = vmatpush1.msra.mxu0 %v7976
  %7978 = vmatprep.subr.mxu0 0.0
  %v7979 = vand.u32 %v7570, 4294901760
  %7980 = vmatpush1.msra.mxu0 %v7979
  %7981 = vmatprep.subr.mxu0 0.0
  %v7982 = vand.u32 %v7571, 4294901760
  %7983 = vmatpush1.msra.mxu0 %v7982
  %7984 = vmatprep.subr.mxu0 0.0
  %v7985 = vand.u32 %v7572, 4294901760
  %7986 = vmatpush1.msra.mxu0 %v7985
  %7987 = vmatprep.subr.mxu0 0.0
  %v7988 = vand.u32 %v7573, 4294901760
  %7989 = vmatpush1.msra.mxu0 %v7988
  %7990 = vmatprep.subr.mxu0 0.0
  %v7991 = vand.u32 %v7574, 4294901760
  %7992 = vmatpush1.msra.mxu0 %v7991
  %7993 = vmatprep.subr.mxu0 0.0
  %v7994 = vand.u32 %v7575, 4294901760
  %7995 = vmatpush1.msra.mxu0 %v7994
  %7996 = vmatprep.subr.mxu0 0.0
  %v7997 = vand.u32 %v7576, 4294901760
  %7998 = vmatpush1.msra.mxu0 %v7997
  %7999 = vmatprep.subr.mxu0 0.0
  %v8000 = vand.u32 %v7577, 4294901760
  %8001 = vmatpush1.msra.mxu0 %v8000
  %8002 = vmatprep.subr.mxu0 0.0
  %8003 = vmatpush1.msra.mxu0 0.0
  %8004 = vmatprep.subr.mxu0 0.0
  %8005 = vmatpush1.msra.mxu0 0.0
  %8006 = vmatprep.subr.mxu0 0.0
  %8007 = vmatpush1.msra.mxu0 0.0
  %8008 = vmatprep.subr.mxu0 0.0
  %8009 = vmatpush1.msra.mxu0 0.0
  %8010 = vmatprep.subr.mxu0 0.0
  %8011 = vmatpush1.msra.mxu0 0.0
  %8012 = vmatprep.subr.mxu0 0.0
  %8013 = vmatpush1.msra.mxu0 0.0
  %8014 = vmatprep.subr.mxu0 0.0
  %8015 = vmatpush1.msra.mxu0 0.0
  %8016 = vmatprep.subr.mxu0 0.0
  %8017 = vmatpush1.msra.mxu0 0.0
  %8018 = vmatprep.subr.mxu0 0.0
  %8019 = vmatpush1.msra.mxu0 0.0
  %8020 = vmatprep.subr.mxu0 0.0
  %8021 = vmatpush1.msra.mxu0 0.0
  %8022 = vmatprep.subr.mxu0 0.0
  %8023 = vmatpush1.msra.mxu0 0.0
  %8024 = vmatprep.subr.mxu0 0.0
  %8025 = vmatpush1.msra.mxu0 0.0
  %8026 = vmatprep.subr.mxu0 0.0
  %8027 = vmatpush1.msra.mxu0 0.0
  %8028 = vmatprep.subr.mxu0 0.0
  %8029 = vmatpush1.msra.mxu0 0.0
  %v8030 = vand.u32 %v5477, 4294901760
  %v8031 = vsub.f32 %v5477, %v8030
  %v8032 = vand.u32 %v8031, 4294901760
  %8033 = vmatprep.mubr.f32.mxu0 %v8032
  %v8034 = vand.u32 %v5455, 4294901760
  %v8035 = vsub.f32 %v5455, %v8034
  %v8036 = vand.u32 %v8035, 4294901760
  %8037 = vmatmul.mubr.f32.gmra.mrb[0].mxu0 %v8036
  %v8038 = vpop.f32.mrb[0].mxu0
  %v8039 = vadd.f32 %v7945, %v8038
  %v8040 = vpop.f32.mrb[0].mxu0
  %8041 = vdwg.mxu0
  %8042 = vmatprep.subr.mxu0 0.0
  %v8043 = vand.u32 %v7560, 4294901760
  %v8044 = vsub.f32 %v7560, %v8043
  %v8045 = vand.u32 %v8044, 4294901760
  %8046 = vmatpush1.msra.mxu0 %v8045
  %8047 = vmatprep.subr.mxu0 0.0
  %v8048 = vand.u32 %v7561, 4294901760
  %v8049 = vsub.f32 %v7561, %v8048
  %v8050 = vand.u32 %v8049, 4294901760
  %8051 = vmatpush1.msra.mxu0 %v8050
  %8052 = vmatprep.subr.mxu0 0.0
  %v8053 = vand.u32 %v7562, 4294901760
  %v8054 = vsub.f32 %v7562, %v8053
  %v8055 = vand.u32 %v8054, 4294901760
  %8056 = vmatpush1.msra.mxu0 %v8055
  %8057 = vmatprep.subr.mxu0 0.0
  %v8058 = vand.u32 %v7563, 4294901760
  %v8059 = vsub.f32 %v7563, %v8058
  %v8060 = vand.u32 %v8059, 4294901760
  %8061 = vmatpush1.msra.mxu0 %v8060
  %8062 = vmatprep.subr.mxu0 0.0
  %v8063 = vand.u32 %v7564, 4294901760
  %v8064 = vsub.f32 %v7564, %v8063
  %v8065 = vand.u32 %v8064, 4294901760
  %8066 = vmatpush1.msra.mxu0 %v8065
  %8067 = vmatprep.subr.mxu0 0.0
  %v8068 = vand.u32 %v7565, 4294901760
  %v8069 = vsub.f32 %v7565, %v8068
  %v8070 = vand.u32 %v8069, 4294901760
  %8071 = vmatpush1.msra.mxu0 %v8070
  %8072 = vmatprep.subr.mxu0 0.0
  %v8073 = vand.u32 %v7566, 4294901760
  %v8074 = vsub.f32 %v7566, %v8073
  %v8075 = vand.u32 %v8074, 4294901760
  %8076 = vmatpush1.msra.mxu0 %v8075
  %8077 = vmatprep.subr.mxu0 0.0
  %v8078 = vand.u32 %v7567, 4294901760
  %v8079 = vsub.f32 %v7567, %v8078
  %v8080 = vand.u32 %v8079, 4294901760
  %8081 = vmatpush1.msra.mxu0 %v8080
  %8082 = vmatprep.subr.mxu0 0.0
  %v8083 = vand.u32 %v7568, 4294901760
  %v8084 = vsub.f32 %v7568, %v8083
  %v8085 = vand.u32 %v8084, 4294901760
  %8086 = vmatpush1.msra.mxu0 %v8085
  %8087 = vmatprep.subr.mxu0 0.0
  %v8088 = vand.u32 %v7569, 4294901760
  %v8089 = vsub.f32 %v7569, %v8088
  %v8090 = vand.u32 %v8089, 4294901760
  %8091 = vmatpush1.msra.mxu0 %v8090
  %8092 = vmatprep.subr.mxu0 0.0
  %v8093 = vand.u32 %v7570, 4294901760
  %v8094 = vsub.f32 %v7570, %v8093
  %v8095 = vand.u32 %v8094, 4294901760
  %8096 = vmatpush1.msra.mxu0 %v8095
  %8097 = vmatprep.subr.mxu0 0.0
  %v8098 = vand.u32 %v7571, 4294901760
  %v8099 = vsub.f32 %v7571, %v8098
  %v8100 = vand.u32 %v8099, 4294901760
  %8101 = vmatpush1.msra.mxu0 %v8100
  %8102 = vmatprep.subr.mxu0 0.0
  %v8103 = vand.u32 %v7572, 4294901760
  %v8104 = vsub.f32 %v7572, %v8103
  %v8105 = vand.u32 %v8104, 4294901760
  %8106 = vmatpush1.msra.mxu0 %v8105
  %8107 = vmatprep.subr.mxu0 0.0
  %v8108 = vand.u32 %v7573, 4294901760
  %v8109 = vsub.f32 %v7573, %v8108
  %v8110 = vand.u32 %v8109, 4294901760
  %8111 = vmatpush1.msra.mxu0 %v8110
  %8112 = vmatprep.subr.mxu0 0.0
  %v8113 = vand.u32 %v7574, 4294901760
  %v8114 = vsub.f32 %v7574, %v8113
  %v8115 = vand.u32 %v8114, 4294901760
  %8116 = vmatpush1.msra.mxu0 %v8115
  %8117 = vmatprep.subr.mxu0 0.0
  %v8118 = vand.u32 %v7575, 4294901760
  %v8119 = vsub.f32 %v7575, %v8118
  %v8120 = vand.u32 %v8119, 4294901760
  %8121 = vmatpush1.msra.mxu0 %v8120
  %8122 = vmatprep.subr.mxu0 0.0
  %v8123 = vand.u32 %v7576, 4294901760
  %v8124 = vsub.f32 %v7576, %v8123
  %v8125 = vand.u32 %v8124, 4294901760
  %8126 = vmatpush1.msra.mxu0 %v8125
  %8127 = vmatprep.subr.mxu0 0.0
  %v8128 = vand.u32 %v7577, 4294901760
  %v8129 = vsub.f32 %v7577, %v8128
  %v8130 = vand.u32 %v8129, 4294901760
  %8131 = vmatpush1.msra.mxu0 %v8130
  %8132 = vmatprep.subr.mxu0 0.0
  %8133 = vmatpush1.msra.mxu0 0.0
  %8134 = vmatprep.subr.mxu0 0.0
  %8135 = vmatpush1.msra.mxu0 0.0
  %8136 = vmatprep.subr.mxu0 0.0
  %8137 = vmatpush1.msra.mxu0 0.0
  %8138 = vmatprep.subr.mxu0 0.0
  %8139 = vmatpush1.msra.mxu0 0.0
  %8140 = vmatprep.subr.mxu0 0.0
  %8141 = vmatpush1.msra.mxu0 0.0
  %8142 = vmatprep.subr.mxu0 0.0
  %8143 = vmatpush1.msra.mxu0 0.0
  %8144 = vmatprep.subr.mxu0 0.0
  %8145 = vmatpush1.msra.mxu0 0.0
  %8146 = vmatprep.subr.mxu0 0.0
  %8147 = vmatpush1.msra.mxu0 0.0
  %8148 = vmatprep.subr.mxu0 0.0
  %8149 = vmatpush1.msra.mxu0 0.0
  %8150 = vmatprep.subr.mxu0 0.0
  %8151 = vmatpush1.msra.mxu0 0.0
  %8152 = vmatprep.subr.mxu0 0.0
  %8153 = vmatpush1.msra.mxu0 0.0
  %8154 = vmatprep.subr.mxu0 0.0
  %8155 = vmatpush1.msra.mxu0 0.0
  %8156 = vmatprep.subr.mxu0 0.0
  %8157 = vmatpush1.msra.mxu0 0.0
  %8158 = vmatprep.subr.mxu0 0.0
  %8159 = vmatpush1.msra.mxu0 0.0
  %v8160 = vand.u32 %v5477, 4294901760
  %8161 = vmatprep.mubr.f32.mxu0 %v8160
  %v8162 = vand.u32 %v5455, 4294901760
  %8163 = vmatmul.mubr.f32.gmra.mrb[0].mxu0 %v8162
  %v8164 = vpop.f32.mrb[0].mxu0
  %v8165 = vadd.f32 %v8039, %v8164
  %v8166 = vpop.f32.mrb[0].mxu0
  %8167 = vdwg.mxu0
  %8168 = vmatprep.subr.mxu0 0.0
  %v8169 = vand.u32 %v7560, 4294901760
  %8170 = vmatpush1.msra.mxu0 %v8169
  %8171 = vmatprep.subr.mxu0 0.0
  %v8172 = vand.u32 %v7561, 4294901760
  %8173 = vmatpush1.msra.mxu0 %v8172
  %8174 = vmatprep.subr.mxu0 0.0
  %v8175 = vand.u32 %v7562, 4294901760
  %8176 = vmatpush1.msra.mxu0 %v8175
  %8177 = vmatprep.subr.mxu0 0.0
  %v8178 = vand.u32 %v7563, 4294901760
  %8179 = vmatpush1.msra.mxu0 %v8178
  %8180 = vmatprep.subr.mxu0 0.0
  %v8181 = vand.u32 %v7564, 4294901760
  %8182 = vmatpush1.msra.mxu0 %v8181
  %8183 = vmatprep.subr.mxu0 0.0
  %v8184 = vand.u32 %v7565, 4294901760
  %8185 = vmatpush1.msra.mxu0 %v8184
  %8186 = vmatprep.subr.mxu0 0.0
  %v8187 = vand.u32 %v7566, 4294901760
  %8188 = vmatpush1.msra.mxu0 %v8187
  %8189 = vmatprep.subr.mxu0 0.0
  %v8190 = vand.u32 %v7567, 4294901760
  %8191 = vmatpush1.msra.mxu0 %v8190
  %8192 = vmatprep.subr.mxu0 0.0
  %v8193 = vand.u32 %v7568, 4294901760
  %8194 = vmatpush1.msra.mxu0 %v8193
  %8195 = vmatprep.subr.mxu0 0.0
  %v8196 = vand.u32 %v7569, 4294901760
  %8197 = vmatpush1.msra.mxu0 %v8196
  %8198 = vmatprep.subr.mxu0 0.0
  %v8199 = vand.u32 %v7570, 4294901760
  %8200 = vmatpush1.msra.mxu0 %v8199
  %8201 = vmatprep.subr.mxu0 0.0
  %v8202 = vand.u32 %v7571, 4294901760
  %8203 = vmatpush1.msra.mxu0 %v8202
  %8204 = vmatprep.subr.mxu0 0.0
  %v8205 = vand.u32 %v7572, 4294901760
  %8206 = vmatpush1.msra.mxu0 %v8205
  %8207 = vmatprep.subr.mxu0 0.0
  %v8208 = vand.u32 %v7573, 4294901760
  %8209 = vmatpush1.msra.mxu0 %v8208
  %8210 = vmatprep.subr.mxu0 0.0
  %v8211 = vand.u32 %v7574, 4294901760
  %8212 = vmatpush1.msra.mxu0 %v8211
  %8213 = vmatprep.subr.mxu0 0.0
  %v8214 = vand.u32 %v7575, 4294901760
  %8215 = vmatpush1.msra.mxu0 %v8214
  %8216 = vmatprep.subr.mxu0 0.0
  %v8217 = vand.u32 %v7576, 4294901760
  %8218 = vmatpush1.msra.mxu0 %v8217
  %8219 = vmatprep.subr.mxu0 0.0
  %v8220 = vand.u32 %v7577, 4294901760
  %8221 = vmatpush1.msra.mxu0 %v8220
  %8222 = vmatprep.subr.mxu0 0.0
  %8223 = vmatpush1.msra.mxu0 0.0
  %8224 = vmatprep.subr.mxu0 0.0
  %8225 = vmatpush1.msra.mxu0 0.0
  %8226 = vmatprep.subr.mxu0 0.0
  %8227 = vmatpush1.msra.mxu0 0.0
  %8228 = vmatprep.subr.mxu0 0.0
  %8229 = vmatpush1.msra.mxu0 0.0
  %8230 = vmatprep.subr.mxu0 0.0
  %8231 = vmatpush1.msra.mxu0 0.0
  %8232 = vmatprep.subr.mxu0 0.0
  %8233 = vmatpush1.msra.mxu0 0.0
  %8234 = vmatprep.subr.mxu0 0.0
  %8235 = vmatpush1.msra.mxu0 0.0
  %8236 = vmatprep.subr.mxu0 0.0
  %8237 = vmatpush1.msra.mxu0 0.0
  %8238 = vmatprep.subr.mxu0 0.0
  %8239 = vmatpush1.msra.mxu0 0.0
  %8240 = vmatprep.subr.mxu0 0.0
  %8241 = vmatpush1.msra.mxu0 0.0
  %8242 = vmatprep.subr.mxu0 0.0
  %8243 = vmatpush1.msra.mxu0 0.0
  %8244 = vmatprep.subr.mxu0 0.0
  %8245 = vmatpush1.msra.mxu0 0.0
  %8246 = vmatprep.subr.mxu0 0.0
  %8247 = vmatpush1.msra.mxu0 0.0
  %8248 = vmatprep.subr.mxu0 0.0
  %8249 = vmatpush1.msra.mxu0 0.0
  %v8250 = vand.u32 %v5477, 4294901760
  %8251 = vmatprep.mubr.f32.mxu0 %v8250
  %v8252 = vand.u32 %v5455, 4294901760
  %8253 = vmatmul.mubr.f32.gmra.mrb[0].mxu0 %v8252
  %v8254 = vpop.f32.mrb[0].mxu0
  %v8255 = vadd.f32 %v8165, %v8254
  %v8256 = vpop.f32.mrb[0].mxu0
  %8257 = vdwg.mxu0
  %v8258 = vmax.f32 %v7558, %v8255
  %v8259 = vld [vmem:[%s4] sm:$0x1]
  %v8261 = vlaneseq
  %v8262 = vshrl.u32 %v8261, 7
  %v8263 = vsub.s32 0, %v8262
  %v8264 = vrot.slane %v8259, %v8263
  %v8266 = vadd.f32 %v8258, %v8264
  %v8267 = vmax.f32 %v8266, 0.0
  %v8268 = vld [vmem:[%s5] sm:$0xff]
  %v8269 = vld [vmem:[%s5 + $0x8] sm:$0xff]
  %v8270 = vld [vmem:[%s5 + $0x10] sm:$0xff]
  %v8271 = vld [vmem:[%s5 + $0x18] sm:$0xff]
  %v8272 = vld [vmem:[%s6] sm:$0x1]
  %v8274 = vlaneseq
  %v8275 = vshrl.u32 %v8274, 7
  %v8276 = vsub.s32 0, %v8275
  %v8277 = vrot.slane %v8272, %v8276
  %vm8279 = vcmask 261120
  %v8281 = vsel %vm8279, %v8267, 0
  %8283 = vmatprep.subr.mxu0 0.0
  %v8284 = vand.u32 %v8268, 4294901760
  %8285 = vmatpush1.msra.mxu0 %v8284
  %8286 = vmatprep.subr.mxu0 0.0
  %v8287 = vand.u32 %v8269, 4294901760
  %8288 = vmatpush1.msra.mxu0 %v8287
  %8289 = vmatprep.subr.mxu0 0.0
  %v8290 = vand.u32 %v8270, 4294901760
  %8291 = vmatpush1.msra.mxu0 %v8290
  %8292 = vmatprep.subr.mxu0 0.0
  %v8293 = vand.u32 %v8271, 4294901760
  %8294 = vmatpush1.msra.mxu0 %v8293
  %8295 = vmatprep.subr.mxu0 0.0
  %8296 = vmatpush1.msra.mxu0 0.0
  %8297 = vmatprep.subr.mxu0 0.0
  %8298 = vmatpush1.msra.mxu0 0.0
  %8299 = vmatprep.subr.mxu0 0.0
  %8300 = vmatpush1.msra.mxu0 0.0
  %8301 = vmatprep.subr.mxu0 0.0
  %8302 = vmatpush1.msra.mxu0 0.0
  %8303 = vmatprep.subr.mxu0 0.0
  %8304 = vmatpush1.msra.mxu0 0.0
  %8305 = vmatprep.subr.mxu0 0.0
  %8306 = vmatpush1.msra.mxu0 0.0
  %8307 = vmatprep.subr.mxu0 0.0
  %8308 = vmatpush1.msra.mxu0 0.0
  %8309 = vmatprep.subr.mxu0 0.0
  %8310 = vmatpush1.msra.mxu0 0.0
  %8311 = vmatprep.subr.mxu0 0.0
  %8312 = vmatpush1.msra.mxu0 0.0
  %8313 = vmatprep.subr.mxu0 0.0
  %8314 = vmatpush1.msra.mxu0 0.0
  %8315 = vmatprep.subr.mxu0 0.0
  %8316 = vmatpush1.msra.mxu0 0.0
  %8317 = vmatprep.subr.mxu0 0.0
  %8318 = vmatpush1.msra.mxu0 0.0
  %8319 = vmatprep.subr.mxu0 0.0
  %8320 = vmatpush1.msra.mxu0 0.0
  %8321 = vmatprep.subr.mxu0 0.0
  %8322 = vmatpush1.msra.mxu0 0.0
  %8323 = vmatprep.subr.mxu0 0.0
  %8324 = vmatpush1.msra.mxu0 0.0
  %8325 = vmatprep.subr.mxu0 0.0
  %8326 = vmatpush1.msra.mxu0 0.0
  %8327 = vmatprep.subr.mxu0 0.0
  %8328 = vmatpush1.msra.mxu0 0.0
  %8329 = vmatprep.subr.mxu0 0.0
  %8330 = vmatpush1.msra.mxu0 0.0
  %8331 = vmatprep.subr.mxu0 0.0
  %8332 = vmatpush1.msra.mxu0 0.0
  %8333 = vmatprep.subr.mxu0 0.0
  %8334 = vmatpush1.msra.mxu0 0.0
  %8335 = vmatprep.subr.mxu0 0.0
  %8336 = vmatpush1.msra.mxu0 0.0
  %8337 = vmatprep.subr.mxu0 0.0
  %8338 = vmatpush1.msra.mxu0 0.0
  %8339 = vmatprep.subr.mxu0 0.0
  %8340 = vmatpush1.msra.mxu0 0.0
  %8341 = vmatprep.subr.mxu0 0.0
  %8342 = vmatpush1.msra.mxu0 0.0
  %8343 = vmatprep.subr.mxu0 0.0
  %8344 = vmatpush1.msra.mxu0 0.0
  %8345 = vmatprep.subr.mxu0 0.0
  %8346 = vmatpush1.msra.mxu0 0.0
  %8347 = vmatprep.subr.mxu0 0.0
  %8348 = vmatpush1.msra.mxu0 0.0
  %8349 = vmatprep.subr.mxu0 0.0
  %8350 = vmatpush1.msra.mxu0 0.0
  %8351 = vmatprep.mubr.f32.mxu0 0.0
  %v8352 = vand.u32 %v8281, 4294901760
  %v8353 = vsub.f32 %v8281, %v8352
  %v8354 = vand.u32 %v8353, 4294901760
  %v8355 = vsub.f32 %v8353, %v8354
  %v8356 = vand.u32 %v8355, 4294901760
  %8357 = vmatmul.mubr.f32.gmra.mrb[0].mxu0 %v8356
  %v8358 = vpop.f32.mrb[0].mxu0
  %v8359 = vadd.f32 %v8277, %v8358
  %v8360 = vpop.f32.mrb[0].mxu0
  %8361 = vdwg.mxu0
  %8362 = vmatprep.subr.mxu0 0.0
  %v8363 = vand.u32 %v8268, 4294901760
  %v8364 = vsub.f32 %v8268, %v8363
  %v8365 = vand.u32 %v8364, 4294901760
  %v8366 = vsub.f32 %v8364, %v8365
  %v8367 = vand.u32 %v8366, 4294901760
  %8368 = vmatpush1.msra.mxu0 %v8367
  %8369 = vmatprep.subr.mxu0 0.0
  %v8370 = vand.u32 %v8269, 4294901760
  %v8371 = vsub.f32 %v8269, %v8370
  %v8372 = vand.u32 %v8371, 4294901760
  %v8373 = vsub.f32 %v8371, %v8372
  %v8374 = vand.u32 %v8373, 4294901760
  %8375 = vmatpush1.msra.mxu0 %v8374
  %8376 = vmatprep.subr.mxu0 0.0
  %v8377 = vand.u32 %v8270, 4294901760
  %v8378 = vsub.f32 %v8270, %v8377
  %v8379 = vand.u32 %v8378, 4294901760
  %v8380 = vsub.f32 %v8378, %v8379
  %v8381 = vand.u32 %v8380, 4294901760
  %8382 = vmatpush1.msra.mxu0 %v8381
  %8383 = vmatprep.subr.mxu0 0.0
  %v8384 = vand.u32 %v8271, 4294901760
  %v8385 = vsub.f32 %v8271, %v8384
  %v8386 = vand.u32 %v8385, 4294901760
  %v8387 = vsub.f32 %v8385, %v8386
  %v8388 = vand.u32 %v8387, 4294901760
  %8389 = vmatpush1.msra.mxu0 %v8388
  %8390 = vmatprep.subr.mxu0 0.0
  %8391 = vmatpush1.msra.mxu0 0.0
  %8392 = vmatprep.subr.mxu0 0.0
  %8393 = vmatpush1.msra.mxu0 0.0
  %8394 = vmatprep.subr.mxu0 0.0
  %8395 = vmatpush1.msra.mxu0 0.0
  %8396 = vmatprep.subr.mxu0 0.0
  %8397 = vmatpush1.msra.mxu0 0.0
  %8398 = vmatprep.subr.mxu0 0.0
  %8399 = vmatpush1.msra.mxu0 0.0
  %8400 = vmatprep.subr.mxu0 0.0
  %8401 = vmatpush1.msra.mxu0 0.0
  %8402 = vmatprep.subr.mxu0 0.0
  %8403 = vmatpush1.msra.mxu0 0.0
  %8404 = vmatprep.subr.mxu0 0.0
  %8405 = vmatpush1.msra.mxu0 0.0
  %8406 = vmatprep.subr.mxu0 0.0
  %8407 = vmatpush1.msra.mxu0 0.0
  %8408 = vmatprep.subr.mxu0 0.0
  %8409 = vmatpush1.msra.mxu0 0.0
  %8410 = vmatprep.subr.mxu0 0.0
  %8411 = vmatpush1.msra.mxu0 0.0
  %8412 = vmatprep.subr.mxu0 0.0
  %8413 = vmatpush1.msra.mxu0 0.0
  %8414 = vmatprep.subr.mxu0 0.0
  %8415 = vmatpush1.msra.mxu0 0.0
  %8416 = vmatprep.subr.mxu0 0.0
  %8417 = vmatpush1.msra.mxu0 0.0
  %8418 = vmatprep.subr.mxu0 0.0
  %8419 = vmatpush1.msra.mxu0 0.0
  %8420 = vmatprep.subr.mxu0 0.0
  %8421 = vmatpush1.msra.mxu0 0.0
  %8422 = vmatprep.subr.mxu0 0.0
  %8423 = vmatpush1.msra.mxu0 0.0
  %8424 = vmatprep.subr.mxu0 0.0
  %8425 = vmatpush1.msra.mxu0 0.0
  %8426 = vmatprep.subr.mxu0 0.0
  %8427 = vmatpush1.msra.mxu0 0.0
  %8428 = vmatprep.subr.mxu0 0.0
  %8429 = vmatpush1.msra.mxu0 0.0
  %8430 = vmatprep.subr.mxu0 0.0
  %8431 = vmatpush1.msra.mxu0 0.0
  %8432 = vmatprep.subr.mxu0 0.0
  %8433 = vmatpush1.msra.mxu0 0.0
  %8434 = vmatprep.subr.mxu0 0.0
  %8435 = vmatpush1.msra.mxu0 0.0
  %8436 = vmatprep.subr.mxu0 0.0
  %8437 = vmatpush1.msra.mxu0 0.0
  %8438 = vmatprep.subr.mxu0 0.0
  %8439 = vmatpush1.msra.mxu0 0.0
  %8440 = vmatprep.subr.mxu0 0.0
  %8441 = vmatpush1.msra.mxu0 0.0
  %8442 = vmatprep.subr.mxu0 0.0
  %8443 = vmatpush1.msra.mxu0 0.0
  %8444 = vmatprep.subr.mxu0 0.0
  %8445 = vmatpush1.msra.mxu0 0.0
  %8446 = vmatprep.mubr.f32.mxu0 0.0
  %v8447 = vand.u32 %v8281, 4294901760
  %8448 = vmatmul.mubr.f32.gmra.mrb[0].mxu0 %v8447
  %v8449 = vpop.f32.mrb[0].mxu0
  %v8450 = vadd.f32 %v8359, %v8449
  %v8451 = vpop.f32.mrb[0].mxu0
  %8452 = vdwg.mxu0
  %8453 = vmatprep.subr.mxu0 0.0
  %v8454 = vand.u32 %v8268, 4294901760
  %v8455 = vsub.f32 %v8268, %v8454
  %8456 = vmatpush1.msra.mxu0 %v8455
  %8457 = vmatprep.subr.mxu0 0.0
  %v8458 = vand.u32 %v8269, 4294901760
  %v8459 = vsub.f32 %v8269, %v8458
  %8460 = vmatpush1.msra.mxu0 %v8459
  %8461 = vmatprep.subr.mxu0 0.0
  %v8462 = vand.u32 %v8270, 4294901760
  %v8463 = vsub.f32 %v8270, %v8462
  %8464 = vmatpush1.msra.mxu0 %v8463
  %8465 = vmatprep.subr.mxu0 0.0
  %v8466 = vand.u32 %v8271, 4294901760
  %v8467 = vsub.f32 %v8271, %v8466
  %8468 = vmatpush1.msra.mxu0 %v8467
  %8469 = vmatprep.subr.mxu0 0.0
  %8470 = vmatpush1.msra.mxu0 0.0
  %8471 = vmatprep.subr.mxu0 0.0
  %8472 = vmatpush1.msra.mxu0 0.0
  %8473 = vmatprep.subr.mxu0 0.0
  %8474 = vmatpush1.msra.mxu0 0.0
  %8475 = vmatprep.subr.mxu0 0.0
  %8476 = vmatpush1.msra.mxu0 0.0
  %8477 = vmatprep.subr.mxu0 0.0
  %8478 = vmatpush1.msra.mxu0 0.0
  %8479 = vmatprep.subr.mxu0 0.0
  %8480 = vmatpush1.msra.mxu0 0.0
  %8481 = vmatprep.subr.mxu0 0.0
  %8482 = vmatpush1.msra.mxu0 0.0
  %8483 = vmatprep.subr.mxu0 0.0
  %8484 = vmatpush1.msra.mxu0 0.0
  %8485 = vmatprep.subr.mxu0 0.0
  %8486 = vmatpush1.msra.mxu0 0.0
  %8487 = vmatprep.subr.mxu0 0.0
  %8488 = vmatpush1.msra.mxu0 0.0
  %8489 = vmatprep.subr.mxu0 0.0
  %8490 = vmatpush1.msra.mxu0 0.0
  %8491 = vmatprep.subr.mxu0 0.0
  %8492 = vmatpush1.msra.mxu0 0.0
  %8493 = vmatprep.subr.mxu0 0.0
  %8494 = vmatpush1.msra.mxu0 0.0
  %8495 = vmatprep.subr.mxu0 0.0
  %8496 = vmatpush1.msra.mxu0 0.0
  %8497 = vmatprep.subr.mxu0 0.0
  %8498 = vmatpush1.msra.mxu0 0.0
  %8499 = vmatprep.subr.mxu0 0.0
  %8500 = vmatpush1.msra.mxu0 0.0
  %8501 = vmatprep.subr.mxu0 0.0
  %8502 = vmatpush1.msra.mxu0 0.0
  %8503 = vmatprep.subr.mxu0 0.0
  %8504 = vmatpush1.msra.mxu0 0.0
  %8505 = vmatprep.subr.mxu0 0.0
  %8506 = vmatpush1.msra.mxu0 0.0
  %8507 = vmatprep.subr.mxu0 0.0
  %8508 = vmatpush1.msra.mxu0 0.0
  %8509 = vmatprep.subr.mxu0 0.0
  %8510 = vmatpush1.msra.mxu0 0.0
  %8511 = vmatprep.subr.mxu0 0.0
  %8512 = vmatpush1.msra.mxu0 0.0
  %8513 = vmatprep.subr.mxu0 0.0
  %8514 = vmatpush1.msra.mxu0 0.0
  %8515 = vmatprep.subr.mxu0 0.0
  %8516 = vmatpush1.msra.mxu0 0.0
  %8517 = vmatprep.subr.mxu0 0.0
  %8518 = vmatpush1.msra.mxu0 0.0
  %8519 = vmatprep.subr.mxu0 0.0
  %8520 = vmatpush1.msra.mxu0 0.0
  %8521 = vmatprep.subr.mxu0 0.0
  %8522 = vmatpush1.msra.mxu0 0.0
  %8523 = vmatprep.subr.mxu0 0.0
  %8524 = vmatpush1.msra.mxu0 0.0
  %8525 = vmatprep.mubr.f32.mxu0 0.0
  %v8526 = vand.u32 %v8281, 4294901760
  %v8527 = vsub.f32 %v8281, %v8526
  %8528 = vmatmul.mubr.f32.gmra.mrb[0].mxu0 %v8527
  %v8529 = vpop.f32.mrb[0].mxu0
  %v8530 = vadd.f32 %v8450, %v8529
  %v8531 = vpop.f32.mrb[0].mxu0
  %8532 = vdwg.mxu0
  %8533 = vmatprep.subr.mxu0 0.0
  %v8534 = vand.u32 %v8268, 4294901760
  %8535 = vmatpush1.msra.mxu0 %v8534
  %8536 = vmatprep.subr.mxu0 0.0
  %v8537 = vand.u32 %v8269, 4294901760
  %8538 = vmatpush1.msra.mxu0 %v8537
  %8539 = vmatprep.subr.mxu0 0.0
  %v8540 = vand.u32 %v8270, 4294901760
  %8541 = vmatpush1.msra.mxu0 %v8540
  %8542 = vmatprep.subr.mxu0 0.0
  %v8543 = vand.u32 %v8271, 4294901760
  %8544 = vmatpush1.msra.mxu0 %v8543
  %8545 = vmatprep.subr.mxu0 0.0
  %8546 = vmatpush1.msra.mxu0 0.0
  %8547 = vmatprep.subr.mxu0 0.0
  %8548 = vmatpush1.msra.mxu0 0.0
  %8549 = vmatprep.subr.mxu0 0.0
  %8550 = vmatpush1.msra.mxu0 0.0
  %8551 = vmatprep.subr.mxu0 0.0
  %8552 = vmatpush1.msra.mxu0 0.0
  %8553 = vmatprep.subr.mxu0 0.0
  %8554 = vmatpush1.msra.mxu0 0.0
  %8555 = vmatprep.subr.mxu0 0.0
  %8556 = vmatpush1.msra.mxu0 0.0
  %8557 = vmatprep.subr.mxu0 0.0
  %8558 = vmatpush1.msra.mxu0 0.0
  %8559 = vmatprep.subr.mxu0 0.0
  %8560 = vmatpush1.msra.mxu0 0.0
  %8561 = vmatprep.subr.mxu0 0.0
  %8562 = vmatpush1.msra.mxu0 0.0
  %8563 = vmatprep.subr.mxu0 0.0
  %8564 = vmatpush1.msra.mxu0 0.0
  %8565 = vmatprep.subr.mxu0 0.0
  %8566 = vmatpush1.msra.mxu0 0.0
  %8567 = vmatprep.subr.mxu0 0.0
  %8568 = vmatpush1.msra.mxu0 0.0
  %8569 = vmatprep.subr.mxu0 0.0
  %8570 = vmatpush1.msra.mxu0 0.0
  %8571 = vmatprep.subr.mxu0 0.0
  %8572 = vmatpush1.msra.mxu0 0.0
  %8573 = vmatprep.subr.mxu0 0.0
  %8574 = vmatpush1.msra.mxu0 0.0
  %8575 = vmatprep.subr.mxu0 0.0
  %8576 = vmatpush1.msra.mxu0 0.0
  %8577 = vmatprep.subr.mxu0 0.0
  %8578 = vmatpush1.msra.mxu0 0.0
  %8579 = vmatprep.subr.mxu0 0.0
  %8580 = vmatpush1.msra.mxu0 0.0
  %8581 = vmatprep.subr.mxu0 0.0
  %8582 = vmatpush1.msra.mxu0 0.0
  %8583 = vmatprep.subr.mxu0 0.0
  %8584 = vmatpush1.msra.mxu0 0.0
  %8585 = vmatprep.subr.mxu0 0.0
  %8586 = vmatpush1.msra.mxu0 0.0
  %8587 = vmatprep.subr.mxu0 0.0
  %8588 = vmatpush1.msra.mxu0 0.0
  %8589 = vmatprep.subr.mxu0 0.0
  %8590 = vmatpush1.msra.mxu0 0.0
  %8591 = vmatprep.subr.mxu0 0.0
  %8592 = vmatpush1.msra.mxu0 0.0
  %8593 = vmatprep.subr.mxu0 0.0
  %8594 = vmatpush1.msra.mxu0 0.0
  %8595 = vmatprep.subr.mxu0 0.0
  %8596 = vmatpush1.msra.mxu0 0.0
  %8597 = vmatprep.subr.mxu0 0.0
  %8598 = vmatpush1.msra.mxu0 0.0
  %8599 = vmatprep.subr.mxu0 0.0
  %8600 = vmatpush1.msra.mxu0 0.0
  %8601 = vmatprep.mubr.f32.mxu0 0.0
  %v8602 = vand.u32 %v8281, 4294901760
  %v8603 = vsub.f32 %v8281, %v8602
  %v8604 = vand.u32 %v8603, 4294901760
  %8605 = vmatmul.mubr.f32.gmra.mrb[0].mxu0 %v8604
  %v8606 = vpop.f32.mrb[0].mxu0
  %v8607 = vadd.f32 %v8530, %v8606
  %v8608 = vpop.f32.mrb[0].mxu0
  %8609 = vdwg.mxu0
  %8610 = vmatprep.subr.mxu0 0.0
  %v8611 = vand.u32 %v8268, 4294901760
  %v8612 = vsub.f32 %v8268, %v8611
  %v8613 = vand.u32 %v8612, 4294901760
  %8614 = vmatpush1.msra.mxu0 %v8613
  %8615 = vmatprep.subr.mxu0 0.0
  %v8616 = vand.u32 %v8269, 4294901760
  %v8617 = vsub.f32 %v8269, %v8616
  %v8618 = vand.u32 %v8617, 4294901760
  %8619 = vmatpush1.msra.mxu0 %v8618
  %8620 = vmatprep.subr.mxu0 0.0
  %v8621 = vand.u32 %v8270, 4294901760
  %v8622 = vsub.f32 %v8270, %v8621
  %v8623 = vand.u32 %v8622, 4294901760
  %8624 = vmatpush1.msra.mxu0 %v8623
  %8625 = vmatprep.subr.mxu0 0.0
  %v8626 = vand.u32 %v8271, 4294901760
  %v8627 = vsub.f32 %v8271, %v8626
  %v8628 = vand.u32 %v8627, 4294901760
  %8629 = vmatpush1.msra.mxu0 %v8628
  %8630 = vmatprep.subr.mxu0 0.0
  %8631 = vmatpush1.msra.mxu0 0.0
  %8632 = vmatprep.subr.mxu0 0.0
  %8633 = vmatpush1.msra.mxu0 0.0
  %8634 = vmatprep.subr.mxu0 0.0
  %8635 = vmatpush1.msra.mxu0 0.0
  %8636 = vmatprep.subr.mxu0 0.0
  %8637 = vmatpush1.msra.mxu0 0.0
  %8638 = vmatprep.subr.mxu0 0.0
  %8639 = vmatpush1.msra.mxu0 0.0
  %8640 = vmatprep.subr.mxu0 0.0
  %8641 = vmatpush1.msra.mxu0 0.0
  %8642 = vmatprep.subr.mxu0 0.0
  %8643 = vmatpush1.msra.mxu0 0.0
  %8644 = vmatprep.subr.mxu0 0.0
  %8645 = vmatpush1.msra.mxu0 0.0
  %8646 = vmatprep.subr.mxu0 0.0
  %8647 = vmatpush1.msra.mxu0 0.0
  %8648 = vmatprep.subr.mxu0 0.0
  %8649 = vmatpush1.msra.mxu0 0.0
  %8650 = vmatprep.subr.mxu0 0.0
  %8651 = vmatpush1.msra.mxu0 0.0
  %8652 = vmatprep.subr.mxu0 0.0
  %8653 = vmatpush1.msra.mxu0 0.0
  %8654 = vmatprep.subr.mxu0 0.0
  %8655 = vmatpush1.msra.mxu0 0.0
  %8656 = vmatprep.subr.mxu0 0.0
  %8657 = vmatpush1.msra.mxu0 0.0
  %8658 = vmatprep.subr.mxu0 0.0
  %8659 = vmatpush1.msra.mxu0 0.0
  %8660 = vmatprep.subr.mxu0 0.0
  %8661 = vmatpush1.msra.mxu0 0.0
  %8662 = vmatprep.subr.mxu0 0.0
  %8663 = vmatpush1.msra.mxu0 0.0
  %8664 = vmatprep.subr.mxu0 0.0
  %8665 = vmatpush1.msra.mxu0 0.0
  %8666 = vmatprep.subr.mxu0 0.0
  %8667 = vmatpush1.msra.mxu0 0.0
  %8668 = vmatprep.subr.mxu0 0.0
  %8669 = vmatpush1.msra.mxu0 0.0
  %8670 = vmatprep.subr.mxu0 0.0
  %8671 = vmatpush1.msra.mxu0 0.0
  %8672 = vmatprep.subr.mxu0 0.0
  %8673 = vmatpush1.msra.mxu0 0.0
  %8674 = vmatprep.subr.mxu0 0.0
  %8675 = vmatpush1.msra.mxu0 0.0
  %8676 = vmatprep.subr.mxu0 0.0
  %8677 = vmatpush1.msra.mxu0 0.0
  %8678 = vmatprep.subr.mxu0 0.0
  %8679 = vmatpush1.msra.mxu0 0.0
  %8680 = vmatprep.subr.mxu0 0.0
  %8681 = vmatpush1.msra.mxu0 0.0
  %8682 = vmatprep.subr.mxu0 0.0
  %8683 = vmatpush1.msra.mxu0 0.0
  %8684 = vmatprep.subr.mxu0 0.0
  %8685 = vmatpush1.msra.mxu0 0.0
  %8686 = vmatprep.mubr.f32.mxu0 0.0
  %v8687 = vand.u32 %v8281, 4294901760
  %8688 = vmatmul.mubr.f32.gmra.mrb[0].mxu0 %v8687
  %v8689 = vpop.f32.mrb[0].mxu0
  %v8690 = vadd.f32 %v8607, %v8689
  %v8691 = vpop.f32.mrb[0].mxu0
  %8692 = vdwg.mxu0
  %8693 = vmatprep.subr.mxu0 0.0
  %v8694 = vand.u32 %v8268, 4294901760
  %8695 = vmatpush1.msra.mxu0 %v8694
  %8696 = vmatprep.subr.mxu0 0.0
  %v8697 = vand.u32 %v8269, 4294901760
  %8698 = vmatpush1.msra.mxu0 %v8697
  %8699 = vmatprep.subr.mxu0 0.0
  %v8700 = vand.u32 %v8270, 4294901760
  %8701 = vmatpush1.msra.mxu0 %v8700
  %8702 = vmatprep.subr.mxu0 0.0
  %v8703 = vand.u32 %v8271, 4294901760
  %8704 = vmatpush1.msra.mxu0 %v8703
  %8705 = vmatprep.subr.mxu0 0.0
  %8706 = vmatpush1.msra.mxu0 0.0
  %8707 = vmatprep.subr.mxu0 0.0
  %8708 = vmatpush1.msra.mxu0 0.0
  %8709 = vmatprep.subr.mxu0 0.0
  %8710 = vmatpush1.msra.mxu0 0.0
  %8711 = vmatprep.subr.mxu0 0.0
  %8712 = vmatpush1.msra.mxu0 0.0
  %8713 = vmatprep.subr.mxu0 0.0
  %8714 = vmatpush1.msra.mxu0 0.0
  %8715 = vmatprep.subr.mxu0 0.0
  %8716 = vmatpush1.msra.mxu0 0.0
  %8717 = vmatprep.subr.mxu0 0.0
  %8718 = vmatpush1.msra.mxu0 0.0
  %8719 = vmatprep.subr.mxu0 0.0
  %8720 = vmatpush1.msra.mxu0 0.0
  %8721 = vmatprep.subr.mxu0 0.0
  %8722 = vmatpush1.msra.mxu0 0.0
  %8723 = vmatprep.subr.mxu0 0.0
  %8724 = vmatpush1.msra.mxu0 0.0
  %8725 = vmatprep.subr.mxu0 0.0
  %8726 = vmatpush1.msra.mxu0 0.0
  %8727 = vmatprep.subr.mxu0 0.0
  %8728 = vmatpush1.msra.mxu0 0.0
  %8729 = vmatprep.subr.mxu0 0.0
  %8730 = vmatpush1.msra.mxu0 0.0
  %8731 = vmatprep.subr.mxu0 0.0
  %8732 = vmatpush1.msra.mxu0 0.0
  %8733 = vmatprep.subr.mxu0 0.0
  %8734 = vmatpush1.msra.mxu0 0.0
  %8735 = vmatprep.subr.mxu0 0.0
  %8736 = vmatpush1.msra.mxu0 0.0
  %8737 = vmatprep.subr.mxu0 0.0
  %8738 = vmatpush1.msra.mxu0 0.0
  %8739 = vmatprep.subr.mxu0 0.0
  %8740 = vmatpush1.msra.mxu0 0.0
  %8741 = vmatprep.subr.mxu0 0.0
  %8742 = vmatpush1.msra.mxu0 0.0
  %8743 = vmatprep.subr.mxu0 0.0
  %8744 = vmatpush1.msra.mxu0 0.0
  %8745 = vmatprep.subr.mxu0 0.0
  %8746 = vmatpush1.msra.mxu0 0.0
  %8747 = vmatprep.subr.mxu0 0.0
  %8748 = vmatpush1.msra.mxu0 0.0
  %8749 = vmatprep.subr.mxu0 0.0
  %8750 = vmatpush1.msra.mxu0 0.0
  %8751 = vmatprep.subr.mxu0 0.0
  %8752 = vmatpush1.msra.mxu0 0.0
  %8753 = vmatprep.subr.mxu0 0.0
  %8754 = vmatpush1.msra.mxu0 0.0
  %8755 = vmatprep.subr.mxu0 0.0
  %8756 = vmatpush1.msra.mxu0 0.0
  %8757 = vmatprep.subr.mxu0 0.0
  %8758 = vmatpush1.msra.mxu0 0.0
  %8759 = vmatprep.subr.mxu0 0.0
  %8760 = vmatpush1.msra.mxu0 0.0
  %8761 = vmatprep.mubr.f32.mxu0 0.0
  %v8762 = vand.u32 %v8281, 4294901760
  %8763 = vmatmul.mubr.f32.gmra.mrb[0].mxu0 %v8762
  %v8764 = vpop.f32.mrb[0].mxu0
  %v8765 = vadd.f32 %v8690, %v8764
  %v8766 = vpop.f32.mrb[0].mxu0
  %8767 = vdwg.mxu0
  %v8768 = vmax.f32 %v8765, 0.0
  %v8769 = vld [vmem:[%s7] sm:$0xff]
  %v8770 = vld [vmem:[%s7 + $0x8] sm:$0xff]
  %v8771 = vld [vmem:[%s7 + $0x10] sm:$0xff]
  %v8772 = vld [vmem:[%s7 + $0x18] sm:$0xff]
  %v8773 = vld [vmem:[%s8] sm:$0x1]
  %v8775 = vlaneseq
  %v8776 = vshrl.u32 %v8775, 7
  %v8777 = vsub.s32 0, %v8776
  %v8778 = vrot.slane %v8773, %v8777
  %v8781 = vsel %vm8279, %v8768, 0
  %8783 = vmatprep.subr.mxu0 0.0
  %v8784 = vand.u32 %v8769, 4294901760
  %8785 = vmatpush1.msra.mxu0 %v8784
  %8786 = vmatprep.subr.mxu0 0.0
  %v8787 = vand.u32 %v8770, 4294901760
  %8788 = vmatpush1.msra.mxu0 %v8787
  %8789 = vmatprep.subr.mxu0 0.0
  %v8790 = vand.u32 %v8771, 4294901760
  %8791 = vmatpush1.msra.mxu0 %v8790
  %8792 = vmatprep.subr.mxu0 0.0
  %v8793 = vand.u32 %v8772, 4294901760
  %8794 = vmatpush1.msra.mxu0 %v8793
  %8795 = vmatprep.subr.mxu0 0.0
  %8796 = vmatpush1.msra.mxu0 0.0
  %8797 = vmatprep.subr.mxu0 0.0
  %8798 = vmatpush1.msra.mxu0 0.0
  %8799 = vmatprep.subr.mxu0 0.0
  %8800 = vmatpush1.msra.mxu0 0.0
  %8801 = vmatprep.subr.mxu0 0.0
  %8802 = vmatpush1.msra.mxu0 0.0
  %8803 = vmatprep.subr.mxu0 0.0
  %8804 = vmatpush1.msra.mxu0 0.0
  %8805 = vmatprep.subr.mxu0 0.0
  %8806 = vmatpush1.msra.mxu0 0.0
  %8807 = vmatprep.subr.mxu0 0.0
  %8808 = vmatpush1.msra.mxu0 0.0
  %8809 = vmatprep.subr.mxu0 0.0
  %8810 = vmatpush1.msra.mxu0 0.0
  %8811 = vmatprep.subr.mxu0 0.0
  %8812 = vmatpush1.msra.mxu0 0.0
  %8813 = vmatprep.subr.mxu0 0.0
  %8814 = vmatpush1.msra.mxu0 0.0
  %8815 = vmatprep.subr.mxu0 0.0
  %8816 = vmatpush1.msra.mxu0 0.0
  %8817 = vmatprep.subr.mxu0 0.0
  %8818 = vmatpush1.msra.mxu0 0.0
  %8819 = vmatprep.subr.mxu0 0.0
  %8820 = vmatpush1.msra.mxu0 0.0
  %8821 = vmatprep.subr.mxu0 0.0
  %8822 = vmatpush1.msra.mxu0 0.0
  %8823 = vmatprep.subr.mxu0 0.0
  %8824 = vmatpush1.msra.mxu0 0.0
  %8825 = vmatprep.subr.mxu0 0.0
  %8826 = vmatpush1.msra.mxu0 0.0
  %8827 = vmatprep.subr.mxu0 0.0
  %8828 = vmatpush1.msra.mxu0 0.0
  %8829 = vmatprep.subr.mxu0 0.0
  %8830 = vmatpush1.msra.mxu0 0.0
  %8831 = vmatprep.subr.mxu0 0.0
  %8832 = vmatpush1.msra.mxu0 0.0
  %8833 = vmatprep.subr.mxu0 0.0
  %8834 = vmatpush1.msra.mxu0 0.0
  %8835 = vmatprep.subr.mxu0 0.0
  %8836 = vmatpush1.msra.mxu0 0.0
  %8837 = vmatprep.subr.mxu0 0.0
  %8838 = vmatpush1.msra.mxu0 0.0
  %8839 = vmatprep.subr.mxu0 0.0
  %8840 = vmatpush1.msra.mxu0 0.0
  %8841 = vmatprep.subr.mxu0 0.0
  %8842 = vmatpush1.msra.mxu0 0.0
  %8843 = vmatprep.subr.mxu0 0.0
  %8844 = vmatpush1.msra.mxu0 0.0
  %8845 = vmatprep.subr.mxu0 0.0
  %8846 = vmatpush1.msra.mxu0 0.0
  %8847 = vmatprep.subr.mxu0 0.0
  %8848 = vmatpush1.msra.mxu0 0.0
  %8849 = vmatprep.subr.mxu0 0.0
  %8850 = vmatpush1.msra.mxu0 0.0
  %8851 = vmatprep.mubr.f32.mxu0 0.0
  %v8852 = vand.u32 %v8781, 4294901760
  %v8853 = vsub.f32 %v8781, %v8852
  %v8854 = vand.u32 %v8853, 4294901760
  %v8855 = vsub.f32 %v8853, %v8854
  %v8856 = vand.u32 %v8855, 4294901760
  %8857 = vmatmul.mubr.f32.gmra.mrb[0].mxu0 %v8856
  %v8858 = vpop.f32.mrb[0].mxu0
  %v8859 = vadd.f32 %v8778, %v8858
  %v8860 = vpop.f32.mrb[0].mxu0
  %8861 = vdwg.mxu0
  %8862 = vmatprep.subr.mxu0 0.0
  %v8863 = vand.u32 %v8769, 4294901760
  %v8864 = vsub.f32 %v8769, %v8863
  %v8865 = vand.u32 %v8864, 4294901760
  %v8866 = vsub.f32 %v8864, %v8865
  %v8867 = vand.u32 %v8866, 4294901760
  %8868 = vmatpush1.msra.mxu0 %v8867
  %8869 = vmatprep.subr.mxu0 0.0
  %v8870 = vand.u32 %v8770, 4294901760
  %v8871 = vsub.f32 %v8770, %v8870
  %v8872 = vand.u32 %v8871, 4294901760
  %v8873 = vsub.f32 %v8871, %v8872
  %v8874 = vand.u32 %v8873, 4294901760
  %8875 = vmatpush1.msra.mxu0 %v8874
  %8876 = vmatprep.subr.mxu0 0.0
  %v8877 = vand.u32 %v8771, 4294901760
  %v8878 = vsub.f32 %v8771, %v8877
  %v8879 = vand.u32 %v8878, 4294901760
  %v8880 = vsub.f32 %v8878, %v8879
  %v8881 = vand.u32 %v8880, 4294901760
  %8882 = vmatpush1.msra.mxu0 %v8881
  %8883 = vmatprep.subr.mxu0 0.0
  %v8884 = vand.u32 %v8772, 4294901760
  %v8885 = vsub.f32 %v8772, %v8884
  %v8886 = vand.u32 %v8885, 4294901760
  %v8887 = vsub.f32 %v8885, %v8886
  %v8888 = vand.u32 %v8887, 4294901760
  %8889 = vmatpush1.msra.mxu0 %v8888
  %8890 = vmatprep.subr.mxu0 0.0
  %8891 = vmatpush1.msra.mxu0 0.0
  %8892 = vmatprep.subr.mxu0 0.0
  %8893 = vmatpush1.msra.mxu0 0.0
  %8894 = vmatprep.subr.mxu0 0.0
  %8895 = vmatpush1.msra.mxu0 0.0
  %8896 = vmatprep.subr.mxu0 0.0
  %8897 = vmatpush1.msra.mxu0 0.0
  %8898 = vmatprep.subr.mxu0 0.0
  %8899 = vmatpush1.msra.mxu0 0.0
  %8900 = vmatprep.subr.mxu0 0.0
  %8901 = vmatpush1.msra.mxu0 0.0
  %8902 = vmatprep.subr.mxu0 0.0
  %8903 = vmatpush1.msra.mxu0 0.0
  %8904 = vmatprep.subr.mxu0 0.0
  %8905 = vmatpush1.msra.mxu0 0.0
  %8906 = vmatprep.subr.mxu0 0.0
  %8907 = vmatpush1.msra.mxu0 0.0
  %8908 = vmatprep.subr.mxu0 0.0
  %8909 = vmatpush1.msra.mxu0 0.0
  %8910 = vmatprep.subr.mxu0 0.0
  %8911 = vmatpush1.msra.mxu0 0.0
  %8912 = vmatprep.subr.mxu0 0.0
  %8913 = vmatpush1.msra.mxu0 0.0
  %8914 = vmatprep.subr.mxu0 0.0
  %8915 = vmatpush1.msra.mxu0 0.0
  %8916 = vmatprep.subr.mxu0 0.0
  %8917 = vmatpush1.msra.mxu0 0.0
  %8918 = vmatprep.subr.mxu0 0.0
  %8919 = vmatpush1.msra.mxu0 0.0
  %8920 = vmatprep.subr.mxu0 0.0
  %8921 = vmatpush1.msra.mxu0 0.0
  %8922 = vmatprep.subr.mxu0 0.0
  %8923 = vmatpush1.msra.mxu0 0.0
  %8924 = vmatprep.subr.mxu0 0.0
  %8925 = vmatpush1.msra.mxu0 0.0
  %8926 = vmatprep.subr.mxu0 0.0
  %8927 = vmatpush1.msra.mxu0 0.0
  %8928 = vmatprep.subr.mxu0 0.0
  %8929 = vmatpush1.msra.mxu0 0.0
  %8930 = vmatprep.subr.mxu0 0.0
  %8931 = vmatpush1.msra.mxu0 0.0
  %8932 = vmatprep.subr.mxu0 0.0
  %8933 = vmatpush1.msra.mxu0 0.0
  %8934 = vmatprep.subr.mxu0 0.0
  %8935 = vmatpush1.msra.mxu0 0.0
  %8936 = vmatprep.subr.mxu0 0.0
  %8937 = vmatpush1.msra.mxu0 0.0
  %8938 = vmatprep.subr.mxu0 0.0
  %8939 = vmatpush1.msra.mxu0 0.0
  %8940 = vmatprep.subr.mxu0 0.0
  %8941 = vmatpush1.msra.mxu0 0.0
  %8942 = vmatprep.subr.mxu0 0.0
  %8943 = vmatpush1.msra.mxu0 0.0
  %8944 = vmatprep.subr.mxu0 0.0
  %8945 = vmatpush1.msra.mxu0 0.0
  %8946 = vmatprep.mubr.f32.mxu0 0.0
  %v8947 = vand.u32 %v8781, 4294901760
  %8948 = vmatmul.mubr.f32.gmra.mrb[0].mxu0 %v8947
  %v8949 = vpop.f32.mrb[0].mxu0
  %v8950 = vadd.f32 %v8859, %v8949
  %v8951 = vpop.f32.mrb[0].mxu0
  %8952 = vdwg.mxu0
  %8953 = vmatprep.subr.mxu0 0.0
  %v8954 = vand.u32 %v8769, 4294901760
  %v8955 = vsub.f32 %v8769, %v8954
  %8956 = vmatpush1.msra.mxu0 %v8955
  %8957 = vmatprep.subr.mxu0 0.0
  %v8958 = vand.u32 %v8770, 4294901760
  %v8959 = vsub.f32 %v8770, %v8958
  %8960 = vmatpush1.msra.mxu0 %v8959
  %8961 = vmatprep.subr.mxu0 0.0
  %v8962 = vand.u32 %v8771, 4294901760
  %v8963 = vsub.f32 %v8771, %v8962
  %8964 = vmatpush1.msra.mxu0 %v8963
  %8965 = vmatprep.subr.mxu0 0.0
  %v8966 = vand.u32 %v8772, 4294901760
  %v8967 = vsub.f32 %v8772, %v8966
  %8968 = vmatpush1.msra.mxu0 %v8967
  %8969 = vmatprep.subr.mxu0 0.0
  %8970 = vmatpush1.msra.mxu0 0.0
  %8971 = vmatprep.subr.mxu0 0.0
  %8972 = vmatpush1.msra.mxu0 0.0
  %8973 = vmatprep.subr.mxu0 0.0
  %8974 = vmatpush1.msra.mxu0 0.0
  %8975 = vmatprep.subr.mxu0 0.0
  %8976 = vmatpush1.msra.mxu0 0.0
  %8977 = vmatprep.subr.mxu0 0.0
  %8978 = vmatpush1.msra.mxu0 0.0
  %8979 = vmatprep.subr.mxu0 0.0
  %8980 = vmatpush1.msra.mxu0 0.0
  %8981 = vmatprep.subr.mxu0 0.0
  %8982 = vmatpush1.msra.mxu0 0.0
  %8983 = vmatprep.subr.mxu0 0.0
  %8984 = vmatpush1.msra.mxu0 0.0
  %8985 = vmatprep.subr.mxu0 0.0
  %8986 = vmatpush1.msra.mxu0 0.0
  %8987 = vmatprep.subr.mxu0 0.0
  %8988 = vmatpush1.msra.mxu0 0.0
  %8989 = vmatprep.subr.mxu0 0.0
  %8990 = vmatpush1.msra.mxu0 0.0
  %8991 = vmatprep.subr.mxu0 0.0
  %8992 = vmatpush1.msra.mxu0 0.0
  %8993 = vmatprep.subr.mxu0 0.0
  %8994 = vmatpush1.msra.mxu0 0.0
  %8995 = vmatprep.subr.mxu0 0.0
  %8996 = vmatpush1.msra.mxu0 0.0
  %8997 = vmatprep.subr.mxu0 0.0
  %8998 = vmatpush1.msra.mxu0 0.0
  %8999 = vmatprep.subr.mxu0 0.0
  %9000 = vmatpush1.msra.mxu0 0.0
  %9001 = vmatprep.subr.mxu0 0.0
  %9002 = vmatpush1.msra.mxu0 0.0
  %9003 = vmatprep.subr.mxu0 0.0
  %9004 = vmatpush1.msra.mxu0 0.0
  %9005 = vmatprep.subr.mxu0 0.0
  %9006 = vmatpush1.msra.mxu0 0.0
  %9007 = vmatprep.subr.mxu0 0.0
  %9008 = vmatpush1.msra.mxu0 0.0
  %9009 = vmatprep.subr.mxu0 0.0
  %9010 = vmatpush1.msra.mxu0 0.0
  %9011 = vmatprep.subr.mxu0 0.0
  %9012 = vmatpush1.msra.mxu0 0.0
  %9013 = vmatprep.subr.mxu0 0.0
  %9014 = vmatpush1.msra.mxu0 0.0
  %9015 = vmatprep.subr.mxu0 0.0
  %9016 = vmatpush1.msra.mxu0 0.0
  %9017 = vmatprep.subr.mxu0 0.0
  %9018 = vmatpush1.msra.mxu0 0.0
  %9019 = vmatprep.subr.mxu0 0.0
  %9020 = vmatpush1.msra.mxu0 0.0
  %9021 = vmatprep.subr.mxu0 0.0
  %9022 = vmatpush1.msra.mxu0 0.0
  %9023 = vmatprep.subr.mxu0 0.0
  %9024 = vmatpush1.msra.mxu0 0.0
  %9025 = vmatprep.mubr.f32.mxu0 0.0
  %v9026 = vand.u32 %v8781, 4294901760
  %v9027 = vsub.f32 %v8781, %v9026
  %9028 = vmatmul.mubr.f32.gmra.mrb[0].mxu0 %v9027
  %v9029 = vpop.f32.mrb[0].mxu0
  %v9030 = vadd.f32 %v8950, %v9029
  %v9031 = vpop.f32.mrb[0].mxu0
  %9032 = vdwg.mxu0
  %9033 = vmatprep.subr.mxu0 0.0
  %v9034 = vand.u32 %v8769, 4294901760
  %9035 = vmatpush1.msra.mxu0 %v9034
  %9036 = vmatprep.subr.mxu0 0.0
  %v9037 = vand.u32 %v8770, 4294901760
  %9038 = vmatpush1.msra.mxu0 %v9037
  %9039 = vmatprep.subr.mxu0 0.0
  %v9040 = vand.u32 %v8771, 4294901760
  %9041 = vmatpush1.msra.mxu0 %v9040
  %9042 = vmatprep.subr.mxu0 0.0
  %v9043 = vand.u32 %v8772, 4294901760
  %9044 = vmatpush1.msra.mxu0 %v9043
  %9045 = vmatprep.subr.mxu0 0.0
  %9046 = vmatpush1.msra.mxu0 0.0
  %9047 = vmatprep.subr.mxu0 0.0
  %9048 = vmatpush1.msra.mxu0 0.0
  %9049 = vmatprep.subr.mxu0 0.0
  %9050 = vmatpush1.msra.mxu0 0.0
  %9051 = vmatprep.subr.mxu0 0.0
  %9052 = vmatpush1.msra.mxu0 0.0
  %9053 = vmatprep.subr.mxu0 0.0
  %9054 = vmatpush1.msra.mxu0 0.0
  %9055 = vmatprep.subr.mxu0 0.0
  %9056 = vmatpush1.msra.mxu0 0.0
  %9057 = vmatprep.subr.mxu0 0.0
  %9058 = vmatpush1.msra.mxu0 0.0
  %9059 = vmatprep.subr.mxu0 0.0
  %9060 = vmatpush1.msra.mxu0 0.0
  %9061 = vmatprep.subr.mxu0 0.0
  %9062 = vmatpush1.msra.mxu0 0.0
  %9063 = vmatprep.subr.mxu0 0.0
  %9064 = vmatpush1.msra.mxu0 0.0
  %9065 = vmatprep.subr.mxu0 0.0
  %9066 = vmatpush1.msra.mxu0 0.0
  %9067 = vmatprep.subr.mxu0 0.0
  %9068 = vmatpush1.msra.mxu0 0.0
  %9069 = vmatprep.subr.mxu0 0.0
  %9070 = vmatpush1.msra.mxu0 0.0
  %9071 = vmatprep.subr.mxu0 0.0
  %9072 = vmatpush1.msra.mxu0 0.0
  %9073 = vmatprep.subr.mxu0 0.0
  %9074 = vmatpush1.msra.mxu0 0.0
  %9075 = vmatprep.subr.mxu0 0.0
  %9076 = vmatpush1.msra.mxu0 0.0
  %9077 = vmatprep.subr.mxu0 0.0
  %9078 = vmatpush1.msra.mxu0 0.0
  %9079 = vmatprep.subr.mxu0 0.0
  %9080 = vmatpush1.msra.mxu0 0.0
  %9081 = vmatprep.subr.mxu0 0.0
  %9082 = vmatpush1.msra.mxu0 0.0
  %9083 = vmatprep.subr.mxu0 0.0
  %9084 = vmatpush1.msra.mxu0 0.0
  %9085 = vmatprep.subr.mxu0 0.0
  %9086 = vmatpush1.msra.mxu0 0.0
  %9087 = vmatprep.subr.mxu0 0.0
  %9088 = vmatpush1.msra.mxu0 0.0
  %9089 = vmatprep.subr.mxu0 0.0
  %9090 = vmatpush1.msra.mxu0 0.0
  %9091 = vmatprep.subr.mxu0 0.0
  %9092 = vmatpush1.msra.mxu0 0.0
  %9093 = vmatprep.subr.mxu0 0.0
  %9094 = vmatpush1.msra.mxu0 0.0
  %9095 = vmatprep.subr.mxu0 0.0
  %9096 = vmatpush1.msra.mxu0 0.0
  %9097 = vmatprep.subr.mxu0 0.0
  %9098 = vmatpush1.msra.mxu0 0.0
  %9099 = vmatprep.subr.mxu0 0.0
  %9100 = vmatpush1.msra.mxu0 0.0
  %9101 = vmatprep.mubr.f32.mxu0 0.0
  %v9102 = vand.u32 %v8781, 4294901760
  %v9103 = vsub.f32 %v8781, %v9102
  %v9104 = vand.u32 %v9103, 4294901760
  %9105 = vmatmul.mubr.f32.gmra.mrb[0].mxu0 %v9104
  %v9106 = vpop.f32.mrb[0].mxu0
  %v9107 = vadd.f32 %v9030, %v9106
  %v9108 = vpop.f32.mrb[0].mxu0
  %9109 = vdwg.mxu0
  %9110 = vmatprep.subr.mxu0 0.0
  %v9111 = vand.u32 %v8769, 4294901760
  %v9112 = vsub.f32 %v8769, %v9111
  %v9113 = vand.u32 %v9112, 4294901760
  %9114 = vmatpush1.msra.mxu0 %v9113
  %9115 = vmatprep.subr.mxu0 0.0
  %v9116 = vand.u32 %v8770, 4294901760
  %v9117 = vsub.f32 %v8770, %v9116
  %v9118 = vand.u32 %v9117, 4294901760
  %9119 = vmatpush1.msra.mxu0 %v9118
  %9120 = vmatprep.subr.mxu0 0.0
  %v9121 = vand.u32 %v8771, 4294901760
  %v9122 = vsub.f32 %v8771, %v9121
  %v9123 = vand.u32 %v9122, 4294901760
  %9124 = vmatpush1.msra.mxu0 %v9123
  %9125 = vmatprep.subr.mxu0 0.0
  %v9126 = vand.u32 %v8772, 4294901760
  %v9127 = vsub.f32 %v8772, %v9126
  %v9128 = vand.u32 %v9127, 4294901760
  %9129 = vmatpush1.msra.mxu0 %v9128
  %9130 = vmatprep.subr.mxu0 0.0
  %9131 = vmatpush1.msra.mxu0 0.0
  %9132 = vmatprep.subr.mxu0 0.0
  %9133 = vmatpush1.msra.mxu0 0.0
  %9134 = vmatprep.subr.mxu0 0.0
  %9135 = vmatpush1.msra.mxu0 0.0
  %9136 = vmatprep.subr.mxu0 0.0
  %9137 = vmatpush1.msra.mxu0 0.0
  %9138 = vmatprep.subr.mxu0 0.0
  %9139 = vmatpush1.msra.mxu0 0.0
  %9140 = vmatprep.subr.mxu0 0.0
  %9141 = vmatpush1.msra.mxu0 0.0
  %9142 = vmatprep.subr.mxu0 0.0
  %9143 = vmatpush1.msra.mxu0 0.0
  %9144 = vmatprep.subr.mxu0 0.0
  %9145 = vmatpush1.msra.mxu0 0.0
  %9146 = vmatprep.subr.mxu0 0.0
  %9147 = vmatpush1.msra.mxu0 0.0
  %9148 = vmatprep.subr.mxu0 0.0
  %9149 = vmatpush1.msra.mxu0 0.0
  %9150 = vmatprep.subr.mxu0 0.0
  %9151 = vmatpush1.msra.mxu0 0.0
  %9152 = vmatprep.subr.mxu0 0.0
  %9153 = vmatpush1.msra.mxu0 0.0
  %9154 = vmatprep.subr.mxu0 0.0
  %9155 = vmatpush1.msra.mxu0 0.0
  %9156 = vmatprep.subr.mxu0 0.0
  %9157 = vmatpush1.msra.mxu0 0.0
  %9158 = vmatprep.subr.mxu0 0.0
  %9159 = vmatpush1.msra.mxu0 0.0
  %9160 = vmatprep.subr.mxu0 0.0
  %9161 = vmatpush1.msra.mxu0 0.0
  %9162 = vmatprep.subr.mxu0 0.0
  %9163 = vmatpush1.msra.mxu0 0.0
  %9164 = vmatprep.subr.mxu0 0.0
  %9165 = vmatpush1.msra.mxu0 0.0
  %9166 = vmatprep.subr.mxu0 0.0
  %9167 = vmatpush1.msra.mxu0 0.0
  %9168 = vmatprep.subr.mxu0 0.0
  %9169 = vmatpush1.msra.mxu0 0.0
  %9170 = vmatprep.subr.mxu0 0.0
  %9171 = vmatpush1.msra.mxu0 0.0
  %9172 = vmatprep.subr.mxu0 0.0
  %9173 = vmatpush1.msra.mxu0 0.0
  %9174 = vmatprep.subr.mxu0 0.0
  %9175 = vmatpush1.msra.mxu0 0.0
  %9176 = vmatprep.subr.mxu0 0.0
  %9177 = vmatpush1.msra.mxu0 0.0
  %9178 = vmatprep.subr.mxu0 0.0
  %9179 = vmatpush1.msra.mxu0 0.0
  %9180 = vmatprep.subr.mxu0 0.0
  %9181 = vmatpush1.msra.mxu0 0.0
  %9182 = vmatprep.subr.mxu0 0.0
  %9183 = vmatpush1.msra.mxu0 0.0
  %9184 = vmatprep.subr.mxu0 0.0
  %9185 = vmatpush1.msra.mxu0 0.0
  %9186 = vmatprep.mubr.f32.mxu0 0.0
  %v9187 = vand.u32 %v8781, 4294901760
  %9188 = vmatmul.mubr.f32.gmra.mrb[0].mxu0 %v9187
  %v9189 = vpop.f32.mrb[0].mxu0
  %v9190 = vadd.f32 %v9107, %v9189
  %v9191 = vpop.f32.mrb[0].mxu0
  %9192 = vdwg.mxu0
  %9193 = vmatprep.subr.mxu0 0.0
  %v9194 = vand.u32 %v8769, 4294901760
  %9195 = vmatpush1.msra.mxu0 %v9194
  %9196 = vmatprep.subr.mxu0 0.0
  %v9197 = vand.u32 %v8770, 4294901760
  %9198 = vmatpush1.msra.mxu0 %v9197
  %9199 = vmatprep.subr.mxu0 0.0
  %v9200 = vand.u32 %v8771, 4294901760
  %9201 = vmatpush1.msra.mxu0 %v9200
  %9202 = vmatprep.subr.mxu0 0.0
  %v9203 = vand.u32 %v8772, 4294901760
  %9204 = vmatpush1.msra.mxu0 %v9203
  %9205 = vmatprep.subr.mxu0 0.0
  %9206 = vmatpush1.msra.mxu0 0.0
  %9207 = vmatprep.subr.mxu0 0.0
  %9208 = vmatpush1.msra.mxu0 0.0
  %9209 = vmatprep.subr.mxu0 0.0
  %9210 = vmatpush1.msra.mxu0 0.0
  %9211 = vmatprep.subr.mxu0 0.0
  %9212 = vmatpush1.msra.mxu0 0.0
  %9213 = vmatprep.subr.mxu0 0.0
  %9214 = vmatpush1.msra.mxu0 0.0
  %9215 = vmatprep.subr.mxu0 0.0
  %9216 = vmatpush1.msra.mxu0 0.0
  %9217 = vmatprep.subr.mxu0 0.0
  %9218 = vmatpush1.msra.mxu0 0.0
  %9219 = vmatprep.subr.mxu0 0.0
  %9220 = vmatpush1.msra.mxu0 0.0
  %9221 = vmatprep.subr.mxu0 0.0
  %9222 = vmatpush1.msra.mxu0 0.0
  %9223 = vmatprep.subr.mxu0 0.0
  %9224 = vmatpush1.msra.mxu0 0.0
  %9225 = vmatprep.subr.mxu0 0.0
  %9226 = vmatpush1.msra.mxu0 0.0
  %9227 = vmatprep.subr.mxu0 0.0
  %9228 = vmatpush1.msra.mxu0 0.0
  %9229 = vmatprep.subr.mxu0 0.0
  %9230 = vmatpush1.msra.mxu0 0.0
  %9231 = vmatprep.subr.mxu0 0.0
  %9232 = vmatpush1.msra.mxu0 0.0
  %9233 = vmatprep.subr.mxu0 0.0
  %9234 = vmatpush1.msra.mxu0 0.0
  %9235 = vmatprep.subr.mxu0 0.0
  %9236 = vmatpush1.msra.mxu0 0.0
  %9237 = vmatprep.subr.mxu0 0.0
  %9238 = vmatpush1.msra.mxu0 0.0
  %9239 = vmatprep.subr.mxu0 0.0
  %9240 = vmatpush1.msra.mxu0 0.0
  %9241 = vmatprep.subr.mxu0 0.0
  %9242 = vmatpush1.msra.mxu0 0.0
  %9243 = vmatprep.subr.mxu0 0.0
  %9244 = vmatpush1.msra.mxu0 0.0
  %9245 = vmatprep.subr.mxu0 0.0
  %9246 = vmatpush1.msra.mxu0 0.0
  %9247 = vmatprep.subr.mxu0 0.0
  %9248 = vmatpush1.msra.mxu0 0.0
  %9249 = vmatprep.subr.mxu0 0.0
  %9250 = vmatpush1.msra.mxu0 0.0
  %9251 = vmatprep.subr.mxu0 0.0
  %9252 = vmatpush1.msra.mxu0 0.0
  %9253 = vmatprep.subr.mxu0 0.0
  %9254 = vmatpush1.msra.mxu0 0.0
  %9255 = vmatprep.subr.mxu0 0.0
  %9256 = vmatpush1.msra.mxu0 0.0
  %9257 = vmatprep.subr.mxu0 0.0
  %9258 = vmatpush1.msra.mxu0 0.0
  %9259 = vmatprep.subr.mxu0 0.0
  %9260 = vmatpush1.msra.mxu0 0.0
  %9261 = vmatprep.mubr.f32.mxu0 0.0
  %v9262 = vand.u32 %v8781, 4294901760
  %9263 = vmatmul.mubr.f32.gmra.mrb[0].mxu0 %v9262
  %v9264 = vpop.f32.mrb[0].mxu0
  %v9265 = vadd.f32 %v9190, %v9264
  %v9266 = vpop.f32.mrb[0].mxu0
  %9267 = vdwg.mxu0
  %v9268 = vmax.f32 %v9265, 0.0
  %v9269 = vld [vmem:[%s9] sm:$0xff]
  %v9270 = vld [vmem:[%s9 + $0x8] sm:$0xff]
  %v9271 = vld [vmem:[%s10] sm:$0x1]
  %v9273 = vlaneseq
  %v9274 = vshrl.u32 %v9273, 7
  %v9275 = vsub.s32 0, %v9274
  %v9276 = vrot.slane %v9271, %v9275
  %v9279 = vsel %vm5475, %v9268, 0
  %9281 = vmatprep.subr.mxu0 0.0
  %v9282 = vand.u32 %v9269, 4294901760
  %9283 = vmatpush1.msra.mxu0 %v9282
  %9284 = vmatprep.subr.mxu0 0.0
  %v9285 = vand.u32 %v9270, 4294901760
  %9286 = vmatpush1.msra.mxu0 %v9285
  %9287 = vmatprep.subr.mxu0 0.0
  %9288 = vmatpush1.msra.mxu0 0.0
  %9289 = vmatprep.subr.mxu0 0.0
  %9290 = vmatpush1.msra.mxu0 0.0
  %9291 = vmatprep.subr.mxu0 0.0
  %9292 = vmatpush1.msra.mxu0 0.0
  %9293 = vmatprep.subr.mxu0 0.0
  %9294 = vmatpush1.msra.mxu0 0.0
  %9295 = vmatprep.subr.mxu0 0.0
  %9296 = vmatpush1.msra.mxu0 0.0
  %9297 = vmatprep.subr.mxu0 0.0
  %9298 = vmatpush1.msra.mxu0 0.0
  %9299 = vmatprep.subr.mxu0 0.0
  %9300 = vmatpush1.msra.mxu0 0.0
  %9301 = vmatprep.subr.mxu0 0.0
  %9302 = vmatpush1.msra.mxu0 0.0
  %9303 = vmatprep.subr.mxu0 0.0
  %9304 = vmatpush1.msra.mxu0 0.0
  %9305 = vmatprep.subr.mxu0 0.0
  %9306 = vmatpush1.msra.mxu0 0.0
  %9307 = vmatprep.subr.mxu0 0.0
  %9308 = vmatpush1.msra.mxu0 0.0
  %9309 = vmatprep.subr.mxu0 0.0
  %9310 = vmatpush1.msra.mxu0 0.0
  %9311 = vmatprep.subr.mxu0 0.0
  %9312 = vmatpush1.msra.mxu0 0.0
  %9313 = vmatprep.subr.mxu0 0.0
  %9314 = vmatpush1.msra.mxu0 0.0
  %9315 = vmatprep.subr.mxu0 0.0
  %9316 = vmatpush1.msra.mxu0 0.0
  %9317 = vmatprep.subr.mxu0 0.0
  %9318 = vmatpush1.msra.mxu0 0.0
  %9319 = vmatprep.subr.mxu0 0.0
  %9320 = vmatpush1.msra.mxu0 0.0
  %9321 = vmatprep.subr.mxu0 0.0
  %9322 = vmatpush1.msra.mxu0 0.0
  %9323 = vmatprep.subr.mxu0 0.0
  %9324 = vmatpush1.msra.mxu0 0.0
  %9325 = vmatprep.subr.mxu0 0.0
  %9326 = vmatpush1.msra.mxu0 0.0
  %9327 = vmatprep.subr.mxu0 0.0
  %9328 = vmatpush1.msra.mxu0 0.0
  %9329 = vmatprep.subr.mxu0 0.0
  %9330 = vmatpush1.msra.mxu0 0.0
  %9331 = vmatprep.subr.mxu0 0.0
  %9332 = vmatpush1.msra.mxu0 0.0
  %9333 = vmatprep.subr.mxu0 0.0
  %9334 = vmatpush1.msra.mxu0 0.0
  %9335 = vmatprep.subr.mxu0 0.0
  %9336 = vmatpush1.msra.mxu0 0.0
  %9337 = vmatprep.subr.mxu0 0.0
  %9338 = vmatpush1.msra.mxu0 0.0
  %9339 = vmatprep.subr.mxu0 0.0
  %9340 = vmatpush1.msra.mxu0 0.0
  %9341 = vmatprep.subr.mxu0 0.0
  %9342 = vmatpush1.msra.mxu0 0.0
  %9343 = vmatprep.subr.mxu0 0.0
  %9344 = vmatpush1.msra.mxu0 0.0
  %9345 = vmatprep.subr.mxu0 0.0
  %9346 = vmatpush1.msra.mxu0 0.0
  %9347 = vmatprep.mubr.f32.mxu0 0.0
  %v9348 = vand.u32 %v9279, 4294901760
  %v9349 = vsub.f32 %v9279, %v9348
  %v9350 = vand.u32 %v9349, 4294901760
  %v9351 = vsub.f32 %v9349, %v9350
  %v9352 = vand.u32 %v9351, 4294901760
  %9353 = vmatmul.mubr.f32.gmra.mrb[0].mxu0 %v9352
  %v9354 = vpop.f32.mrb[0].mxu0
  %v9355 = vadd.f32 %v9276, %v9354
  %v9356 = vpop.f32.mrb[0].mxu0
  %9357 = vdwg.mxu0
  %9358 = vmatprep.subr.mxu0 0.0
  %v9359 = vand.u32 %v9269, 4294901760
  %v9360 = vsub.f32 %v9269, %v9359
  %v9361 = vand.u32 %v9360, 4294901760
  %v9362 = vsub.f32 %v9360, %v9361
  %v9363 = vand.u32 %v9362, 4294901760
  %9364 = vmatpush1.msra.mxu0 %v9363
  %9365 = vmatprep.subr.mxu0 0.0
  %v9366 = vand.u32 %v9270, 4294901760
  %v9367 = vsub.f32 %v9270, %v9366
  %v9368 = vand.u32 %v9367, 4294901760
  %v9369 = vsub.f32 %v9367, %v9368
  %v9370 = vand.u32 %v9369, 4294901760
  %9371 = vmatpush1.msra.mxu0 %v9370
  %9372 = vmatprep.subr.mxu0 0.0
  %9373 = vmatpush1.msra.mxu0 0.0
  %9374 = vmatprep.subr.mxu0 0.0
  %9375 = vmatpush1.msra.mxu0 0.0
  %9376 = vmatprep.subr.mxu0 0.0
  %9377 = vmatpush1.msra.mxu0 0.0
  %9378 = vmatprep.subr.mxu0 0.0
  %9379 = vmatpush1.msra.mxu0 0.0
  %9380 = vmatprep.subr.mxu0 0.0
  %9381 = vmatpush1.msra.mxu0 0.0
  %9382 = vmatprep.subr.mxu0 0.0
  %9383 = vmatpush1.msra.mxu0 0.0
  %9384 = vmatprep.subr.mxu0 0.0
  %9385 = vmatpush1.msra.mxu0 0.0
  %9386 = vmatprep.subr.mxu0 0.0
  %9387 = vmatpush1.msra.mxu0 0.0
  %9388 = vmatprep.subr.mxu0 0.0
  %9389 = vmatpush1.msra.mxu0 0.0
  %9390 = vmatprep.subr.mxu0 0.0
  %9391 = vmatpush1.msra.mxu0 0.0
  %9392 = vmatprep.subr.mxu0 0.0
  %9393 = vmatpush1.msra.mxu0 0.0
  %9394 = vmatprep.subr.mxu0 0.0
  %9395 = vmatpush1.msra.mxu0 0.0
  %9396 = vmatprep.subr.mxu0 0.0
  %9397 = vmatpush1.msra.mxu0 0.0
  %9398 = vmatprep.subr.mxu0 0.0
  %9399 = vmatpush1.msra.mxu0 0.0
  %9400 = vmatprep.subr.mxu0 0.0
  %9401 = vmatpush1.msra.mxu0 0.0
  %9402 = vmatprep.subr.mxu0 0.0
  %9403 = vmatpush1.msra.mxu0 0.0
  %9404 = vmatprep.subr.mxu0 0.0
  %9405 = vmatpush1.msra.mxu0 0.0
  %9406 = vmatprep.subr.mxu0 0.0
  %9407 = vmatpush1.msra.mxu0 0.0
  %9408 = vmatprep.subr.mxu0 0.0
  %9409 = vmatpush1.msra.mxu0 0.0
  %9410 = vmatprep.subr.mxu0 0.0
  %9411 = vmatpush1.msra.mxu0 0.0
  %9412 = vmatprep.subr.mxu0 0.0
  %9413 = vmatpush1.msra.mxu0 0.0
  %9414 = vmatprep.subr.mxu0 0.0
  %9415 = vmatpush1.msra.mxu0 0.0
  %9416 = vmatprep.subr.mxu0 0.0
  %9417 = vmatpush1.msra.mxu0 0.0
  %9418 = vmatprep.subr.mxu0 0.0
  %9419 = vmatpush1.msra.mxu0 0.0
  %9420 = vmatprep.subr.mxu0 0.0
  %9421 = vmatpush1.msra.mxu0 0.0
  %9422 = vmatprep.subr.mxu0 0.0
  %9423 = vmatpush1.msra.mxu0 0.0
  %9424 = vmatprep.subr.mxu0 0.0
  %9425 = vmatpush1.msra.mxu0 0.0
  %9426 = vmatprep.subr.mxu0 0.0
  %9427 = vmatpush1.msra.mxu0 0.0
  %9428 = vmatprep.subr.mxu0 0.0
  %9429 = vmatpush1.msra.mxu0 0.0
  %9430 = vmatprep.subr.mxu0 0.0
  %9431 = vmatpush1.msra.mxu0 0.0
  %9432 = vmatprep.mubr.f32.mxu0 0.0
  %v9433 = vand.u32 %v9279, 4294901760
  %9434 = vmatmul.mubr.f32.gmra.mrb[0].mxu0 %v9433
  %v9435 = vpop.f32.mrb[0].mxu0
  %v9436 = vadd.f32 %v9355, %v9435
  %v9437 = vpop.f32.mrb[0].mxu0
  %9438 = vdwg.mxu0
  %9439 = vmatprep.subr.mxu0 0.0
  %v9440 = vand.u32 %v9269, 4294901760
  %v9441 = vsub.f32 %v9269, %v9440
  %9442 = vmatpush1.msra.mxu0 %v9441
  %9443 = vmatprep.subr.mxu0 0.0
  %v9444 = vand.u32 %v9270, 4294901760
  %v9445 = vsub.f32 %v9270, %v9444
  %9446 = vmatpush1.msra.mxu0 %v9445
  %9447 = vmatprep.subr.mxu0 0.0
  %9448 = vmatpush1.msra.mxu0 0.0
  %9449 = vmatprep.subr.mxu0 0.0
  %9450 = vmatpush1.msra.mxu0 0.0
  %9451 = vmatprep.subr.mxu0 0.0
  %9452 = vmatpush1.msra.mxu0 0.0
  %9453 = vmatprep.subr.mxu0 0.0
  %9454 = vmatpush1.msra.mxu0 0.0
  %9455 = vmatprep.subr.mxu0 0.0
  %9456 = vmatpush1.msra.mxu0 0.0
  %9457 = vmatprep.subr.mxu0 0.0
  %9458 = vmatpush1.msra.mxu0 0.0
  %9459 = vmatprep.subr.mxu0 0.0
  %9460 = vmatpush1.msra.mxu0 0.0
  %9461 = vmatprep.subr.mxu0 0.0
  %9462 = vmatpush1.msra.mxu0 0.0
  %9463 = vmatprep.subr.mxu0 0.0
  %9464 = vmatpush1.msra.mxu0 0.0
  %9465 = vmatprep.subr.mxu0 0.0
  %9466 = vmatpush1.msra.mxu0 0.0
  %9467 = vmatprep.subr.mxu0 0.0
  %9468 = vmatpush1.msra.mxu0 0.0
  %9469 = vmatprep.subr.mxu0 0.0
  %9470 = vmatpush1.msra.mxu0 0.0
  %9471 = vmatprep.subr.mxu0 0.0
  %9472 = vmatpush1.msra.mxu0 0.0
  %9473 = vmatprep.subr.mxu0 0.0
  %9474 = vmatpush1.msra.mxu0 0.0
  %9475 = vmatprep.subr.mxu0 0.0
  %9476 = vmatpush1.msra.mxu0 0.0
  %9477 = vmatprep.subr.mxu0 0.0
  %9478 = vmatpush1.msra.mxu0 0.0
  %9479 = vmatprep.subr.mxu0 0.0
  %9480 = vmatpush1.msra.mxu0 0.0
  %9481 = vmatprep.subr.mxu0 0.0
  %9482 = vmatpush1.msra.mxu0 0.0
  %9483 = vmatprep.subr.mxu0 0.0
  %9484 = vmatpush1.msra.mxu0 0.0
  %9485 = vmatprep.subr.mxu0 0.0
  %9486 = vmatpush1.msra.mxu0 0.0
  %9487 = vmatprep.subr.mxu0 0.0
  %9488 = vmatpush1.msra.mxu0 0.0
  %9489 = vmatprep.subr.mxu0 0.0
  %9490 = vmatpush1.msra.mxu0 0.0
  %9491 = vmatprep.subr.mxu0 0.0
  %9492 = vmatpush1.msra.mxu0 0.0
  %9493 = vmatprep.subr.mxu0 0.0
  %9494 = vmatpush1.msra.mxu0 0.0
  %9495 = vmatprep.subr.mxu0 0.0
  %9496 = vmatpush1.msra.mxu0 0.0
  %9497 = vmatprep.subr.mxu0 0.0
  %9498 = vmatpush1.msra.mxu0 0.0
  %9499 = vmatprep.subr.mxu0 0.0
  %9500 = vmatpush1.msra.mxu0 0.0
  %9501 = vmatprep.subr.mxu0 0.0
  %9502 = vmatpush1.msra.mxu0 0.0
  %9503 = vmatprep.subr.mxu0 0.0
  %9504 = vmatpush1.msra.mxu0 0.0
  %9505 = vmatprep.subr.mxu0 0.0
  %9506 = vmatpush1.msra.mxu0 0.0
  %9507 = vmatprep.mubr.f32.mxu0 0.0
  %v9508 = vand.u32 %v9279, 4294901760
  %v9509 = vsub.f32 %v9279, %v9508
  %9510 = vmatmul.mubr.f32.gmra.mrb[0].mxu0 %v9509
  %v9511 = vpop.f32.mrb[0].mxu0
  %v9512 = vadd.f32 %v9436, %v9511
  %v9513 = vpop.f32.mrb[0].mxu0
  %9514 = vdwg.mxu0
  %9515 = vmatprep.subr.mxu0 0.0
  %v9516 = vand.u32 %v9269, 4294901760
  %9517 = vmatpush1.msra.mxu0 %v9516
  %9518 = vmatprep.subr.mxu0 0.0
  %v9519 = vand.u32 %v9270, 4294901760
  %9520 = vmatpush1.msra.mxu0 %v9519
  %9521 = vmatprep.subr.mxu0 0.0
  %9522 = vmatpush1.msra.mxu0 0.0
  %9523 = vmatprep.subr.mxu0 0.0
  %9524 = vmatpush1.msra.mxu0 0.0
  %9525 = vmatprep.subr.mxu0 0.0
  %9526 = vmatpush1.msra.mxu0 0.0
  %9527 = vmatprep.subr.mxu0 0.0
  %9528 = vmatpush1.msra.mxu0 0.0
  %9529 = vmatprep.subr.mxu0 0.0
  %9530 = vmatpush1.msra.mxu0 0.0
  %9531 = vmatprep.subr.mxu0 0.0
  %9532 = vmatpush1.msra.mxu0 0.0
  %9533 = vmatprep.subr.mxu0 0.0
  %9534 = vmatpush1.msra.mxu0 0.0
  %9535 = vmatprep.subr.mxu0 0.0
  %9536 = vmatpush1.msra.mxu0 0.0
  %9537 = vmatprep.subr.mxu0 0.0
  %9538 = vmatpush1.msra.mxu0 0.0
  %9539 = vmatprep.subr.mxu0 0.0
  %9540 = vmatpush1.msra.mxu0 0.0
  %9541 = vmatprep.subr.mxu0 0.0
  %9542 = vmatpush1.msra.mxu0 0.0
  %9543 = vmatprep.subr.mxu0 0.0
  %9544 = vmatpush1.msra.mxu0 0.0
  %9545 = vmatprep.subr.mxu0 0.0
  %9546 = vmatpush1.msra.mxu0 0.0
  %9547 = vmatprep.subr.mxu0 0.0
  %9548 = vmatpush1.msra.mxu0 0.0
  %9549 = vmatprep.subr.mxu0 0.0
  %9550 = vmatpush1.msra.mxu0 0.0
  %9551 = vmatprep.subr.mxu0 0.0
  %9552 = vmatpush1.msra.mxu0 0.0
  %9553 = vmatprep.subr.mxu0 0.0
  %9554 = vmatpush1.msra.mxu0 0.0
  %9555 = vmatprep.subr.mxu0 0.0
  %9556 = vmatpush1.msra.mxu0 0.0
  %9557 = vmatprep.subr.mxu0 0.0
  %9558 = vmatpush1.msra.mxu0 0.0
  %9559 = vmatprep.subr.mxu0 0.0
  %9560 = vmatpush1.msra.mxu0 0.0
  %9561 = vmatprep.subr.mxu0 0.0
  %9562 = vmatpush1.msra.mxu0 0.0
  %9563 = vmatprep.subr.mxu0 0.0
  %9564 = vmatpush1.msra.mxu0 0.0
  %9565 = vmatprep.subr.mxu0 0.0
  %9566 = vmatpush1.msra.mxu0 0.0
  %9567 = vmatprep.subr.mxu0 0.0
  %9568 = vmatpush1.msra.mxu0 0.0
  %9569 = vmatprep.subr.mxu0 0.0
  %9570 = vmatpush1.msra.mxu0 0.0
  %9571 = vmatprep.subr.mxu0 0.0
  %9572 = vmatpush1.msra.mxu0 0.0
  %9573 = vmatprep.subr.mxu0 0.0
  %9574 = vmatpush1.msra.mxu0 0.0
  %9575 = vmatprep.subr.mxu0 0.0
  %9576 = vmatpush1.msra.mxu0 0.0
  %9577 = vmatprep.subr.mxu0 0.0
  %9578 = vmatpush1.msra.mxu0 0.0
  %9579 = vmatprep.subr.mxu0 0.0
  %9580 = vmatpush1.msra.mxu0 0.0
  %9581 = vmatprep.mubr.f32.mxu0 0.0
  %v9582 = vand.u32 %v9279, 4294901760
  %v9583 = vsub.f32 %v9279, %v9582
  %v9584 = vand.u32 %v9583, 4294901760
  %9585 = vmatmul.mubr.f32.gmra.mrb[0].mxu0 %v9584
  %v9586 = vpop.f32.mrb[0].mxu0
  %v9587 = vadd.f32 %v9512, %v9586
  %v9588 = vpop.f32.mrb[0].mxu0
  %9589 = vdwg.mxu0
  %9590 = vmatprep.subr.mxu0 0.0
  %v9591 = vand.u32 %v9269, 4294901760
  %v9592 = vsub.f32 %v9269, %v9591
  %v9593 = vand.u32 %v9592, 4294901760
  %9594 = vmatpush1.msra.mxu0 %v9593
  %9595 = vmatprep.subr.mxu0 0.0
  %v9596 = vand.u32 %v9270, 4294901760
  %v9597 = vsub.f32 %v9270, %v9596
  %v9598 = vand.u32 %v9597, 4294901760
  %9599 = vmatpush1.msra.mxu0 %v9598
  %9600 = vmatprep.subr.mxu0 0.0
  %9601 = vmatpush1.msra.mxu0 0.0
  %9602 = vmatprep.subr.mxu0 0.0
  %9603 = vmatpush1.msra.mxu0 0.0
  %9604 = vmatprep.subr.mxu0 0.0
  %9605 = vmatpush1.msra.mxu0 0.0
  %9606 = vmatprep.subr.mxu0 0.0
  %9607 = vmatpush1.msra.mxu0 0.0
  %9608 = vmatprep.subr.mxu0 0.0
  %9609 = vmatpush1.msra.mxu0 0.0
  %9610 = vmatprep.subr.mxu0 0.0
  %9611 = vmatpush1.msra.mxu0 0.0
  %9612 = vmatprep.subr.mxu0 0.0
  %9613 = vmatpush1.msra.mxu0 0.0
  %9614 = vmatprep.subr.mxu0 0.0
  %9615 = vmatpush1.msra.mxu0 0.0
  %9616 = vmatprep.subr.mxu0 0.0
  %9617 = vmatpush1.msra.mxu0 0.0
  %9618 = vmatprep.subr.mxu0 0.0
  %9619 = vmatpush1.msra.mxu0 0.0
  %9620 = vmatprep.subr.mxu0 0.0
  %9621 = vmatpush1.msra.mxu0 0.0
  %9622 = vmatprep.subr.mxu0 0.0
  %9623 = vmatpush1.msra.mxu0 0.0
  %9624 = vmatprep.subr.mxu0 0.0
  %9625 = vmatpush1.msra.mxu0 0.0
  %9626 = vmatprep.subr.mxu0 0.0
  %9627 = vmatpush1.msra.mxu0 0.0
  %9628 = vmatprep.subr.mxu0 0.0
  %9629 = vmatpush1.msra.mxu0 0.0
  %9630 = vmatprep.subr.mxu0 0.0
  %9631 = vmatpush1.msra.mxu0 0.0
  %9632 = vmatprep.subr.mxu0 0.0
  %9633 = vmatpush1.msra.mxu0 0.0
  %9634 = vmatprep.subr.mxu0 0.0
  %9635 = vmatpush1.msra.mxu0 0.0
  %9636 = vmatprep.subr.mxu0 0.0
  %9637 = vmatpush1.msra.mxu0 0.0
  %9638 = vmatprep.subr.mxu0 0.0
  %9639 = vmatpush1.msra.mxu0 0.0
  %9640 = vmatprep.subr.mxu0 0.0
  %9641 = vmatpush1.msra.mxu0 0.0
  %9642 = vmatprep.subr.mxu0 0.0
  %9643 = vmatpush1.msra.mxu0 0.0
  %9644 = vmatprep.subr.mxu0 0.0
  %9645 = vmatpush1.msra.mxu0 0.0
  %9646 = vmatprep.subr.mxu0 0.0
  %9647 = vmatpush1.msra.mxu0 0.0
  %9648 = vmatprep.subr.mxu0 0.0
  %9649 = vmatpush1.msra.mxu0 0.0
  %9650 = vmatprep.subr.mxu0 0.0
  %9651 = vmatpush1.msra.mxu0 0.0
  %9652 = vmatprep.subr.mxu0 0.0
  %9653 = vmatpush1.msra.mxu0 0.0
  %9654 = vmatprep.subr.mxu0 0.0
  %9655 = vmatpush1.msra.mxu0 0.0
  %9656 = vmatprep.subr.mxu0 0.0
  %9657 = vmatpush1.msra.mxu0 0.0
  %9658 = vmatprep.subr.mxu0 0.0
  %9659 = vmatpush1.msra.mxu0 0.0
  %9660 = vmatprep.mubr.f32.mxu0 0.0
  %v9661 = vand.u32 %v9279, 4294901760
  %9662 = vmatmul.mubr.f32.gmra.mrb[0].mxu0 %v9661
  %v9663 = vpop.f32.mrb[0].mxu0
  %v9664 = vadd.f32 %v9587, %v9663
  %v9665 = vpop.f32.mrb[0].mxu0
  %9666 = vdwg.mxu0
  %9667 = vmatprep.subr.mxu0 0.0
  %v9668 = vand.u32 %v9269, 4294901760
  %9669 = vmatpush1.msra.mxu0 %v9668
  %9670 = vmatprep.subr.mxu0 0.0
  %v9671 = vand.u32 %v9270, 4294901760
  %9672 = vmatpush1.msra.mxu0 %v9671
  %9673 = vmatprep.subr.mxu0 0.0
  %9674 = vmatpush1.msra.mxu0 0.0
  %9675 = vmatprep.subr.mxu0 0.0
  %9676 = vmatpush1.msra.mxu0 0.0
  %9677 = vmatprep.subr.mxu0 0.0
  %9678 = vmatpush1.msra.mxu0 0.0
  %9679 = vmatprep.subr.mxu0 0.0
  %9680 = vmatpush1.msra.mxu0 0.0
  %9681 = vmatprep.subr.mxu0 0.0
  %9682 = vmatpush1.msra.mxu0 0.0
  %9683 = vmatprep.subr.mxu0 0.0
  %9684 = vmatpush1.msra.mxu0 0.0
  %9685 = vmatprep.subr.mxu0 0.0
  %9686 = vmatpush1.msra.mxu0 0.0
  %9687 = vmatprep.subr.mxu0 0.0
  %9688 = vmatpush1.msra.mxu0 0.0
  %9689 = vmatprep.subr.mxu0 0.0
  %9690 = vmatpush1.msra.mxu0 0.0
  %9691 = vmatprep.subr.mxu0 0.0
  %9692 = vmatpush1.msra.mxu0 0.0
  %9693 = vmatprep.subr.mxu0 0.0
  %9694 = vmatpush1.msra.mxu0 0.0
  %9695 = vmatprep.subr.mxu0 0.0
  %9696 = vmatpush1.msra.mxu0 0.0
  %9697 = vmatprep.subr.mxu0 0.0
  %9698 = vmatpush1.msra.mxu0 0.0
  %9699 = vmatprep.subr.mxu0 0.0
  %9700 = vmatpush1.msra.mxu0 0.0
  %9701 = vmatprep.subr.mxu0 0.0
  %9702 = vmatpush1.msra.mxu0 0.0
  %9703 = vmatprep.subr.mxu0 0.0
  %9704 = vmatpush1.msra.mxu0 0.0
  %9705 = vmatprep.subr.mxu0 0.0
  %9706 = vmatpush1.msra.mxu0 0.0
  %9707 = vmatprep.subr.mxu0 0.0
  %9708 = vmatpush1.msra.mxu0 0.0
  %9709 = vmatprep.subr.mxu0 0.0
  %9710 = vmatpush1.msra.mxu0 0.0
  %9711 = vmatprep.subr.mxu0 0.0
  %9712 = vmatpush1.msra.mxu0 0.0
  %9713 = vmatprep.subr.mxu0 0.0
  %9714 = vmatpush1.msra.mxu0 0.0
  %9715 = vmatprep.subr.mxu0 0.0
  %9716 = vmatpush1.msra.mxu0 0.0
  %9717 = vmatprep.subr.mxu0 0.0
  %9718 = vmatpush1.msra.mxu0 0.0
  %9719 = vmatprep.subr.mxu0 0.0
  %9720 = vmatpush1.msra.mxu0 0.0
  %9721 = vmatprep.subr.mxu0 0.0
  %9722 = vmatpush1.msra.mxu0 0.0
  %9723 = vmatprep.subr.mxu0 0.0
  %9724 = vmatpush1.msra.mxu0 0.0
  %9725 = vmatprep.subr.mxu0 0.0
  %9726 = vmatpush1.msra.mxu0 0.0
  %9727 = vmatprep.subr.mxu0 0.0
  %9728 = vmatpush1.msra.mxu0 0.0
  %9729 = vmatprep.subr.mxu0 0.0
  %9730 = vmatpush1.msra.mxu0 0.0
  %9731 = vmatprep.subr.mxu0 0.0
  %9732 = vmatpush1.msra.mxu0 0.0
  %9733 = vmatprep.mubr.f32.mxu0 0.0
  %v9734 = vand.u32 %v9279, 4294901760
  %9735 = vmatmul.mubr.f32.gmra.mrb[0].mxu0 %v9734
  %v9736 = vpop.f32.mrb[0].mxu0
  %v9737 = vadd.f32 %v9664, %v9736
  %v9738 = vpop.f32.mrb[0].mxu0
  %9739 = vdwg.mxu0
  %9740 = vst [vmem:[%s11] sm:$0xff] %v9737
  // Predicated region
  $region46: #{fashion_classifier_forward.1} parent=0 // pred_check
    _
  $region47: #{fashion_classifier_forward.1} parent=0 // pred_check_branch
    %9742 = sbr.rel (0) target = $region49
  $region48: #{fashion_classifier_forward.1} parent=0 // pred_region
    _
  $region49: #{fashion_classifier_forward.1} parent=0 // pred_fallthru
    _
  // Predicated region
  $region50: #{fashion_classifier_forward.1} parent=0 // pred_check
    _
  $region51: #{fashion_classifier_forward.1} parent=0 // pred_check_branch
    %9744 = sbr.rel (0) target = $region53
  $region52: #{fashion_classifier_forward.1} parent=0 // pred_region
    _
  $region53: #{fashion_classifier_forward.1} parent=0 // pred_fallthru
    _

</llo_original>
